<compile_context>
chip_gen: v6e
topology: v6e:2x2x1
jax: 0.10.0
libtpu: 0.0.40
codegen_flags: <defaults>
</compile_context>

<pallas_src>
import jax
import jax.numpy as jnp
from jax.experimental import pallas as pl
from jax.experimental.pallas import tpu as pltpu


def _round_up(n, m):
    return ((n + m - 1) // m) * m


def _cdiv(a, b):
    return -(-a // b)


# ---------------------------------------------------------------------------
# Pure-JAX reference ops — used ONLY for init-time folding and the sanity
# check in __main__.  The runtime forward is a single Pallas kernel.
# ---------------------------------------------------------------------------
def _conv2d_ref(x, w, b, stride, pad):
    y = jax.lax.conv_general_dilated(
        x, w, window_strides=(stride, stride),
        padding=[(pad, pad), (pad, pad)],
        dimension_numbers=("NCHW", "OIHW", "NCHW"))
    return y + b[None, :, None, None]


def _avgpool_ref(x, k, stride, pad):
    # PyTorch AvgPool2d default count_include_pad=True -> always divide by k*k.
    s = jax.lax.reduce_window(
        x, jnp.array(0.0, x.dtype), jax.lax.add,
        (1, 1, k, k), (1, 1, stride, stride),
        [(0, 0), (0, 0), (pad, pad), (pad, pad)])
    return s / float(k * k)


def _fold_doconv(W_do, D_do, kh=5, kw=5):
    # DOConv2d forward-time folding.  For D_mul < kh*kw the reference module's
    # d_diag is identically zero, so DoW is exactly this einsum.  If D_mul were
    # ever == kh*kw the identity diag would have to be added to D first.
    D_mul = W_do.shape[2]
    assert D_mul < kh * kw, "fold assumes d_diag == 0 (requires D_mul < kh*kw)"
    o, i = W_do.shape[0], W_do.shape[1]
    return jnp.einsum("ims,ois->oim", D_do, W_do).reshape(o, i, kh, kw)


def net_reference(params, x):
    """Straight port of the PyTorch forward (NCHW), for correctness checking."""
    w2_eff = _fold_doconv(params["W_do"], params["D_do"])
    y = _conv2d_ref(x, params["w1"], params["b1"], 2, 1)
    y = 0.125 * y * y + 0.5 * y + 0.25
    y = _avgpool_ref(y, 3, 2, 1)
    y = _conv2d_ref(y, w2_eff, params["b2"], 1, 0)
    y = _avgpool_ref(y, 3, 2, 1)
    y = y.reshape(y.shape[0], -1)
    y = y @ params["wf1"].T + params["bf1"]
    y = 0.125 * y * y + 0.5 * y + 0.25
    return y @ params["wf2"].T + params["bf2"]


# ---------------------------------------------------------------------------
# Init-time folding (hoisted weight prep — never in the hot path).
# ---------------------------------------------------------------------------
def _affine_from_fn(fn, in_dim):
    """fn maps a batch (N, in_dim) -> (N, out_dim) affinely; return (A, b)."""
    b = fn(jnp.zeros((1, in_dim), jnp.float32))[0]
    A = fn(jnp.eye(in_dim, dtype=jnp.float32)) - b[None, :]
    return A, b


def prepare_folded_params(params):
    w1, b1 = params["w1"], params["b1"]
    b2 = params["b2"]
    wf1, bf1 = params["wf1"], params["bf1"]
    wf2, bf2 = params["wf2"], params["bf2"]
    w2_eff = _fold_doconv(params["W_do"], params["D_do"])

    def stage1(xb):                                      # (N, 784) -> (N, 3380)
        x = xb.reshape(-1, 1, 28, 28)
        y = _conv2d_ref(x, w1, b1, stride=2, pad=1)      # (N, 20, 13, 13)
        return y.transpose(0, 2, 3, 1).reshape(xb.shape[0], 13 * 13 * 20)

    def stage2(yb):                                      # (N, 3380) -> (N, hidden)
        y = yb.reshape(-1, 13, 13, 20).transpose(0, 3, 1, 2)
        y = _avgpool_ref(y, 3, 2, 1)                     # (N, 20, 7, 7)
        y = _conv2d_ref(y, w2_eff, b2, stride=1, pad=0)  # (N, 50, 3, 3)
        y = _avgpool_ref(y, 3, 2, 1)                     # (N, 50, 2, 2)
        flat = y.reshape(y.shape[0], -1)                 # (N, 200) torch.flatten order
        return flat @ wf1.T + bf1

    A1, c1 = _affine_from_fn(stage1, 28 * 28)            # (784, 3380)
    A2, c2 = _affine_from_fn(stage2, 13 * 13 * 20)       # (3380, hidden)
    A3, c3 = wf2.T, bf2                                  # (hidden, out)

    d1, hid, out = A1.shape[1], A2.shape[1], A3.shape[1]
    d1p, hidp, outp = _round_up(d1, 128), _round_up(hid, 128), _round_up(out, 128)

    # Zero-pad every matmul output dim to a multiple of 128 (lane-dense,
    # unmasked stores).
    #
    # INVARIANT (do not break): the padded lanes of the first two matmul
    # outputs become poly(0) = 0.25 after the activation, NOT zero.  They only
    # stay out of the result because the corresponding ROWS of A2p / A3p are
    # zero.  Any change to the padding or to the poly/padding order must keep
    # those rows zero.
    A1p = jnp.zeros((A1.shape[0], d1p), jnp.float32).at[:, :d1].set(A1)
    A2p = jnp.zeros((d1p, hidp), jnp.float32).at[:d1, :hid].set(A2)
    A3p = jnp.zeros((hidp, outp), jnp.float32).at[:hid, :out].set(A3)
    c1p = jnp.zeros((1, d1p), jnp.float32).at[0, :d1].set(c1)
    c2p = jnp.zeros((1, hidp), jnp.float32).at[0, :hid].set(c2)
    c3p = jnp.zeros((1, outp), jnp.float32).at[0, :out].set(c3)

    # A1/A2 live in VMEM as bf16 (MXU-native); A3 (fc2) stays f32 — its MXU
    # cost is negligible and it tightens final-layer accuracy.  Biases f32.
    folded = dict(A1=A1p.astype(jnp.bfloat16), A2=A2p.astype(jnp.bfloat16),
                  A3=A3p, b1=c1p, b2=c2p, b3=c3p)
    return folded, out


# ---------------------------------------------------------------------------
# Fused Pallas kernel: the whole forward in one call, weights VMEM-resident.
# ---------------------------------------------------------------------------
def _fused_net_kernel(x_ref, a1_ref, b1_ref, a2_ref, b2_ref, a3_ref, b3_ref, o_ref):
    # conv1 (folded) + polynomial activation (f32 epilogue — v5e safe).
    y = jnp.dot(x_ref[...].astype(jnp.bfloat16), a1_ref[...],
                preferred_element_type=jnp.float32) + b1_ref[...]
    y = y * (0.125 * y + 0.5) + 0.25
    # pool1 -> DO-conv2 -> pool2 -> flatten -> fc1 (folded) + polynomial act.
    h = jnp.dot(y.astype(jnp.bfloat16), a2_ref[...],
                preferred_element_type=jnp.float32) + b2_ref[...]
    h = h * (0.125 * h + 0.5) + 0.25
    # fc2 in f32 (tiny 128x128 matmul; accuracy > speed here).
    o = jnp.dot(h, a3_ref[...], preferred_element_type=jnp.float32) + b3_ref[...]
    o_ref[...] = o.astype(o_ref.dtype)


def make_net_forward(params, batch_tile=512):
    folded, out_dim = prepare_folded_params(params)
    a1, a2, a3 = folded["A1"], folded["A2"], folded["A3"]
    b1, b2, b3 = folded["b1"], folded["b2"], folded["b3"]
    in_dim, d1p = a1.shape
    hidp, outp = a3.shape

    weight_bytes = int(a1.size * 2 + a2.size * 2 + a3.size * 4
                       + (b1.size + b2.size + b3.size) * 4)
    flops_per_row = 2 * (in_dim * d1p + d1p * hidp + hidp * outp)

    def forward(x):
        B = x.shape[0]
        xf = x.reshape(B, -1).astype(jnp.float32)
        assert xf.shape[1] == in_dim, xf.shape

        # --- batch tiling ---------------------------------------------------
        #  * bt is a multiple of 16 rows (bf16 sublane packing of the MXU LHS).
        #  * >= 2 grid steps whenever B > 16 so both v7x TensorCores get work
        #    under dimension_semantics=("parallel",); costs nothing on the
        #    single-TC v5e/v6e (just one more ~0.35 us grid step).
        #  * bt capped at batch_tile (default 512): per-step MXU work is then
        #    ~3.2 GFLOP, comfortably amortizing per-step pipeline overhead and
        #    the A1 RHS pushes, with ~23 MiB total VMEM residency.
        n_tiles = max(_cdiv(B, batch_tile), 2) if B > 16 else 1
        bt = _round_up(_cdiv(B, n_tiles), 16)
        bpad = n_tiles * bt
        if bpad != B:
            # Tail-only zeros block; no copy at all when B already tiles
            # evenly (the common large-batch case).
            xf = jnp.concatenate(
                [xf, jnp.zeros((bpad - B, in_dim), xf.dtype)], axis=0)

        # --- VMEM budget (review item: re-derive for v7x's 64 MiB/TC) --------
        # double-buffered streamed tiles + double-buffered resident weights +
        # f32 intermediates, plus margin; capped at 48 MiB (safe on all gens).
        vmem_est = (2 * bt * (in_dim + outp) * 4        # x / out tiles (x2 buf)
                    + 2 * weight_bytes                  # resident weights (x2 buf)
                    + bt * (d1p + hidp) * 4)            # f32 y / h intermediates
        vmem_limit = int(min(vmem_est + (8 << 20), 48 << 20))

        cost = pl.CostEstimate(
            flops=int(bpad * flops_per_row),
            transcendentals=0,
            bytes_accessed=int(bpad * (in_dim + outp) * 4 + weight_bytes))

        out = pl.pallas_call(
            _fused_net_kernel,
            out_shape=jax.ShapeDtypeStruct((bpad, outp), jnp.float32),
            grid=(n_tiles,),
            in_specs=[
                pl.BlockSpec((bt, in_dim), lambda i: (i, 0)),    # x tile (streamed)
                pl.BlockSpec((in_dim, d1p), lambda i: (0, 0)),   # A1 (resident)
                pl.BlockSpec((1, d1p), lambda i: (0, 0)),        # b1
                pl.BlockSpec((d1p, hidp), lambda i: (0, 0)),     # A2 (resident)
                pl.BlockSpec((1, hidp), lambda i: (0, 0)),       # b2
                pl.BlockSpec((hidp, outp), lambda i: (0, 0)),    # A3 (resident, f32)
                pl.BlockSpec((1, outp), lambda i: (0, 0)),       # b3
            ],
            out_specs=pl.BlockSpec((bt, outp), lambda i: (i, 0)),
            compiler_params=pltpu.CompilerParams(
                dimension_semantics=("parallel",),
                vmem_limit_bytes=vmem_limit),
            cost_estimate=cost,
        )(xf, a1, b1, a2, b2, a3, b3)

        return out[:B, :out_dim]

    return jax.jit(forward)


# ---------------------------------------------------------------------------
# Parameters (deterministic, synthetic; shapes follow the PyTorch __init__)
# ---------------------------------------------------------------------------
def init_params(key, hidden=100, output=10):
    ks = jax.random.split(key, 8)
    # conv1: Conv2d(1, 20, 5), kaiming-normal (std = sqrt(2 / fan_in))
    w1 = jax.random.normal(ks[0], (20, 1, 5, 5), jnp.float32) * jnp.sqrt(2.0 / 25.0)
    b1 = jax.random.uniform(ks[1], (20,), jnp.float32, -0.2, 0.2)
    # conv2: DOConv2d(20, 50, 5, D_mul=1) -> W: (50, 20, 1), D: (20, 25, 1)
    W_do = jax.random.normal(ks[2], (50, 20, 1), jnp.float32) * jnp.sqrt(2.0 / 500.0)
    D_do = jax.random.normal(ks[3], (20, 25, 1), jnp.float32) * 0.2
    b2 = jax.random.uniform(ks[4], (50,), jnp.float32, -0.05, 0.05)
    # fc1: Linear(200, hidden), fc2: Linear(hidden, output)
    wf1 = jax.random.uniform(ks[5], (hidden, 200), jnp.float32,
                             -1 / jnp.sqrt(200.0), 1 / jnp.sqrt(200.0))
    bf1 = jnp.zeros((hidden,), jnp.float32)
    wf2 = jax.random.uniform(ks[6], (output, hidden), jnp.float32,
                             -1 / jnp.sqrt(float(hidden)), 1 / jnp.sqrt(float(hidden)))
    bf2 = jnp.zeros((output,), jnp.float32)
    return dict(w1=w1, b1=b1, W_do=W_do, D_do=D_do, b2=b2,
                wf1=wf1, bf1=bf1, wf2=wf2, bf2=bf2)


if __name__ == "__main__":
    key = jax.random.PRNGKey(0)
    pkey, xkey = jax.random.split(key)
    params = init_params(pkey, hidden=100, output=10)

    # MNIST-like input: fc1(200) forces 1x28x28 spatial.
    x = jax.random.normal(xkey, (2, 1, 28, 28), jnp.float32)

    forward = make_net_forward(params)
    out = jax.block_until_ready(forward(x))
    assert out.shape == (2, 10), out.shape

    # Sanity-check the fused/folded Pallas forward against a plain-JAX port of
    # the PyTorch module (bf16 MXU inputs -> loose tolerance).
    ref = net_reference(params, x)
    max_err = float(jnp.max(jnp.abs(out - ref)))
    assert max_err < 0.1, max_err

    # Also exercise the multi-tile (>16 rows, 2 "parallel" grid steps) path.
    x_big = jax.random.normal(xkey, (40, 1, 28, 28), jnp.float32)
    out_big = jax.block_until_ready(forward(x_big))
    assert out_big.shape == (40, 10), out_big.shape
    ref_big = net_reference(params, x_big)
    assert float(jnp.max(jnp.abs(out_big - ref_big))) < 0.1

    print("KERNEL_OK")
</pallas_src>

<mosaic_0001>
module attributes {stable_mosaic.version = 11 : i64} {
  func.func @_fused_net_kernel(%arg0: i32, %arg1: memref<16x784xf32, #tpu.memory_space<vmem>>, %arg2: memref<784x3456xbf16, #tpu.memory_space<vmem>>, %arg3: memref<1x3456xf32, #tpu.memory_space<vmem>>, %arg4: memref<3456x128xbf16, #tpu.memory_space<vmem>>, %arg5: memref<1x128xf32, #tpu.memory_space<vmem>>, %arg6: memref<128x128xf32, #tpu.memory_space<vmem>>, %arg7: memref<1x128xf32, #tpu.memory_space<vmem>>, %arg8: memref<16x128xf32, #tpu.memory_space<vmem>>) attributes {dimension_semantics = [#tpu.dimension_semantics<parallel>], iteration_bounds = array<i64: 1>, scalar_prefetch = 0 : i64, scratch_operands = 0 : i64, tpu.core_type = #tpu.core_type<tc>, window_params = [{transform_indices = @transform_0, window_bounds = array<i64: 16, 784>}, {pipeline_mode = #tpu.pipeline_mode<synchronous>, transform_indices = @transform_1, window_bounds = array<i64: 784, 3456>}, {pipeline_mode = #tpu.pipeline_mode<synchronous>, transform_indices = @transform_2, window_bounds = array<i64: 1, 3456>}, {pipeline_mode = #tpu.pipeline_mode<synchronous>, transform_indices = @transform_3, window_bounds = array<i64: 3456, 128>}, {pipeline_mode = #tpu.pipeline_mode<synchronous>, transform_indices = @transform_4, window_bounds = array<i64: 1, 128>}, {pipeline_mode = #tpu.pipeline_mode<synchronous>, transform_indices = @transform_5, window_bounds = array<i64: 128, 128>}, {pipeline_mode = #tpu.pipeline_mode<synchronous>, transform_indices = @transform_6, window_bounds = array<i64: 1, 128>}, {transform_indices = @transform_7, window_bounds = array<i64: 16, 128>}]} {
    %c0 = arith.constant 0 : index
    %c0_0 = arith.constant 0 : index
    %0 = vector.load %arg1[%c0, %c0_0] : memref<16x784xf32, #tpu.memory_space<vmem>>, vector<16x784xf32>
    %1 = arith.truncf %0 : vector<16x784xf32> to vector<16x784xbf16>
    %c0_1 = arith.constant 0 : index
    %c0_2 = arith.constant 0 : index
    %2 = vector.load %arg2[%c0_1, %c0_2] : memref<784x3456xbf16, #tpu.memory_space<vmem>>, vector<784x3456xbf16>
    %cst = arith.constant dense<0.000000e+00> : vector<16x3456xf32>
    %3 = tpu.matmul %1, %2, %cst {dimension_numbers = #tpu.dot_dimension_numbers<[1], [0], [0], [1], [0, 0, 1, 1], [], []>} : vector<16x784xbf16>, vector<784x3456xbf16>, vector<16x3456xf32> -> vector<16x3456xf32>
    %c0_3 = arith.constant 0 : index
    %c0_4 = arith.constant 0 : index
    %4 = vector.load %arg3[%c0_3, %c0_4] : memref<1x3456xf32, #tpu.memory_space<vmem>>, vector<1x3456xf32>
    %5 = vector.broadcast %4 : vector<1x3456xf32> to vector<16x3456xf32>
    %6 = arith.addf %3, %5 : vector<16x3456xf32>
    %cst_5 = arith.constant 1.250000e-01 : f32
    %7 = vector.broadcast %cst_5 : f32 to vector<16x3456xf32>
    %8 = arith.mulf %7, %6 : vector<16x3456xf32>
    %cst_6 = arith.constant 5.000000e-01 : f32
    %9 = vector.broadcast %cst_6 : f32 to vector<16x3456xf32>
    %10 = arith.addf %8, %9 : vector<16x3456xf32>
    %11 = arith.mulf %6, %10 : vector<16x3456xf32>
    %cst_7 = arith.constant 2.500000e-01 : f32
    %12 = vector.broadcast %cst_7 : f32 to vector<16x3456xf32>
    %13 = arith.addf %11, %12 : vector<16x3456xf32>
    %14 = arith.truncf %13 : vector<16x3456xf32> to vector<16x3456xbf16>
    %c0_8 = arith.constant 0 : index
    %c0_9 = arith.constant 0 : index
    %15 = vector.load %arg4[%c0_8, %c0_9] : memref<3456x128xbf16, #tpu.memory_space<vmem>>, vector<3456x128xbf16>
    %cst_10 = arith.constant dense<0.000000e+00> : vector<16x128xf32>
    %16 = tpu.matmul %14, %15, %cst_10 {dimension_numbers = #tpu.dot_dimension_numbers<[1], [0], [0], [1], [0, 0, 1, 1], [], []>} : vector<16x3456xbf16>, vector<3456x128xbf16>, vector<16x128xf32> -> vector<16x128xf32>
    %c0_11 = arith.constant 0 : index
    %c0_12 = arith.constant 0 : index
    %17 = vector.load %arg5[%c0_11, %c0_12] : memref<1x128xf32, #tpu.memory_space<vmem>>, vector<1x128xf32>
    %18 = vector.broadcast %17 : vector<1x128xf32> to vector<16x128xf32>
    %19 = arith.addf %16, %18 : vector<16x128xf32>
    %cst_13 = arith.constant 1.250000e-01 : f32
    %20 = vector.broadcast %cst_13 : f32 to vector<16x128xf32>
    %21 = arith.mulf %20, %19 : vector<16x128xf32>
    %cst_14 = arith.constant 5.000000e-01 : f32
    %22 = vector.broadcast %cst_14 : f32 to vector<16x128xf32>
    %23 = arith.addf %21, %22 : vector<16x128xf32>
    %24 = arith.mulf %19, %23 : vector<16x128xf32>
    %cst_15 = arith.constant 2.500000e-01 : f32
    %25 = vector.broadcast %cst_15 : f32 to vector<16x128xf32>
    %26 = arith.addf %24, %25 : vector<16x128xf32>
    %c0_16 = arith.constant 0 : index
    %c0_17 = arith.constant 0 : index
    %27 = vector.load %arg6[%c0_16, %c0_17] : memref<128x128xf32, #tpu.memory_space<vmem>>, vector<128x128xf32>
    %cst_18 = arith.constant dense<0.000000e+00> : vector<16x128xf32>
    %28 = tpu.matmul %26, %27, %cst_18 {dimension_numbers = #tpu.dot_dimension_numbers<[1], [0], [0], [1], [0, 0, 1, 1], [], []>} : vector<16x128xf32>, vector<128x128xf32>, vector<16x128xf32> -> vector<16x128xf32>
    %c0_19 = arith.constant 0 : index
    %c0_20 = arith.constant 0 : index
    %29 = vector.load %arg7[%c0_19, %c0_20] : memref<1x128xf32, #tpu.memory_space<vmem>>, vector<1x128xf32>
    %30 = vector.broadcast %29 : vector<1x128xf32> to vector<16x128xf32>
    %31 = arith.addf %28, %30 : vector<16x128xf32>
    %c0_21 = arith.constant 0 : index
    %c0_22 = arith.constant 0 : index
    %32 = vector.load %arg8[%c0_21, %c0_22] : memref<16x128xf32, #tpu.memory_space<vmem>>, vector<16x128xf32>
    tpu.vector_store %arg8[%c0_21, %c0_22], %31 {strides = array<i32>} : memref<16x128xf32, #tpu.memory_space<vmem>>, vector<16x128xf32>,
    return
  }
  func.func @transform_0(%arg0: i32) -> (i32, i32) {
    %c0_i32 = arith.constant 0 : i32
    %c0_i32_0 = arith.constant 0 : i32
    return %arg0, %c0_i32 : i32, i32
  }
  func.func @transform_1(%arg0: i32) -> (i32, i32) {
    %c0_i32 = arith.constant 0 : i32
    %c0_i32_0 = arith.constant 0 : i32
    %c0_i32_1 = arith.constant 0 : i32
    return %c0_i32, %c0_i32_0 : i32, i32
  }
  func.func @transform_2(%arg0: i32) -> (i32, i32) {
    %c0_i32 = arith.constant 0 : i32
    %c0_i32_0 = arith.constant 0 : i32
    %c0_i32_1 = arith.constant 0 : i32
    return %c0_i32, %c0_i32_0 : i32, i32
  }
  func.func @transform_3(%arg0: i32) -> (i32, i32) {
    %c0_i32 = arith.constant 0 : i32
    %c0_i32_0 = arith.constant 0 : i32
    %c0_i32_1 = arith.constant 0 : i32
    return %c0_i32, %c0_i32_0 : i32, i32
  }
  func.func @transform_4(%arg0: i32) -> (i32, i32) {
    %c0_i32 = arith.constant 0 : i32
    %c0_i32_0 = arith.constant 0 : i32
    %c0_i32_1 = arith.constant 0 : i32
    return %c0_i32, %c0_i32_0 : i32, i32
  }
  func.func @transform_5(%arg0: i32) -> (i32, i32) {
    %c0_i32 = arith.constant 0 : i32
    %c0_i32_0 = arith.constant 0 : i32
    %c0_i32_1 = arith.constant 0 : i32
    return %c0_i32, %c0_i32_0 : i32, i32
  }
  func.func @transform_6(%arg0: i32) -> (i32, i32) {
    %c0_i32 = arith.constant 0 : i32
    %c0_i32_0 = arith.constant 0 : i32
    %c0_i32_1 = arith.constant 0 : i32
    return %c0_i32, %c0_i32_0 : i32, i32
  }
  func.func @transform_7(%arg0: i32) -> (i32, i32) {
    %c0_i32 = arith.constant 0 : i32
    %c0_i32_0 = arith.constant 0 : i32
    return %arg0, %c0_i32 : i32, i32
  }
}

</mosaic_0001>

<llo_original>
// kernel: forward.1
$region0: #{forward.1}
  #allocation0 [shape = 'u32[]', space=smem, size = 0x4, offset = 0x4, fixed_abs, tag = 'smem constant byte address 0x4 - core index']
  #allocation1 [shape = 'u32[144,128]{1,0:T(1,128)}', space=vmem, size = 0x12000, scoped, tag = 'internal scratch']
  %s0 = inlined_call_operand.vmem [shape: f32[16,784], index: 0, kind: input, shape index: {}]
  %s1 = inlined_call_operand.hbm [shape: bf16[784,3456], index: 1, kind: input, shape index: {}]
  %s2 = inlined_call_operand.hbm [shape: f32[1,3456], index: 2, kind: input, shape index: {}]
  %s3 = inlined_call_operand.hbm [shape: bf16[3456,128], index: 3, kind: input, shape index: {}]
  %s4 = inlined_call_operand.hbm [shape: f32[1,128], index: 4, kind: input, shape index: {}]
  %s5 = inlined_call_operand.hbm [shape: f32[128,128], index: 5, kind: input, shape index: {}]
  %s6 = inlined_call_operand.vmem [shape: f32[1,128], index: 6, kind: input, shape index: {}]
  %s7 = inlined_call_operand.vmem [shape: f32[16,128], index: 7, kind: output, shape index: {}]
  %s8 = sld [smem:[#allocation0]]
  $region58: #{forward.1} parent=0
    _
  %s10 = ssub.s32 1, %s8
  %s11 = scalar_select 0, %s10, %s8
  $region1: #{forward.1} parent=0
    #allocation2 [shape = 'u8[5419008]{0}', space=vmem, size = 0x52b000, scoped, tag = 'input window, operand 1, single buffered']
    #allocation3 [shape = 's32[1]{0}', space=sflag, size = 0x4, scoped, tag = 'scoped memory for forward.1']
    #allocation4 [shape = 'u8[13824]{0}', space=vmem, size = 0x3800, scoped, tag = 'input window, operand 2, single buffered']
    #allocation5 [shape = 's32[1]{0}', space=sflag, size = 0x4, scoped, tag = 'scoped memory for forward.1']
    #allocation6 [shape = 'u8[884736]{0}', space=vmem, size = 0xd8000, scoped, tag = 'input window, operand 3, single buffered']
    #allocation7 [shape = 'u8[512]{0}', space=vmem, size = 0x400, scoped, tag = 'input window, operand 4, single buffered']
    #allocation8 [shape = 's32[1]{0}', space=sflag, size = 0x4, scoped, tag = 'scoped memory for forward.1']
    #allocation9 [shape = 'u8[65536]{0}', space=vmem, size = 0x10000, scoped, tag = 'input window, operand 5, single buffered']
    %12 = vsyncpa [#allocation3], 0
    %13 = vsyncpa [#allocation5], 0
    %14 = vsyncpa [#allocation8], 0
    // Predicated region
    $region2: #{forward.1} parent=1 // pred_check
      _
    $region3: #{forward.1} parent=1 // pred_check_branch
      %16 = sbr.rel (0) target = $region5
    $region4: #{forward.1} parent=1 // pred_region
      _
    $region5: #{forward.1} parent=1 // pred_fallthru
      _
    // Predicated region
    $region6: #{forward.1} parent=1 // pred_check
      _
    $region7: #{forward.1} parent=1 // pred_check_branch
      %18 = sbr.rel (0) target = $region9
    $region8: #{forward.1} parent=1 // pred_region
      %s20 = ssub.s32 169344, 169344
      %21 = vsyncadd [#allocation3], %s20
      %s22 = sshll.u32 [#allocation2], 4
      %s23 = int_to_ptr.vmem [resolvable:$true] %s22
      %28 = dma.hbm_to_vmem [thread:$0]  %s1, 169344, %s23, [#allocation3], 1728, 1728, 108
    $region9: #{forward.1} parent=1 // pred_fallthru
      _
    // Predicated region
    $region10: #{forward.1} parent=1 // pred_check
      _
    $region11: #{forward.1} parent=1 // pred_check_branch
      %30 = sbr.rel (0) target = $region13
    $region12: #{forward.1} parent=1 // pred_region
      %s32 = ssub.s32 432, 432
      %33 = vsyncadd [#allocation5], %s32
      %s35 = sshll.u32 [#allocation4], 4
      %s36 = int_to_ptr.vmem [resolvable:$true] %s35
      %38 = dma.hbm_to_vmem [thread:$0]  %s2, 432, %s36, [#allocation5]
    $region13: #{forward.1} parent=1 // pred_fallthru
      _
    // Predicated region
    $region14: #{forward.1} parent=1 // pred_check
      _
    $region15: #{forward.1} parent=1 // pred_check_branch
      %40 = sbr.rel (0) target = $region17
    $region16: #{forward.1} parent=1 // pred_region
      %s42 = ssub.s32 27648, 27648
      %43 = vsyncadd [#allocation5], %s42
      %s44 = sshll.u32 [#allocation6], 4
      %s45 = int_to_ptr.vmem [resolvable:$true] %s44
      %50 = dma.hbm_to_vmem [thread:$0]  %s3, 27648, %s45, [#allocation5], 64, 64, 4
    $region17: #{forward.1} parent=1 // pred_fallthru
      _
    // Predicated region
    $region18: #{forward.1} parent=1 // pred_check
      _
    $region19: #{forward.1} parent=1 // pred_check_branch
      %52 = sbr.rel (0) target = $region21
    $region20: #{forward.1} parent=1 // pred_region
      %s54 = ssub.s32 16, 16
      %55 = vsyncadd [#allocation8], %s54
      %s57 = sshll.u32 [#allocation7], 4
      %s58 = int_to_ptr.vmem [resolvable:$true] %s57
      %60 = dma.hbm_to_vmem [thread:$0]  %s4, 16, %s58, [#allocation8]
    $region21: #{forward.1} parent=1 // pred_fallthru
      _
    // Predicated region
    $region22: #{forward.1} parent=1 // pred_check
      _
    $region23: #{forward.1} parent=1 // pred_check_branch
      %62 = sbr.rel (0) target = $region25
    $region24: #{forward.1} parent=1 // pred_region
      %s64 = ssub.s32 2048, 2048
      %65 = vsyncadd [#allocation8], %s64
      %s66 = sshll.u32 [#allocation9], 4
      %s67 = int_to_ptr.vmem [resolvable:$true] %s66
      %72 = dma.hbm_to_vmem [thread:$0]  %s5, 2048, %s67, [#allocation8], 128, 128, 8
    $region25: #{forward.1} parent=1 // pred_fallthru
      _
    // Predicated region
    $region26: #{forward.1} parent=1 // pred_check
      _
    $region27: #{forward.1} parent=1 // pred_check_branch
      %74 = sbr.rel (0) target = $region29
    $region28: #{forward.1} parent=1 // pred_region
      _
    $region29: #{forward.1} parent=1 // pred_fallthru
      _
    // Predicated region
    $region30: #{forward.1} parent=1 // pred_check
      _
    $region31: #{forward.1} parent=1 // pred_check_branch
      %76 = sbr.rel (0) target = $region33
    $region32: #{forward.1} parent=1 // pred_region
      %77 = dma.done [#allocation3], 169344
    $region33: #{forward.1} parent=1 // pred_fallthru
      _
    // Predicated region
    $region34: #{forward.1} parent=1 // pred_check
      _
    $region35: #{forward.1} parent=1 // pred_check_branch
      %79 = sbr.rel (0) target = $region37
    $region36: #{forward.1} parent=1 // pred_region
      %80 = dma.done [#allocation5], 432
    $region37: #{forward.1} parent=1 // pred_fallthru
      _
    // Predicated region
    $region38: #{forward.1} parent=1 // pred_check
      _
    $region39: #{forward.1} parent=1 // pred_check_branch
      %82 = sbr.rel (0) target = $region41
    $region40: #{forward.1} parent=1 // pred_region
      %83 = dma.done [#allocation5], 27648
    $region41: #{forward.1} parent=1 // pred_fallthru
      _
    // Predicated region
    $region42: #{forward.1} parent=1 // pred_check
      _
    $region43: #{forward.1} parent=1 // pred_check_branch
      %85 = sbr.rel (0) target = $region45
    $region44: #{forward.1} parent=1 // pred_region
      %86 = dma.done [#allocation8], 16
    $region45: #{forward.1} parent=1 // pred_fallthru
      _
    // Predicated region
    $region46: #{forward.1} parent=1 // pred_check
      _
    $region47: #{forward.1} parent=1 // pred_check_branch
      %88 = sbr.rel (0) target = $region49
    $region48: #{forward.1} parent=1 // pred_region
      %89 = dma.done [#allocation8], 2048
    $region49: #{forward.1} parent=1 // pred_fallthru
      _
    %v91 = vld [vmem:[%s0] sm:$0xff]
    %v92 = vld [vmem:[%s0 + $0x8] sm:$0xff]
    %v93 = vld [vmem:[%s0 + $0x10] sm:$0xff]
    %v94 = vld [vmem:[%s0 + $0x18] sm:$0xff]
    %v95 = vld [vmem:[%s0 + $0x20] sm:$0xff]
    %v96 = vld [vmem:[%s0 + $0x28] sm:$0xff]
    %v97 = vld [vmem:[%s0 + $0x30] sm:$0xff]
    %v98 = vld [vmem:[%s0 + $0x38] sm:$0xff]
    %v99 = vld [vmem:[%s0 + $0x40] sm:$0xff]
    %v100 = vld [vmem:[%s0 + $0x48] sm:$0xff]
    %v101 = vld [vmem:[%s0 + $0x50] sm:$0xff]
    %v102 = vld [vmem:[%s0 + $0x58] sm:$0xff]
    %v103 = vld [vmem:[%s0 + $0x60] sm:$0xff]
    %v104 = vld [vmem:[%s0 + $0x68] sm:$0xff]
    %v105 = vpack.c.bf16 %v98, %v91
    %v106 = vpack.c.bf16 %v99, %v92
    %v107 = vpack.c.bf16 %v100, %v93
    %v108 = vpack.c.bf16 %v101, %v94
    %v109 = vpack.c.bf16 %v102, %v95
    %v110 = vpack.c.bf16 %v103, %v96
    %v111 = vpack.c.bf16 %v104, %v97
    %v112 = vld [vmem:[#allocation2] sm:$0xff]
    %v113 = vld [vmem:[#allocation2 + $0x8] sm:$0xff]
    %v114 = vld [vmem:[#allocation2 + $0x10] sm:$0xff]
    %v115 = vld [vmem:[#allocation2 + $0x18] sm:$0xff]
    %v116 = vld [vmem:[#allocation2 + $0x20] sm:$0xff]
    %v117 = vld [vmem:[#allocation2 + $0x28] sm:$0xff]
    %v118 = vld [vmem:[#allocation2 + $0x30] sm:$0xff]
    %v119 = vld [vmem:[#allocation2 + $0x38] sm:$0xff]
    %v120 = vld [vmem:[#allocation2 + $0x40] sm:$0xff]
    %v121 = vld [vmem:[#allocation2 + $0x48] sm:$0xff]
    %v122 = vld [vmem:[#allocation2 + $0x50] sm:$0xff]
    %v123 = vld [vmem:[#allocation2 + $0x58] sm:$0xff]
    %v124 = vld [vmem:[#allocation2 + $0x60] sm:$0xff]
    %v125 = vld [vmem:[#allocation2 + $0x68] sm:$0xf]
    %v126 = vld [vmem:[#allocation2 + $0x6c] sm:$0xff]
    %v127 = vld [vmem:[#allocation2 + $0x74] sm:$0xff]
    %v128 = vld [vmem:[#allocation2 + $0x7c] sm:$0xff]
    %v129 = vld [vmem:[#allocation2 + $0x84] sm:$0xff]
    %v130 = vld [vmem:[#allocation2 + $0x8c] sm:$0xff]
    %v131 = vld [vmem:[#allocation2 + $0x94] sm:$0xff]
    %v132 = vld [vmem:[#allocation2 + $0x9c] sm:$0xff]
    %v133 = vld [vmem:[#allocation2 + $0xa4] sm:$0xff]
    %v134 = vld [vmem:[#allocation2 + $0xac] sm:$0xff]
    %v135 = vld [vmem:[#allocation2 + $0xb4] sm:$0xff]
    %v136 = vld [vmem:[#allocation2 + $0xbc] sm:$0xff]
    %v137 = vld [vmem:[#allocation2 + $0xc4] sm:$0xff]
    %v138 = vld [vmem:[#allocation2 + $0xcc] sm:$0xff]
    %v139 = vld [vmem:[#allocation2 + $0xd4] sm:$0xf]
    %v140 = vld [vmem:[#allocation2 + $0xd8] sm:$0xff]
    %v141 = vld [vmem:[#allocation2 + $0xe0] sm:$0xff]
    %v142 = vld [vmem:[#allocation2 + $0xe8] sm:$0xff]
    %v143 = vld [vmem:[#allocation2 + $0xf0] sm:$0xff]
    %v144 = vld [vmem:[#allocation2 + $0xf8] sm:$0xff]
    %v145 = vld [vmem:[#allocation2 + $0x100] sm:$0xff]
    %v146 = vld [vmem:[#allocation2 + $0x108] sm:$0xff]
    %v147 = vld [vmem:[#allocation2 + $0x110] sm:$0xff]
    %v148 = vld [vmem:[#allocation2 + $0x118] sm:$0xff]
    %v149 = vld [vmem:[#allocation2 + $0x120] sm:$0xff]
    %v150 = vld [vmem:[#allocation2 + $0x128] sm:$0xff]
    %v151 = vld [vmem:[#allocation2 + $0x130] sm:$0xff]
    %v152 = vld [vmem:[#allocation2 + $0x138] sm:$0xff]
    %v153 = vld [vmem:[#allocation2 + $0x140] sm:$0xf]
    %v154 = vld [vmem:[#allocation2 + $0x144] sm:$0xff]
    %v155 = vld [vmem:[#allocation2 + $0x14c] sm:$0xff]
    %v156 = vld [vmem:[#allocation2 + $0x154] sm:$0xff]
    %v157 = vld [vmem:[#allocation2 + $0x15c] sm:$0xff]
    %v158 = vld [vmem:[#allocation2 + $0x164] sm:$0xff]
    %v159 = vld [vmem:[#allocation2 + $0x16c] sm:$0xff]
    %v160 = vld [vmem:[#allocation2 + $0x174] sm:$0xff]
    %v161 = vld [vmem:[#allocation2 + $0x17c] sm:$0xff]
    %v162 = vld [vmem:[#allocation2 + $0x184] sm:$0xff]
    %v163 = vld [vmem:[#allocation2 + $0x18c] sm:$0xff]
    %v164 = vld [vmem:[#allocation2 + $0x194] sm:$0xff]
    %v165 = vld [vmem:[#allocation2 + $0x19c] sm:$0xff]
    %v166 = vld [vmem:[#allocation2 + $0x1a4] sm:$0xff]
    %v167 = vld [vmem:[#allocation2 + $0x1ac] sm:$0xf]
    %v168 = vld [vmem:[#allocation2 + $0x1b0] sm:$0xff]
    %v169 = vld [vmem:[#allocation2 + $0x1b8] sm:$0xff]
    %v170 = vld [vmem:[#allocation2 + $0x1c0] sm:$0xff]
    %v171 = vld [vmem:[#allocation2 + $0x1c8] sm:$0xff]
    %v172 = vld [vmem:[#allocation2 + $0x1d0] sm:$0xff]
    %v173 = vld [vmem:[#allocation2 + $0x1d8] sm:$0xff]
    %v174 = vld [vmem:[#allocation2 + $0x1e0] sm:$0xff]
    %v175 = vld [vmem:[#allocation2 + $0x1e8] sm:$0xff]
    %v176 = vld [vmem:[#allocation2 + $0x1f0] sm:$0xff]
    %v177 = vld [vmem:[#allocation2 + $0x1f8] sm:$0xff]
    %v178 = vld [vmem:[#allocation2 + $0x200] sm:$0xff]
    %v179 = vld [vmem:[#allocation2 + $0x208] sm:$0xff]
    %v180 = vld [vmem:[#allocation2 + $0x210] sm:$0xff]
    %v181 = vld [vmem:[#allocation2 + $0x218] sm:$0xf]
    %v182 = vld [vmem:[#allocation2 + $0x21c] sm:$0xff]
    %v183 = vld [vmem:[#allocation2 + $0x224] sm:$0xff]
    %v184 = vld [vmem:[#allocation2 + $0x22c] sm:$0xff]
    %v185 = vld [vmem:[#allocation2 + $0x234] sm:$0xff]
    %v186 = vld [vmem:[#allocation2 + $0x23c] sm:$0xff]
    %v187 = vld [vmem:[#allocation2 + $0x244] sm:$0xff]
    %v188 = vld [vmem:[#allocation2 + $0x24c] sm:$0xff]
    %v189 = vld [vmem:[#allocation2 + $0x254] sm:$0xff]
    %v190 = vld [vmem:[#allocation2 + $0x25c] sm:$0xff]
    %v191 = vld [vmem:[#allocation2 + $0x264] sm:$0xff]
    %v192 = vld [vmem:[#allocation2 + $0x26c] sm:$0xff]
    %v193 = vld [vmem:[#allocation2 + $0x274] sm:$0xff]
    %v194 = vld [vmem:[#allocation2 + $0x27c] sm:$0xff]
    %v195 = vld [vmem:[#allocation2 + $0x284] sm:$0xf]
    %v196 = vld [vmem:[#allocation2 + $0x288] sm:$0xff]
    %v197 = vld [vmem:[#allocation2 + $0x290] sm:$0xff]
    %v198 = vld [vmem:[#allocation2 + $0x298] sm:$0xff]
    %v199 = vld [vmem:[#allocation2 + $0x2a0] sm:$0xff]
    %v200 = vld [vmem:[#allocation2 + $0x2a8] sm:$0xff]
    %v201 = vld [vmem:[#allocation2 + $0x2b0] sm:$0xff]
    %v202 = vld [vmem:[#allocation2 + $0x2b8] sm:$0xff]
    %v203 = vld [vmem:[#allocation2 + $0x2c0] sm:$0xff]
    %v204 = vld [vmem:[#allocation2 + $0x2c8] sm:$0xff]
    %v205 = vld [vmem:[#allocation2 + $0x2d0] sm:$0xff]
    %v206 = vld [vmem:[#allocation2 + $0x2d8] sm:$0xff]
    %v207 = vld [vmem:[#allocation2 + $0x2e0] sm:$0xff]
    %v208 = vld [vmem:[#allocation2 + $0x2e8] sm:$0xff]
    %v209 = vld [vmem:[#allocation2 + $0x2f0] sm:$0xf]
    %v210 = vld [vmem:[#allocation2 + $0x2f4] sm:$0xff]
    %v211 = vld [vmem:[#allocation2 + $0x2fc] sm:$0xff]
    %v212 = vld [vmem:[#allocation2 + $0x304] sm:$0xff]
    %v213 = vld [vmem:[#allocation2 + $0x30c] sm:$0xff]
    %v214 = vld [vmem:[#allocation2 + $0x314] sm:$0xff]
    %v215 = vld [vmem:[#allocation2 + $0x31c] sm:$0xff]
    %v216 = vld [vmem:[#allocation2 + $0x324] sm:$0xff]
    %v217 = vld [vmem:[#allocation2 + $0x32c] sm:$0xff]
    %v218 = vld [vmem:[#allocation2 + $0x334] sm:$0xff]
    %v219 = vld [vmem:[#allocation2 + $0x33c] sm:$0xff]
    %v220 = vld [vmem:[#allocation2 + $0x344] sm:$0xff]
    %v221 = vld [vmem:[#allocation2 + $0x34c] sm:$0xff]
    %v222 = vld [vmem:[#allocation2 + $0x354] sm:$0xff]
    %v223 = vld [vmem:[#allocation2 + $0x35c] sm:$0xf]
    %v224 = vld [vmem:[#allocation2 + $0x360] sm:$0xff]
    %v225 = vld [vmem:[#allocation2 + $0x368] sm:$0xff]
    %v226 = vld [vmem:[#allocation2 + $0x370] sm:$0xff]
    %v227 = vld [vmem:[#allocation2 + $0x378] sm:$0xff]
    %v228 = vld [vmem:[#allocation2 + $0x380] sm:$0xff]
    %v229 = vld [vmem:[#allocation2 + $0x388] sm:$0xff]
    %v230 = vld [vmem:[#allocation2 + $0x390] sm:$0xff]
    %v231 = vld [vmem:[#allocation2 + $0x398] sm:$0xff]
    %v232 = vld [vmem:[#allocation2 + $0x3a0] sm:$0xff]
    %v233 = vld [vmem:[#allocation2 + $0x3a8] sm:$0xff]
    %v234 = vld [vmem:[#allocation2 + $0x3b0] sm:$0xff]
    %v235 = vld [vmem:[#allocation2 + $0x3b8] sm:$0xff]
    %v236 = vld [vmem:[#allocation2 + $0x3c0] sm:$0xff]
    %v237 = vld [vmem:[#allocation2 + $0x3c8] sm:$0xf]
    %v238 = vld [vmem:[#allocation2 + $0x3cc] sm:$0xff]
    %v239 = vld [vmem:[#allocation2 + $0x3d4] sm:$0xff]
    %v240 = vld [vmem:[#allocation2 + $0x3dc] sm:$0xff]
    %v241 = vld [vmem:[#allocation2 + $0x3e4] sm:$0xff]
    %v242 = vld [vmem:[#allocation2 + $0x3ec] sm:$0xff]
    %v243 = vld [vmem:[#allocation2 + $0x3f4] sm:$0xff]
    %v244 = vld [vmem:[#allocation2 + $0x3fc] sm:$0xff]
    %v245 = vld [vmem:[#allocation2 + $0x404] sm:$0xff]
    %v246 = vld [vmem:[#allocation2 + $0x40c] sm:$0xff]
    %v247 = vld [vmem:[#allocation2 + $0x414] sm:$0xff]
    %v248 = vld [vmem:[#allocation2 + $0x41c] sm:$0xff]
    %v249 = vld [vmem:[#allocation2 + $0x424] sm:$0xff]
    %v250 = vld [vmem:[#allocation2 + $0x42c] sm:$0xff]
    %v251 = vld [vmem:[#allocation2 + $0x434] sm:$0xf]
    %v252 = vld [vmem:[#allocation2 + $0x438] sm:$0xff]
    %v253 = vld [vmem:[#allocation2 + $0x440] sm:$0xff]
    %v254 = vld [vmem:[#allocation2 + $0x448] sm:$0xff]
    %v255 = vld [vmem:[#allocation2 + $0x450] sm:$0xff]
    %v256 = vld [vmem:[#allocation2 + $0x458] sm:$0xff]
    %v257 = vld [vmem:[#allocation2 + $0x460] sm:$0xff]
    %v258 = vld [vmem:[#allocation2 + $0x468] sm:$0xff]
    %v259 = vld [vmem:[#allocation2 + $0x470] sm:$0xff]
    %v260 = vld [vmem:[#allocation2 + $0x478] sm:$0xff]
    %v261 = vld [vmem:[#allocation2 + $0x480] sm:$0xff]
    %v262 = vld [vmem:[#allocation2 + $0x488] sm:$0xff]
    %v263 = vld [vmem:[#allocation2 + $0x490] sm:$0xff]
    %v264 = vld [vmem:[#allocation2 + $0x498] sm:$0xff]
    %v265 = vld [vmem:[#allocation2 + $0x4a0] sm:$0xf]
    %v266 = vld [vmem:[#allocation2 + $0x4a4] sm:$0xff]
    %v267 = vld [vmem:[#allocation2 + $0x4ac] sm:$0xff]
    %v268 = vld [vmem:[#allocation2 + $0x4b4] sm:$0xff]
    %v269 = vld [vmem:[#allocation2 + $0x4bc] sm:$0xff]
    %v270 = vld [vmem:[#allocation2 + $0x4c4] sm:$0xff]
    %v271 = vld [vmem:[#allocation2 + $0x4cc] sm:$0xff]
    %v272 = vld [vmem:[#allocation2 + $0x4d4] sm:$0xff]
    %v273 = vld [vmem:[#allocation2 + $0x4dc] sm:$0xff]
    %v274 = vld [vmem:[#allocation2 + $0x4e4] sm:$0xff]
    %v275 = vld [vmem:[#allocation2 + $0x4ec] sm:$0xff]
    %v276 = vld [vmem:[#allocation2 + $0x4f4] sm:$0xff]
    %v277 = vld [vmem:[#allocation2 + $0x4fc] sm:$0xff]
    %v278 = vld [vmem:[#allocation2 + $0x504] sm:$0xff]
    %v279 = vld [vmem:[#allocation2 + $0x50c] sm:$0xf]
    %v280 = vld [vmem:[#allocation2 + $0x510] sm:$0xff]
    %v281 = vld [vmem:[#allocation2 + $0x518] sm:$0xff]
    %v282 = vld [vmem:[#allocation2 + $0x520] sm:$0xff]
    %v283 = vld [vmem:[#allocation2 + $0x528] sm:$0xff]
    %v284 = vld [vmem:[#allocation2 + $0x530] sm:$0xff]
    %v285 = vld [vmem:[#allocation2 + $0x538] sm:$0xff]
    %v286 = vld [vmem:[#allocation2 + $0x540] sm:$0xff]
    %v287 = vld [vmem:[#allocation2 + $0x548] sm:$0xff]
    %v288 = vld [vmem:[#allocation2 + $0x550] sm:$0xff]
    %v289 = vld [vmem:[#allocation2 + $0x558] sm:$0xff]
    %v290 = vld [vmem:[#allocation2 + $0x560] sm:$0xff]
    %v291 = vld [vmem:[#allocation2 + $0x568] sm:$0xff]
    %v292 = vld [vmem:[#allocation2 + $0x570] sm:$0xff]
    %v293 = vld [vmem:[#allocation2 + $0x578] sm:$0xf]
    %v294 = vld [vmem:[#allocation2 + $0x57c] sm:$0xff]
    %v295 = vld [vmem:[#allocation2 + $0x584] sm:$0xff]
    %v296 = vld [vmem:[#allocation2 + $0x58c] sm:$0xff]
    %v297 = vld [vmem:[#allocation2 + $0x594] sm:$0xff]
    %v298 = vld [vmem:[#allocation2 + $0x59c] sm:$0xff]
    %v299 = vld [vmem:[#allocation2 + $0x5a4] sm:$0xff]
    %v300 = vld [vmem:[#allocation2 + $0x5ac] sm:$0xff]
    %v301 = vld [vmem:[#allocation2 + $0x5b4] sm:$0xff]
    %v302 = vld [vmem:[#allocation2 + $0x5bc] sm:$0xff]
    %v303 = vld [vmem:[#allocation2 + $0x5c4] sm:$0xff]
    %v304 = vld [vmem:[#allocation2 + $0x5cc] sm:$0xff]
    %v305 = vld [vmem:[#allocation2 + $0x5d4] sm:$0xff]
    %v306 = vld [vmem:[#allocation2 + $0x5dc] sm:$0xff]
    %v307 = vld [vmem:[#allocation2 + $0x5e4] sm:$0xf]
    %v308 = vld [vmem:[#allocation2 + $0x5e8] sm:$0xff]
    %v309 = vld [vmem:[#allocation2 + $0x5f0] sm:$0xff]
    %v310 = vld [vmem:[#allocation2 + $0x5f8] sm:$0xff]
    %v311 = vld [vmem:[#allocation2 + $0x600] sm:$0xff]
    %v312 = vld [vmem:[#allocation2 + $0x608] sm:$0xff]
    %v313 = vld [vmem:[#allocation2 + $0x610] sm:$0xff]
    %v314 = vld [vmem:[#allocation2 + $0x618] sm:$0xff]
    %v315 = vld [vmem:[#allocation2 + $0x620] sm:$0xff]
    %v316 = vld [vmem:[#allocation2 + $0x628] sm:$0xff]
    %v317 = vld [vmem:[#allocation2 + $0x630] sm:$0xff]
    %v318 = vld [vmem:[#allocation2 + $0x638] sm:$0xff]
    %v319 = vld [vmem:[#allocation2 + $0x640] sm:$0xff]
    %v320 = vld [vmem:[#allocation2 + $0x648] sm:$0xff]
    %v321 = vld [vmem:[#allocation2 + $0x650] sm:$0xf]
    %v322 = vld [vmem:[#allocation2 + $0x654] sm:$0xff]
    %v323 = vld [vmem:[#allocation2 + $0x65c] sm:$0xff]
    %v324 = vld [vmem:[#allocation2 + $0x664] sm:$0xff]
    %v325 = vld [vmem:[#allocation2 + $0x66c] sm:$0xff]
    %v326 = vld [vmem:[#allocation2 + $0x674] sm:$0xff]
    %v327 = vld [vmem:[#allocation2 + $0x67c] sm:$0xff]
    %v328 = vld [vmem:[#allocation2 + $0x684] sm:$0xff]
    %v329 = vld [vmem:[#allocation2 + $0x68c] sm:$0xff]
    %v330 = vld [vmem:[#allocation2 + $0x694] sm:$0xff]
    %v331 = vld [vmem:[#allocation2 + $0x69c] sm:$0xff]
    %v332 = vld [vmem:[#allocation2 + $0x6a4] sm:$0xff]
    %v333 = vld [vmem:[#allocation2 + $0x6ac] sm:$0xff]
    %v334 = vld [vmem:[#allocation2 + $0x6b4] sm:$0xff]
    %v335 = vld [vmem:[#allocation2 + $0x6bc] sm:$0xf]
    %v336 = vld [vmem:[#allocation2 + $0x6c0] sm:$0xff]
    %v337 = vld [vmem:[#allocation2 + $0x6c8] sm:$0xff]
    %v338 = vld [vmem:[#allocation2 + $0x6d0] sm:$0xff]
    %v339 = vld [vmem:[#allocation2 + $0x6d8] sm:$0xff]
    %v340 = vld [vmem:[#allocation2 + $0x6e0] sm:$0xff]
    %v341 = vld [vmem:[#allocation2 + $0x6e8] sm:$0xff]
    %v342 = vld [vmem:[#allocation2 + $0x6f0] sm:$0xff]
    %v343 = vld [vmem:[#allocation2 + $0x6f8] sm:$0xff]
    %v344 = vld [vmem:[#allocation2 + $0x700] sm:$0xff]
    %v345 = vld [vmem:[#allocation2 + $0x708] sm:$0xff]
    %v346 = vld [vmem:[#allocation2 + $0x710] sm:$0xff]
    %v347 = vld [vmem:[#allocation2 + $0x718] sm:$0xff]
    %v348 = vld [vmem:[#allocation2 + $0x720] sm:$0xff]
    %v349 = vld [vmem:[#allocation2 + $0x728] sm:$0xf]
    %v350 = vld [vmem:[#allocation2 + $0x72c] sm:$0xff]
    %v351 = vld [vmem:[#allocation2 + $0x734] sm:$0xff]
    %v352 = vld [vmem:[#allocation2 + $0x73c] sm:$0xff]
    %v353 = vld [vmem:[#allocation2 + $0x744] sm:$0xff]
    %v354 = vld [vmem:[#allocation2 + $0x74c] sm:$0xff]
    %v355 = vld [vmem:[#allocation2 + $0x754] sm:$0xff]
    %v356 = vld [vmem:[#allocation2 + $0x75c] sm:$0xff]
    %v357 = vld [vmem:[#allocation2 + $0x764] sm:$0xff]
    %v358 = vld [vmem:[#allocation2 + $0x76c] sm:$0xff]
    %v359 = vld [vmem:[#allocation2 + $0x774] sm:$0xff]
    %v360 = vld [vmem:[#allocation2 + $0x77c] sm:$0xff]
    %v361 = vld [vmem:[#allocation2 + $0x784] sm:$0xff]
    %v362 = vld [vmem:[#allocation2 + $0x78c] sm:$0xff]
    %v363 = vld [vmem:[#allocation2 + $0x794] sm:$0xf]
    %v364 = vld [vmem:[#allocation2 + $0x798] sm:$0xff]
    %v365 = vld [vmem:[#allocation2 + $0x7a0] sm:$0xff]
    %v366 = vld [vmem:[#allocation2 + $0x7a8] sm:$0xff]
    %v367 = vld [vmem:[#allocation2 + $0x7b0] sm:$0xff]
    %v368 = vld [vmem:[#allocation2 + $0x7b8] sm:$0xff]
    %v369 = vld [vmem:[#allocation2 + $0x7c0] sm:$0xff]
    %v370 = vld [vmem:[#allocation2 + $0x7c8] sm:$0xff]
    %v371 = vld [vmem:[#allocation2 + $0x7d0] sm:$0xff]
    %v372 = vld [vmem:[#allocation2 + $0x7d8] sm:$0xff]
    %v373 = vld [vmem:[#allocation2 + $0x7e0] sm:$0xff]
    %v374 = vld [vmem:[#allocation2 + $0x7e8] sm:$0xff]
    %v375 = vld [vmem:[#allocation2 + $0x7f0] sm:$0xff]
    %v376 = vld [vmem:[#allocation2 + $0x7f8] sm:$0xff]
    %v377 = vld [vmem:[#allocation2 + $0x800] sm:$0xf]
    %v378 = vld [vmem:[#allocation2 + $0x804] sm:$0xff]
    %v379 = vld [vmem:[#allocation2 + $0x80c] sm:$0xff]
    %v380 = vld [vmem:[#allocation2 + $0x814] sm:$0xff]
    %v381 = vld [vmem:[#allocation2 + $0x81c] sm:$0xff]
    %v382 = vld [vmem:[#allocation2 + $0x824] sm:$0xff]
    %v383 = vld [vmem:[#allocation2 + $0x82c] sm:$0xff]
    %v384 = vld [vmem:[#allocation2 + $0x834] sm:$0xff]
    %v385 = vld [vmem:[#allocation2 + $0x83c] sm:$0xff]
    %v386 = vld [vmem:[#allocation2 + $0x844] sm:$0xff]
    %v387 = vld [vmem:[#allocation2 + $0x84c] sm:$0xff]
    %v388 = vld [vmem:[#allocation2 + $0x854] sm:$0xff]
    %v389 = vld [vmem:[#allocation2 + $0x85c] sm:$0xff]
    %v390 = vld [vmem:[#allocation2 + $0x864] sm:$0xff]
    %v391 = vld [vmem:[#allocation2 + $0x86c] sm:$0xf]
    %v392 = vld [vmem:[#allocation2 + $0x870] sm:$0xff]
    %v393 = vld [vmem:[#allocation2 + $0x878] sm:$0xff]
    %v394 = vld [vmem:[#allocation2 + $0x880] sm:$0xff]
    %v395 = vld [vmem:[#allocation2 + $0x888] sm:$0xff]
    %v396 = vld [vmem:[#allocation2 + $0x890] sm:$0xff]
    %v397 = vld [vmem:[#allocation2 + $0x898] sm:$0xff]
    %v398 = vld [vmem:[#allocation2 + $0x8a0] sm:$0xff]
    %v399 = vld [vmem:[#allocation2 + $0x8a8] sm:$0xff]
    %v400 = vld [vmem:[#allocation2 + $0x8b0] sm:$0xff]
    %v401 = vld [vmem:[#allocation2 + $0x8b8] sm:$0xff]
    %v402 = vld [vmem:[#allocation2 + $0x8c0] sm:$0xff]
    %v403 = vld [vmem:[#allocation2 + $0x8c8] sm:$0xff]
    %v404 = vld [vmem:[#allocation2 + $0x8d0] sm:$0xff]
    %v405 = vld [vmem:[#allocation2 + $0x8d8] sm:$0xf]
    %v406 = vld [vmem:[#allocation2 + $0x8dc] sm:$0xff]
    %v407 = vld [vmem:[#allocation2 + $0x8e4] sm:$0xff]
    %v408 = vld [vmem:[#allocation2 + $0x8ec] sm:$0xff]
    %v409 = vld [vmem:[#allocation2 + $0x8f4] sm:$0xff]
    %v410 = vld [vmem:[#allocation2 + $0x8fc] sm:$0xff]
    %v411 = vld [vmem:[#allocation2 + $0x904] sm:$0xff]
    %v412 = vld [vmem:[#allocation2 + $0x90c] sm:$0xff]
    %v413 = vld [vmem:[#allocation2 + $0x914] sm:$0xff]
    %v414 = vld [vmem:[#allocation2 + $0x91c] sm:$0xff]
    %v415 = vld [vmem:[#allocation2 + $0x924] sm:$0xff]
    %v416 = vld [vmem:[#allocation2 + $0x92c] sm:$0xff]
    %v417 = vld [vmem:[#allocation2 + $0x934] sm:$0xff]
    %v418 = vld [vmem:[#allocation2 + $0x93c] sm:$0xff]
    %v419 = vld [vmem:[#allocation2 + $0x944] sm:$0xf]
    %v420 = vld [vmem:[#allocation2 + $0x948] sm:$0xff]
    %v421 = vld [vmem:[#allocation2 + $0x950] sm:$0xff]
    %v422 = vld [vmem:[#allocation2 + $0x958] sm:$0xff]
    %v423 = vld [vmem:[#allocation2 + $0x960] sm:$0xff]
    %v424 = vld [vmem:[#allocation2 + $0x968] sm:$0xff]
    %v425 = vld [vmem:[#allocation2 + $0x970] sm:$0xff]
    %v426 = vld [vmem:[#allocation2 + $0x978] sm:$0xff]
    %v427 = vld [vmem:[#allocation2 + $0x980] sm:$0xff]
    %v428 = vld [vmem:[#allocation2 + $0x988] sm:$0xff]
    %v429 = vld [vmem:[#allocation2 + $0x990] sm:$0xff]
    %v430 = vld [vmem:[#allocation2 + $0x998] sm:$0xff]
    %v431 = vld [vmem:[#allocation2 + $0x9a0] sm:$0xff]
    %v432 = vld [vmem:[#allocation2 + $0x9a8] sm:$0xff]
    %v433 = vld [vmem:[#allocation2 + $0x9b0] sm:$0xf]
    %v434 = vld [vmem:[#allocation2 + $0x9b4] sm:$0xff]
    %v435 = vld [vmem:[#allocation2 + $0x9bc] sm:$0xff]
    %v436 = vld [vmem:[#allocation2 + $0x9c4] sm:$0xff]
    %v437 = vld [vmem:[#allocation2 + $0x9cc] sm:$0xff]
    %v438 = vld [vmem:[#allocation2 + $0x9d4] sm:$0xff]
    %v439 = vld [vmem:[#allocation2 + $0x9dc] sm:$0xff]
    %v440 = vld [vmem:[#allocation2 + $0x9e4] sm:$0xff]
    %v441 = vld [vmem:[#allocation2 + $0x9ec] sm:$0xff]
    %v442 = vld [vmem:[#allocation2 + $0x9f4] sm:$0xff]
    %v443 = vld [vmem:[#allocation2 + $0x9fc] sm:$0xff]
    %v444 = vld [vmem:[#allocation2 + $0xa04] sm:$0xff]
    %v445 = vld [vmem:[#allocation2 + $0xa0c] sm:$0xff]
    %v446 = vld [vmem:[#allocation2 + $0xa14] sm:$0xff]
    %v447 = vld [vmem:[#allocation2 + $0xa1c] sm:$0xf]
    %v448 = vld [vmem:[#allocation2 + $0xa20] sm:$0xff]
    %v449 = vld [vmem:[#allocation2 + $0xa28] sm:$0xff]
    %v450 = vld [vmem:[#allocation2 + $0xa30] sm:$0xff]
    %v451 = vld [vmem:[#allocation2 + $0xa38] sm:$0xff]
    %v452 = vld [vmem:[#allocation2 + $0xa40] sm:$0xff]
    %v453 = vld [vmem:[#allocation2 + $0xa48] sm:$0xff]
    %v454 = vld [vmem:[#allocation2 + $0xa50] sm:$0xff]
    %v455 = vld [vmem:[#allocation2 + $0xa58] sm:$0xff]
    %v456 = vld [vmem:[#allocation2 + $0xa60] sm:$0xff]
    %v457 = vld [vmem:[#allocation2 + $0xa68] sm:$0xff]
    %v458 = vld [vmem:[#allocation2 + $0xa70] sm:$0xff]
    %v459 = vld [vmem:[#allocation2 + $0xa78] sm:$0xff]
    %v460 = vld [vmem:[#allocation2 + $0xa80] sm:$0xff]
    %v461 = vld [vmem:[#allocation2 + $0xa88] sm:$0xf]
    %v462 = vld [vmem:[#allocation2 + $0xa8c] sm:$0xff]
    %v463 = vld [vmem:[#allocation2 + $0xa94] sm:$0xff]
    %v464 = vld [vmem:[#allocation2 + $0xa9c] sm:$0xff]
    %v465 = vld [vmem:[#allocation2 + $0xaa4] sm:$0xff]
    %v466 = vld [vmem:[#allocation2 + $0xaac] sm:$0xff]
    %v467 = vld [vmem:[#allocation2 + $0xab4] sm:$0xff]
    %v468 = vld [vmem:[#allocation2 + $0xabc] sm:$0xff]
    %v469 = vld [vmem:[#allocation2 + $0xac4] sm:$0xff]
    %v470 = vld [vmem:[#allocation2 + $0xacc] sm:$0xff]
    %v471 = vld [vmem:[#allocation2 + $0xad4] sm:$0xff]
    %v472 = vld [vmem:[#allocation2 + $0xadc] sm:$0xff]
    %v473 = vld [vmem:[#allocation2 + $0xae4] sm:$0xff]
    %v474 = vld [vmem:[#allocation2 + $0xaec] sm:$0xff]
    %v475 = vld [vmem:[#allocation2 + $0xaf4] sm:$0xf]
    %v476 = vld [vmem:[#allocation2 + $0xaf8] sm:$0xff]
    %v477 = vld [vmem:[#allocation2 + $0xb00] sm:$0xff]
    %v478 = vld [vmem:[#allocation2 + $0xb08] sm:$0xff]
    %v479 = vld [vmem:[#allocation2 + $0xb10] sm:$0xff]
    %v480 = vld [vmem:[#allocation2 + $0xb18] sm:$0xff]
    %v481 = vld [vmem:[#allocation2 + $0xb20] sm:$0xff]
    %v482 = vld [vmem:[#allocation2 + $0xb28] sm:$0xff]
    %v483 = vld [vmem:[#allocation2 + $0xb30] sm:$0xff]
    %v484 = vld [vmem:[#allocation2 + $0xb38] sm:$0xff]
    %v485 = vld [vmem:[#allocation2 + $0xb40] sm:$0xff]
    %v486 = vld [vmem:[#allocation2 + $0xb48] sm:$0xff]
    %v487 = vld [vmem:[#allocation2 + $0xb50] sm:$0xff]
    %v488 = vld [vmem:[#allocation2 + $0xb58] sm:$0xff]
    %v489 = vld [vmem:[#allocation2 + $0xb60] sm:$0xf]
    %v490 = vld [vmem:[#allocation2 + $0xb64] sm:$0xff]
    %v491 = vld [vmem:[#allocation2 + $0xb6c] sm:$0xff]
    %v492 = vld [vmem:[#allocation2 + $0xb74] sm:$0xff]
    %v493 = vld [vmem:[#allocation2 + $0xb7c] sm:$0xff]
    %v494 = vld [vmem:[#allocation2 + $0xb84] sm:$0xff]
    %v495 = vld [vmem:[#allocation2 + $0xb8c] sm:$0xff]
    %v496 = vld [vmem:[#allocation2 + $0xb94] sm:$0xff]
    %v497 = vld [vmem:[#allocation2 + $0xb9c] sm:$0xff]
    %v498 = vld [vmem:[#allocation2 + $0xba4] sm:$0xff]
    %v499 = vld [vmem:[#allocation2 + $0xbac] sm:$0xff]
    %v500 = vld [vmem:[#allocation2 + $0xbb4] sm:$0xff]
    %v501 = vld [vmem:[#allocation2 + $0xbbc] sm:$0xff]
    %v502 = vld [vmem:[#allocation2 + $0xbc4] sm:$0xff]
    %v503 = vld [vmem:[#allocation2 + $0xbcc] sm:$0xf]
    %v504 = vld [vmem:[#allocation2 + $0xbd0] sm:$0xff]
    %v505 = vld [vmem:[#allocation2 + $0xbd8] sm:$0xff]
    %v506 = vld [vmem:[#allocation2 + $0xbe0] sm:$0xff]
    %v507 = vld [vmem:[#allocation2 + $0xbe8] sm:$0xff]
    %v508 = vld [vmem:[#allocation2 + $0xbf0] sm:$0xff]
    %v509 = vld [vmem:[#allocation2 + $0xbf8] sm:$0xff]
    %v510 = vld [vmem:[#allocation2 + $0xc00] sm:$0xff]
    %v511 = vld [vmem:[#allocation2 + $0xc08] sm:$0xff]
    %v512 = vld [vmem:[#allocation2 + $0xc10] sm:$0xff]
    %v513 = vld [vmem:[#allocation2 + $0xc18] sm:$0xff]
    %v514 = vld [vmem:[#allocation2 + $0xc20] sm:$0xff]
    %v515 = vld [vmem:[#allocation2 + $0xc28] sm:$0xff]
    %v516 = vld [vmem:[#allocation2 + $0xc30] sm:$0xff]
    %v517 = vld [vmem:[#allocation2 + $0xc38] sm:$0xf]
    %v518 = vld [vmem:[#allocation2 + $0xc3c] sm:$0xff]
    %v519 = vld [vmem:[#allocation2 + $0xc44] sm:$0xff]
    %v520 = vld [vmem:[#allocation2 + $0xc4c] sm:$0xff]
    %v521 = vld [vmem:[#allocation2 + $0xc54] sm:$0xff]
    %v522 = vld [vmem:[#allocation2 + $0xc5c] sm:$0xff]
    %v523 = vld [vmem:[#allocation2 + $0xc64] sm:$0xff]
    %v524 = vld [vmem:[#allocation2 + $0xc6c] sm:$0xff]
    %v525 = vld [vmem:[#allocation2 + $0xc74] sm:$0xff]
    %v526 = vld [vmem:[#allocation2 + $0xc7c] sm:$0xff]
    %v527 = vld [vmem:[#allocation2 + $0xc84] sm:$0xff]
    %v528 = vld [vmem:[#allocation2 + $0xc8c] sm:$0xff]
    %v529 = vld [vmem:[#allocation2 + $0xc94] sm:$0xff]
    %v530 = vld [vmem:[#allocation2 + $0xc9c] sm:$0xff]
    %v531 = vld [vmem:[#allocation2 + $0xca4] sm:$0xf]
    %v532 = vld [vmem:[#allocation2 + $0xca8] sm:$0xff]
    %v533 = vld [vmem:[#allocation2 + $0xcb0] sm:$0xff]
    %v534 = vld [vmem:[#allocation2 + $0xcb8] sm:$0xff]
    %v535 = vld [vmem:[#allocation2 + $0xcc0] sm:$0xff]
    %v536 = vld [vmem:[#allocation2 + $0xcc8] sm:$0xff]
    %v537 = vld [vmem:[#allocation2 + $0xcd0] sm:$0xff]
    %v538 = vld [vmem:[#allocation2 + $0xcd8] sm:$0xff]
    %v539 = vld [vmem:[#allocation2 + $0xce0] sm:$0xff]
    %v540 = vld [vmem:[#allocation2 + $0xce8] sm:$0xff]
    %v541 = vld [vmem:[#allocation2 + $0xcf0] sm:$0xff]
    %v542 = vld [vmem:[#allocation2 + $0xcf8] sm:$0xff]
    %v543 = vld [vmem:[#allocation2 + $0xd00] sm:$0xff]
    %v544 = vld [vmem:[#allocation2 + $0xd08] sm:$0xff]
    %v545 = vld [vmem:[#allocation2 + $0xd10] sm:$0xf]
    %v546 = vld [vmem:[#allocation2 + $0xd14] sm:$0xff]
    %v547 = vld [vmem:[#allocation2 + $0xd1c] sm:$0xff]
    %v548 = vld [vmem:[#allocation2 + $0xd24] sm:$0xff]
    %v549 = vld [vmem:[#allocation2 + $0xd2c] sm:$0xff]
    %v550 = vld [vmem:[#allocation2 + $0xd34] sm:$0xff]
    %v551 = vld [vmem:[#allocation2 + $0xd3c] sm:$0xff]
    %v552 = vld [vmem:[#allocation2 + $0xd44] sm:$0xff]
    %v553 = vld [vmem:[#allocation2 + $0xd4c] sm:$0xff]
    %v554 = vld [vmem:[#allocation2 + $0xd54] sm:$0xff]
    %v555 = vld [vmem:[#allocation2 + $0xd5c] sm:$0xff]
    %v556 = vld [vmem:[#allocation2 + $0xd64] sm:$0xff]
    %v557 = vld [vmem:[#allocation2 + $0xd6c] sm:$0xff]
    %v558 = vld [vmem:[#allocation2 + $0xd74] sm:$0xff]
    %v559 = vld [vmem:[#allocation2 + $0xd7c] sm:$0xf]
    %v560 = vld [vmem:[#allocation2 + $0xd80] sm:$0xff]
    %v561 = vld [vmem:[#allocation2 + $0xd88] sm:$0xff]
    %v562 = vld [vmem:[#allocation2 + $0xd90] sm:$0xff]
    %v563 = vld [vmem:[#allocation2 + $0xd98] sm:$0xff]
    %v564 = vld [vmem:[#allocation2 + $0xda0] sm:$0xff]
    %v565 = vld [vmem:[#allocation2 + $0xda8] sm:$0xff]
    %v566 = vld [vmem:[#allocation2 + $0xdb0] sm:$0xff]
    %v567 = vld [vmem:[#allocation2 + $0xdb8] sm:$0xff]
    %v568 = vld [vmem:[#allocation2 + $0xdc0] sm:$0xff]
    %v569 = vld [vmem:[#allocation2 + $0xdc8] sm:$0xff]
    %v570 = vld [vmem:[#allocation2 + $0xdd0] sm:$0xff]
    %v571 = vld [vmem:[#allocation2 + $0xdd8] sm:$0xff]
    %v572 = vld [vmem:[#allocation2 + $0xde0] sm:$0xff]
    %v573 = vld [vmem:[#allocation2 + $0xde8] sm:$0xf]
    %v574 = vld [vmem:[#allocation2 + $0xdec] sm:$0xff]
    %v575 = vld [vmem:[#allocation2 + $0xdf4] sm:$0xff]
    %v576 = vld [vmem:[#allocation2 + $0xdfc] sm:$0xff]
    %v577 = vld [vmem:[#allocation2 + $0xe04] sm:$0xff]
    %v578 = vld [vmem:[#allocation2 + $0xe0c] sm:$0xff]
    %v579 = vld [vmem:[#allocation2 + $0xe14] sm:$0xff]
    %v580 = vld [vmem:[#allocation2 + $0xe1c] sm:$0xff]
    %v581 = vld [vmem:[#allocation2 + $0xe24] sm:$0xff]
    %v582 = vld [vmem:[#allocation2 + $0xe2c] sm:$0xff]
    %v583 = vld [vmem:[#allocation2 + $0xe34] sm:$0xff]
    %v584 = vld [vmem:[#allocation2 + $0xe3c] sm:$0xff]
    %v585 = vld [vmem:[#allocation2 + $0xe44] sm:$0xff]
    %v586 = vld [vmem:[#allocation2 + $0xe4c] sm:$0xff]
    %v587 = vld [vmem:[#allocation2 + $0xe54] sm:$0xf]
    %v588 = vld [vmem:[#allocation2 + $0xe58] sm:$0xff]
    %v589 = vld [vmem:[#allocation2 + $0xe60] sm:$0xff]
    %v590 = vld [vmem:[#allocation2 + $0xe68] sm:$0xff]
    %v591 = vld [vmem:[#allocation2 + $0xe70] sm:$0xff]
    %v592 = vld [vmem:[#allocation2 + $0xe78] sm:$0xff]
    %v593 = vld [vmem:[#allocation2 + $0xe80] sm:$0xff]
    %v594 = vld [vmem:[#allocation2 + $0xe88] sm:$0xff]
    %v595 = vld [vmem:[#allocation2 + $0xe90] sm:$0xff]
    %v596 = vld [vmem:[#allocation2 + $0xe98] sm:$0xff]
    %v597 = vld [vmem:[#allocation2 + $0xea0] sm:$0xff]
    %v598 = vld [vmem:[#allocation2 + $0xea8] sm:$0xff]
    %v599 = vld [vmem:[#allocation2 + $0xeb0] sm:$0xff]
    %v600 = vld [vmem:[#allocation2 + $0xeb8] sm:$0xff]
    %v601 = vld [vmem:[#allocation2 + $0xec0] sm:$0xf]
    %v602 = vld [vmem:[#allocation2 + $0xec4] sm:$0xff]
    %v603 = vld [vmem:[#allocation2 + $0xecc] sm:$0xff]
    %v604 = vld [vmem:[#allocation2 + $0xed4] sm:$0xff]
    %v605 = vld [vmem:[#allocation2 + $0xedc] sm:$0xff]
    %v606 = vld [vmem:[#allocation2 + $0xee4] sm:$0xff]
    %v607 = vld [vmem:[#allocation2 + $0xeec] sm:$0xff]
    %v608 = vld [vmem:[#allocation2 + $0xef4] sm:$0xff]
    %v609 = vld [vmem:[#allocation2 + $0xefc] sm:$0xff]
    %v610 = vld [vmem:[#allocation2 + $0xf04] sm:$0xff]
    %v611 = vld [vmem:[#allocation2 + $0xf0c] sm:$0xff]
    %v612 = vld [vmem:[#allocation2 + $0xf14] sm:$0xff]
    %v613 = vld [vmem:[#allocation2 + $0xf1c] sm:$0xff]
    %v614 = vld [vmem:[#allocation2 + $0xf24] sm:$0xff]
    %v615 = vld [vmem:[#allocation2 + $0xf2c] sm:$0xf]
    %v616 = vld [vmem:[#allocation2 + $0xf30] sm:$0xff]
    %v617 = vld [vmem:[#allocation2 + $0xf38] sm:$0xff]
    %v618 = vld [vmem:[#allocation2 + $0xf40] sm:$0xff]
    %v619 = vld [vmem:[#allocation2 + $0xf48] sm:$0xff]
    %v620 = vld [vmem:[#allocation2 + $0xf50] sm:$0xff]
    %v621 = vld [vmem:[#allocation2 + $0xf58] sm:$0xff]
    %v622 = vld [vmem:[#allocation2 + $0xf60] sm:$0xff]
    %v623 = vld [vmem:[#allocation2 + $0xf68] sm:$0xff]
    %v624 = vld [vmem:[#allocation2 + $0xf70] sm:$0xff]
    %v625 = vld [vmem:[#allocation2 + $0xf78] sm:$0xff]
    %v626 = vld [vmem:[#allocation2 + $0xf80] sm:$0xff]
    %v627 = vld [vmem:[#allocation2 + $0xf88] sm:$0xff]
    %v628 = vld [vmem:[#allocation2 + $0xf90] sm:$0xff]
    %v629 = vld [vmem:[#allocation2 + $0xf98] sm:$0xf]
    %v630 = vld [vmem:[#allocation2 + $0xf9c] sm:$0xff]
    %v631 = vld [vmem:[#allocation2 + $0xfa4] sm:$0xff]
    %v632 = vld [vmem:[#allocation2 + $0xfac] sm:$0xff]
    %v633 = vld [vmem:[#allocation2 + $0xfb4] sm:$0xff]
    %v634 = vld [vmem:[#allocation2 + $0xfbc] sm:$0xff]
    %v635 = vld [vmem:[#allocation2 + $0xfc4] sm:$0xff]
    %v636 = vld [vmem:[#allocation2 + $0xfcc] sm:$0xff]
    %v637 = vld [vmem:[#allocation2 + $0xfd4] sm:$0xff]
    %v638 = vld [vmem:[#allocation2 + $0xfdc] sm:$0xff]
    %v639 = vld [vmem:[#allocation2 + $0xfe4] sm:$0xff]
    %v640 = vld [vmem:[#allocation2 + $0xfec] sm:$0xff]
    %v641 = vld [vmem:[#allocation2 + $0xff4] sm:$0xff]
    %v642 = vld [vmem:[#allocation2 + $0xffc] sm:$0xff]
    %v643 = vld [vmem:[#allocation2 + $0x1004] sm:$0xf]
    %v644 = vld [vmem:[#allocation2 + $0x1008] sm:$0xff]
    %v645 = vld [vmem:[#allocation2 + $0x1010] sm:$0xff]
    %v646 = vld [vmem:[#allocation2 + $0x1018] sm:$0xff]
    %v647 = vld [vmem:[#allocation2 + $0x1020] sm:$0xff]
    %v648 = vld [vmem:[#allocation2 + $0x1028] sm:$0xff]
    %v649 = vld [vmem:[#allocation2 + $0x1030] sm:$0xff]
    %v650 = vld [vmem:[#allocation2 + $0x1038] sm:$0xff]
    %v651 = vld [vmem:[#allocation2 + $0x1040] sm:$0xff]
    %v652 = vld [vmem:[#allocation2 + $0x1048] sm:$0xff]
    %v653 = vld [vmem:[#allocation2 + $0x1050] sm:$0xff]
    %v654 = vld [vmem:[#allocation2 + $0x1058] sm:$0xff]
    %v655 = vld [vmem:[#allocation2 + $0x1060] sm:$0xff]
    %v656 = vld [vmem:[#allocation2 + $0x1068] sm:$0xff]
    %v657 = vld [vmem:[#allocation2 + $0x1070] sm:$0xf]
    %v658 = vld [vmem:[#allocation2 + $0x1074] sm:$0xff]
    %v659 = vld [vmem:[#allocation2 + $0x107c] sm:$0xff]
    %v660 = vld [vmem:[#allocation2 + $0x1084] sm:$0xff]
    %v661 = vld [vmem:[#allocation2 + $0x108c] sm:$0xff]
    %v662 = vld [vmem:[#allocation2 + $0x1094] sm:$0xff]
    %v663 = vld [vmem:[#allocation2 + $0x109c] sm:$0xff]
    %v664 = vld [vmem:[#allocation2 + $0x10a4] sm:$0xff]
    %v665 = vld [vmem:[#allocation2 + $0x10ac] sm:$0xff]
    %v666 = vld [vmem:[#allocation2 + $0x10b4] sm:$0xff]
    %v667 = vld [vmem:[#allocation2 + $0x10bc] sm:$0xff]
    %v668 = vld [vmem:[#allocation2 + $0x10c4] sm:$0xff]
    %v669 = vld [vmem:[#allocation2 + $0x10cc] sm:$0xff]
    %v670 = vld [vmem:[#allocation2 + $0x10d4] sm:$0xff]
    %v671 = vld [vmem:[#allocation2 + $0x10dc] sm:$0xf]
    %v672 = vld [vmem:[#allocation2 + $0x10e0] sm:$0xff]
    %v673 = vld [vmem:[#allocation2 + $0x10e8] sm:$0xff]
    %v674 = vld [vmem:[#allocation2 + $0x10f0] sm:$0xff]
    %v675 = vld [vmem:[#allocation2 + $0x10f8] sm:$0xff]
    %v676 = vld [vmem:[#allocation2 + $0x1100] sm:$0xff]
    %v677 = vld [vmem:[#allocation2 + $0x1108] sm:$0xff]
    %v678 = vld [vmem:[#allocation2 + $0x1110] sm:$0xff]
    %v679 = vld [vmem:[#allocation2 + $0x1118] sm:$0xff]
    %v680 = vld [vmem:[#allocation2 + $0x1120] sm:$0xff]
    %v681 = vld [vmem:[#allocation2 + $0x1128] sm:$0xff]
    %v682 = vld [vmem:[#allocation2 + $0x1130] sm:$0xff]
    %v683 = vld [vmem:[#allocation2 + $0x1138] sm:$0xff]
    %v684 = vld [vmem:[#allocation2 + $0x1140] sm:$0xff]
    %v685 = vld [vmem:[#allocation2 + $0x1148] sm:$0xf]
    %v686 = vld [vmem:[#allocation2 + $0x114c] sm:$0xff]
    %v687 = vld [vmem:[#allocation2 + $0x1154] sm:$0xff]
    %v688 = vld [vmem:[#allocation2 + $0x115c] sm:$0xff]
    %v689 = vld [vmem:[#allocation2 + $0x1164] sm:$0xff]
    %v690 = vld [vmem:[#allocation2 + $0x116c] sm:$0xff]
    %v691 = vld [vmem:[#allocation2 + $0x1174] sm:$0xff]
    %v692 = vld [vmem:[#allocation2 + $0x117c] sm:$0xff]
    %v693 = vld [vmem:[#allocation2 + $0x1184] sm:$0xff]
    %v694 = vld [vmem:[#allocation2 + $0x118c] sm:$0xff]
    %v695 = vld [vmem:[#allocation2 + $0x1194] sm:$0xff]
    %v696 = vld [vmem:[#allocation2 + $0x119c] sm:$0xff]
    %v697 = vld [vmem:[#allocation2 + $0x11a4] sm:$0xff]
    %v698 = vld [vmem:[#allocation2 + $0x11ac] sm:$0xff]
    %v699 = vld [vmem:[#allocation2 + $0x11b4] sm:$0xf]
    %v700 = vld [vmem:[#allocation2 + $0x11b8] sm:$0xff]
    %v701 = vld [vmem:[#allocation2 + $0x11c0] sm:$0xff]
    %v702 = vld [vmem:[#allocation2 + $0x11c8] sm:$0xff]
    %v703 = vld [vmem:[#allocation2 + $0x11d0] sm:$0xff]
    %v704 = vld [vmem:[#allocation2 + $0x11d8] sm:$0xff]
    %v705 = vld [vmem:[#allocation2 + $0x11e0] sm:$0xff]
    %v706 = vld [vmem:[#allocation2 + $0x11e8] sm:$0xff]
    %v707 = vld [vmem:[#allocation2 + $0x11f0] sm:$0xff]
    %v708 = vld [vmem:[#allocation2 + $0x11f8] sm:$0xff]
    %v709 = vld [vmem:[#allocation2 + $0x1200] sm:$0xff]
    %v710 = vld [vmem:[#allocation2 + $0x1208] sm:$0xff]
    %v711 = vld [vmem:[#allocation2 + $0x1210] sm:$0xff]
    %v712 = vld [vmem:[#allocation2 + $0x1218] sm:$0xff]
    %v713 = vld [vmem:[#allocation2 + $0x1220] sm:$0xf]
    %v714 = vld [vmem:[#allocation2 + $0x1224] sm:$0xff]
    %v715 = vld [vmem:[#allocation2 + $0x122c] sm:$0xff]
    %v716 = vld [vmem:[#allocation2 + $0x1234] sm:$0xff]
    %v717 = vld [vmem:[#allocation2 + $0x123c] sm:$0xff]
    %v718 = vld [vmem:[#allocation2 + $0x1244] sm:$0xff]
    %v719 = vld [vmem:[#allocation2 + $0x124c] sm:$0xff]
    %v720 = vld [vmem:[#allocation2 + $0x1254] sm:$0xff]
    %v721 = vld [vmem:[#allocation2 + $0x125c] sm:$0xff]
    %v722 = vld [vmem:[#allocation2 + $0x1264] sm:$0xff]
    %v723 = vld [vmem:[#allocation2 + $0x126c] sm:$0xff]
    %v724 = vld [vmem:[#allocation2 + $0x1274] sm:$0xff]
    %v725 = vld [vmem:[#allocation2 + $0x127c] sm:$0xff]
    %v726 = vld [vmem:[#allocation2 + $0x1284] sm:$0xff]
    %v727 = vld [vmem:[#allocation2 + $0x128c] sm:$0xf]
    %v728 = vld [vmem:[#allocation2 + $0x1290] sm:$0xff]
    %v729 = vld [vmem:[#allocation2 + $0x1298] sm:$0xff]
    %v730 = vld [vmem:[#allocation2 + $0x12a0] sm:$0xff]
    %v731 = vld [vmem:[#allocation2 + $0x12a8] sm:$0xff]
    %v732 = vld [vmem:[#allocation2 + $0x12b0] sm:$0xff]
    %v733 = vld [vmem:[#allocation2 + $0x12b8] sm:$0xff]
    %v734 = vld [vmem:[#allocation2 + $0x12c0] sm:$0xff]
    %v735 = vld [vmem:[#allocation2 + $0x12c8] sm:$0xff]
    %v736 = vld [vmem:[#allocation2 + $0x12d0] sm:$0xff]
    %v737 = vld [vmem:[#allocation2 + $0x12d8] sm:$0xff]
    %v738 = vld [vmem:[#allocation2 + $0x12e0] sm:$0xff]
    %v739 = vld [vmem:[#allocation2 + $0x12e8] sm:$0xff]
    %v740 = vld [vmem:[#allocation2 + $0x12f0] sm:$0xff]
    %v741 = vld [vmem:[#allocation2 + $0x12f8] sm:$0xf]
    %v742 = vld [vmem:[#allocation2 + $0x12fc] sm:$0xff]
    %v743 = vld [vmem:[#allocation2 + $0x1304] sm:$0xff]
    %v744 = vld [vmem:[#allocation2 + $0x130c] sm:$0xff]
    %v745 = vld [vmem:[#allocation2 + $0x1314] sm:$0xff]
    %v746 = vld [vmem:[#allocation2 + $0x131c] sm:$0xff]
    %v747 = vld [vmem:[#allocation2 + $0x1324] sm:$0xff]
    %v748 = vld [vmem:[#allocation2 + $0x132c] sm:$0xff]
    %v749 = vld [vmem:[#allocation2 + $0x1334] sm:$0xff]
    %v750 = vld [vmem:[#allocation2 + $0x133c] sm:$0xff]
    %v751 = vld [vmem:[#allocation2 + $0x1344] sm:$0xff]
    %v752 = vld [vmem:[#allocation2 + $0x134c] sm:$0xff]
    %v753 = vld [vmem:[#allocation2 + $0x1354] sm:$0xff]
    %v754 = vld [vmem:[#allocation2 + $0x135c] sm:$0xff]
    %v755 = vld [vmem:[#allocation2 + $0x1364] sm:$0xf]
    %v756 = vld [vmem:[#allocation2 + $0x1368] sm:$0xff]
    %v757 = vld [vmem:[#allocation2 + $0x1370] sm:$0xff]
    %v758 = vld [vmem:[#allocation2 + $0x1378] sm:$0xff]
    %v759 = vld [vmem:[#allocation2 + $0x1380] sm:$0xff]
    %v760 = vld [vmem:[#allocation2 + $0x1388] sm:$0xff]
    %v761 = vld [vmem:[#allocation2 + $0x1390] sm:$0xff]
    %v762 = vld [vmem:[#allocation2 + $0x1398] sm:$0xff]
    %v763 = vld [vmem:[#allocation2 + $0x13a0] sm:$0xff]
    %v764 = vld [vmem:[#allocation2 + $0x13a8] sm:$0xff]
    %v765 = vld [vmem:[#allocation2 + $0x13b0] sm:$0xff]
    %v766 = vld [vmem:[#allocation2 + $0x13b8] sm:$0xff]
    %v767 = vld [vmem:[#allocation2 + $0x13c0] sm:$0xff]
    %v768 = vld [vmem:[#allocation2 + $0x13c8] sm:$0xff]
    %v769 = vld [vmem:[#allocation2 + $0x13d0] sm:$0xf]
    %v770 = vld [vmem:[#allocation2 + $0x13d4] sm:$0xff]
    %v771 = vld [vmem:[#allocation2 + $0x13dc] sm:$0xff]
    %v772 = vld [vmem:[#allocation2 + $0x13e4] sm:$0xff]
    %v773 = vld [vmem:[#allocation2 + $0x13ec] sm:$0xff]
    %v774 = vld [vmem:[#allocation2 + $0x13f4] sm:$0xff]
    %v775 = vld [vmem:[#allocation2 + $0x13fc] sm:$0xff]
    %v776 = vld [vmem:[#allocation2 + $0x1404] sm:$0xff]
    %v777 = vld [vmem:[#allocation2 + $0x140c] sm:$0xff]
    %v778 = vld [vmem:[#allocation2 + $0x1414] sm:$0xff]
    %v779 = vld [vmem:[#allocation2 + $0x141c] sm:$0xff]
    %v780 = vld [vmem:[#allocation2 + $0x1424] sm:$0xff]
    %v781 = vld [vmem:[#allocation2 + $0x142c] sm:$0xff]
    %v782 = vld [vmem:[#allocation2 + $0x1434] sm:$0xff]
    %v783 = vld [vmem:[#allocation2 + $0x143c] sm:$0xf]
    %v784 = vld [vmem:[#allocation2 + $0x1440] sm:$0xff]
    %v785 = vld [vmem:[#allocation2 + $0x1448] sm:$0xff]
    %v786 = vld [vmem:[#allocation2 + $0x1450] sm:$0xff]
    %v787 = vld [vmem:[#allocation2 + $0x1458] sm:$0xff]
    %v788 = vld [vmem:[#allocation2 + $0x1460] sm:$0xff]
    %v789 = vld [vmem:[#allocation2 + $0x1468] sm:$0xff]
    %v790 = vld [vmem:[#allocation2 + $0x1470] sm:$0xff]
    %v791 = vld [vmem:[#allocation2 + $0x1478] sm:$0xff]
    %v792 = vld [vmem:[#allocation2 + $0x1480] sm:$0xff]
    %v793 = vld [vmem:[#allocation2 + $0x1488] sm:$0xff]
    %v794 = vld [vmem:[#allocation2 + $0x1490] sm:$0xff]
    %v795 = vld [vmem:[#allocation2 + $0x1498] sm:$0xff]
    %v796 = vld [vmem:[#allocation2 + $0x14a0] sm:$0xff]
    %v797 = vld [vmem:[#allocation2 + $0x14a8] sm:$0xf]
    %v798 = vld [vmem:[#allocation2 + $0x14ac] sm:$0xff]
    %v799 = vld [vmem:[#allocation2 + $0x14b4] sm:$0xff]
    %v800 = vld [vmem:[#allocation2 + $0x14bc] sm:$0xff]
    %v801 = vld [vmem:[#allocation2 + $0x14c4] sm:$0xff]
    %v802 = vld [vmem:[#allocation2 + $0x14cc] sm:$0xff]
    %v803 = vld [vmem:[#allocation2 + $0x14d4] sm:$0xff]
    %v804 = vld [vmem:[#allocation2 + $0x14dc] sm:$0xff]
    %v805 = vld [vmem:[#allocation2 + $0x14e4] sm:$0xff]
    %v806 = vld [vmem:[#allocation2 + $0x14ec] sm:$0xff]
    %v807 = vld [vmem:[#allocation2 + $0x14f4] sm:$0xff]
    %v808 = vld [vmem:[#allocation2 + $0x14fc] sm:$0xff]
    %v809 = vld [vmem:[#allocation2 + $0x1504] sm:$0xff]
    %v810 = vld [vmem:[#allocation2 + $0x150c] sm:$0xff]
    %v811 = vld [vmem:[#allocation2 + $0x1514] sm:$0xf]
    %v812 = vld [vmem:[#allocation2 + $0x1518] sm:$0xff]
    %v813 = vld [vmem:[#allocation2 + $0x1520] sm:$0xff]
    %v814 = vld [vmem:[#allocation2 + $0x1528] sm:$0xff]
    %v815 = vld [vmem:[#allocation2 + $0x1530] sm:$0xff]
    %v816 = vld [vmem:[#allocation2 + $0x1538] sm:$0xff]
    %v817 = vld [vmem:[#allocation2 + $0x1540] sm:$0xff]
    %v818 = vld [vmem:[#allocation2 + $0x1548] sm:$0xff]
    %v819 = vld [vmem:[#allocation2 + $0x1550] sm:$0xff]
    %v820 = vld [vmem:[#allocation2 + $0x1558] sm:$0xff]
    %v821 = vld [vmem:[#allocation2 + $0x1560] sm:$0xff]
    %v822 = vld [vmem:[#allocation2 + $0x1568] sm:$0xff]
    %v823 = vld [vmem:[#allocation2 + $0x1570] sm:$0xff]
    %v824 = vld [vmem:[#allocation2 + $0x1578] sm:$0xff]
    %v825 = vld [vmem:[#allocation2 + $0x1580] sm:$0xf]
    %v826 = vld [vmem:[#allocation2 + $0x1584] sm:$0xff]
    %v827 = vld [vmem:[#allocation2 + $0x158c] sm:$0xff]
    %v828 = vld [vmem:[#allocation2 + $0x1594] sm:$0xff]
    %v829 = vld [vmem:[#allocation2 + $0x159c] sm:$0xff]
    %v830 = vld [vmem:[#allocation2 + $0x15a4] sm:$0xff]
    %v831 = vld [vmem:[#allocation2 + $0x15ac] sm:$0xff]
    %v832 = vld [vmem:[#allocation2 + $0x15b4] sm:$0xff]
    %v833 = vld [vmem:[#allocation2 + $0x15bc] sm:$0xff]
    %v834 = vld [vmem:[#allocation2 + $0x15c4] sm:$0xff]
    %v835 = vld [vmem:[#allocation2 + $0x15cc] sm:$0xff]
    %v836 = vld [vmem:[#allocation2 + $0x15d4] sm:$0xff]
    %v837 = vld [vmem:[#allocation2 + $0x15dc] sm:$0xff]
    %v838 = vld [vmem:[#allocation2 + $0x15e4] sm:$0xff]
    %v839 = vld [vmem:[#allocation2 + $0x15ec] sm:$0xf]
    %v840 = vld [vmem:[#allocation2 + $0x15f0] sm:$0xff]
    %v841 = vld [vmem:[#allocation2 + $0x15f8] sm:$0xff]
    %v842 = vld [vmem:[#allocation2 + $0x1600] sm:$0xff]
    %v843 = vld [vmem:[#allocation2 + $0x1608] sm:$0xff]
    %v844 = vld [vmem:[#allocation2 + $0x1610] sm:$0xff]
    %v845 = vld [vmem:[#allocation2 + $0x1618] sm:$0xff]
    %v846 = vld [vmem:[#allocation2 + $0x1620] sm:$0xff]
    %v847 = vld [vmem:[#allocation2 + $0x1628] sm:$0xff]
    %v848 = vld [vmem:[#allocation2 + $0x1630] sm:$0xff]
    %v849 = vld [vmem:[#allocation2 + $0x1638] sm:$0xff]
    %v850 = vld [vmem:[#allocation2 + $0x1640] sm:$0xff]
    %v851 = vld [vmem:[#allocation2 + $0x1648] sm:$0xff]
    %v852 = vld [vmem:[#allocation2 + $0x1650] sm:$0xff]
    %v853 = vld [vmem:[#allocation2 + $0x1658] sm:$0xf]
    %v854 = vld [vmem:[#allocation2 + $0x165c] sm:$0xff]
    %v855 = vld [vmem:[#allocation2 + $0x1664] sm:$0xff]
    %v856 = vld [vmem:[#allocation2 + $0x166c] sm:$0xff]
    %v857 = vld [vmem:[#allocation2 + $0x1674] sm:$0xff]
    %v858 = vld [vmem:[#allocation2 + $0x167c] sm:$0xff]
    %v859 = vld [vmem:[#allocation2 + $0x1684] sm:$0xff]
    %v860 = vld [vmem:[#allocation2 + $0x168c] sm:$0xff]
    %v861 = vld [vmem:[#allocation2 + $0x1694] sm:$0xff]
    %v862 = vld [vmem:[#allocation2 + $0x169c] sm:$0xff]
    %v863 = vld [vmem:[#allocation2 + $0x16a4] sm:$0xff]
    %v864 = vld [vmem:[#allocation2 + $0x16ac] sm:$0xff]
    %v865 = vld [vmem:[#allocation2 + $0x16b4] sm:$0xff]
    %v866 = vld [vmem:[#allocation2 + $0x16bc] sm:$0xff]
    %v867 = vld [vmem:[#allocation2 + $0x16c4] sm:$0xf]
    %v868 = vld [vmem:[#allocation2 + $0x16c8] sm:$0xff]
    %v869 = vld [vmem:[#allocation2 + $0x16d0] sm:$0xff]
    %v870 = vld [vmem:[#allocation2 + $0x16d8] sm:$0xff]
    %v871 = vld [vmem:[#allocation2 + $0x16e0] sm:$0xff]
    %v872 = vld [vmem:[#allocation2 + $0x16e8] sm:$0xff]
    %v873 = vld [vmem:[#allocation2 + $0x16f0] sm:$0xff]
    %v874 = vld [vmem:[#allocation2 + $0x16f8] sm:$0xff]
    %v875 = vld [vmem:[#allocation2 + $0x1700] sm:$0xff]
    %v876 = vld [vmem:[#allocation2 + $0x1708] sm:$0xff]
    %v877 = vld [vmem:[#allocation2 + $0x1710] sm:$0xff]
    %v878 = vld [vmem:[#allocation2 + $0x1718] sm:$0xff]
    %v879 = vld [vmem:[#allocation2 + $0x1720] sm:$0xff]
    %v880 = vld [vmem:[#allocation2 + $0x1728] sm:$0xff]
    %v881 = vld [vmem:[#allocation2 + $0x1730] sm:$0xf]
    %v882 = vld [vmem:[#allocation2 + $0x1734] sm:$0xff]
    %v883 = vld [vmem:[#allocation2 + $0x173c] sm:$0xff]
    %v884 = vld [vmem:[#allocation2 + $0x1744] sm:$0xff]
    %v885 = vld [vmem:[#allocation2 + $0x174c] sm:$0xff]
    %v886 = vld [vmem:[#allocation2 + $0x1754] sm:$0xff]
    %v887 = vld [vmem:[#allocation2 + $0x175c] sm:$0xff]
    %v888 = vld [vmem:[#allocation2 + $0x1764] sm:$0xff]
    %v889 = vld [vmem:[#allocation2 + $0x176c] sm:$0xff]
    %v890 = vld [vmem:[#allocation2 + $0x1774] sm:$0xff]
    %v891 = vld [vmem:[#allocation2 + $0x177c] sm:$0xff]
    %v892 = vld [vmem:[#allocation2 + $0x1784] sm:$0xff]
    %v893 = vld [vmem:[#allocation2 + $0x178c] sm:$0xff]
    %v894 = vld [vmem:[#allocation2 + $0x1794] sm:$0xff]
    %v895 = vld [vmem:[#allocation2 + $0x179c] sm:$0xf]
    %v896 = vld [vmem:[#allocation2 + $0x17a0] sm:$0xff]
    %v897 = vld [vmem:[#allocation2 + $0x17a8] sm:$0xff]
    %v898 = vld [vmem:[#allocation2 + $0x17b0] sm:$0xff]
    %v899 = vld [vmem:[#allocation2 + $0x17b8] sm:$0xff]
    %v900 = vld [vmem:[#allocation2 + $0x17c0] sm:$0xff]
    %v901 = vld [vmem:[#allocation2 + $0x17c8] sm:$0xff]
    %v902 = vld [vmem:[#allocation2 + $0x17d0] sm:$0xff]
    %v903 = vld [vmem:[#allocation2 + $0x17d8] sm:$0xff]
    %v904 = vld [vmem:[#allocation2 + $0x17e0] sm:$0xff]
    %v905 = vld [vmem:[#allocation2 + $0x17e8] sm:$0xff]
    %v906 = vld [vmem:[#allocation2 + $0x17f0] sm:$0xff]
    %v907 = vld [vmem:[#allocation2 + $0x17f8] sm:$0xff]
    %v908 = vld [vmem:[#allocation2 + $0x1800] sm:$0xff]
    %v909 = vld [vmem:[#allocation2 + $0x1808] sm:$0xf]
    %v910 = vld [vmem:[#allocation2 + $0x180c] sm:$0xff]
    %v911 = vld [vmem:[#allocation2 + $0x1814] sm:$0xff]
    %v912 = vld [vmem:[#allocation2 + $0x181c] sm:$0xff]
    %v913 = vld [vmem:[#allocation2 + $0x1824] sm:$0xff]
    %v914 = vld [vmem:[#allocation2 + $0x182c] sm:$0xff]
    %v915 = vld [vmem:[#allocation2 + $0x1834] sm:$0xff]
    %v916 = vld [vmem:[#allocation2 + $0x183c] sm:$0xff]
    %v917 = vld [vmem:[#allocation2 + $0x1844] sm:$0xff]
    %v918 = vld [vmem:[#allocation2 + $0x184c] sm:$0xff]
    %v919 = vld [vmem:[#allocation2 + $0x1854] sm:$0xff]
    %v920 = vld [vmem:[#allocation2 + $0x185c] sm:$0xff]
    %v921 = vld [vmem:[#allocation2 + $0x1864] sm:$0xff]
    %v922 = vld [vmem:[#allocation2 + $0x186c] sm:$0xff]
    %v923 = vld [vmem:[#allocation2 + $0x1874] sm:$0xf]
    %v924 = vld [vmem:[#allocation2 + $0x1878] sm:$0xff]
    %v925 = vld [vmem:[#allocation2 + $0x1880] sm:$0xff]
    %v926 = vld [vmem:[#allocation2 + $0x1888] sm:$0xff]
    %v927 = vld [vmem:[#allocation2 + $0x1890] sm:$0xff]
    %v928 = vld [vmem:[#allocation2 + $0x1898] sm:$0xff]
    %v929 = vld [vmem:[#allocation2 + $0x18a0] sm:$0xff]
    %v930 = vld [vmem:[#allocation2 + $0x18a8] sm:$0xff]
    %v931 = vld [vmem:[#allocation2 + $0x18b0] sm:$0xff]
    %v932 = vld [vmem:[#allocation2 + $0x18b8] sm:$0xff]
    %v933 = vld [vmem:[#allocation2 + $0x18c0] sm:$0xff]
    %v934 = vld [vmem:[#allocation2 + $0x18c8] sm:$0xff]
    %v935 = vld [vmem:[#allocation2 + $0x18d0] sm:$0xff]
    %v936 = vld [vmem:[#allocation2 + $0x18d8] sm:$0xff]
    %v937 = vld [vmem:[#allocation2 + $0x18e0] sm:$0xf]
    %v938 = vld [vmem:[#allocation2 + $0x18e4] sm:$0xff]
    %v939 = vld [vmem:[#allocation2 + $0x18ec] sm:$0xff]
    %v940 = vld [vmem:[#allocation2 + $0x18f4] sm:$0xff]
    %v941 = vld [vmem:[#allocation2 + $0x18fc] sm:$0xff]
    %v942 = vld [vmem:[#allocation2 + $0x1904] sm:$0xff]
    %v943 = vld [vmem:[#allocation2 + $0x190c] sm:$0xff]
    %v944 = vld [vmem:[#allocation2 + $0x1914] sm:$0xff]
    %v945 = vld [vmem:[#allocation2 + $0x191c] sm:$0xff]
    %v946 = vld [vmem:[#allocation2 + $0x1924] sm:$0xff]
    %v947 = vld [vmem:[#allocation2 + $0x192c] sm:$0xff]
    %v948 = vld [vmem:[#allocation2 + $0x1934] sm:$0xff]
    %v949 = vld [vmem:[#allocation2 + $0x193c] sm:$0xff]
    %v950 = vld [vmem:[#allocation2 + $0x1944] sm:$0xff]
    %v951 = vld [vmem:[#allocation2 + $0x194c] sm:$0xf]
    %v952 = vld [vmem:[#allocation2 + $0x1950] sm:$0xff]
    %v953 = vld [vmem:[#allocation2 + $0x1958] sm:$0xff]
    %v954 = vld [vmem:[#allocation2 + $0x1960] sm:$0xff]
    %v955 = vld [vmem:[#allocation2 + $0x1968] sm:$0xff]
    %v956 = vld [vmem:[#allocation2 + $0x1970] sm:$0xff]
    %v957 = vld [vmem:[#allocation2 + $0x1978] sm:$0xff]
    %v958 = vld [vmem:[#allocation2 + $0x1980] sm:$0xff]
    %v959 = vld [vmem:[#allocation2 + $0x1988] sm:$0xff]
    %v960 = vld [vmem:[#allocation2 + $0x1990] sm:$0xff]
    %v961 = vld [vmem:[#allocation2 + $0x1998] sm:$0xff]
    %v962 = vld [vmem:[#allocation2 + $0x19a0] sm:$0xff]
    %v963 = vld [vmem:[#allocation2 + $0x19a8] sm:$0xff]
    %v964 = vld [vmem:[#allocation2 + $0x19b0] sm:$0xff]
    %v965 = vld [vmem:[#allocation2 + $0x19b8] sm:$0xf]
    %v966 = vld [vmem:[#allocation2 + $0x19bc] sm:$0xff]
    %v967 = vld [vmem:[#allocation2 + $0x19c4] sm:$0xff]
    %v968 = vld [vmem:[#allocation2 + $0x19cc] sm:$0xff]
    %v969 = vld [vmem:[#allocation2 + $0x19d4] sm:$0xff]
    %v970 = vld [vmem:[#allocation2 + $0x19dc] sm:$0xff]
    %v971 = vld [vmem:[#allocation2 + $0x19e4] sm:$0xff]
    %v972 = vld [vmem:[#allocation2 + $0x19ec] sm:$0xff]
    %v973 = vld [vmem:[#allocation2 + $0x19f4] sm:$0xff]
    %v974 = vld [vmem:[#allocation2 + $0x19fc] sm:$0xff]
    %v975 = vld [vmem:[#allocation2 + $0x1a04] sm:$0xff]
    %v976 = vld [vmem:[#allocation2 + $0x1a0c] sm:$0xff]
    %v977 = vld [vmem:[#allocation2 + $0x1a14] sm:$0xff]
    %v978 = vld [vmem:[#allocation2 + $0x1a1c] sm:$0xff]
    %v979 = vld [vmem:[#allocation2 + $0x1a24] sm:$0xf]
    %v980 = vld [vmem:[#allocation2 + $0x1a28] sm:$0xff]
    %v981 = vld [vmem:[#allocation2 + $0x1a30] sm:$0xff]
    %v982 = vld [vmem:[#allocation2 + $0x1a38] sm:$0xff]
    %v983 = vld [vmem:[#allocation2 + $0x1a40] sm:$0xff]
    %v984 = vld [vmem:[#allocation2 + $0x1a48] sm:$0xff]
    %v985 = vld [vmem:[#allocation2 + $0x1a50] sm:$0xff]
    %v986 = vld [vmem:[#allocation2 + $0x1a58] sm:$0xff]
    %v987 = vld [vmem:[#allocation2 + $0x1a60] sm:$0xff]
    %v988 = vld [vmem:[#allocation2 + $0x1a68] sm:$0xff]
    %v989 = vld [vmem:[#allocation2 + $0x1a70] sm:$0xff]
    %v990 = vld [vmem:[#allocation2 + $0x1a78] sm:$0xff]
    %v991 = vld [vmem:[#allocation2 + $0x1a80] sm:$0xff]
    %v992 = vld [vmem:[#allocation2 + $0x1a88] sm:$0xff]
    %v993 = vld [vmem:[#allocation2 + $0x1a90] sm:$0xf]
    %v994 = vld [vmem:[#allocation2 + $0x1a94] sm:$0xff]
    %v995 = vld [vmem:[#allocation2 + $0x1a9c] sm:$0xff]
    %v996 = vld [vmem:[#allocation2 + $0x1aa4] sm:$0xff]
    %v997 = vld [vmem:[#allocation2 + $0x1aac] sm:$0xff]
    %v998 = vld [vmem:[#allocation2 + $0x1ab4] sm:$0xff]
    %v999 = vld [vmem:[#allocation2 + $0x1abc] sm:$0xff]
    %v1000 = vld [vmem:[#allocation2 + $0x1ac4] sm:$0xff]
    %v1001 = vld [vmem:[#allocation2 + $0x1acc] sm:$0xff]
    %v1002 = vld [vmem:[#allocation2 + $0x1ad4] sm:$0xff]
    %v1003 = vld [vmem:[#allocation2 + $0x1adc] sm:$0xff]
    %v1004 = vld [vmem:[#allocation2 + $0x1ae4] sm:$0xff]
    %v1005 = vld [vmem:[#allocation2 + $0x1aec] sm:$0xff]
    %v1006 = vld [vmem:[#allocation2 + $0x1af4] sm:$0xff]
    %v1007 = vld [vmem:[#allocation2 + $0x1afc] sm:$0xf]
    %v1008 = vld [vmem:[#allocation2 + $0x1b00] sm:$0xff]
    %v1009 = vld [vmem:[#allocation2 + $0x1b08] sm:$0xff]
    %v1010 = vld [vmem:[#allocation2 + $0x1b10] sm:$0xff]
    %v1011 = vld [vmem:[#allocation2 + $0x1b18] sm:$0xff]
    %v1012 = vld [vmem:[#allocation2 + $0x1b20] sm:$0xff]
    %v1013 = vld [vmem:[#allocation2 + $0x1b28] sm:$0xff]
    %v1014 = vld [vmem:[#allocation2 + $0x1b30] sm:$0xff]
    %v1015 = vld [vmem:[#allocation2 + $0x1b38] sm:$0xff]
    %v1016 = vld [vmem:[#allocation2 + $0x1b40] sm:$0xff]
    %v1017 = vld [vmem:[#allocation2 + $0x1b48] sm:$0xff]
    %v1018 = vld [vmem:[#allocation2 + $0x1b50] sm:$0xff]
    %v1019 = vld [vmem:[#allocation2 + $0x1b58] sm:$0xff]
    %v1020 = vld [vmem:[#allocation2 + $0x1b60] sm:$0xff]
    %v1021 = vld [vmem:[#allocation2 + $0x1b68] sm:$0xf]
    %v1022 = vld [vmem:[#allocation2 + $0x1b6c] sm:$0xff]
    %v1023 = vld [vmem:[#allocation2 + $0x1b74] sm:$0xff]
    %v1024 = vld [vmem:[#allocation2 + $0x1b7c] sm:$0xff]
    %v1025 = vld [vmem:[#allocation2 + $0x1b84] sm:$0xff]
    %v1026 = vld [vmem:[#allocation2 + $0x1b8c] sm:$0xff]
    %v1027 = vld [vmem:[#allocation2 + $0x1b94] sm:$0xff]
    %v1028 = vld [vmem:[#allocation2 + $0x1b9c] sm:$0xff]
    %v1029 = vld [vmem:[#allocation2 + $0x1ba4] sm:$0xff]
    %v1030 = vld [vmem:[#allocation2 + $0x1bac] sm:$0xff]
    %v1031 = vld [vmem:[#allocation2 + $0x1bb4] sm:$0xff]
    %v1032 = vld [vmem:[#allocation2 + $0x1bbc] sm:$0xff]
    %v1033 = vld [vmem:[#allocation2 + $0x1bc4] sm:$0xff]
    %v1034 = vld [vmem:[#allocation2 + $0x1bcc] sm:$0xff]
    %v1035 = vld [vmem:[#allocation2 + $0x1bd4] sm:$0xf]
    %v1036 = vld [vmem:[#allocation2 + $0x1bd8] sm:$0xff]
    %v1037 = vld [vmem:[#allocation2 + $0x1be0] sm:$0xff]
    %v1038 = vld [vmem:[#allocation2 + $0x1be8] sm:$0xff]
    %v1039 = vld [vmem:[#allocation2 + $0x1bf0] sm:$0xff]
    %v1040 = vld [vmem:[#allocation2 + $0x1bf8] sm:$0xff]
    %v1041 = vld [vmem:[#allocation2 + $0x1c00] sm:$0xff]
    %v1042 = vld [vmem:[#allocation2 + $0x1c08] sm:$0xff]
    %v1043 = vld [vmem:[#allocation2 + $0x1c10] sm:$0xff]
    %v1044 = vld [vmem:[#allocation2 + $0x1c18] sm:$0xff]
    %v1045 = vld [vmem:[#allocation2 + $0x1c20] sm:$0xff]
    %v1046 = vld [vmem:[#allocation2 + $0x1c28] sm:$0xff]
    %v1047 = vld [vmem:[#allocation2 + $0x1c30] sm:$0xff]
    %v1048 = vld [vmem:[#allocation2 + $0x1c38] sm:$0xff]
    %v1049 = vld [vmem:[#allocation2 + $0x1c40] sm:$0xf]
    %v1050 = vld [vmem:[#allocation2 + $0x1c44] sm:$0xff]
    %v1051 = vld [vmem:[#allocation2 + $0x1c4c] sm:$0xff]
    %v1052 = vld [vmem:[#allocation2 + $0x1c54] sm:$0xff]
    %v1053 = vld [vmem:[#allocation2 + $0x1c5c] sm:$0xff]
    %v1054 = vld [vmem:[#allocation2 + $0x1c64] sm:$0xff]
    %v1055 = vld [vmem:[#allocation2 + $0x1c6c] sm:$0xff]
    %v1056 = vld [vmem:[#allocation2 + $0x1c74] sm:$0xff]
    %v1057 = vld [vmem:[#allocation2 + $0x1c7c] sm:$0xff]
    %v1058 = vld [vmem:[#allocation2 + $0x1c84] sm:$0xff]
    %v1059 = vld [vmem:[#allocation2 + $0x1c8c] sm:$0xff]
    %v1060 = vld [vmem:[#allocation2 + $0x1c94] sm:$0xff]
    %v1061 = vld [vmem:[#allocation2 + $0x1c9c] sm:$0xff]
    %v1062 = vld [vmem:[#allocation2 + $0x1ca4] sm:$0xff]
    %v1063 = vld [vmem:[#allocation2 + $0x1cac] sm:$0xf]
    %v1064 = vld [vmem:[#allocation2 + $0x1cb0] sm:$0xff]
    %v1065 = vld [vmem:[#allocation2 + $0x1cb8] sm:$0xff]
    %v1066 = vld [vmem:[#allocation2 + $0x1cc0] sm:$0xff]
    %v1067 = vld [vmem:[#allocation2 + $0x1cc8] sm:$0xff]
    %v1068 = vld [vmem:[#allocation2 + $0x1cd0] sm:$0xff]
    %v1069 = vld [vmem:[#allocation2 + $0x1cd8] sm:$0xff]
    %v1070 = vld [vmem:[#allocation2 + $0x1ce0] sm:$0xff]
    %v1071 = vld [vmem:[#allocation2 + $0x1ce8] sm:$0xff]
    %v1072 = vld [vmem:[#allocation2 + $0x1cf0] sm:$0xff]
    %v1073 = vld [vmem:[#allocation2 + $0x1cf8] sm:$0xff]
    %v1074 = vld [vmem:[#allocation2 + $0x1d00] sm:$0xff]
    %v1075 = vld [vmem:[#allocation2 + $0x1d08] sm:$0xff]
    %v1076 = vld [vmem:[#allocation2 + $0x1d10] sm:$0xff]
    %v1077 = vld [vmem:[#allocation2 + $0x1d18] sm:$0xf]
    %v1078 = vld [vmem:[#allocation2 + $0x1d1c] sm:$0xff]
    %v1079 = vld [vmem:[#allocation2 + $0x1d24] sm:$0xff]
    %v1080 = vld [vmem:[#allocation2 + $0x1d2c] sm:$0xff]
    %v1081 = vld [vmem:[#allocation2 + $0x1d34] sm:$0xff]
    %v1082 = vld [vmem:[#allocation2 + $0x1d3c] sm:$0xff]
    %v1083 = vld [vmem:[#allocation2 + $0x1d44] sm:$0xff]
    %v1084 = vld [vmem:[#allocation2 + $0x1d4c] sm:$0xff]
    %v1085 = vld [vmem:[#allocation2 + $0x1d54] sm:$0xff]
    %v1086 = vld [vmem:[#allocation2 + $0x1d5c] sm:$0xff]
    %v1087 = vld [vmem:[#allocation2 + $0x1d64] sm:$0xff]
    %v1088 = vld [vmem:[#allocation2 + $0x1d6c] sm:$0xff]
    %v1089 = vld [vmem:[#allocation2 + $0x1d74] sm:$0xff]
    %v1090 = vld [vmem:[#allocation2 + $0x1d7c] sm:$0xff]
    %v1091 = vld [vmem:[#allocation2 + $0x1d84] sm:$0xf]
    %v1092 = vld [vmem:[#allocation2 + $0x1d88] sm:$0xff]
    %v1093 = vld [vmem:[#allocation2 + $0x1d90] sm:$0xff]
    %v1094 = vld [vmem:[#allocation2 + $0x1d98] sm:$0xff]
    %v1095 = vld [vmem:[#allocation2 + $0x1da0] sm:$0xff]
    %v1096 = vld [vmem:[#allocation2 + $0x1da8] sm:$0xff]
    %v1097 = vld [vmem:[#allocation2 + $0x1db0] sm:$0xff]
    %v1098 = vld [vmem:[#allocation2 + $0x1db8] sm:$0xff]
    %v1099 = vld [vmem:[#allocation2 + $0x1dc0] sm:$0xff]
    %v1100 = vld [vmem:[#allocation2 + $0x1dc8] sm:$0xff]
    %v1101 = vld [vmem:[#allocation2 + $0x1dd0] sm:$0xff]
    %v1102 = vld [vmem:[#allocation2 + $0x1dd8] sm:$0xff]
    %v1103 = vld [vmem:[#allocation2 + $0x1de0] sm:$0xff]
    %v1104 = vld [vmem:[#allocation2 + $0x1de8] sm:$0xff]
    %v1105 = vld [vmem:[#allocation2 + $0x1df0] sm:$0xf]
    %v1106 = vld [vmem:[#allocation2 + $0x1df4] sm:$0xff]
    %v1107 = vld [vmem:[#allocation2 + $0x1dfc] sm:$0xff]
    %v1108 = vld [vmem:[#allocation2 + $0x1e04] sm:$0xff]
    %v1109 = vld [vmem:[#allocation2 + $0x1e0c] sm:$0xff]
    %v1110 = vld [vmem:[#allocation2 + $0x1e14] sm:$0xff]
    %v1111 = vld [vmem:[#allocation2 + $0x1e1c] sm:$0xff]
    %v1112 = vld [vmem:[#allocation2 + $0x1e24] sm:$0xff]
    %v1113 = vld [vmem:[#allocation2 + $0x1e2c] sm:$0xff]
    %v1114 = vld [vmem:[#allocation2 + $0x1e34] sm:$0xff]
    %v1115 = vld [vmem:[#allocation2 + $0x1e3c] sm:$0xff]
    %v1116 = vld [vmem:[#allocation2 + $0x1e44] sm:$0xff]
    %v1117 = vld [vmem:[#allocation2 + $0x1e4c] sm:$0xff]
    %v1118 = vld [vmem:[#allocation2 + $0x1e54] sm:$0xff]
    %v1119 = vld [vmem:[#allocation2 + $0x1e5c] sm:$0xf]
    %v1120 = vld [vmem:[#allocation2 + $0x1e60] sm:$0xff]
    %v1121 = vld [vmem:[#allocation2 + $0x1e68] sm:$0xff]
    %v1122 = vld [vmem:[#allocation2 + $0x1e70] sm:$0xff]
    %v1123 = vld [vmem:[#allocation2 + $0x1e78] sm:$0xff]
    %v1124 = vld [vmem:[#allocation2 + $0x1e80] sm:$0xff]
    %v1125 = vld [vmem:[#allocation2 + $0x1e88] sm:$0xff]
    %v1126 = vld [vmem:[#allocation2 + $0x1e90] sm:$0xff]
    %v1127 = vld [vmem:[#allocation2 + $0x1e98] sm:$0xff]
    %v1128 = vld [vmem:[#allocation2 + $0x1ea0] sm:$0xff]
    %v1129 = vld [vmem:[#allocation2 + $0x1ea8] sm:$0xff]
    %v1130 = vld [vmem:[#allocation2 + $0x1eb0] sm:$0xff]
    %v1131 = vld [vmem:[#allocation2 + $0x1eb8] sm:$0xff]
    %v1132 = vld [vmem:[#allocation2 + $0x1ec0] sm:$0xff]
    %v1133 = vld [vmem:[#allocation2 + $0x1ec8] sm:$0xf]
    %v1134 = vld [vmem:[#allocation2 + $0x1ecc] sm:$0xff]
    %v1135 = vld [vmem:[#allocation2 + $0x1ed4] sm:$0xff]
    %v1136 = vld [vmem:[#allocation2 + $0x1edc] sm:$0xff]
    %v1137 = vld [vmem:[#allocation2 + $0x1ee4] sm:$0xff]
    %v1138 = vld [vmem:[#allocation2 + $0x1eec] sm:$0xff]
    %v1139 = vld [vmem:[#allocation2 + $0x1ef4] sm:$0xff]
    %v1140 = vld [vmem:[#allocation2 + $0x1efc] sm:$0xff]
    %v1141 = vld [vmem:[#allocation2 + $0x1f04] sm:$0xff]
    %v1142 = vld [vmem:[#allocation2 + $0x1f0c] sm:$0xff]
    %v1143 = vld [vmem:[#allocation2 + $0x1f14] sm:$0xff]
    %v1144 = vld [vmem:[#allocation2 + $0x1f1c] sm:$0xff]
    %v1145 = vld [vmem:[#allocation2 + $0x1f24] sm:$0xff]
    %v1146 = vld [vmem:[#allocation2 + $0x1f2c] sm:$0xff]
    %v1147 = vld [vmem:[#allocation2 + $0x1f34] sm:$0xf]
    %v1148 = vld [vmem:[#allocation2 + $0x1f38] sm:$0xff]
    %v1149 = vld [vmem:[#allocation2 + $0x1f40] sm:$0xff]
    %v1150 = vld [vmem:[#allocation2 + $0x1f48] sm:$0xff]
    %v1151 = vld [vmem:[#allocation2 + $0x1f50] sm:$0xff]
    %v1152 = vld [vmem:[#allocation2 + $0x1f58] sm:$0xff]
    %v1153 = vld [vmem:[#allocation2 + $0x1f60] sm:$0xff]
    %v1154 = vld [vmem:[#allocation2 + $0x1f68] sm:$0xff]
    %v1155 = vld [vmem:[#allocation2 + $0x1f70] sm:$0xff]
    %v1156 = vld [vmem:[#allocation2 + $0x1f78] sm:$0xff]
    %v1157 = vld [vmem:[#allocation2 + $0x1f80] sm:$0xff]
    %v1158 = vld [vmem:[#allocation2 + $0x1f88] sm:$0xff]
    %v1159 = vld [vmem:[#allocation2 + $0x1f90] sm:$0xff]
    %v1160 = vld [vmem:[#allocation2 + $0x1f98] sm:$0xff]
    %v1161 = vld [vmem:[#allocation2 + $0x1fa0] sm:$0xf]
    %v1162 = vld [vmem:[#allocation2 + $0x1fa4] sm:$0xff]
    %v1163 = vld [vmem:[#allocation2 + $0x1fac] sm:$0xff]
    %v1164 = vld [vmem:[#allocation2 + $0x1fb4] sm:$0xff]
    %v1165 = vld [vmem:[#allocation2 + $0x1fbc] sm:$0xff]
    %v1166 = vld [vmem:[#allocation2 + $0x1fc4] sm:$0xff]
    %v1167 = vld [vmem:[#allocation2 + $0x1fcc] sm:$0xff]
    %v1168 = vld [vmem:[#allocation2 + $0x1fd4] sm:$0xff]
    %v1169 = vld [vmem:[#allocation2 + $0x1fdc] sm:$0xff]
    %v1170 = vld [vmem:[#allocation2 + $0x1fe4] sm:$0xff]
    %v1171 = vld [vmem:[#allocation2 + $0x1fec] sm:$0xff]
    %v1172 = vld [vmem:[#allocation2 + $0x1ff4] sm:$0xff]
    %v1173 = vld [vmem:[#allocation2 + $0x1ffc] sm:$0xff]
    %v1174 = vld [vmem:[#allocation2 + $0x2004] sm:$0xff]
    %v1175 = vld [vmem:[#allocation2 + $0x200c] sm:$0xf]
    %v1176 = vld [vmem:[#allocation2 + $0x2010] sm:$0xff]
    %v1177 = vld [vmem:[#allocation2 + $0x2018] sm:$0xff]
    %v1178 = vld [vmem:[#allocation2 + $0x2020] sm:$0xff]
    %v1179 = vld [vmem:[#allocation2 + $0x2028] sm:$0xff]
    %v1180 = vld [vmem:[#allocation2 + $0x2030] sm:$0xff]
    %v1181 = vld [vmem:[#allocation2 + $0x2038] sm:$0xff]
    %v1182 = vld [vmem:[#allocation2 + $0x2040] sm:$0xff]
    %v1183 = vld [vmem:[#allocation2 + $0x2048] sm:$0xff]
    %v1184 = vld [vmem:[#allocation2 + $0x2050] sm:$0xff]
    %v1185 = vld [vmem:[#allocation2 + $0x2058] sm:$0xff]
    %v1186 = vld [vmem:[#allocation2 + $0x2060] sm:$0xff]
    %v1187 = vld [vmem:[#allocation2 + $0x2068] sm:$0xff]
    %v1188 = vld [vmem:[#allocation2 + $0x2070] sm:$0xff]
    %v1189 = vld [vmem:[#allocation2 + $0x2078] sm:$0xf]
    %v1190 = vld [vmem:[#allocation2 + $0x207c] sm:$0xff]
    %v1191 = vld [vmem:[#allocation2 + $0x2084] sm:$0xff]
    %v1192 = vld [vmem:[#allocation2 + $0x208c] sm:$0xff]
    %v1193 = vld [vmem:[#allocation2 + $0x2094] sm:$0xff]
    %v1194 = vld [vmem:[#allocation2 + $0x209c] sm:$0xff]
    %v1195 = vld [vmem:[#allocation2 + $0x20a4] sm:$0xff]
    %v1196 = vld [vmem:[#allocation2 + $0x20ac] sm:$0xff]
    %v1197 = vld [vmem:[#allocation2 + $0x20b4] sm:$0xff]
    %v1198 = vld [vmem:[#allocation2 + $0x20bc] sm:$0xff]
    %v1199 = vld [vmem:[#allocation2 + $0x20c4] sm:$0xff]
    %v1200 = vld [vmem:[#allocation2 + $0x20cc] sm:$0xff]
    %v1201 = vld [vmem:[#allocation2 + $0x20d4] sm:$0xff]
    %v1202 = vld [vmem:[#allocation2 + $0x20dc] sm:$0xff]
    %v1203 = vld [vmem:[#allocation2 + $0x20e4] sm:$0xf]
    %v1204 = vld [vmem:[#allocation2 + $0x20e8] sm:$0xff]
    %v1205 = vld [vmem:[#allocation2 + $0x20f0] sm:$0xff]
    %v1206 = vld [vmem:[#allocation2 + $0x20f8] sm:$0xff]
    %v1207 = vld [vmem:[#allocation2 + $0x2100] sm:$0xff]
    %v1208 = vld [vmem:[#allocation2 + $0x2108] sm:$0xff]
    %v1209 = vld [vmem:[#allocation2 + $0x2110] sm:$0xff]
    %v1210 = vld [vmem:[#allocation2 + $0x2118] sm:$0xff]
    %v1211 = vld [vmem:[#allocation2 + $0x2120] sm:$0xff]
    %v1212 = vld [vmem:[#allocation2 + $0x2128] sm:$0xff]
    %v1213 = vld [vmem:[#allocation2 + $0x2130] sm:$0xff]
    %v1214 = vld [vmem:[#allocation2 + $0x2138] sm:$0xff]
    %v1215 = vld [vmem:[#allocation2 + $0x2140] sm:$0xff]
    %v1216 = vld [vmem:[#allocation2 + $0x2148] sm:$0xff]
    %v1217 = vld [vmem:[#allocation2 + $0x2150] sm:$0xf]
    %v1218 = vld [vmem:[#allocation2 + $0x2154] sm:$0xff]
    %v1219 = vld [vmem:[#allocation2 + $0x215c] sm:$0xff]
    %v1220 = vld [vmem:[#allocation2 + $0x2164] sm:$0xff]
    %v1221 = vld [vmem:[#allocation2 + $0x216c] sm:$0xff]
    %v1222 = vld [vmem:[#allocation2 + $0x2174] sm:$0xff]
    %v1223 = vld [vmem:[#allocation2 + $0x217c] sm:$0xff]
    %v1224 = vld [vmem:[#allocation2 + $0x2184] sm:$0xff]
    %v1225 = vld [vmem:[#allocation2 + $0x218c] sm:$0xff]
    %v1226 = vld [vmem:[#allocation2 + $0x2194] sm:$0xff]
    %v1227 = vld [vmem:[#allocation2 + $0x219c] sm:$0xff]
    %v1228 = vld [vmem:[#allocation2 + $0x21a4] sm:$0xff]
    %v1229 = vld [vmem:[#allocation2 + $0x21ac] sm:$0xff]
    %v1230 = vld [vmem:[#allocation2 + $0x21b4] sm:$0xff]
    %v1231 = vld [vmem:[#allocation2 + $0x21bc] sm:$0xf]
    %v1232 = vld [vmem:[#allocation2 + $0x21c0] sm:$0xff]
    %v1233 = vld [vmem:[#allocation2 + $0x21c8] sm:$0xff]
    %v1234 = vld [vmem:[#allocation2 + $0x21d0] sm:$0xff]
    %v1235 = vld [vmem:[#allocation2 + $0x21d8] sm:$0xff]
    %v1236 = vld [vmem:[#allocation2 + $0x21e0] sm:$0xff]
    %v1237 = vld [vmem:[#allocation2 + $0x21e8] sm:$0xff]
    %v1238 = vld [vmem:[#allocation2 + $0x21f0] sm:$0xff]
    %v1239 = vld [vmem:[#allocation2 + $0x21f8] sm:$0xff]
    %v1240 = vld [vmem:[#allocation2 + $0x2200] sm:$0xff]
    %v1241 = vld [vmem:[#allocation2 + $0x2208] sm:$0xff]
    %v1242 = vld [vmem:[#allocation2 + $0x2210] sm:$0xff]
    %v1243 = vld [vmem:[#allocation2 + $0x2218] sm:$0xff]
    %v1244 = vld [vmem:[#allocation2 + $0x2220] sm:$0xff]
    %v1245 = vld [vmem:[#allocation2 + $0x2228] sm:$0xf]
    %v1246 = vld [vmem:[#allocation2 + $0x222c] sm:$0xff]
    %v1247 = vld [vmem:[#allocation2 + $0x2234] sm:$0xff]
    %v1248 = vld [vmem:[#allocation2 + $0x223c] sm:$0xff]
    %v1249 = vld [vmem:[#allocation2 + $0x2244] sm:$0xff]
    %v1250 = vld [vmem:[#allocation2 + $0x224c] sm:$0xff]
    %v1251 = vld [vmem:[#allocation2 + $0x2254] sm:$0xff]
    %v1252 = vld [vmem:[#allocation2 + $0x225c] sm:$0xff]
    %v1253 = vld [vmem:[#allocation2 + $0x2264] sm:$0xff]
    %v1254 = vld [vmem:[#allocation2 + $0x226c] sm:$0xff]
    %v1255 = vld [vmem:[#allocation2 + $0x2274] sm:$0xff]
    %v1256 = vld [vmem:[#allocation2 + $0x227c] sm:$0xff]
    %v1257 = vld [vmem:[#allocation2 + $0x2284] sm:$0xff]
    %v1258 = vld [vmem:[#allocation2 + $0x228c] sm:$0xff]
    %v1259 = vld [vmem:[#allocation2 + $0x2294] sm:$0xf]
    %v1260 = vld [vmem:[#allocation2 + $0x2298] sm:$0xff]
    %v1261 = vld [vmem:[#allocation2 + $0x22a0] sm:$0xff]
    %v1262 = vld [vmem:[#allocation2 + $0x22a8] sm:$0xff]
    %v1263 = vld [vmem:[#allocation2 + $0x22b0] sm:$0xff]
    %v1264 = vld [vmem:[#allocation2 + $0x22b8] sm:$0xff]
    %v1265 = vld [vmem:[#allocation2 + $0x22c0] sm:$0xff]
    %v1266 = vld [vmem:[#allocation2 + $0x22c8] sm:$0xff]
    %v1267 = vld [vmem:[#allocation2 + $0x22d0] sm:$0xff]
    %v1268 = vld [vmem:[#allocation2 + $0x22d8] sm:$0xff]
    %v1269 = vld [vmem:[#allocation2 + $0x22e0] sm:$0xff]
    %v1270 = vld [vmem:[#allocation2 + $0x22e8] sm:$0xff]
    %v1271 = vld [vmem:[#allocation2 + $0x22f0] sm:$0xff]
    %v1272 = vld [vmem:[#allocation2 + $0x22f8] sm:$0xff]
    %v1273 = vld [vmem:[#allocation2 + $0x2300] sm:$0xf]
    %v1274 = vld [vmem:[#allocation2 + $0x2304] sm:$0xff]
    %v1275 = vld [vmem:[#allocation2 + $0x230c] sm:$0xff]
    %v1276 = vld [vmem:[#allocation2 + $0x2314] sm:$0xff]
    %v1277 = vld [vmem:[#allocation2 + $0x231c] sm:$0xff]
    %v1278 = vld [vmem:[#allocation2 + $0x2324] sm:$0xff]
    %v1279 = vld [vmem:[#allocation2 + $0x232c] sm:$0xff]
    %v1280 = vld [vmem:[#allocation2 + $0x2334] sm:$0xff]
    %v1281 = vld [vmem:[#allocation2 + $0x233c] sm:$0xff]
    %v1282 = vld [vmem:[#allocation2 + $0x2344] sm:$0xff]
    %v1283 = vld [vmem:[#allocation2 + $0x234c] sm:$0xff]
    %v1284 = vld [vmem:[#allocation2 + $0x2354] sm:$0xff]
    %v1285 = vld [vmem:[#allocation2 + $0x235c] sm:$0xff]
    %v1286 = vld [vmem:[#allocation2 + $0x2364] sm:$0xff]
    %v1287 = vld [vmem:[#allocation2 + $0x236c] sm:$0xf]
    %v1288 = vld [vmem:[#allocation2 + $0x2370] sm:$0xff]
    %v1289 = vld [vmem:[#allocation2 + $0x2378] sm:$0xff]
    %v1290 = vld [vmem:[#allocation2 + $0x2380] sm:$0xff]
    %v1291 = vld [vmem:[#allocation2 + $0x2388] sm:$0xff]
    %v1292 = vld [vmem:[#allocation2 + $0x2390] sm:$0xff]
    %v1293 = vld [vmem:[#allocation2 + $0x2398] sm:$0xff]
    %v1294 = vld [vmem:[#allocation2 + $0x23a0] sm:$0xff]
    %v1295 = vld [vmem:[#allocation2 + $0x23a8] sm:$0xff]
    %v1296 = vld [vmem:[#allocation2 + $0x23b0] sm:$0xff]
    %v1297 = vld [vmem:[#allocation2 + $0x23b8] sm:$0xff]
    %v1298 = vld [vmem:[#allocation2 + $0x23c0] sm:$0xff]
    %v1299 = vld [vmem:[#allocation2 + $0x23c8] sm:$0xff]
    %v1300 = vld [vmem:[#allocation2 + $0x23d0] sm:$0xff]
    %v1301 = vld [vmem:[#allocation2 + $0x23d8] sm:$0xf]
    %v1302 = vld [vmem:[#allocation2 + $0x23dc] sm:$0xff]
    %v1303 = vld [vmem:[#allocation2 + $0x23e4] sm:$0xff]
    %v1304 = vld [vmem:[#allocation2 + $0x23ec] sm:$0xff]
    %v1305 = vld [vmem:[#allocation2 + $0x23f4] sm:$0xff]
    %v1306 = vld [vmem:[#allocation2 + $0x23fc] sm:$0xff]
    %v1307 = vld [vmem:[#allocation2 + $0x2404] sm:$0xff]
    %v1308 = vld [vmem:[#allocation2 + $0x240c] sm:$0xff]
    %v1309 = vld [vmem:[#allocation2 + $0x2414] sm:$0xff]
    %v1310 = vld [vmem:[#allocation2 + $0x241c] sm:$0xff]
    %v1311 = vld [vmem:[#allocation2 + $0x2424] sm:$0xff]
    %v1312 = vld [vmem:[#allocation2 + $0x242c] sm:$0xff]
    %v1313 = vld [vmem:[#allocation2 + $0x2434] sm:$0xff]
    %v1314 = vld [vmem:[#allocation2 + $0x243c] sm:$0xff]
    %v1315 = vld [vmem:[#allocation2 + $0x2444] sm:$0xf]
    %v1316 = vld [vmem:[#allocation2 + $0x2448] sm:$0xff]
    %v1317 = vld [vmem:[#allocation2 + $0x2450] sm:$0xff]
    %v1318 = vld [vmem:[#allocation2 + $0x2458] sm:$0xff]
    %v1319 = vld [vmem:[#allocation2 + $0x2460] sm:$0xff]
    %v1320 = vld [vmem:[#allocation2 + $0x2468] sm:$0xff]
    %v1321 = vld [vmem:[#allocation2 + $0x2470] sm:$0xff]
    %v1322 = vld [vmem:[#allocation2 + $0x2478] sm:$0xff]
    %v1323 = vld [vmem:[#allocation2 + $0x2480] sm:$0xff]
    %v1324 = vld [vmem:[#allocation2 + $0x2488] sm:$0xff]
    %v1325 = vld [vmem:[#allocation2 + $0x2490] sm:$0xff]
    %v1326 = vld [vmem:[#allocation2 + $0x2498] sm:$0xff]
    %v1327 = vld [vmem:[#allocation2 + $0x24a0] sm:$0xff]
    %v1328 = vld [vmem:[#allocation2 + $0x24a8] sm:$0xff]
    %v1329 = vld [vmem:[#allocation2 + $0x24b0] sm:$0xf]
    %v1330 = vld [vmem:[#allocation2 + $0x24b4] sm:$0xff]
    %v1331 = vld [vmem:[#allocation2 + $0x24bc] sm:$0xff]
    %v1332 = vld [vmem:[#allocation2 + $0x24c4] sm:$0xff]
    %v1333 = vld [vmem:[#allocation2 + $0x24cc] sm:$0xff]
    %v1334 = vld [vmem:[#allocation2 + $0x24d4] sm:$0xff]
    %v1335 = vld [vmem:[#allocation2 + $0x24dc] sm:$0xff]
    %v1336 = vld [vmem:[#allocation2 + $0x24e4] sm:$0xff]
    %v1337 = vld [vmem:[#allocation2 + $0x24ec] sm:$0xff]
    %v1338 = vld [vmem:[#allocation2 + $0x24f4] sm:$0xff]
    %v1339 = vld [vmem:[#allocation2 + $0x24fc] sm:$0xff]
    %v1340 = vld [vmem:[#allocation2 + $0x2504] sm:$0xff]
    %v1341 = vld [vmem:[#allocation2 + $0x250c] sm:$0xff]
    %v1342 = vld [vmem:[#allocation2 + $0x2514] sm:$0xff]
    %v1343 = vld [vmem:[#allocation2 + $0x251c] sm:$0xf]
    %v1344 = vld [vmem:[#allocation2 + $0x2520] sm:$0xff]
    %v1345 = vld [vmem:[#allocation2 + $0x2528] sm:$0xff]
    %v1346 = vld [vmem:[#allocation2 + $0x2530] sm:$0xff]
    %v1347 = vld [vmem:[#allocation2 + $0x2538] sm:$0xff]
    %v1348 = vld [vmem:[#allocation2 + $0x2540] sm:$0xff]
    %v1349 = vld [vmem:[#allocation2 + $0x2548] sm:$0xff]
    %v1350 = vld [vmem:[#allocation2 + $0x2550] sm:$0xff]
    %v1351 = vld [vmem:[#allocation2 + $0x2558] sm:$0xff]
    %v1352 = vld [vmem:[#allocation2 + $0x2560] sm:$0xff]
    %v1353 = vld [vmem:[#allocation2 + $0x2568] sm:$0xff]
    %v1354 = vld [vmem:[#allocation2 + $0x2570] sm:$0xff]
    %v1355 = vld [vmem:[#allocation2 + $0x2578] sm:$0xff]
    %v1356 = vld [vmem:[#allocation2 + $0x2580] sm:$0xff]
    %v1357 = vld [vmem:[#allocation2 + $0x2588] sm:$0xf]
    %v1358 = vld [vmem:[#allocation2 + $0x258c] sm:$0xff]
    %v1359 = vld [vmem:[#allocation2 + $0x2594] sm:$0xff]
    %v1360 = vld [vmem:[#allocation2 + $0x259c] sm:$0xff]
    %v1361 = vld [vmem:[#allocation2 + $0x25a4] sm:$0xff]
    %v1362 = vld [vmem:[#allocation2 + $0x25ac] sm:$0xff]
    %v1363 = vld [vmem:[#allocation2 + $0x25b4] sm:$0xff]
    %v1364 = vld [vmem:[#allocation2 + $0x25bc] sm:$0xff]
    %v1365 = vld [vmem:[#allocation2 + $0x25c4] sm:$0xff]
    %v1366 = vld [vmem:[#allocation2 + $0x25cc] sm:$0xff]
    %v1367 = vld [vmem:[#allocation2 + $0x25d4] sm:$0xff]
    %v1368 = vld [vmem:[#allocation2 + $0x25dc] sm:$0xff]
    %v1369 = vld [vmem:[#allocation2 + $0x25e4] sm:$0xff]
    %v1370 = vld [vmem:[#allocation2 + $0x25ec] sm:$0xff]
    %v1371 = vld [vmem:[#allocation2 + $0x25f4] sm:$0xf]
    %v1372 = vld [vmem:[#allocation2 + $0x25f8] sm:$0xff]
    %v1373 = vld [vmem:[#allocation2 + $0x2600] sm:$0xff]
    %v1374 = vld [vmem:[#allocation2 + $0x2608] sm:$0xff]
    %v1375 = vld [vmem:[#allocation2 + $0x2610] sm:$0xff]
    %v1376 = vld [vmem:[#allocation2 + $0x2618] sm:$0xff]
    %v1377 = vld [vmem:[#allocation2 + $0x2620] sm:$0xff]
    %v1378 = vld [vmem:[#allocation2 + $0x2628] sm:$0xff]
    %v1379 = vld [vmem:[#allocation2 + $0x2630] sm:$0xff]
    %v1380 = vld [vmem:[#allocation2 + $0x2638] sm:$0xff]
    %v1381 = vld [vmem:[#allocation2 + $0x2640] sm:$0xff]
    %v1382 = vld [vmem:[#allocation2 + $0x2648] sm:$0xff]
    %v1383 = vld [vmem:[#allocation2 + $0x2650] sm:$0xff]
    %v1384 = vld [vmem:[#allocation2 + $0x2658] sm:$0xff]
    %v1385 = vld [vmem:[#allocation2 + $0x2660] sm:$0xf]
    %v1386 = vld [vmem:[#allocation2 + $0x2664] sm:$0xff]
    %v1387 = vld [vmem:[#allocation2 + $0x266c] sm:$0xff]
    %v1388 = vld [vmem:[#allocation2 + $0x2674] sm:$0xff]
    %v1389 = vld [vmem:[#allocation2 + $0x267c] sm:$0xff]
    %v1390 = vld [vmem:[#allocation2 + $0x2684] sm:$0xff]
    %v1391 = vld [vmem:[#allocation2 + $0x268c] sm:$0xff]
    %v1392 = vld [vmem:[#allocation2 + $0x2694] sm:$0xff]
    %v1393 = vld [vmem:[#allocation2 + $0x269c] sm:$0xff]
    %v1394 = vld [vmem:[#allocation2 + $0x26a4] sm:$0xff]
    %v1395 = vld [vmem:[#allocation2 + $0x26ac] sm:$0xff]
    %v1396 = vld [vmem:[#allocation2 + $0x26b4] sm:$0xff]
    %v1397 = vld [vmem:[#allocation2 + $0x26bc] sm:$0xff]
    %v1398 = vld [vmem:[#allocation2 + $0x26c4] sm:$0xff]
    %v1399 = vld [vmem:[#allocation2 + $0x26cc] sm:$0xf]
    %v1400 = vld [vmem:[#allocation2 + $0x26d0] sm:$0xff]
    %v1401 = vld [vmem:[#allocation2 + $0x26d8] sm:$0xff]
    %v1402 = vld [vmem:[#allocation2 + $0x26e0] sm:$0xff]
    %v1403 = vld [vmem:[#allocation2 + $0x26e8] sm:$0xff]
    %v1404 = vld [vmem:[#allocation2 + $0x26f0] sm:$0xff]
    %v1405 = vld [vmem:[#allocation2 + $0x26f8] sm:$0xff]
    %v1406 = vld [vmem:[#allocation2 + $0x2700] sm:$0xff]
    %v1407 = vld [vmem:[#allocation2 + $0x2708] sm:$0xff]
    %v1408 = vld [vmem:[#allocation2 + $0x2710] sm:$0xff]
    %v1409 = vld [vmem:[#allocation2 + $0x2718] sm:$0xff]
    %v1410 = vld [vmem:[#allocation2 + $0x2720] sm:$0xff]
    %v1411 = vld [vmem:[#allocation2 + $0x2728] sm:$0xff]
    %v1412 = vld [vmem:[#allocation2 + $0x2730] sm:$0xff]
    %v1413 = vld [vmem:[#allocation2 + $0x2738] sm:$0xf]
    %v1414 = vld [vmem:[#allocation2 + $0x273c] sm:$0xff]
    %v1415 = vld [vmem:[#allocation2 + $0x2744] sm:$0xff]
    %v1416 = vld [vmem:[#allocation2 + $0x274c] sm:$0xff]
    %v1417 = vld [vmem:[#allocation2 + $0x2754] sm:$0xff]
    %v1418 = vld [vmem:[#allocation2 + $0x275c] sm:$0xff]
    %v1419 = vld [vmem:[#allocation2 + $0x2764] sm:$0xff]
    %v1420 = vld [vmem:[#allocation2 + $0x276c] sm:$0xff]
    %v1421 = vld [vmem:[#allocation2 + $0x2774] sm:$0xff]
    %v1422 = vld [vmem:[#allocation2 + $0x277c] sm:$0xff]
    %v1423 = vld [vmem:[#allocation2 + $0x2784] sm:$0xff]
    %v1424 = vld [vmem:[#allocation2 + $0x278c] sm:$0xff]
    %v1425 = vld [vmem:[#allocation2 + $0x2794] sm:$0xff]
    %v1426 = vld [vmem:[#allocation2 + $0x279c] sm:$0xff]
    %v1427 = vld [vmem:[#allocation2 + $0x27a4] sm:$0xf]
    %v1428 = vld [vmem:[#allocation2 + $0x27a8] sm:$0xff]
    %v1429 = vld [vmem:[#allocation2 + $0x27b0] sm:$0xff]
    %v1430 = vld [vmem:[#allocation2 + $0x27b8] sm:$0xff]
    %v1431 = vld [vmem:[#allocation2 + $0x27c0] sm:$0xff]
    %v1432 = vld [vmem:[#allocation2 + $0x27c8] sm:$0xff]
    %v1433 = vld [vmem:[#allocation2 + $0x27d0] sm:$0xff]
    %v1434 = vld [vmem:[#allocation2 + $0x27d8] sm:$0xff]
    %v1435 = vld [vmem:[#allocation2 + $0x27e0] sm:$0xff]
    %v1436 = vld [vmem:[#allocation2 + $0x27e8] sm:$0xff]
    %v1437 = vld [vmem:[#allocation2 + $0x27f0] sm:$0xff]
    %v1438 = vld [vmem:[#allocation2 + $0x27f8] sm:$0xff]
    %v1439 = vld [vmem:[#allocation2 + $0x2800] sm:$0xff]
    %v1440 = vld [vmem:[#allocation2 + $0x2808] sm:$0xff]
    %v1441 = vld [vmem:[#allocation2 + $0x2810] sm:$0xf]
    %v1442 = vld [vmem:[#allocation2 + $0x2814] sm:$0xff]
    %v1443 = vld [vmem:[#allocation2 + $0x281c] sm:$0xff]
    %v1444 = vld [vmem:[#allocation2 + $0x2824] sm:$0xff]
    %v1445 = vld [vmem:[#allocation2 + $0x282c] sm:$0xff]
    %v1446 = vld [vmem:[#allocation2 + $0x2834] sm:$0xff]
    %v1447 = vld [vmem:[#allocation2 + $0x283c] sm:$0xff]
    %v1448 = vld [vmem:[#allocation2 + $0x2844] sm:$0xff]
    %v1449 = vld [vmem:[#allocation2 + $0x284c] sm:$0xff]
    %v1450 = vld [vmem:[#allocation2 + $0x2854] sm:$0xff]
    %v1451 = vld [vmem:[#allocation2 + $0x285c] sm:$0xff]
    %v1452 = vld [vmem:[#allocation2 + $0x2864] sm:$0xff]
    %v1453 = vld [vmem:[#allocation2 + $0x286c] sm:$0xff]
    %v1454 = vld [vmem:[#allocation2 + $0x2874] sm:$0xff]
    %v1455 = vld [vmem:[#allocation2 + $0x287c] sm:$0xf]
    %v1456 = vld [vmem:[#allocation2 + $0x2880] sm:$0xff]
    %v1457 = vld [vmem:[#allocation2 + $0x2888] sm:$0xff]
    %v1458 = vld [vmem:[#allocation2 + $0x2890] sm:$0xff]
    %v1459 = vld [vmem:[#allocation2 + $0x2898] sm:$0xff]
    %v1460 = vld [vmem:[#allocation2 + $0x28a0] sm:$0xff]
    %v1461 = vld [vmem:[#allocation2 + $0x28a8] sm:$0xff]
    %v1462 = vld [vmem:[#allocation2 + $0x28b0] sm:$0xff]
    %v1463 = vld [vmem:[#allocation2 + $0x28b8] sm:$0xff]
    %v1464 = vld [vmem:[#allocation2 + $0x28c0] sm:$0xff]
    %v1465 = vld [vmem:[#allocation2 + $0x28c8] sm:$0xff]
    %v1466 = vld [vmem:[#allocation2 + $0x28d0] sm:$0xff]
    %v1467 = vld [vmem:[#allocation2 + $0x28d8] sm:$0xff]
    %v1468 = vld [vmem:[#allocation2 + $0x28e0] sm:$0xff]
    %v1469 = vld [vmem:[#allocation2 + $0x28e8] sm:$0xf]
    %v1470 = vld [vmem:[#allocation2 + $0x28ec] sm:$0xff]
    %v1471 = vld [vmem:[#allocation2 + $0x28f4] sm:$0xff]
    %v1472 = vld [vmem:[#allocation2 + $0x28fc] sm:$0xff]
    %v1473 = vld [vmem:[#allocation2 + $0x2904] sm:$0xff]
    %v1474 = vld [vmem:[#allocation2 + $0x290c] sm:$0xff]
    %v1475 = vld [vmem:[#allocation2 + $0x2914] sm:$0xff]
    %v1476 = vld [vmem:[#allocation2 + $0x291c] sm:$0xff]
    %v1477 = vld [vmem:[#allocation2 + $0x2924] sm:$0xff]
    %v1478 = vld [vmem:[#allocation2 + $0x292c] sm:$0xff]
    %v1479 = vld [vmem:[#allocation2 + $0x2934] sm:$0xff]
    %v1480 = vld [vmem:[#allocation2 + $0x293c] sm:$0xff]
    %v1481 = vld [vmem:[#allocation2 + $0x2944] sm:$0xff]
    %v1482 = vld [vmem:[#allocation2 + $0x294c] sm:$0xff]
    %v1483 = vld [vmem:[#allocation2 + $0x2954] sm:$0xf]
    %v1484 = vld [vmem:[#allocation4] sm:$0xff]
    %v1485 = vld [vmem:[#allocation4 + $0x8] sm:$0xff]
    %v1486 = vld [vmem:[#allocation4 + $0x10] sm:$0xff]
    %v1487 = vld [vmem:[#allocation4 + $0x18] sm:$0x7]
    %v1492 = vlaneseq
    %v1493 = vshrl.u32 %v1492, 7
    %v1494 = vsub.s32 0, %v1493
    %v1495 = vrot.slane %v1484, %v1494
    %v1496 = vlaneseq
    %v1497 = vshrl.u32 %v1496, 7
    %v1498 = vsub.s32 1, %v1497
    %v1499 = vrot.slane %v1484, %v1498
    %v1500 = vlaneseq
    %v1501 = vshrl.u32 %v1500, 7
    %v1502 = vsub.s32 2, %v1501
    %v1503 = vrot.slane %v1484, %v1502
    %v1504 = vlaneseq
    %v1505 = vshrl.u32 %v1504, 7
    %v1506 = vsub.s32 3, %v1505
    %v1507 = vrot.slane %v1484, %v1506
    %v1508 = vlaneseq
    %v1509 = vshrl.u32 %v1508, 7
    %v1510 = vsub.s32 4, %v1509
    %v1511 = vrot.slane %v1484, %v1510
    %v1512 = vlaneseq
    %v1513 = vshrl.u32 %v1512, 7
    %v1514 = vsub.s32 5, %v1513
    %v1515 = vrot.slane %v1484, %v1514
    %v1516 = vlaneseq
    %v1517 = vshrl.u32 %v1516, 7
    %v1518 = vsub.s32 6, %v1517
    %v1519 = vrot.slane %v1484, %v1518
    %v1520 = vlaneseq
    %v1521 = vshrl.u32 %v1520, 7
    %v1522 = vsub.s32 7, %v1521
    %v1523 = vrot.slane %v1484, %v1522
    %v1524 = vlaneseq
    %v1525 = vshrl.u32 %v1524, 7
    %v1526 = vsub.s32 0, %v1525
    %v1527 = vrot.slane %v1485, %v1526
    %v1528 = vlaneseq
    %v1529 = vshrl.u32 %v1528, 7
    %v1530 = vsub.s32 1, %v1529
    %v1531 = vrot.slane %v1485, %v1530
    %v1532 = vlaneseq
    %v1533 = vshrl.u32 %v1532, 7
    %v1534 = vsub.s32 2, %v1533
    %v1535 = vrot.slane %v1485, %v1534
    %v1536 = vlaneseq
    %v1537 = vshrl.u32 %v1536, 7
    %v1538 = vsub.s32 3, %v1537
    %v1539 = vrot.slane %v1485, %v1538
    %v1540 = vlaneseq
    %v1541 = vshrl.u32 %v1540, 7
    %v1542 = vsub.s32 4, %v1541
    %v1543 = vrot.slane %v1485, %v1542
    %v1544 = vlaneseq
    %v1545 = vshrl.u32 %v1544, 7
    %v1546 = vsub.s32 5, %v1545
    %v1547 = vrot.slane %v1485, %v1546
    %v1548 = vlaneseq
    %v1549 = vshrl.u32 %v1548, 7
    %v1550 = vsub.s32 6, %v1549
    %v1551 = vrot.slane %v1485, %v1550
    %v1552 = vlaneseq
    %v1553 = vshrl.u32 %v1552, 7
    %v1554 = vsub.s32 7, %v1553
    %v1555 = vrot.slane %v1485, %v1554
    %v1556 = vlaneseq
    %v1557 = vshrl.u32 %v1556, 7
    %v1558 = vsub.s32 0, %v1557
    %v1559 = vrot.slane %v1486, %v1558
    %v1560 = vlaneseq
    %v1561 = vshrl.u32 %v1560, 7
    %v1562 = vsub.s32 1, %v1561
    %v1563 = vrot.slane %v1486, %v1562
    %v1564 = vlaneseq
    %v1565 = vshrl.u32 %v1564, 7
    %v1566 = vsub.s32 2, %v1565
    %v1567 = vrot.slane %v1486, %v1566
    %v1568 = vlaneseq
    %v1569 = vshrl.u32 %v1568, 7
    %v1570 = vsub.s32 3, %v1569
    %v1571 = vrot.slane %v1486, %v1570
    %v1572 = vlaneseq
    %v1573 = vshrl.u32 %v1572, 7
    %v1574 = vsub.s32 4, %v1573
    %v1575 = vrot.slane %v1486, %v1574
    %v1576 = vlaneseq
    %v1577 = vshrl.u32 %v1576, 7
    %v1578 = vsub.s32 5, %v1577
    %v1579 = vrot.slane %v1486, %v1578
    %v1580 = vlaneseq
    %v1581 = vshrl.u32 %v1580, 7
    %v1582 = vsub.s32 6, %v1581
    %v1583 = vrot.slane %v1486, %v1582
    %v1584 = vlaneseq
    %v1585 = vshrl.u32 %v1584, 7
    %v1586 = vsub.s32 7, %v1585
    %v1587 = vrot.slane %v1486, %v1586
    %v1588 = vlaneseq
    %v1589 = vshrl.u32 %v1588, 7
    %v1590 = vsub.s32 0, %v1589
    %v1591 = vrot.slane %v1487, %v1590
    %v1592 = vlaneseq
    %v1593 = vshrl.u32 %v1592, 7
    %v1594 = vsub.s32 1, %v1593
    %v1595 = vrot.slane %v1487, %v1594
    %v1596 = vlaneseq
    %v1597 = vshrl.u32 %v1596, 7
    %v1598 = vsub.s32 2, %v1597
    %v1599 = vrot.slane %v1487, %v1598
    %v2999 = vunpack.c.l.b16 %v112
    %v3000 = vunpack.c.h.b16 %v112
    %v3001 = vunpack.c.l.b16 %v113
    %v3002 = vunpack.c.h.b16 %v113
    %v3003 = vunpack.c.l.b16 %v114
    %v3004 = vunpack.c.h.b16 %v114
    %v3005 = vunpack.c.l.b16 %v115
    %v3006 = vunpack.c.h.b16 %v115
    %v3007 = vunpack.c.l.b16 %v116
    %v3008 = vunpack.c.h.b16 %v116
    %v3009 = vunpack.c.l.b16 %v117
    %v3010 = vunpack.c.h.b16 %v117
    %v3011 = vunpack.c.l.b16 %v118
    %v3012 = vunpack.c.h.b16 %v118
    %v3013 = vunpack.c.l.b16 %v119
    %v3014 = vunpack.c.h.b16 %v119
    %v3015 = vunpack.c.l.b16 %v120
    %v3016 = vunpack.c.h.b16 %v120
    %v3017 = vunpack.c.l.b16 %v121
    %v3018 = vunpack.c.h.b16 %v121
    %v3019 = vunpack.c.l.b16 %v122
    %v3020 = vunpack.c.h.b16 %v122
    %v3021 = vunpack.c.l.b16 %v123
    %v3022 = vunpack.c.h.b16 %v123
    %v3023 = vunpack.c.l.b16 %v124
    %v3024 = vunpack.c.h.b16 %v124
    %v3025 = vunpack.c.l.b16 %v125
    %v3026 = vunpack.c.l.b16 %v126
    %v3027 = vunpack.c.h.b16 %v126
    %v3028 = vunpack.c.l.b16 %v127
    %v3029 = vunpack.c.h.b16 %v127
    %v3030 = vunpack.c.l.b16 %v128
    %v3031 = vunpack.c.h.b16 %v128
    %v3032 = vunpack.c.l.b16 %v129
    %v3033 = vunpack.c.h.b16 %v129
    %v3034 = vunpack.c.l.b16 %v130
    %v3035 = vunpack.c.h.b16 %v130
    %v3036 = vunpack.c.l.b16 %v131
    %v3037 = vunpack.c.h.b16 %v131
    %v3038 = vunpack.c.l.b16 %v132
    %v3039 = vunpack.c.h.b16 %v132
    %v3040 = vunpack.c.l.b16 %v133
    %v3041 = vunpack.c.h.b16 %v133
    %v3042 = vunpack.c.l.b16 %v134
    %v3043 = vunpack.c.h.b16 %v134
    %v3044 = vunpack.c.l.b16 %v135
    %v3045 = vunpack.c.h.b16 %v135
    %v3046 = vunpack.c.l.b16 %v136
    %v3047 = vunpack.c.h.b16 %v136
    %v3048 = vunpack.c.l.b16 %v137
    %v3049 = vunpack.c.h.b16 %v137
    %v3050 = vunpack.c.l.b16 %v138
    %v3051 = vunpack.c.h.b16 %v138
    %v3052 = vunpack.c.l.b16 %v139
    %v3053 = vunpack.c.l.b16 %v140
    %v3054 = vunpack.c.h.b16 %v140
    %v3055 = vunpack.c.l.b16 %v141
    %v3056 = vunpack.c.h.b16 %v141
    %v3057 = vunpack.c.l.b16 %v142
    %v3058 = vunpack.c.h.b16 %v142
    %v3059 = vunpack.c.l.b16 %v143
    %v3060 = vunpack.c.h.b16 %v143
    %v3061 = vunpack.c.l.b16 %v144
    %v3062 = vunpack.c.h.b16 %v144
    %v3063 = vunpack.c.l.b16 %v145
    %v3064 = vunpack.c.h.b16 %v145
    %v3065 = vunpack.c.l.b16 %v146
    %v3066 = vunpack.c.h.b16 %v146
    %v3067 = vunpack.c.l.b16 %v147
    %v3068 = vunpack.c.h.b16 %v147
    %v3069 = vunpack.c.l.b16 %v148
    %v3070 = vunpack.c.h.b16 %v148
    %v3071 = vunpack.c.l.b16 %v149
    %v3072 = vunpack.c.h.b16 %v149
    %v3073 = vunpack.c.l.b16 %v150
    %v3074 = vunpack.c.h.b16 %v150
    %v3075 = vunpack.c.l.b16 %v151
    %v3076 = vunpack.c.h.b16 %v151
    %v3077 = vunpack.c.l.b16 %v152
    %v3078 = vunpack.c.h.b16 %v152
    %v3079 = vunpack.c.l.b16 %v153
    %v3080 = vunpack.c.l.b16 %v154
    %v3081 = vunpack.c.h.b16 %v154
    %v3082 = vunpack.c.l.b16 %v155
    %v3083 = vunpack.c.h.b16 %v155
    %v3084 = vunpack.c.l.b16 %v156
    %v3085 = vunpack.c.h.b16 %v156
    %v3086 = vunpack.c.l.b16 %v157
    %v3087 = vunpack.c.h.b16 %v157
    %v3088 = vunpack.c.l.b16 %v158
    %v3089 = vunpack.c.h.b16 %v158
    %v3090 = vunpack.c.l.b16 %v159
    %v3091 = vunpack.c.h.b16 %v159
    %v3092 = vunpack.c.l.b16 %v160
    %v3093 = vunpack.c.h.b16 %v160
    %v3094 = vunpack.c.l.b16 %v161
    %v3095 = vunpack.c.h.b16 %v161
    %v3096 = vunpack.c.l.b16 %v162
    %v3097 = vunpack.c.h.b16 %v162
    %v3098 = vunpack.c.l.b16 %v163
    %v3099 = vunpack.c.h.b16 %v163
    %v3100 = vunpack.c.l.b16 %v164
    %v3101 = vunpack.c.h.b16 %v164
    %v3102 = vunpack.c.l.b16 %v165
    %v3103 = vunpack.c.h.b16 %v165
    %v3104 = vunpack.c.l.b16 %v166
    %v3105 = vunpack.c.h.b16 %v166
    %v3106 = vunpack.c.l.b16 %v167
    %v3107 = vunpack.c.l.b16 %v168
    %v3108 = vunpack.c.h.b16 %v168
    %v3109 = vunpack.c.l.b16 %v169
    %v3110 = vunpack.c.h.b16 %v169
    %v3111 = vunpack.c.l.b16 %v170
    %v3112 = vunpack.c.h.b16 %v170
    %v3113 = vunpack.c.l.b16 %v171
    %v3114 = vunpack.c.h.b16 %v171
    %v3115 = vunpack.c.l.b16 %v172
    %v3116 = vunpack.c.h.b16 %v172
    %v3117 = vunpack.c.l.b16 %v173
    %v3118 = vunpack.c.h.b16 %v173
    %v3119 = vunpack.c.l.b16 %v174
    %v3120 = vunpack.c.h.b16 %v174
    %v3121 = vunpack.c.l.b16 %v175
    %v3122 = vunpack.c.h.b16 %v175
    %v3123 = vunpack.c.l.b16 %v176
    %v3124 = vunpack.c.h.b16 %v176
    %v3125 = vunpack.c.l.b16 %v177
    %v3126 = vunpack.c.h.b16 %v177
    %v3127 = vunpack.c.l.b16 %v178
    %v3128 = vunpack.c.h.b16 %v178
    %v3129 = vunpack.c.l.b16 %v179
    %v3130 = vunpack.c.h.b16 %v179
    %v3131 = vunpack.c.l.b16 %v180
    %v3132 = vunpack.c.h.b16 %v180
    %v3133 = vunpack.c.l.b16 %v181
    %v3134 = vunpack.c.l.b16 %v182
    %v3135 = vunpack.c.h.b16 %v182
    %v3136 = vunpack.c.l.b16 %v183
    %v3137 = vunpack.c.h.b16 %v183
    %v3138 = vunpack.c.l.b16 %v184
    %v3139 = vunpack.c.h.b16 %v184
    %v3140 = vunpack.c.l.b16 %v185
    %v3141 = vunpack.c.h.b16 %v185
    %v3142 = vunpack.c.l.b16 %v186
    %v3143 = vunpack.c.h.b16 %v186
    %v3144 = vunpack.c.l.b16 %v187
    %v3145 = vunpack.c.h.b16 %v187
    %v3146 = vunpack.c.l.b16 %v188
    %v3147 = vunpack.c.h.b16 %v188
    %v3148 = vunpack.c.l.b16 %v189
    %v3149 = vunpack.c.h.b16 %v189
    %v3150 = vunpack.c.l.b16 %v190
    %v3151 = vunpack.c.h.b16 %v190
    %v3152 = vunpack.c.l.b16 %v191
    %v3153 = vunpack.c.h.b16 %v191
    %v3154 = vunpack.c.l.b16 %v192
    %v3155 = vunpack.c.h.b16 %v192
    %v3156 = vunpack.c.l.b16 %v193
    %v3157 = vunpack.c.h.b16 %v193
    %v3158 = vunpack.c.l.b16 %v194
    %v3159 = vunpack.c.h.b16 %v194
    %v3160 = vunpack.c.l.b16 %v195
    %v3161 = vunpack.c.l.b16 %v196
    %v3162 = vunpack.c.h.b16 %v196
    %v3163 = vunpack.c.l.b16 %v197
    %v3164 = vunpack.c.h.b16 %v197
    %v3165 = vunpack.c.l.b16 %v198
    %v3166 = vunpack.c.h.b16 %v198
    %v3167 = vunpack.c.l.b16 %v199
    %v3168 = vunpack.c.h.b16 %v199
    %v3169 = vunpack.c.l.b16 %v200
    %v3170 = vunpack.c.h.b16 %v200
    %v3171 = vunpack.c.l.b16 %v201
    %v3172 = vunpack.c.h.b16 %v201
    %v3173 = vunpack.c.l.b16 %v202
    %v3174 = vunpack.c.h.b16 %v202
    %v3175 = vunpack.c.l.b16 %v203
    %v3176 = vunpack.c.h.b16 %v203
    %v3177 = vunpack.c.l.b16 %v204
    %v3178 = vunpack.c.h.b16 %v204
    %v3179 = vunpack.c.l.b16 %v205
    %v3180 = vunpack.c.h.b16 %v205
    %v3181 = vunpack.c.l.b16 %v206
    %v3182 = vunpack.c.h.b16 %v206
    %v3183 = vunpack.c.l.b16 %v207
    %v3184 = vunpack.c.h.b16 %v207
    %v3185 = vunpack.c.l.b16 %v208
    %v3186 = vunpack.c.h.b16 %v208
    %v3187 = vunpack.c.l.b16 %v209
    %v3188 = vunpack.c.l.b16 %v210
    %v3189 = vunpack.c.h.b16 %v210
    %v3190 = vunpack.c.l.b16 %v211
    %v3191 = vunpack.c.h.b16 %v211
    %v3192 = vunpack.c.l.b16 %v212
    %v3193 = vunpack.c.h.b16 %v212
    %v3194 = vunpack.c.l.b16 %v213
    %v3195 = vunpack.c.h.b16 %v213
    %v3196 = vunpack.c.l.b16 %v214
    %v3197 = vunpack.c.h.b16 %v214
    %v3198 = vunpack.c.l.b16 %v215
    %v3199 = vunpack.c.h.b16 %v215
    %v3200 = vunpack.c.l.b16 %v216
    %v3201 = vunpack.c.h.b16 %v216
    %v3202 = vunpack.c.l.b16 %v217
    %v3203 = vunpack.c.h.b16 %v217
    %v3204 = vunpack.c.l.b16 %v218
    %v3205 = vunpack.c.h.b16 %v218
    %v3206 = vunpack.c.l.b16 %v219
    %v3207 = vunpack.c.h.b16 %v219
    %v3208 = vunpack.c.l.b16 %v220
    %v3209 = vunpack.c.h.b16 %v220
    %v3210 = vunpack.c.l.b16 %v221
    %v3211 = vunpack.c.h.b16 %v221
    %v3212 = vunpack.c.l.b16 %v222
    %v3213 = vunpack.c.h.b16 %v222
    %v3214 = vunpack.c.l.b16 %v223
    %v3215 = vunpack.c.l.b16 %v224
    %v3216 = vunpack.c.h.b16 %v224
    %v3217 = vunpack.c.l.b16 %v225
    %v3218 = vunpack.c.h.b16 %v225
    %v3219 = vunpack.c.l.b16 %v226
    %v3220 = vunpack.c.h.b16 %v226
    %v3221 = vunpack.c.l.b16 %v227
    %v3222 = vunpack.c.h.b16 %v227
    %v3223 = vunpack.c.l.b16 %v228
    %v3224 = vunpack.c.h.b16 %v228
    %v3225 = vunpack.c.l.b16 %v229
    %v3226 = vunpack.c.h.b16 %v229
    %v3227 = vunpack.c.l.b16 %v230
    %v3228 = vunpack.c.h.b16 %v230
    %v3229 = vunpack.c.l.b16 %v231
    %v3230 = vunpack.c.h.b16 %v231
    %v3231 = vunpack.c.l.b16 %v232
    %v3232 = vunpack.c.h.b16 %v232
    %v3233 = vunpack.c.l.b16 %v233
    %v3234 = vunpack.c.h.b16 %v233
    %v3235 = vunpack.c.l.b16 %v234
    %v3236 = vunpack.c.h.b16 %v234
    %v3237 = vunpack.c.l.b16 %v235
    %v3238 = vunpack.c.h.b16 %v235
    %v3239 = vunpack.c.l.b16 %v236
    %v3240 = vunpack.c.h.b16 %v236
    %v3241 = vunpack.c.l.b16 %v237
    %v3242 = vunpack.c.l.b16 %v238
    %v3243 = vunpack.c.h.b16 %v238
    %v3244 = vunpack.c.l.b16 %v239
    %v3245 = vunpack.c.h.b16 %v239
    %v3246 = vunpack.c.l.b16 %v240
    %v3247 = vunpack.c.h.b16 %v240
    %v3248 = vunpack.c.l.b16 %v241
    %v3249 = vunpack.c.h.b16 %v241
    %v3250 = vunpack.c.l.b16 %v242
    %v3251 = vunpack.c.h.b16 %v242
    %v3252 = vunpack.c.l.b16 %v243
    %v3253 = vunpack.c.h.b16 %v243
    %v3254 = vunpack.c.l.b16 %v244
    %v3255 = vunpack.c.h.b16 %v244
    %v3256 = vunpack.c.l.b16 %v245
    %v3257 = vunpack.c.h.b16 %v245
    %v3258 = vunpack.c.l.b16 %v246
    %v3259 = vunpack.c.h.b16 %v246
    %v3260 = vunpack.c.l.b16 %v247
    %v3261 = vunpack.c.h.b16 %v247
    %v3262 = vunpack.c.l.b16 %v248
    %v3263 = vunpack.c.h.b16 %v248
    %v3264 = vunpack.c.l.b16 %v249
    %v3265 = vunpack.c.h.b16 %v249
    %v3266 = vunpack.c.l.b16 %v250
    %v3267 = vunpack.c.h.b16 %v250
    %v3268 = vunpack.c.l.b16 %v251
    %v3269 = vunpack.c.l.b16 %v252
    %v3270 = vunpack.c.h.b16 %v252
    %v3271 = vunpack.c.l.b16 %v253
    %v3272 = vunpack.c.h.b16 %v253
    %v3273 = vunpack.c.l.b16 %v254
    %v3274 = vunpack.c.h.b16 %v254
    %v3275 = vunpack.c.l.b16 %v255
    %v3276 = vunpack.c.h.b16 %v255
    %v3277 = vunpack.c.l.b16 %v256
    %v3278 = vunpack.c.h.b16 %v256
    %v3279 = vunpack.c.l.b16 %v257
    %v3280 = vunpack.c.h.b16 %v257
    %v3281 = vunpack.c.l.b16 %v258
    %v3282 = vunpack.c.h.b16 %v258
    %v3283 = vunpack.c.l.b16 %v259
    %v3284 = vunpack.c.h.b16 %v259
    %v3285 = vunpack.c.l.b16 %v260
    %v3286 = vunpack.c.h.b16 %v260
    %v3287 = vunpack.c.l.b16 %v261
    %v3288 = vunpack.c.h.b16 %v261
    %v3289 = vunpack.c.l.b16 %v262
    %v3290 = vunpack.c.h.b16 %v262
    %v3291 = vunpack.c.l.b16 %v263
    %v3292 = vunpack.c.h.b16 %v263
    %v3293 = vunpack.c.l.b16 %v264
    %v3294 = vunpack.c.h.b16 %v264
    %v3295 = vunpack.c.l.b16 %v265
    %v3296 = vunpack.c.l.b16 %v266
    %v3297 = vunpack.c.h.b16 %v266
    %v3298 = vunpack.c.l.b16 %v267
    %v3299 = vunpack.c.h.b16 %v267
    %v3300 = vunpack.c.l.b16 %v268
    %v3301 = vunpack.c.h.b16 %v268
    %v3302 = vunpack.c.l.b16 %v269
    %v3303 = vunpack.c.h.b16 %v269
    %v3304 = vunpack.c.l.b16 %v270
    %v3305 = vunpack.c.h.b16 %v270
    %v3306 = vunpack.c.l.b16 %v271
    %v3307 = vunpack.c.h.b16 %v271
    %v3308 = vunpack.c.l.b16 %v272
    %v3309 = vunpack.c.h.b16 %v272
    %v3310 = vunpack.c.l.b16 %v273
    %v3311 = vunpack.c.h.b16 %v273
    %v3312 = vunpack.c.l.b16 %v274
    %v3313 = vunpack.c.h.b16 %v274
    %v3314 = vunpack.c.l.b16 %v275
    %v3315 = vunpack.c.h.b16 %v275
    %v3316 = vunpack.c.l.b16 %v276
    %v3317 = vunpack.c.h.b16 %v276
    %v3318 = vunpack.c.l.b16 %v277
    %v3319 = vunpack.c.h.b16 %v277
    %v3320 = vunpack.c.l.b16 %v278
    %v3321 = vunpack.c.h.b16 %v278
    %v3322 = vunpack.c.l.b16 %v279
    %v3323 = vunpack.c.l.b16 %v280
    %v3324 = vunpack.c.h.b16 %v280
    %v3325 = vunpack.c.l.b16 %v281
    %v3326 = vunpack.c.h.b16 %v281
    %v3327 = vunpack.c.l.b16 %v282
    %v3328 = vunpack.c.h.b16 %v282
    %v3329 = vunpack.c.l.b16 %v283
    %v3330 = vunpack.c.h.b16 %v283
    %v3331 = vunpack.c.l.b16 %v284
    %v3332 = vunpack.c.h.b16 %v284
    %v3333 = vunpack.c.l.b16 %v285
    %v3334 = vunpack.c.h.b16 %v285
    %v3335 = vunpack.c.l.b16 %v286
    %v3336 = vunpack.c.h.b16 %v286
    %v3337 = vunpack.c.l.b16 %v287
    %v3338 = vunpack.c.h.b16 %v287
    %v3339 = vunpack.c.l.b16 %v288
    %v3340 = vunpack.c.h.b16 %v288
    %v3341 = vunpack.c.l.b16 %v289
    %v3342 = vunpack.c.h.b16 %v289
    %v3343 = vunpack.c.l.b16 %v290
    %v3344 = vunpack.c.h.b16 %v290
    %v3345 = vunpack.c.l.b16 %v291
    %v3346 = vunpack.c.h.b16 %v291
    %v3347 = vunpack.c.l.b16 %v292
    %v3348 = vunpack.c.h.b16 %v292
    %v3349 = vunpack.c.l.b16 %v293
    %v3350 = vunpack.c.l.b16 %v294
    %v3351 = vunpack.c.h.b16 %v294
    %v3352 = vunpack.c.l.b16 %v295
    %v3353 = vunpack.c.h.b16 %v295
    %v3354 = vunpack.c.l.b16 %v296
    %v3355 = vunpack.c.h.b16 %v296
    %v3356 = vunpack.c.l.b16 %v297
    %v3357 = vunpack.c.h.b16 %v297
    %v3358 = vunpack.c.l.b16 %v298
    %v3359 = vunpack.c.h.b16 %v298
    %v3360 = vunpack.c.l.b16 %v299
    %v3361 = vunpack.c.h.b16 %v299
    %v3362 = vunpack.c.l.b16 %v300
    %v3363 = vunpack.c.h.b16 %v300
    %v3364 = vunpack.c.l.b16 %v301
    %v3365 = vunpack.c.h.b16 %v301
    %v3366 = vunpack.c.l.b16 %v302
    %v3367 = vunpack.c.h.b16 %v302
    %v3368 = vunpack.c.l.b16 %v303
    %v3369 = vunpack.c.h.b16 %v303
    %v3370 = vunpack.c.l.b16 %v304
    %v3371 = vunpack.c.h.b16 %v304
    %v3372 = vunpack.c.l.b16 %v305
    %v3373 = vunpack.c.h.b16 %v305
    %v3374 = vunpack.c.l.b16 %v306
    %v3375 = vunpack.c.h.b16 %v306
    %v3376 = vunpack.c.l.b16 %v307
    %v3377 = vunpack.c.l.b16 %v308
    %v3378 = vunpack.c.h.b16 %v308
    %v3379 = vunpack.c.l.b16 %v309
    %v3380 = vunpack.c.h.b16 %v309
    %v3381 = vunpack.c.l.b16 %v310
    %v3382 = vunpack.c.h.b16 %v310
    %v3383 = vunpack.c.l.b16 %v311
    %v3384 = vunpack.c.h.b16 %v311
    %v3385 = vunpack.c.l.b16 %v312
    %v3386 = vunpack.c.h.b16 %v312
    %v3387 = vunpack.c.l.b16 %v313
    %v3388 = vunpack.c.h.b16 %v313
    %v3389 = vunpack.c.l.b16 %v314
    %v3390 = vunpack.c.h.b16 %v314
    %v3391 = vunpack.c.l.b16 %v315
    %v3392 = vunpack.c.h.b16 %v315
    %v3393 = vunpack.c.l.b16 %v316
    %v3394 = vunpack.c.h.b16 %v316
    %v3395 = vunpack.c.l.b16 %v317
    %v3396 = vunpack.c.h.b16 %v317
    %v3397 = vunpack.c.l.b16 %v318
    %v3398 = vunpack.c.h.b16 %v318
    %v3399 = vunpack.c.l.b16 %v319
    %v3400 = vunpack.c.h.b16 %v319
    %v3401 = vunpack.c.l.b16 %v320
    %v3402 = vunpack.c.h.b16 %v320
    %v3403 = vunpack.c.l.b16 %v321
    %v3404 = vunpack.c.l.b16 %v322
    %v3405 = vunpack.c.h.b16 %v322
    %v3406 = vunpack.c.l.b16 %v323
    %v3407 = vunpack.c.h.b16 %v323
    %v3408 = vunpack.c.l.b16 %v324
    %v3409 = vunpack.c.h.b16 %v324
    %v3410 = vunpack.c.l.b16 %v325
    %v3411 = vunpack.c.h.b16 %v325
    %v3412 = vunpack.c.l.b16 %v326
    %v3413 = vunpack.c.h.b16 %v326
    %v3414 = vunpack.c.l.b16 %v327
    %v3415 = vunpack.c.h.b16 %v327
    %v3416 = vunpack.c.l.b16 %v328
    %v3417 = vunpack.c.h.b16 %v328
    %v3418 = vunpack.c.l.b16 %v329
    %v3419 = vunpack.c.h.b16 %v329
    %v3420 = vunpack.c.l.b16 %v330
    %v3421 = vunpack.c.h.b16 %v330
    %v3422 = vunpack.c.l.b16 %v331
    %v3423 = vunpack.c.h.b16 %v331
    %v3424 = vunpack.c.l.b16 %v332
    %v3425 = vunpack.c.h.b16 %v332
    %v3426 = vunpack.c.l.b16 %v333
    %v3427 = vunpack.c.h.b16 %v333
    %v3428 = vunpack.c.l.b16 %v334
    %v3429 = vunpack.c.h.b16 %v334
    %v3430 = vunpack.c.l.b16 %v335
    %v3431 = vunpack.c.l.b16 %v336
    %v3432 = vunpack.c.h.b16 %v336
    %v3433 = vunpack.c.l.b16 %v337
    %v3434 = vunpack.c.h.b16 %v337
    %v3435 = vunpack.c.l.b16 %v338
    %v3436 = vunpack.c.h.b16 %v338
    %v3437 = vunpack.c.l.b16 %v339
    %v3438 = vunpack.c.h.b16 %v339
    %v3439 = vunpack.c.l.b16 %v340
    %v3440 = vunpack.c.h.b16 %v340
    %v3441 = vunpack.c.l.b16 %v341
    %v3442 = vunpack.c.h.b16 %v341
    %v3443 = vunpack.c.l.b16 %v342
    %v3444 = vunpack.c.h.b16 %v342
    %v3445 = vunpack.c.l.b16 %v343
    %v3446 = vunpack.c.h.b16 %v343
    %v3447 = vunpack.c.l.b16 %v344
    %v3448 = vunpack.c.h.b16 %v344
    %v3449 = vunpack.c.l.b16 %v345
    %v3450 = vunpack.c.h.b16 %v345
    %v3451 = vunpack.c.l.b16 %v346
    %v3452 = vunpack.c.h.b16 %v346
    %v3453 = vunpack.c.l.b16 %v347
    %v3454 = vunpack.c.h.b16 %v347
    %v3455 = vunpack.c.l.b16 %v348
    %v3456 = vunpack.c.h.b16 %v348
    %v3457 = vunpack.c.l.b16 %v349
    %v3458 = vunpack.c.l.b16 %v350
    %v3459 = vunpack.c.h.b16 %v350
    %v3460 = vunpack.c.l.b16 %v351
    %v3461 = vunpack.c.h.b16 %v351
    %v3462 = vunpack.c.l.b16 %v352
    %v3463 = vunpack.c.h.b16 %v352
    %v3464 = vunpack.c.l.b16 %v353
    %v3465 = vunpack.c.h.b16 %v353
    %v3466 = vunpack.c.l.b16 %v354
    %v3467 = vunpack.c.h.b16 %v354
    %v3468 = vunpack.c.l.b16 %v355
    %v3469 = vunpack.c.h.b16 %v355
    %v3470 = vunpack.c.l.b16 %v356
    %v3471 = vunpack.c.h.b16 %v356
    %v3472 = vunpack.c.l.b16 %v357
    %v3473 = vunpack.c.h.b16 %v357
    %v3474 = vunpack.c.l.b16 %v358
    %v3475 = vunpack.c.h.b16 %v358
    %v3476 = vunpack.c.l.b16 %v359
    %v3477 = vunpack.c.h.b16 %v359
    %v3478 = vunpack.c.l.b16 %v360
    %v3479 = vunpack.c.h.b16 %v360
    %v3480 = vunpack.c.l.b16 %v361
    %v3481 = vunpack.c.h.b16 %v361
    %v3482 = vunpack.c.l.b16 %v362
    %v3483 = vunpack.c.h.b16 %v362
    %v3484 = vunpack.c.l.b16 %v363
    %v3485 = vunpack.c.l.b16 %v364
    %v3486 = vunpack.c.h.b16 %v364
    %v3487 = vunpack.c.l.b16 %v365
    %v3488 = vunpack.c.h.b16 %v365
    %v3489 = vunpack.c.l.b16 %v366
    %v3490 = vunpack.c.h.b16 %v366
    %v3491 = vunpack.c.l.b16 %v367
    %v3492 = vunpack.c.h.b16 %v367
    %v3493 = vunpack.c.l.b16 %v368
    %v3494 = vunpack.c.h.b16 %v368
    %v3495 = vunpack.c.l.b16 %v369
    %v3496 = vunpack.c.h.b16 %v369
    %v3497 = vunpack.c.l.b16 %v370
    %v3498 = vunpack.c.h.b16 %v370
    %v3499 = vunpack.c.l.b16 %v371
    %v3500 = vunpack.c.h.b16 %v371
    %v3501 = vunpack.c.l.b16 %v372
    %v3502 = vunpack.c.h.b16 %v372
    %v3503 = vunpack.c.l.b16 %v373
    %v3504 = vunpack.c.h.b16 %v373
    %v3505 = vunpack.c.l.b16 %v374
    %v3506 = vunpack.c.h.b16 %v374
    %v3507 = vunpack.c.l.b16 %v375
    %v3508 = vunpack.c.h.b16 %v375
    %v3509 = vunpack.c.l.b16 %v376
    %v3510 = vunpack.c.h.b16 %v376
    %v3511 = vunpack.c.l.b16 %v377
    %v3512 = vunpack.c.l.b16 %v378
    %v3513 = vunpack.c.h.b16 %v378
    %v3514 = vunpack.c.l.b16 %v379
    %v3515 = vunpack.c.h.b16 %v379
    %v3516 = vunpack.c.l.b16 %v380
    %v3517 = vunpack.c.h.b16 %v380
    %v3518 = vunpack.c.l.b16 %v381
    %v3519 = vunpack.c.h.b16 %v381
    %v3520 = vunpack.c.l.b16 %v382
    %v3521 = vunpack.c.h.b16 %v382
    %v3522 = vunpack.c.l.b16 %v383
    %v3523 = vunpack.c.h.b16 %v383
    %v3524 = vunpack.c.l.b16 %v384
    %v3525 = vunpack.c.h.b16 %v384
    %v3526 = vunpack.c.l.b16 %v385
    %v3527 = vunpack.c.h.b16 %v385
    %v3528 = vunpack.c.l.b16 %v386
    %v3529 = vunpack.c.h.b16 %v386
    %v3530 = vunpack.c.l.b16 %v387
    %v3531 = vunpack.c.h.b16 %v387
    %v3532 = vunpack.c.l.b16 %v388
    %v3533 = vunpack.c.h.b16 %v388
    %v3534 = vunpack.c.l.b16 %v389
    %v3535 = vunpack.c.h.b16 %v389
    %v3536 = vunpack.c.l.b16 %v390
    %v3537 = vunpack.c.h.b16 %v390
    %v3538 = vunpack.c.l.b16 %v391
    %v3539 = vunpack.c.l.b16 %v392
    %v3540 = vunpack.c.h.b16 %v392
    %v3541 = vunpack.c.l.b16 %v393
    %v3542 = vunpack.c.h.b16 %v393
    %v3543 = vunpack.c.l.b16 %v394
    %v3544 = vunpack.c.h.b16 %v394
    %v3545 = vunpack.c.l.b16 %v395
    %v3546 = vunpack.c.h.b16 %v395
    %v3547 = vunpack.c.l.b16 %v396
    %v3548 = vunpack.c.h.b16 %v396
    %v3549 = vunpack.c.l.b16 %v397
    %v3550 = vunpack.c.h.b16 %v397
    %v3551 = vunpack.c.l.b16 %v398
    %v3552 = vunpack.c.h.b16 %v398
    %v3553 = vunpack.c.l.b16 %v399
    %v3554 = vunpack.c.h.b16 %v399
    %v3555 = vunpack.c.l.b16 %v400
    %v3556 = vunpack.c.h.b16 %v400
    %v3557 = vunpack.c.l.b16 %v401
    %v3558 = vunpack.c.h.b16 %v401
    %v3559 = vunpack.c.l.b16 %v402
    %v3560 = vunpack.c.h.b16 %v402
    %v3561 = vunpack.c.l.b16 %v403
    %v3562 = vunpack.c.h.b16 %v403
    %v3563 = vunpack.c.l.b16 %v404
    %v3564 = vunpack.c.h.b16 %v404
    %v3565 = vunpack.c.l.b16 %v405
    %v3566 = vunpack.c.l.b16 %v406
    %v3567 = vunpack.c.h.b16 %v406
    %v3568 = vunpack.c.l.b16 %v407
    %v3569 = vunpack.c.h.b16 %v407
    %v3570 = vunpack.c.l.b16 %v408
    %v3571 = vunpack.c.h.b16 %v408
    %v3572 = vunpack.c.l.b16 %v409
    %v3573 = vunpack.c.h.b16 %v409
    %v3574 = vunpack.c.l.b16 %v410
    %v3575 = vunpack.c.h.b16 %v410
    %v3576 = vunpack.c.l.b16 %v411
    %v3577 = vunpack.c.h.b16 %v411
    %v3578 = vunpack.c.l.b16 %v412
    %v3579 = vunpack.c.h.b16 %v412
    %v3580 = vunpack.c.l.b16 %v413
    %v3581 = vunpack.c.h.b16 %v413
    %v3582 = vunpack.c.l.b16 %v414
    %v3583 = vunpack.c.h.b16 %v414
    %v3584 = vunpack.c.l.b16 %v415
    %v3585 = vunpack.c.h.b16 %v415
    %v3586 = vunpack.c.l.b16 %v416
    %v3587 = vunpack.c.h.b16 %v416
    %v3588 = vunpack.c.l.b16 %v417
    %v3589 = vunpack.c.h.b16 %v417
    %v3590 = vunpack.c.l.b16 %v418
    %v3591 = vunpack.c.h.b16 %v418
    %v3592 = vunpack.c.l.b16 %v419
    %v3593 = vunpack.c.l.b16 %v420
    %v3594 = vunpack.c.h.b16 %v420
    %v3595 = vunpack.c.l.b16 %v421
    %v3596 = vunpack.c.h.b16 %v421
    %v3597 = vunpack.c.l.b16 %v422
    %v3598 = vunpack.c.h.b16 %v422
    %v3599 = vunpack.c.l.b16 %v423
    %v3600 = vunpack.c.h.b16 %v423
    %v3601 = vunpack.c.l.b16 %v424
    %v3602 = vunpack.c.h.b16 %v424
    %v3603 = vunpack.c.l.b16 %v425
    %v3604 = vunpack.c.h.b16 %v425
    %v3605 = vunpack.c.l.b16 %v426
    %v3606 = vunpack.c.h.b16 %v426
    %v3607 = vunpack.c.l.b16 %v427
    %v3608 = vunpack.c.h.b16 %v427
    %v3609 = vunpack.c.l.b16 %v428
    %v3610 = vunpack.c.h.b16 %v428
    %v3611 = vunpack.c.l.b16 %v429
    %v3612 = vunpack.c.h.b16 %v429
    %v3613 = vunpack.c.l.b16 %v430
    %v3614 = vunpack.c.h.b16 %v430
    %v3615 = vunpack.c.l.b16 %v431
    %v3616 = vunpack.c.h.b16 %v431
    %v3617 = vunpack.c.l.b16 %v432
    %v3618 = vunpack.c.h.b16 %v432
    %v3619 = vunpack.c.l.b16 %v433
    %v3620 = vunpack.c.l.b16 %v434
    %v3621 = vunpack.c.h.b16 %v434
    %v3622 = vunpack.c.l.b16 %v435
    %v3623 = vunpack.c.h.b16 %v435
    %v3624 = vunpack.c.l.b16 %v436
    %v3625 = vunpack.c.h.b16 %v436
    %v3626 = vunpack.c.l.b16 %v437
    %v3627 = vunpack.c.h.b16 %v437
    %v3628 = vunpack.c.l.b16 %v438
    %v3629 = vunpack.c.h.b16 %v438
    %v3630 = vunpack.c.l.b16 %v439
    %v3631 = vunpack.c.h.b16 %v439
    %v3632 = vunpack.c.l.b16 %v440
    %v3633 = vunpack.c.h.b16 %v440
    %v3634 = vunpack.c.l.b16 %v441
    %v3635 = vunpack.c.h.b16 %v441
    %v3636 = vunpack.c.l.b16 %v442
    %v3637 = vunpack.c.h.b16 %v442
    %v3638 = vunpack.c.l.b16 %v443
    %v3639 = vunpack.c.h.b16 %v443
    %v3640 = vunpack.c.l.b16 %v444
    %v3641 = vunpack.c.h.b16 %v444
    %v3642 = vunpack.c.l.b16 %v445
    %v3643 = vunpack.c.h.b16 %v445
    %v3644 = vunpack.c.l.b16 %v446
    %v3645 = vunpack.c.h.b16 %v446
    %v3646 = vunpack.c.l.b16 %v447
    %v3647 = vunpack.c.l.b16 %v448
    %v3648 = vunpack.c.h.b16 %v448
    %v3649 = vunpack.c.l.b16 %v449
    %v3650 = vunpack.c.h.b16 %v449
    %v3651 = vunpack.c.l.b16 %v450
    %v3652 = vunpack.c.h.b16 %v450
    %v3653 = vunpack.c.l.b16 %v451
    %v3654 = vunpack.c.h.b16 %v451
    %v3655 = vunpack.c.l.b16 %v452
    %v3656 = vunpack.c.h.b16 %v452
    %v3657 = vunpack.c.l.b16 %v453
    %v3658 = vunpack.c.h.b16 %v453
    %v3659 = vunpack.c.l.b16 %v454
    %v3660 = vunpack.c.h.b16 %v454
    %v3661 = vunpack.c.l.b16 %v455
    %v3662 = vunpack.c.h.b16 %v455
    %v3663 = vunpack.c.l.b16 %v456
    %v3664 = vunpack.c.h.b16 %v456
    %v3665 = vunpack.c.l.b16 %v457
    %v3666 = vunpack.c.h.b16 %v457
    %v3667 = vunpack.c.l.b16 %v458
    %v3668 = vunpack.c.h.b16 %v458
    %v3669 = vunpack.c.l.b16 %v459
    %v3670 = vunpack.c.h.b16 %v459
    %v3671 = vunpack.c.l.b16 %v460
    %v3672 = vunpack.c.h.b16 %v460
    %v3673 = vunpack.c.l.b16 %v461
    %v3674 = vunpack.c.l.b16 %v462
    %v3675 = vunpack.c.h.b16 %v462
    %v3676 = vunpack.c.l.b16 %v463
    %v3677 = vunpack.c.h.b16 %v463
    %v3678 = vunpack.c.l.b16 %v464
    %v3679 = vunpack.c.h.b16 %v464
    %v3680 = vunpack.c.l.b16 %v465
    %v3681 = vunpack.c.h.b16 %v465
    %v3682 = vunpack.c.l.b16 %v466
    %v3683 = vunpack.c.h.b16 %v466
    %v3684 = vunpack.c.l.b16 %v467
    %v3685 = vunpack.c.h.b16 %v467
    %v3686 = vunpack.c.l.b16 %v468
    %v3687 = vunpack.c.h.b16 %v468
    %v3688 = vunpack.c.l.b16 %v469
    %v3689 = vunpack.c.h.b16 %v469
    %v3690 = vunpack.c.l.b16 %v470
    %v3691 = vunpack.c.h.b16 %v470
    %v3692 = vunpack.c.l.b16 %v471
    %v3693 = vunpack.c.h.b16 %v471
    %v3694 = vunpack.c.l.b16 %v472
    %v3695 = vunpack.c.h.b16 %v472
    %v3696 = vunpack.c.l.b16 %v473
    %v3697 = vunpack.c.h.b16 %v473
    %v3698 = vunpack.c.l.b16 %v474
    %v3699 = vunpack.c.h.b16 %v474
    %v3700 = vunpack.c.l.b16 %v475
    %v3701 = vunpack.c.l.b16 %v476
    %v3702 = vunpack.c.h.b16 %v476
    %v3703 = vunpack.c.l.b16 %v477
    %v3704 = vunpack.c.h.b16 %v477
    %v3705 = vunpack.c.l.b16 %v478
    %v3706 = vunpack.c.h.b16 %v478
    %v3707 = vunpack.c.l.b16 %v479
    %v3708 = vunpack.c.h.b16 %v479
    %v3709 = vunpack.c.l.b16 %v480
    %v3710 = vunpack.c.h.b16 %v480
    %v3711 = vunpack.c.l.b16 %v481
    %v3712 = vunpack.c.h.b16 %v481
    %v3713 = vunpack.c.l.b16 %v482
    %v3714 = vunpack.c.h.b16 %v482
    %v3715 = vunpack.c.l.b16 %v483
    %v3716 = vunpack.c.h.b16 %v483
    %v3717 = vunpack.c.l.b16 %v484
    %v3718 = vunpack.c.h.b16 %v484
    %v3719 = vunpack.c.l.b16 %v485
    %v3720 = vunpack.c.h.b16 %v485
    %v3721 = vunpack.c.l.b16 %v486
    %v3722 = vunpack.c.h.b16 %v486
    %v3723 = vunpack.c.l.b16 %v487
    %v3724 = vunpack.c.h.b16 %v487
    %v3725 = vunpack.c.l.b16 %v488
    %v3726 = vunpack.c.h.b16 %v488
    %v3727 = vunpack.c.l.b16 %v489
    %v3728 = vunpack.c.l.b16 %v490
    %v3729 = vunpack.c.h.b16 %v490
    %v3730 = vunpack.c.l.b16 %v491
    %v3731 = vunpack.c.h.b16 %v491
    %v3732 = vunpack.c.l.b16 %v492
    %v3733 = vunpack.c.h.b16 %v492
    %v3734 = vunpack.c.l.b16 %v493
    %v3735 = vunpack.c.h.b16 %v493
    %v3736 = vunpack.c.l.b16 %v494
    %v3737 = vunpack.c.h.b16 %v494
    %v3738 = vunpack.c.l.b16 %v495
    %v3739 = vunpack.c.h.b16 %v495
    %v3740 = vunpack.c.l.b16 %v496
    %v3741 = vunpack.c.h.b16 %v496
    %v3742 = vunpack.c.l.b16 %v497
    %v3743 = vunpack.c.h.b16 %v497
    %v3744 = vunpack.c.l.b16 %v498
    %v3745 = vunpack.c.h.b16 %v498
    %v3746 = vunpack.c.l.b16 %v499
    %v3747 = vunpack.c.h.b16 %v499
    %v3748 = vunpack.c.l.b16 %v500
    %v3749 = vunpack.c.h.b16 %v500
    %v3750 = vunpack.c.l.b16 %v501
    %v3751 = vunpack.c.h.b16 %v501
    %v3752 = vunpack.c.l.b16 %v502
    %v3753 = vunpack.c.h.b16 %v502
    %v3754 = vunpack.c.l.b16 %v503
    %v3755 = vunpack.c.l.b16 %v504
    %v3756 = vunpack.c.h.b16 %v504
    %v3757 = vunpack.c.l.b16 %v505
    %v3758 = vunpack.c.h.b16 %v505
    %v3759 = vunpack.c.l.b16 %v506
    %v3760 = vunpack.c.h.b16 %v506
    %v3761 = vunpack.c.l.b16 %v507
    %v3762 = vunpack.c.h.b16 %v507
    %v3763 = vunpack.c.l.b16 %v508
    %v3764 = vunpack.c.h.b16 %v508
    %v3765 = vunpack.c.l.b16 %v509
    %v3766 = vunpack.c.h.b16 %v509
    %v3767 = vunpack.c.l.b16 %v510
    %v3768 = vunpack.c.h.b16 %v510
    %v3769 = vunpack.c.l.b16 %v511
    %v3770 = vunpack.c.h.b16 %v511
    %v3771 = vunpack.c.l.b16 %v512
    %v3772 = vunpack.c.h.b16 %v512
    %v3773 = vunpack.c.l.b16 %v513
    %v3774 = vunpack.c.h.b16 %v513
    %v3775 = vunpack.c.l.b16 %v514
    %v3776 = vunpack.c.h.b16 %v514
    %v3777 = vunpack.c.l.b16 %v515
    %v3778 = vunpack.c.h.b16 %v515
    %v3779 = vunpack.c.l.b16 %v516
    %v3780 = vunpack.c.h.b16 %v516
    %v3781 = vunpack.c.l.b16 %v517
    %v3782 = vunpack.c.l.b16 %v518
    %v3783 = vunpack.c.h.b16 %v518
    %v3784 = vunpack.c.l.b16 %v519
    %v3785 = vunpack.c.h.b16 %v519
    %v3786 = vunpack.c.l.b16 %v520
    %v3787 = vunpack.c.h.b16 %v520
    %v3788 = vunpack.c.l.b16 %v521
    %v3789 = vunpack.c.h.b16 %v521
    %v3790 = vunpack.c.l.b16 %v522
    %v3791 = vunpack.c.h.b16 %v522
    %v3792 = vunpack.c.l.b16 %v523
    %v3793 = vunpack.c.h.b16 %v523
    %v3794 = vunpack.c.l.b16 %v524
    %v3795 = vunpack.c.h.b16 %v524
    %v3796 = vunpack.c.l.b16 %v525
    %v3797 = vunpack.c.h.b16 %v525
    %v3798 = vunpack.c.l.b16 %v526
    %v3799 = vunpack.c.h.b16 %v526
    %v3800 = vunpack.c.l.b16 %v527
    %v3801 = vunpack.c.h.b16 %v527
    %v3802 = vunpack.c.l.b16 %v528
    %v3803 = vunpack.c.h.b16 %v528
    %v3804 = vunpack.c.l.b16 %v529
    %v3805 = vunpack.c.h.b16 %v529
    %v3806 = vunpack.c.l.b16 %v530
    %v3807 = vunpack.c.h.b16 %v530
    %v3808 = vunpack.c.l.b16 %v531
    %v3809 = vunpack.c.l.b16 %v532
    %v3810 = vunpack.c.h.b16 %v532
    %v3811 = vunpack.c.l.b16 %v533
    %v3812 = vunpack.c.h.b16 %v533
    %v3813 = vunpack.c.l.b16 %v534
    %v3814 = vunpack.c.h.b16 %v534
    %v3815 = vunpack.c.l.b16 %v535
    %v3816 = vunpack.c.h.b16 %v535
    %v3817 = vunpack.c.l.b16 %v536
    %v3818 = vunpack.c.h.b16 %v536
    %v3819 = vunpack.c.l.b16 %v537
    %v3820 = vunpack.c.h.b16 %v537
    %v3821 = vunpack.c.l.b16 %v538
    %v3822 = vunpack.c.h.b16 %v538
    %v3823 = vunpack.c.l.b16 %v539
    %v3824 = vunpack.c.h.b16 %v539
    %v3825 = vunpack.c.l.b16 %v540
    %v3826 = vunpack.c.h.b16 %v540
    %v3827 = vunpack.c.l.b16 %v541
    %v3828 = vunpack.c.h.b16 %v541
    %v3829 = vunpack.c.l.b16 %v542
    %v3830 = vunpack.c.h.b16 %v542
    %v3831 = vunpack.c.l.b16 %v543
    %v3832 = vunpack.c.h.b16 %v543
    %v3833 = vunpack.c.l.b16 %v544
    %v3834 = vunpack.c.h.b16 %v544
    %v3835 = vunpack.c.l.b16 %v545
    %v3836 = vunpack.c.l.b16 %v546
    %v3837 = vunpack.c.h.b16 %v546
    %v3838 = vunpack.c.l.b16 %v547
    %v3839 = vunpack.c.h.b16 %v547
    %v3840 = vunpack.c.l.b16 %v548
    %v3841 = vunpack.c.h.b16 %v548
    %v3842 = vunpack.c.l.b16 %v549
    %v3843 = vunpack.c.h.b16 %v549
    %v3844 = vunpack.c.l.b16 %v550
    %v3845 = vunpack.c.h.b16 %v550
    %v3846 = vunpack.c.l.b16 %v551
    %v3847 = vunpack.c.h.b16 %v551
    %v3848 = vunpack.c.l.b16 %v552
    %v3849 = vunpack.c.h.b16 %v552
    %v3850 = vunpack.c.l.b16 %v553
    %v3851 = vunpack.c.h.b16 %v553
    %v3852 = vunpack.c.l.b16 %v554
    %v3853 = vunpack.c.h.b16 %v554
    %v3854 = vunpack.c.l.b16 %v555
    %v3855 = vunpack.c.h.b16 %v555
    %v3856 = vunpack.c.l.b16 %v556
    %v3857 = vunpack.c.h.b16 %v556
    %v3858 = vunpack.c.l.b16 %v557
    %v3859 = vunpack.c.h.b16 %v557
    %v3860 = vunpack.c.l.b16 %v558
    %v3861 = vunpack.c.h.b16 %v558
    %v3862 = vunpack.c.l.b16 %v559
    %v3863 = vunpack.c.l.b16 %v560
    %v3864 = vunpack.c.h.b16 %v560
    %v3865 = vunpack.c.l.b16 %v561
    %v3866 = vunpack.c.h.b16 %v561
    %v3867 = vunpack.c.l.b16 %v562
    %v3868 = vunpack.c.h.b16 %v562
    %v3869 = vunpack.c.l.b16 %v563
    %v3870 = vunpack.c.h.b16 %v563
    %v3871 = vunpack.c.l.b16 %v564
    %v3872 = vunpack.c.h.b16 %v564
    %v3873 = vunpack.c.l.b16 %v565
    %v3874 = vunpack.c.h.b16 %v565
    %v3875 = vunpack.c.l.b16 %v566
    %v3876 = vunpack.c.h.b16 %v566
    %v3877 = vunpack.c.l.b16 %v567
    %v3878 = vunpack.c.h.b16 %v567
    %v3879 = vunpack.c.l.b16 %v568
    %v3880 = vunpack.c.h.b16 %v568
    %v3881 = vunpack.c.l.b16 %v569
    %v3882 = vunpack.c.h.b16 %v569
    %v3883 = vunpack.c.l.b16 %v570
    %v3884 = vunpack.c.h.b16 %v570
    %v3885 = vunpack.c.l.b16 %v571
    %v3886 = vunpack.c.h.b16 %v571
    %v3887 = vunpack.c.l.b16 %v572
    %v3888 = vunpack.c.h.b16 %v572
    %v3889 = vunpack.c.l.b16 %v573
    %v3890 = vunpack.c.l.b16 %v574
    %v3891 = vunpack.c.h.b16 %v574
    %v3892 = vunpack.c.l.b16 %v575
    %v3893 = vunpack.c.h.b16 %v575
    %v3894 = vunpack.c.l.b16 %v576
    %v3895 = vunpack.c.h.b16 %v576
    %v3896 = vunpack.c.l.b16 %v577
    %v3897 = vunpack.c.h.b16 %v577
    %v3898 = vunpack.c.l.b16 %v578
    %v3899 = vunpack.c.h.b16 %v578
    %v3900 = vunpack.c.l.b16 %v579
    %v3901 = vunpack.c.h.b16 %v579
    %v3902 = vunpack.c.l.b16 %v580
    %v3903 = vunpack.c.h.b16 %v580
    %v3904 = vunpack.c.l.b16 %v581
    %v3905 = vunpack.c.h.b16 %v581
    %v3906 = vunpack.c.l.b16 %v582
    %v3907 = vunpack.c.h.b16 %v582
    %v3908 = vunpack.c.l.b16 %v583
    %v3909 = vunpack.c.h.b16 %v583
    %v3910 = vunpack.c.l.b16 %v584
    %v3911 = vunpack.c.h.b16 %v584
    %v3912 = vunpack.c.l.b16 %v585
    %v3913 = vunpack.c.h.b16 %v585
    %v3914 = vunpack.c.l.b16 %v586
    %v3915 = vunpack.c.h.b16 %v586
    %v3916 = vunpack.c.l.b16 %v587
    %v3917 = vunpack.c.l.b16 %v588
    %v3918 = vunpack.c.h.b16 %v588
    %v3919 = vunpack.c.l.b16 %v589
    %v3920 = vunpack.c.h.b16 %v589
    %v3921 = vunpack.c.l.b16 %v590
    %v3922 = vunpack.c.h.b16 %v590
    %v3923 = vunpack.c.l.b16 %v591
    %v3924 = vunpack.c.h.b16 %v591
    %v3925 = vunpack.c.l.b16 %v592
    %v3926 = vunpack.c.h.b16 %v592
    %v3927 = vunpack.c.l.b16 %v593
    %v3928 = vunpack.c.h.b16 %v593
    %v3929 = vunpack.c.l.b16 %v594
    %v3930 = vunpack.c.h.b16 %v594
    %v3931 = vunpack.c.l.b16 %v595
    %v3932 = vunpack.c.h.b16 %v595
    %v3933 = vunpack.c.l.b16 %v596
    %v3934 = vunpack.c.h.b16 %v596
    %v3935 = vunpack.c.l.b16 %v597
    %v3936 = vunpack.c.h.b16 %v597
    %v3937 = vunpack.c.l.b16 %v598
    %v3938 = vunpack.c.h.b16 %v598
    %v3939 = vunpack.c.l.b16 %v599
    %v3940 = vunpack.c.h.b16 %v599
    %v3941 = vunpack.c.l.b16 %v600
    %v3942 = vunpack.c.h.b16 %v600
    %v3943 = vunpack.c.l.b16 %v601
    %v3944 = vunpack.c.l.b16 %v602
    %v3945 = vunpack.c.h.b16 %v602
    %v3946 = vunpack.c.l.b16 %v603
    %v3947 = vunpack.c.h.b16 %v603
    %v3948 = vunpack.c.l.b16 %v604
    %v3949 = vunpack.c.h.b16 %v604
    %v3950 = vunpack.c.l.b16 %v605
    %v3951 = vunpack.c.h.b16 %v605
    %v3952 = vunpack.c.l.b16 %v606
    %v3953 = vunpack.c.h.b16 %v606
    %v3954 = vunpack.c.l.b16 %v607
    %v3955 = vunpack.c.h.b16 %v607
    %v3956 = vunpack.c.l.b16 %v608
    %v3957 = vunpack.c.h.b16 %v608
    %v3958 = vunpack.c.l.b16 %v609
    %v3959 = vunpack.c.h.b16 %v609
    %v3960 = vunpack.c.l.b16 %v610
    %v3961 = vunpack.c.h.b16 %v610
    %v3962 = vunpack.c.l.b16 %v611
    %v3963 = vunpack.c.h.b16 %v611
    %v3964 = vunpack.c.l.b16 %v612
    %v3965 = vunpack.c.h.b16 %v612
    %v3966 = vunpack.c.l.b16 %v613
    %v3967 = vunpack.c.h.b16 %v613
    %v3968 = vunpack.c.l.b16 %v614
    %v3969 = vunpack.c.h.b16 %v614
    %v3970 = vunpack.c.l.b16 %v615
    %v3971 = vunpack.c.l.b16 %v616
    %v3972 = vunpack.c.h.b16 %v616
    %v3973 = vunpack.c.l.b16 %v617
    %v3974 = vunpack.c.h.b16 %v617
    %v3975 = vunpack.c.l.b16 %v618
    %v3976 = vunpack.c.h.b16 %v618
    %v3977 = vunpack.c.l.b16 %v619
    %v3978 = vunpack.c.h.b16 %v619
    %v3979 = vunpack.c.l.b16 %v620
    %v3980 = vunpack.c.h.b16 %v620
    %v3981 = vunpack.c.l.b16 %v621
    %v3982 = vunpack.c.h.b16 %v621
    %v3983 = vunpack.c.l.b16 %v622
    %v3984 = vunpack.c.h.b16 %v622
    %v3985 = vunpack.c.l.b16 %v623
    %v3986 = vunpack.c.h.b16 %v623
    %v3987 = vunpack.c.l.b16 %v624
    %v3988 = vunpack.c.h.b16 %v624
    %v3989 = vunpack.c.l.b16 %v625
    %v3990 = vunpack.c.h.b16 %v625
    %v3991 = vunpack.c.l.b16 %v626
    %v3992 = vunpack.c.h.b16 %v626
    %v3993 = vunpack.c.l.b16 %v627
    %v3994 = vunpack.c.h.b16 %v627
    %v3995 = vunpack.c.l.b16 %v628
    %v3996 = vunpack.c.h.b16 %v628
    %v3997 = vunpack.c.l.b16 %v629
    %v3998 = vunpack.c.l.b16 %v630
    %v3999 = vunpack.c.h.b16 %v630
    %v4000 = vunpack.c.l.b16 %v631
    %v4001 = vunpack.c.h.b16 %v631
    %v4002 = vunpack.c.l.b16 %v632
    %v4003 = vunpack.c.h.b16 %v632
    %v4004 = vunpack.c.l.b16 %v633
    %v4005 = vunpack.c.h.b16 %v633
    %v4006 = vunpack.c.l.b16 %v634
    %v4007 = vunpack.c.h.b16 %v634
    %v4008 = vunpack.c.l.b16 %v635
    %v4009 = vunpack.c.h.b16 %v635
    %v4010 = vunpack.c.l.b16 %v636
    %v4011 = vunpack.c.h.b16 %v636
    %v4012 = vunpack.c.l.b16 %v637
    %v4013 = vunpack.c.h.b16 %v637
    %v4014 = vunpack.c.l.b16 %v638
    %v4015 = vunpack.c.h.b16 %v638
    %v4016 = vunpack.c.l.b16 %v639
    %v4017 = vunpack.c.h.b16 %v639
    %v4018 = vunpack.c.l.b16 %v640
    %v4019 = vunpack.c.h.b16 %v640
    %v4020 = vunpack.c.l.b16 %v641
    %v4021 = vunpack.c.h.b16 %v641
    %v4022 = vunpack.c.l.b16 %v642
    %v4023 = vunpack.c.h.b16 %v642
    %v4024 = vunpack.c.l.b16 %v643
    %v4025 = vunpack.c.l.b16 %v644
    %v4026 = vunpack.c.h.b16 %v644
    %v4027 = vunpack.c.l.b16 %v645
    %v4028 = vunpack.c.h.b16 %v645
    %v4029 = vunpack.c.l.b16 %v646
    %v4030 = vunpack.c.h.b16 %v646
    %v4031 = vunpack.c.l.b16 %v647
    %v4032 = vunpack.c.h.b16 %v647
    %v4033 = vunpack.c.l.b16 %v648
    %v4034 = vunpack.c.h.b16 %v648
    %v4035 = vunpack.c.l.b16 %v649
    %v4036 = vunpack.c.h.b16 %v649
    %v4037 = vunpack.c.l.b16 %v650
    %v4038 = vunpack.c.h.b16 %v650
    %v4039 = vunpack.c.l.b16 %v651
    %v4040 = vunpack.c.h.b16 %v651
    %v4041 = vunpack.c.l.b16 %v652
    %v4042 = vunpack.c.h.b16 %v652
    %v4043 = vunpack.c.l.b16 %v653
    %v4044 = vunpack.c.h.b16 %v653
    %v4045 = vunpack.c.l.b16 %v654
    %v4046 = vunpack.c.h.b16 %v654
    %v4047 = vunpack.c.l.b16 %v655
    %v4048 = vunpack.c.h.b16 %v655
    %v4049 = vunpack.c.l.b16 %v656
    %v4050 = vunpack.c.h.b16 %v656
    %v4051 = vunpack.c.l.b16 %v657
    %v4052 = vunpack.c.l.b16 %v658
    %v4053 = vunpack.c.h.b16 %v658
    %v4054 = vunpack.c.l.b16 %v659
    %v4055 = vunpack.c.h.b16 %v659
    %v4056 = vunpack.c.l.b16 %v660
    %v4057 = vunpack.c.h.b16 %v660
    %v4058 = vunpack.c.l.b16 %v661
    %v4059 = vunpack.c.h.b16 %v661
    %v4060 = vunpack.c.l.b16 %v662
    %v4061 = vunpack.c.h.b16 %v662
    %v4062 = vunpack.c.l.b16 %v663
    %v4063 = vunpack.c.h.b16 %v663
    %v4064 = vunpack.c.l.b16 %v664
    %v4065 = vunpack.c.h.b16 %v664
    %v4066 = vunpack.c.l.b16 %v665
    %v4067 = vunpack.c.h.b16 %v665
    %v4068 = vunpack.c.l.b16 %v666
    %v4069 = vunpack.c.h.b16 %v666
    %v4070 = vunpack.c.l.b16 %v667
    %v4071 = vunpack.c.h.b16 %v667
    %v4072 = vunpack.c.l.b16 %v668
    %v4073 = vunpack.c.h.b16 %v668
    %v4074 = vunpack.c.l.b16 %v669
    %v4075 = vunpack.c.h.b16 %v669
    %v4076 = vunpack.c.l.b16 %v670
    %v4077 = vunpack.c.h.b16 %v670
    %v4078 = vunpack.c.l.b16 %v671
    %v4079 = vunpack.c.l.b16 %v672
    %v4080 = vunpack.c.h.b16 %v672
    %v4081 = vunpack.c.l.b16 %v673
    %v4082 = vunpack.c.h.b16 %v673
    %v4083 = vunpack.c.l.b16 %v674
    %v4084 = vunpack.c.h.b16 %v674
    %v4085 = vunpack.c.l.b16 %v675
    %v4086 = vunpack.c.h.b16 %v675
    %v4087 = vunpack.c.l.b16 %v676
    %v4088 = vunpack.c.h.b16 %v676
    %v4089 = vunpack.c.l.b16 %v677
    %v4090 = vunpack.c.h.b16 %v677
    %v4091 = vunpack.c.l.b16 %v678
    %v4092 = vunpack.c.h.b16 %v678
    %v4093 = vunpack.c.l.b16 %v679
    %v4094 = vunpack.c.h.b16 %v679
    %v4095 = vunpack.c.l.b16 %v680
    %v4096 = vunpack.c.h.b16 %v680
    %v4097 = vunpack.c.l.b16 %v681
    %v4098 = vunpack.c.h.b16 %v681
    %v4099 = vunpack.c.l.b16 %v682
    %v4100 = vunpack.c.h.b16 %v682
    %v4101 = vunpack.c.l.b16 %v683
    %v4102 = vunpack.c.h.b16 %v683
    %v4103 = vunpack.c.l.b16 %v684
    %v4104 = vunpack.c.h.b16 %v684
    %v4105 = vunpack.c.l.b16 %v685
    %v4106 = vunpack.c.l.b16 %v686
    %v4107 = vunpack.c.h.b16 %v686
    %v4108 = vunpack.c.l.b16 %v687
    %v4109 = vunpack.c.h.b16 %v687
    %v4110 = vunpack.c.l.b16 %v688
    %v4111 = vunpack.c.h.b16 %v688
    %v4112 = vunpack.c.l.b16 %v689
    %v4113 = vunpack.c.h.b16 %v689
    %v4114 = vunpack.c.l.b16 %v690
    %v4115 = vunpack.c.h.b16 %v690
    %v4116 = vunpack.c.l.b16 %v691
    %v4117 = vunpack.c.h.b16 %v691
    %v4118 = vunpack.c.l.b16 %v692
    %v4119 = vunpack.c.h.b16 %v692
    %v4120 = vunpack.c.l.b16 %v693
    %v4121 = vunpack.c.h.b16 %v693
    %v4122 = vunpack.c.l.b16 %v694
    %v4123 = vunpack.c.h.b16 %v694
    %v4124 = vunpack.c.l.b16 %v695
    %v4125 = vunpack.c.h.b16 %v695
    %v4126 = vunpack.c.l.b16 %v696
    %v4127 = vunpack.c.h.b16 %v696
    %v4128 = vunpack.c.l.b16 %v697
    %v4129 = vunpack.c.h.b16 %v697
    %v4130 = vunpack.c.l.b16 %v698
    %v4131 = vunpack.c.h.b16 %v698
    %v4132 = vunpack.c.l.b16 %v699
    %v4133 = vunpack.c.l.b16 %v700
    %v4134 = vunpack.c.h.b16 %v700
    %v4135 = vunpack.c.l.b16 %v701
    %v4136 = vunpack.c.h.b16 %v701
    %v4137 = vunpack.c.l.b16 %v702
    %v4138 = vunpack.c.h.b16 %v702
    %v4139 = vunpack.c.l.b16 %v703
    %v4140 = vunpack.c.h.b16 %v703
    %v4141 = vunpack.c.l.b16 %v704
    %v4142 = vunpack.c.h.b16 %v704
    %v4143 = vunpack.c.l.b16 %v705
    %v4144 = vunpack.c.h.b16 %v705
    %v4145 = vunpack.c.l.b16 %v706
    %v4146 = vunpack.c.h.b16 %v706
    %v4147 = vunpack.c.l.b16 %v707
    %v4148 = vunpack.c.h.b16 %v707
    %v4149 = vunpack.c.l.b16 %v708
    %v4150 = vunpack.c.h.b16 %v708
    %v4151 = vunpack.c.l.b16 %v709
    %v4152 = vunpack.c.h.b16 %v709
    %v4153 = vunpack.c.l.b16 %v710
    %v4154 = vunpack.c.h.b16 %v710
    %v4155 = vunpack.c.l.b16 %v711
    %v4156 = vunpack.c.h.b16 %v711
    %v4157 = vunpack.c.l.b16 %v712
    %v4158 = vunpack.c.h.b16 %v712
    %v4159 = vunpack.c.l.b16 %v713
    %v4160 = vunpack.c.l.b16 %v714
    %v4161 = vunpack.c.h.b16 %v714
    %v4162 = vunpack.c.l.b16 %v715
    %v4163 = vunpack.c.h.b16 %v715
    %v4164 = vunpack.c.l.b16 %v716
    %v4165 = vunpack.c.h.b16 %v716
    %v4166 = vunpack.c.l.b16 %v717
    %v4167 = vunpack.c.h.b16 %v717
    %v4168 = vunpack.c.l.b16 %v718
    %v4169 = vunpack.c.h.b16 %v718
    %v4170 = vunpack.c.l.b16 %v719
    %v4171 = vunpack.c.h.b16 %v719
    %v4172 = vunpack.c.l.b16 %v720
    %v4173 = vunpack.c.h.b16 %v720
    %v4174 = vunpack.c.l.b16 %v721
    %v4175 = vunpack.c.h.b16 %v721
    %v4176 = vunpack.c.l.b16 %v722
    %v4177 = vunpack.c.h.b16 %v722
    %v4178 = vunpack.c.l.b16 %v723
    %v4179 = vunpack.c.h.b16 %v723
    %v4180 = vunpack.c.l.b16 %v724
    %v4181 = vunpack.c.h.b16 %v724
    %v4182 = vunpack.c.l.b16 %v725
    %v4183 = vunpack.c.h.b16 %v725
    %v4184 = vunpack.c.l.b16 %v726
    %v4185 = vunpack.c.h.b16 %v726
    %v4186 = vunpack.c.l.b16 %v727
    %v4187 = vunpack.c.l.b16 %v728
    %v4188 = vunpack.c.h.b16 %v728
    %v4189 = vunpack.c.l.b16 %v729
    %v4190 = vunpack.c.h.b16 %v729
    %v4191 = vunpack.c.l.b16 %v730
    %v4192 = vunpack.c.h.b16 %v730
    %v4193 = vunpack.c.l.b16 %v731
    %v4194 = vunpack.c.h.b16 %v731
    %v4195 = vunpack.c.l.b16 %v732
    %v4196 = vunpack.c.h.b16 %v732
    %v4197 = vunpack.c.l.b16 %v733
    %v4198 = vunpack.c.h.b16 %v733
    %v4199 = vunpack.c.l.b16 %v734
    %v4200 = vunpack.c.h.b16 %v734
    %v4201 = vunpack.c.l.b16 %v735
    %v4202 = vunpack.c.h.b16 %v735
    %v4203 = vunpack.c.l.b16 %v736
    %v4204 = vunpack.c.h.b16 %v736
    %v4205 = vunpack.c.l.b16 %v737
    %v4206 = vunpack.c.h.b16 %v737
    %v4207 = vunpack.c.l.b16 %v738
    %v4208 = vunpack.c.h.b16 %v738
    %v4209 = vunpack.c.l.b16 %v739
    %v4210 = vunpack.c.h.b16 %v739
    %v4211 = vunpack.c.l.b16 %v740
    %v4212 = vunpack.c.h.b16 %v740
    %v4213 = vunpack.c.l.b16 %v741
    %v4214 = vunpack.c.l.b16 %v742
    %v4215 = vunpack.c.h.b16 %v742
    %v4216 = vunpack.c.l.b16 %v743
    %v4217 = vunpack.c.h.b16 %v743
    %v4218 = vunpack.c.l.b16 %v744
    %v4219 = vunpack.c.h.b16 %v744
    %v4220 = vunpack.c.l.b16 %v745
    %v4221 = vunpack.c.h.b16 %v745
    %v4222 = vunpack.c.l.b16 %v746
    %v4223 = vunpack.c.h.b16 %v746
    %v4224 = vunpack.c.l.b16 %v747
    %v4225 = vunpack.c.h.b16 %v747
    %v4226 = vunpack.c.l.b16 %v748
    %v4227 = vunpack.c.h.b16 %v748
    %v4228 = vunpack.c.l.b16 %v749
    %v4229 = vunpack.c.h.b16 %v749
    %v4230 = vunpack.c.l.b16 %v750
    %v4231 = vunpack.c.h.b16 %v750
    %v4232 = vunpack.c.l.b16 %v751
    %v4233 = vunpack.c.h.b16 %v751
    %v4234 = vunpack.c.l.b16 %v752
    %v4235 = vunpack.c.h.b16 %v752
    %v4236 = vunpack.c.l.b16 %v753
    %v4237 = vunpack.c.h.b16 %v753
    %v4238 = vunpack.c.l.b16 %v754
    %v4239 = vunpack.c.h.b16 %v754
    %v4240 = vunpack.c.l.b16 %v755
    %v4241 = vunpack.c.l.b16 %v756
    %v4242 = vunpack.c.h.b16 %v756
    %v4243 = vunpack.c.l.b16 %v757
    %v4244 = vunpack.c.h.b16 %v757
    %v4245 = vunpack.c.l.b16 %v758
    %v4246 = vunpack.c.h.b16 %v758
    %v4247 = vunpack.c.l.b16 %v759
    %v4248 = vunpack.c.h.b16 %v759
    %v4249 = vunpack.c.l.b16 %v760
    %v4250 = vunpack.c.h.b16 %v760
    %v4251 = vunpack.c.l.b16 %v761
    %v4252 = vunpack.c.h.b16 %v761
    %v4253 = vunpack.c.l.b16 %v762
    %v4254 = vunpack.c.h.b16 %v762
    %v4255 = vunpack.c.l.b16 %v763
    %v4256 = vunpack.c.h.b16 %v763
    %v4257 = vunpack.c.l.b16 %v764
    %v4258 = vunpack.c.h.b16 %v764
    %v4259 = vunpack.c.l.b16 %v765
    %v4260 = vunpack.c.h.b16 %v765
    %v4261 = vunpack.c.l.b16 %v766
    %v4262 = vunpack.c.h.b16 %v766
    %v4263 = vunpack.c.l.b16 %v767
    %v4264 = vunpack.c.h.b16 %v767
    %v4265 = vunpack.c.l.b16 %v768
    %v4266 = vunpack.c.h.b16 %v768
    %v4267 = vunpack.c.l.b16 %v769
    %v4268 = vunpack.c.l.b16 %v770
    %v4269 = vunpack.c.h.b16 %v770
    %v4270 = vunpack.c.l.b16 %v771
    %v4271 = vunpack.c.h.b16 %v771
    %v4272 = vunpack.c.l.b16 %v772
    %v4273 = vunpack.c.h.b16 %v772
    %v4274 = vunpack.c.l.b16 %v773
    %v4275 = vunpack.c.h.b16 %v773
    %v4276 = vunpack.c.l.b16 %v774
    %v4277 = vunpack.c.h.b16 %v774
    %v4278 = vunpack.c.l.b16 %v775
    %v4279 = vunpack.c.h.b16 %v775
    %v4280 = vunpack.c.l.b16 %v776
    %v4281 = vunpack.c.h.b16 %v776
    %v4282 = vunpack.c.l.b16 %v777
    %v4283 = vunpack.c.h.b16 %v777
    %v4284 = vunpack.c.l.b16 %v778
    %v4285 = vunpack.c.h.b16 %v778
    %v4286 = vunpack.c.l.b16 %v779
    %v4287 = vunpack.c.h.b16 %v779
    %v4288 = vunpack.c.l.b16 %v780
    %v4289 = vunpack.c.h.b16 %v780
    %v4290 = vunpack.c.l.b16 %v781
    %v4291 = vunpack.c.h.b16 %v781
    %v4292 = vunpack.c.l.b16 %v782
    %v4293 = vunpack.c.h.b16 %v782
    %v4294 = vunpack.c.l.b16 %v783
    %v4295 = vunpack.c.l.b16 %v784
    %v4296 = vunpack.c.h.b16 %v784
    %v4297 = vunpack.c.l.b16 %v785
    %v4298 = vunpack.c.h.b16 %v785
    %v4299 = vunpack.c.l.b16 %v786
    %v4300 = vunpack.c.h.b16 %v786
    %v4301 = vunpack.c.l.b16 %v787
    %v4302 = vunpack.c.h.b16 %v787
    %v4303 = vunpack.c.l.b16 %v788
    %v4304 = vunpack.c.h.b16 %v788
    %v4305 = vunpack.c.l.b16 %v789
    %v4306 = vunpack.c.h.b16 %v789
    %v4307 = vunpack.c.l.b16 %v790
    %v4308 = vunpack.c.h.b16 %v790
    %v4309 = vunpack.c.l.b16 %v791
    %v4310 = vunpack.c.h.b16 %v791
    %v4311 = vunpack.c.l.b16 %v792
    %v4312 = vunpack.c.h.b16 %v792
    %v4313 = vunpack.c.l.b16 %v793
    %v4314 = vunpack.c.h.b16 %v793
    %v4315 = vunpack.c.l.b16 %v794
    %v4316 = vunpack.c.h.b16 %v794
    %v4317 = vunpack.c.l.b16 %v795
    %v4318 = vunpack.c.h.b16 %v795
    %v4319 = vunpack.c.l.b16 %v796
    %v4320 = vunpack.c.h.b16 %v796
    %v4321 = vunpack.c.l.b16 %v797
    %v4322 = vunpack.c.l.b16 %v798
    %v4323 = vunpack.c.h.b16 %v798
    %v4324 = vunpack.c.l.b16 %v799
    %v4325 = vunpack.c.h.b16 %v799
    %v4326 = vunpack.c.l.b16 %v800
    %v4327 = vunpack.c.h.b16 %v800
    %v4328 = vunpack.c.l.b16 %v801
    %v4329 = vunpack.c.h.b16 %v801
    %v4330 = vunpack.c.l.b16 %v802
    %v4331 = vunpack.c.h.b16 %v802
    %v4332 = vunpack.c.l.b16 %v803
    %v4333 = vunpack.c.h.b16 %v803
    %v4334 = vunpack.c.l.b16 %v804
    %v4335 = vunpack.c.h.b16 %v804
    %v4336 = vunpack.c.l.b16 %v805
    %v4337 = vunpack.c.h.b16 %v805
    %v4338 = vunpack.c.l.b16 %v806
    %v4339 = vunpack.c.h.b16 %v806
    %v4340 = vunpack.c.l.b16 %v807
    %v4341 = vunpack.c.h.b16 %v807
    %v4342 = vunpack.c.l.b16 %v808
    %v4343 = vunpack.c.h.b16 %v808
    %v4344 = vunpack.c.l.b16 %v809
    %v4345 = vunpack.c.h.b16 %v809
    %v4346 = vunpack.c.l.b16 %v810
    %v4347 = vunpack.c.h.b16 %v810
    %v4348 = vunpack.c.l.b16 %v811
    %v4349 = vunpack.c.l.b16 %v812
    %v4350 = vunpack.c.h.b16 %v812
    %v4351 = vunpack.c.l.b16 %v813
    %v4352 = vunpack.c.h.b16 %v813
    %v4353 = vunpack.c.l.b16 %v814
    %v4354 = vunpack.c.h.b16 %v814
    %v4355 = vunpack.c.l.b16 %v815
    %v4356 = vunpack.c.h.b16 %v815
    %v4357 = vunpack.c.l.b16 %v816
    %v4358 = vunpack.c.h.b16 %v816
    %v4359 = vunpack.c.l.b16 %v817
    %v4360 = vunpack.c.h.b16 %v817
    %v4361 = vunpack.c.l.b16 %v818
    %v4362 = vunpack.c.h.b16 %v818
    %v4363 = vunpack.c.l.b16 %v819
    %v4364 = vunpack.c.h.b16 %v819
    %v4365 = vunpack.c.l.b16 %v820
    %v4366 = vunpack.c.h.b16 %v820
    %v4367 = vunpack.c.l.b16 %v821
    %v4368 = vunpack.c.h.b16 %v821
    %v4369 = vunpack.c.l.b16 %v822
    %v4370 = vunpack.c.h.b16 %v822
    %v4371 = vunpack.c.l.b16 %v823
    %v4372 = vunpack.c.h.b16 %v823
    %v4373 = vunpack.c.l.b16 %v824
    %v4374 = vunpack.c.h.b16 %v824
    %v4375 = vunpack.c.l.b16 %v825
    %v4376 = vunpack.c.l.b16 %v826
    %v4377 = vunpack.c.h.b16 %v826
    %v4378 = vunpack.c.l.b16 %v827
    %v4379 = vunpack.c.h.b16 %v827
    %v4380 = vunpack.c.l.b16 %v828
    %v4381 = vunpack.c.h.b16 %v828
    %v4382 = vunpack.c.l.b16 %v829
    %v4383 = vunpack.c.h.b16 %v829
    %v4384 = vunpack.c.l.b16 %v830
    %v4385 = vunpack.c.h.b16 %v830
    %v4386 = vunpack.c.l.b16 %v831
    %v4387 = vunpack.c.h.b16 %v831
    %v4388 = vunpack.c.l.b16 %v832
    %v4389 = vunpack.c.h.b16 %v832
    %v4390 = vunpack.c.l.b16 %v833
    %v4391 = vunpack.c.h.b16 %v833
    %v4392 = vunpack.c.l.b16 %v834
    %v4393 = vunpack.c.h.b16 %v834
    %v4394 = vunpack.c.l.b16 %v835
    %v4395 = vunpack.c.h.b16 %v835
    %v4396 = vunpack.c.l.b16 %v836
    %v4397 = vunpack.c.h.b16 %v836
    %v4398 = vunpack.c.l.b16 %v837
    %v4399 = vunpack.c.h.b16 %v837
    %v4400 = vunpack.c.l.b16 %v838
    %v4401 = vunpack.c.h.b16 %v838
    %v4402 = vunpack.c.l.b16 %v839
    %v4403 = vunpack.c.l.b16 %v840
    %v4404 = vunpack.c.h.b16 %v840
    %v4405 = vunpack.c.l.b16 %v841
    %v4406 = vunpack.c.h.b16 %v841
    %v4407 = vunpack.c.l.b16 %v842
    %v4408 = vunpack.c.h.b16 %v842
    %v4409 = vunpack.c.l.b16 %v843
    %v4410 = vunpack.c.h.b16 %v843
    %v4411 = vunpack.c.l.b16 %v844
    %v4412 = vunpack.c.h.b16 %v844
    %v4413 = vunpack.c.l.b16 %v845
    %v4414 = vunpack.c.h.b16 %v845
    %v4415 = vunpack.c.l.b16 %v846
    %v4416 = vunpack.c.h.b16 %v846
    %v4417 = vunpack.c.l.b16 %v847
    %v4418 = vunpack.c.h.b16 %v847
    %v4419 = vunpack.c.l.b16 %v848
    %v4420 = vunpack.c.h.b16 %v848
    %v4421 = vunpack.c.l.b16 %v849
    %v4422 = vunpack.c.h.b16 %v849
    %v4423 = vunpack.c.l.b16 %v850
    %v4424 = vunpack.c.h.b16 %v850
    %v4425 = vunpack.c.l.b16 %v851
    %v4426 = vunpack.c.h.b16 %v851
    %v4427 = vunpack.c.l.b16 %v852
    %v4428 = vunpack.c.h.b16 %v852
    %v4429 = vunpack.c.l.b16 %v853
    %v4430 = vunpack.c.l.b16 %v854
    %v4431 = vunpack.c.h.b16 %v854
    %v4432 = vunpack.c.l.b16 %v855
    %v4433 = vunpack.c.h.b16 %v855
    %v4434 = vunpack.c.l.b16 %v856
    %v4435 = vunpack.c.h.b16 %v856
    %v4436 = vunpack.c.l.b16 %v857
    %v4437 = vunpack.c.h.b16 %v857
    %v4438 = vunpack.c.l.b16 %v858
    %v4439 = vunpack.c.h.b16 %v858
    %v4440 = vunpack.c.l.b16 %v859
    %v4441 = vunpack.c.h.b16 %v859
    %v4442 = vunpack.c.l.b16 %v860
    %v4443 = vunpack.c.h.b16 %v860
    %v4444 = vunpack.c.l.b16 %v861
    %v4445 = vunpack.c.h.b16 %v861
    %v4446 = vunpack.c.l.b16 %v862
    %v4447 = vunpack.c.h.b16 %v862
    %v4448 = vunpack.c.l.b16 %v863
    %v4449 = vunpack.c.h.b16 %v863
    %v4450 = vunpack.c.l.b16 %v864
    %v4451 = vunpack.c.h.b16 %v864
    %v4452 = vunpack.c.l.b16 %v865
    %v4453 = vunpack.c.h.b16 %v865
    %v4454 = vunpack.c.l.b16 %v866
    %v4455 = vunpack.c.h.b16 %v866
    %v4456 = vunpack.c.l.b16 %v867
    %v4457 = vunpack.c.l.b16 %v868
    %v4458 = vunpack.c.h.b16 %v868
    %v4459 = vunpack.c.l.b16 %v869
    %v4460 = vunpack.c.h.b16 %v869
    %v4461 = vunpack.c.l.b16 %v870
    %v4462 = vunpack.c.h.b16 %v870
    %v4463 = vunpack.c.l.b16 %v871
    %v4464 = vunpack.c.h.b16 %v871
    %v4465 = vunpack.c.l.b16 %v872
    %v4466 = vunpack.c.h.b16 %v872
    %v4467 = vunpack.c.l.b16 %v873
    %v4468 = vunpack.c.h.b16 %v873
    %v4469 = vunpack.c.l.b16 %v874
    %v4470 = vunpack.c.h.b16 %v874
    %v4471 = vunpack.c.l.b16 %v875
    %v4472 = vunpack.c.h.b16 %v875
    %v4473 = vunpack.c.l.b16 %v876
    %v4474 = vunpack.c.h.b16 %v876
    %v4475 = vunpack.c.l.b16 %v877
    %v4476 = vunpack.c.h.b16 %v877
    %v4477 = vunpack.c.l.b16 %v878
    %v4478 = vunpack.c.h.b16 %v878
    %v4479 = vunpack.c.l.b16 %v879
    %v4480 = vunpack.c.h.b16 %v879
    %v4481 = vunpack.c.l.b16 %v880
    %v4482 = vunpack.c.h.b16 %v880
    %v4483 = vunpack.c.l.b16 %v881
    %v4484 = vunpack.c.l.b16 %v882
    %v4485 = vunpack.c.h.b16 %v882
    %v4486 = vunpack.c.l.b16 %v883
    %v4487 = vunpack.c.h.b16 %v883
    %v4488 = vunpack.c.l.b16 %v884
    %v4489 = vunpack.c.h.b16 %v884
    %v4490 = vunpack.c.l.b16 %v885
    %v4491 = vunpack.c.h.b16 %v885
    %v4492 = vunpack.c.l.b16 %v886
    %v4493 = vunpack.c.h.b16 %v886
    %v4494 = vunpack.c.l.b16 %v887
    %v4495 = vunpack.c.h.b16 %v887
    %v4496 = vunpack.c.l.b16 %v888
    %v4497 = vunpack.c.h.b16 %v888
    %v4498 = vunpack.c.l.b16 %v889
    %v4499 = vunpack.c.h.b16 %v889
    %v4500 = vunpack.c.l.b16 %v890
    %v4501 = vunpack.c.h.b16 %v890
    %v4502 = vunpack.c.l.b16 %v891
    %v4503 = vunpack.c.h.b16 %v891
    %v4504 = vunpack.c.l.b16 %v892
    %v4505 = vunpack.c.h.b16 %v892
    %v4506 = vunpack.c.l.b16 %v893
    %v4507 = vunpack.c.h.b16 %v893
    %v4508 = vunpack.c.l.b16 %v894
    %v4509 = vunpack.c.h.b16 %v894
    %v4510 = vunpack.c.l.b16 %v895
    %v4511 = vunpack.c.l.b16 %v896
    %v4512 = vunpack.c.h.b16 %v896
    %v4513 = vunpack.c.l.b16 %v897
    %v4514 = vunpack.c.h.b16 %v897
    %v4515 = vunpack.c.l.b16 %v898
    %v4516 = vunpack.c.h.b16 %v898
    %v4517 = vunpack.c.l.b16 %v899
    %v4518 = vunpack.c.h.b16 %v899
    %v4519 = vunpack.c.l.b16 %v900
    %v4520 = vunpack.c.h.b16 %v900
    %v4521 = vunpack.c.l.b16 %v901
    %v4522 = vunpack.c.h.b16 %v901
    %v4523 = vunpack.c.l.b16 %v902
    %v4524 = vunpack.c.h.b16 %v902
    %v4525 = vunpack.c.l.b16 %v903
    %v4526 = vunpack.c.h.b16 %v903
    %v4527 = vunpack.c.l.b16 %v904
    %v4528 = vunpack.c.h.b16 %v904
    %v4529 = vunpack.c.l.b16 %v905
    %v4530 = vunpack.c.h.b16 %v905
    %v4531 = vunpack.c.l.b16 %v906
    %v4532 = vunpack.c.h.b16 %v906
    %v4533 = vunpack.c.l.b16 %v907
    %v4534 = vunpack.c.h.b16 %v907
    %v4535 = vunpack.c.l.b16 %v908
    %v4536 = vunpack.c.h.b16 %v908
    %v4537 = vunpack.c.l.b16 %v909
    %v4538 = vunpack.c.l.b16 %v910
    %v4539 = vunpack.c.h.b16 %v910
    %v4540 = vunpack.c.l.b16 %v911
    %v4541 = vunpack.c.h.b16 %v911
    %v4542 = vunpack.c.l.b16 %v912
    %v4543 = vunpack.c.h.b16 %v912
    %v4544 = vunpack.c.l.b16 %v913
    %v4545 = vunpack.c.h.b16 %v913
    %v4546 = vunpack.c.l.b16 %v914
    %v4547 = vunpack.c.h.b16 %v914
    %v4548 = vunpack.c.l.b16 %v915
    %v4549 = vunpack.c.h.b16 %v915
    %v4550 = vunpack.c.l.b16 %v916
    %v4551 = vunpack.c.h.b16 %v916
    %v4552 = vunpack.c.l.b16 %v917
    %v4553 = vunpack.c.h.b16 %v917
    %v4554 = vunpack.c.l.b16 %v918
    %v4555 = vunpack.c.h.b16 %v918
    %v4556 = vunpack.c.l.b16 %v919
    %v4557 = vunpack.c.h.b16 %v919
    %v4558 = vunpack.c.l.b16 %v920
    %v4559 = vunpack.c.h.b16 %v920
    %v4560 = vunpack.c.l.b16 %v921
    %v4561 = vunpack.c.h.b16 %v921
    %v4562 = vunpack.c.l.b16 %v922
    %v4563 = vunpack.c.h.b16 %v922
    %v4564 = vunpack.c.l.b16 %v923
    %v4565 = vunpack.c.l.b16 %v924
    %v4566 = vunpack.c.h.b16 %v924
    %v4567 = vunpack.c.l.b16 %v925
    %v4568 = vunpack.c.h.b16 %v925
    %v4569 = vunpack.c.l.b16 %v926
    %v4570 = vunpack.c.h.b16 %v926
    %v4571 = vunpack.c.l.b16 %v927
    %v4572 = vunpack.c.h.b16 %v927
    %v4573 = vunpack.c.l.b16 %v928
    %v4574 = vunpack.c.h.b16 %v928
    %v4575 = vunpack.c.l.b16 %v929
    %v4576 = vunpack.c.h.b16 %v929
    %v4577 = vunpack.c.l.b16 %v930
    %v4578 = vunpack.c.h.b16 %v930
    %v4579 = vunpack.c.l.b16 %v931
    %v4580 = vunpack.c.h.b16 %v931
    %v4581 = vunpack.c.l.b16 %v932
    %v4582 = vunpack.c.h.b16 %v932
    %v4583 = vunpack.c.l.b16 %v933
    %v4584 = vunpack.c.h.b16 %v933
    %v4585 = vunpack.c.l.b16 %v934
    %v4586 = vunpack.c.h.b16 %v934
    %v4587 = vunpack.c.l.b16 %v935
    %v4588 = vunpack.c.h.b16 %v935
    %v4589 = vunpack.c.l.b16 %v936
    %v4590 = vunpack.c.h.b16 %v936
    %v4591 = vunpack.c.l.b16 %v937
    %v4592 = vunpack.c.l.b16 %v938
    %v4593 = vunpack.c.h.b16 %v938
    %v4594 = vunpack.c.l.b16 %v939
    %v4595 = vunpack.c.h.b16 %v939
    %v4596 = vunpack.c.l.b16 %v940
    %v4597 = vunpack.c.h.b16 %v940
    %v4598 = vunpack.c.l.b16 %v941
    %v4599 = vunpack.c.h.b16 %v941
    %v4600 = vunpack.c.l.b16 %v942
    %v4601 = vunpack.c.h.b16 %v942
    %v4602 = vunpack.c.l.b16 %v943
    %v4603 = vunpack.c.h.b16 %v943
    %v4604 = vunpack.c.l.b16 %v944
    %v4605 = vunpack.c.h.b16 %v944
    %v4606 = vunpack.c.l.b16 %v945
    %v4607 = vunpack.c.h.b16 %v945
    %v4608 = vunpack.c.l.b16 %v946
    %v4609 = vunpack.c.h.b16 %v946
    %v4610 = vunpack.c.l.b16 %v947
    %v4611 = vunpack.c.h.b16 %v947
    %v4612 = vunpack.c.l.b16 %v948
    %v4613 = vunpack.c.h.b16 %v948
    %v4614 = vunpack.c.l.b16 %v949
    %v4615 = vunpack.c.h.b16 %v949
    %v4616 = vunpack.c.l.b16 %v950
    %v4617 = vunpack.c.h.b16 %v950
    %v4618 = vunpack.c.l.b16 %v951
    %v4619 = vunpack.c.l.b16 %v952
    %v4620 = vunpack.c.h.b16 %v952
    %v4621 = vunpack.c.l.b16 %v953
    %v4622 = vunpack.c.h.b16 %v953
    %v4623 = vunpack.c.l.b16 %v954
    %v4624 = vunpack.c.h.b16 %v954
    %v4625 = vunpack.c.l.b16 %v955
    %v4626 = vunpack.c.h.b16 %v955
    %v4627 = vunpack.c.l.b16 %v956
    %v4628 = vunpack.c.h.b16 %v956
    %v4629 = vunpack.c.l.b16 %v957
    %v4630 = vunpack.c.h.b16 %v957
    %v4631 = vunpack.c.l.b16 %v958
    %v4632 = vunpack.c.h.b16 %v958
    %v4633 = vunpack.c.l.b16 %v959
    %v4634 = vunpack.c.h.b16 %v959
    %v4635 = vunpack.c.l.b16 %v960
    %v4636 = vunpack.c.h.b16 %v960
    %v4637 = vunpack.c.l.b16 %v961
    %v4638 = vunpack.c.h.b16 %v961
    %v4639 = vunpack.c.l.b16 %v962
    %v4640 = vunpack.c.h.b16 %v962
    %v4641 = vunpack.c.l.b16 %v963
    %v4642 = vunpack.c.h.b16 %v963
    %v4643 = vunpack.c.l.b16 %v964
    %v4644 = vunpack.c.h.b16 %v964
    %v4645 = vunpack.c.l.b16 %v965
    %v4646 = vunpack.c.l.b16 %v966
    %v4647 = vunpack.c.h.b16 %v966
    %v4648 = vunpack.c.l.b16 %v967
    %v4649 = vunpack.c.h.b16 %v967
    %v4650 = vunpack.c.l.b16 %v968
    %v4651 = vunpack.c.h.b16 %v968
    %v4652 = vunpack.c.l.b16 %v969
    %v4653 = vunpack.c.h.b16 %v969
    %v4654 = vunpack.c.l.b16 %v970
    %v4655 = vunpack.c.h.b16 %v970
    %v4656 = vunpack.c.l.b16 %v971
    %v4657 = vunpack.c.h.b16 %v971
    %v4658 = vunpack.c.l.b16 %v972
    %v4659 = vunpack.c.h.b16 %v972
    %v4660 = vunpack.c.l.b16 %v973
    %v4661 = vunpack.c.h.b16 %v973
    %v4662 = vunpack.c.l.b16 %v974
    %v4663 = vunpack.c.h.b16 %v974
    %v4664 = vunpack.c.l.b16 %v975
    %v4665 = vunpack.c.h.b16 %v975
    %v4666 = vunpack.c.l.b16 %v976
    %v4667 = vunpack.c.h.b16 %v976
    %v4668 = vunpack.c.l.b16 %v977
    %v4669 = vunpack.c.h.b16 %v977
    %v4670 = vunpack.c.l.b16 %v978
    %v4671 = vunpack.c.h.b16 %v978
    %v4672 = vunpack.c.l.b16 %v979
    %v4673 = vunpack.c.l.b16 %v980
    %v4674 = vunpack.c.h.b16 %v980
    %v4675 = vunpack.c.l.b16 %v981
    %v4676 = vunpack.c.h.b16 %v981
    %v4677 = vunpack.c.l.b16 %v982
    %v4678 = vunpack.c.h.b16 %v982
    %v4679 = vunpack.c.l.b16 %v983
    %v4680 = vunpack.c.h.b16 %v983
    %v4681 = vunpack.c.l.b16 %v984
    %v4682 = vunpack.c.h.b16 %v984
    %v4683 = vunpack.c.l.b16 %v985
    %v4684 = vunpack.c.h.b16 %v985
    %v4685 = vunpack.c.l.b16 %v986
    %v4686 = vunpack.c.h.b16 %v986
    %v4687 = vunpack.c.l.b16 %v987
    %v4688 = vunpack.c.h.b16 %v987
    %v4689 = vunpack.c.l.b16 %v988
    %v4690 = vunpack.c.h.b16 %v988
    %v4691 = vunpack.c.l.b16 %v989
    %v4692 = vunpack.c.h.b16 %v989
    %v4693 = vunpack.c.l.b16 %v990
    %v4694 = vunpack.c.h.b16 %v990
    %v4695 = vunpack.c.l.b16 %v991
    %v4696 = vunpack.c.h.b16 %v991
    %v4697 = vunpack.c.l.b16 %v992
    %v4698 = vunpack.c.h.b16 %v992
    %v4699 = vunpack.c.l.b16 %v993
    %v4700 = vunpack.c.l.b16 %v994
    %v4701 = vunpack.c.h.b16 %v994
    %v4702 = vunpack.c.l.b16 %v995
    %v4703 = vunpack.c.h.b16 %v995
    %v4704 = vunpack.c.l.b16 %v996
    %v4705 = vunpack.c.h.b16 %v996
    %v4706 = vunpack.c.l.b16 %v997
    %v4707 = vunpack.c.h.b16 %v997
    %v4708 = vunpack.c.l.b16 %v998
    %v4709 = vunpack.c.h.b16 %v998
    %v4710 = vunpack.c.l.b16 %v999
    %v4711 = vunpack.c.h.b16 %v999
    %v4712 = vunpack.c.l.b16 %v1000
    %v4713 = vunpack.c.h.b16 %v1000
    %v4714 = vunpack.c.l.b16 %v1001
    %v4715 = vunpack.c.h.b16 %v1001
    %v4716 = vunpack.c.l.b16 %v1002
    %v4717 = vunpack.c.h.b16 %v1002
    %v4718 = vunpack.c.l.b16 %v1003
    %v4719 = vunpack.c.h.b16 %v1003
    %v4720 = vunpack.c.l.b16 %v1004
    %v4721 = vunpack.c.h.b16 %v1004
    %v4722 = vunpack.c.l.b16 %v1005
    %v4723 = vunpack.c.h.b16 %v1005
    %v4724 = vunpack.c.l.b16 %v1006
    %v4725 = vunpack.c.h.b16 %v1006
    %v4726 = vunpack.c.l.b16 %v1007
    %v4727 = vunpack.c.l.b16 %v1008
    %v4728 = vunpack.c.h.b16 %v1008
    %v4729 = vunpack.c.l.b16 %v1009
    %v4730 = vunpack.c.h.b16 %v1009
    %v4731 = vunpack.c.l.b16 %v1010
    %v4732 = vunpack.c.h.b16 %v1010
    %v4733 = vunpack.c.l.b16 %v1011
    %v4734 = vunpack.c.h.b16 %v1011
    %v4735 = vunpack.c.l.b16 %v1012
    %v4736 = vunpack.c.h.b16 %v1012
    %v4737 = vunpack.c.l.b16 %v1013
    %v4738 = vunpack.c.h.b16 %v1013
    %v4739 = vunpack.c.l.b16 %v1014
    %v4740 = vunpack.c.h.b16 %v1014
    %v4741 = vunpack.c.l.b16 %v1015
    %v4742 = vunpack.c.h.b16 %v1015
    %v4743 = vunpack.c.l.b16 %v1016
    %v4744 = vunpack.c.h.b16 %v1016
    %v4745 = vunpack.c.l.b16 %v1017
    %v4746 = vunpack.c.h.b16 %v1017
    %v4747 = vunpack.c.l.b16 %v1018
    %v4748 = vunpack.c.h.b16 %v1018
    %v4749 = vunpack.c.l.b16 %v1019
    %v4750 = vunpack.c.h.b16 %v1019
    %v4751 = vunpack.c.l.b16 %v1020
    %v4752 = vunpack.c.h.b16 %v1020
    %v4753 = vunpack.c.l.b16 %v1021
    %v4754 = vunpack.c.l.b16 %v1022
    %v4755 = vunpack.c.h.b16 %v1022
    %v4756 = vunpack.c.l.b16 %v1023
    %v4757 = vunpack.c.h.b16 %v1023
    %v4758 = vunpack.c.l.b16 %v1024
    %v4759 = vunpack.c.h.b16 %v1024
    %v4760 = vunpack.c.l.b16 %v1025
    %v4761 = vunpack.c.h.b16 %v1025
    %v4762 = vunpack.c.l.b16 %v1026
    %v4763 = vunpack.c.h.b16 %v1026
    %v4764 = vunpack.c.l.b16 %v1027
    %v4765 = vunpack.c.h.b16 %v1027
    %v4766 = vunpack.c.l.b16 %v1028
    %v4767 = vunpack.c.h.b16 %v1028
    %v4768 = vunpack.c.l.b16 %v1029
    %v4769 = vunpack.c.h.b16 %v1029
    %v4770 = vunpack.c.l.b16 %v1030
    %v4771 = vunpack.c.h.b16 %v1030
    %v4772 = vunpack.c.l.b16 %v1031
    %v4773 = vunpack.c.h.b16 %v1031
    %v4774 = vunpack.c.l.b16 %v1032
    %v4775 = vunpack.c.h.b16 %v1032
    %v4776 = vunpack.c.l.b16 %v1033
    %v4777 = vunpack.c.h.b16 %v1033
    %v4778 = vunpack.c.l.b16 %v1034
    %v4779 = vunpack.c.h.b16 %v1034
    %v4780 = vunpack.c.l.b16 %v1035
    %v4781 = vunpack.c.l.b16 %v1036
    %v4782 = vunpack.c.h.b16 %v1036
    %v4783 = vunpack.c.l.b16 %v1037
    %v4784 = vunpack.c.h.b16 %v1037
    %v4785 = vunpack.c.l.b16 %v1038
    %v4786 = vunpack.c.h.b16 %v1038
    %v4787 = vunpack.c.l.b16 %v1039
    %v4788 = vunpack.c.h.b16 %v1039
    %v4789 = vunpack.c.l.b16 %v1040
    %v4790 = vunpack.c.h.b16 %v1040
    %v4791 = vunpack.c.l.b16 %v1041
    %v4792 = vunpack.c.h.b16 %v1041
    %v4793 = vunpack.c.l.b16 %v1042
    %v4794 = vunpack.c.h.b16 %v1042
    %v4795 = vunpack.c.l.b16 %v1043
    %v4796 = vunpack.c.h.b16 %v1043
    %v4797 = vunpack.c.l.b16 %v1044
    %v4798 = vunpack.c.h.b16 %v1044
    %v4799 = vunpack.c.l.b16 %v1045
    %v4800 = vunpack.c.h.b16 %v1045
    %v4801 = vunpack.c.l.b16 %v1046
    %v4802 = vunpack.c.h.b16 %v1046
    %v4803 = vunpack.c.l.b16 %v1047
    %v4804 = vunpack.c.h.b16 %v1047
    %v4805 = vunpack.c.l.b16 %v1048
    %v4806 = vunpack.c.h.b16 %v1048
    %v4807 = vunpack.c.l.b16 %v1049
    %v4808 = vunpack.c.l.b16 %v1050
    %v4809 = vunpack.c.h.b16 %v1050
    %v4810 = vunpack.c.l.b16 %v1051
    %v4811 = vunpack.c.h.b16 %v1051
    %v4812 = vunpack.c.l.b16 %v1052
    %v4813 = vunpack.c.h.b16 %v1052
    %v4814 = vunpack.c.l.b16 %v1053
    %v4815 = vunpack.c.h.b16 %v1053
    %v4816 = vunpack.c.l.b16 %v1054
    %v4817 = vunpack.c.h.b16 %v1054
    %v4818 = vunpack.c.l.b16 %v1055
    %v4819 = vunpack.c.h.b16 %v1055
    %v4820 = vunpack.c.l.b16 %v1056
    %v4821 = vunpack.c.h.b16 %v1056
    %v4822 = vunpack.c.l.b16 %v1057
    %v4823 = vunpack.c.h.b16 %v1057
    %v4824 = vunpack.c.l.b16 %v1058
    %v4825 = vunpack.c.h.b16 %v1058
    %v4826 = vunpack.c.l.b16 %v1059
    %v4827 = vunpack.c.h.b16 %v1059
    %v4828 = vunpack.c.l.b16 %v1060
    %v4829 = vunpack.c.h.b16 %v1060
    %v4830 = vunpack.c.l.b16 %v1061
    %v4831 = vunpack.c.h.b16 %v1061
    %v4832 = vunpack.c.l.b16 %v1062
    %v4833 = vunpack.c.h.b16 %v1062
    %v4834 = vunpack.c.l.b16 %v1063
    %v4835 = vunpack.c.l.b16 %v1064
    %v4836 = vunpack.c.h.b16 %v1064
    %v4837 = vunpack.c.l.b16 %v1065
    %v4838 = vunpack.c.h.b16 %v1065
    %v4839 = vunpack.c.l.b16 %v1066
    %v4840 = vunpack.c.h.b16 %v1066
    %v4841 = vunpack.c.l.b16 %v1067
    %v4842 = vunpack.c.h.b16 %v1067
    %v4843 = vunpack.c.l.b16 %v1068
    %v4844 = vunpack.c.h.b16 %v1068
    %v4845 = vunpack.c.l.b16 %v1069
    %v4846 = vunpack.c.h.b16 %v1069
    %v4847 = vunpack.c.l.b16 %v1070
    %v4848 = vunpack.c.h.b16 %v1070
    %v4849 = vunpack.c.l.b16 %v1071
    %v4850 = vunpack.c.h.b16 %v1071
    %v4851 = vunpack.c.l.b16 %v1072
    %v4852 = vunpack.c.h.b16 %v1072
    %v4853 = vunpack.c.l.b16 %v1073
    %v4854 = vunpack.c.h.b16 %v1073
    %v4855 = vunpack.c.l.b16 %v1074
    %v4856 = vunpack.c.h.b16 %v1074
    %v4857 = vunpack.c.l.b16 %v1075
    %v4858 = vunpack.c.h.b16 %v1075
    %v4859 = vunpack.c.l.b16 %v1076
    %v4860 = vunpack.c.h.b16 %v1076
    %v4861 = vunpack.c.l.b16 %v1077
    %v4862 = vunpack.c.l.b16 %v1078
    %v4863 = vunpack.c.h.b16 %v1078
    %v4864 = vunpack.c.l.b16 %v1079
    %v4865 = vunpack.c.h.b16 %v1079
    %v4866 = vunpack.c.l.b16 %v1080
    %v4867 = vunpack.c.h.b16 %v1080
    %v4868 = vunpack.c.l.b16 %v1081
    %v4869 = vunpack.c.h.b16 %v1081
    %v4870 = vunpack.c.l.b16 %v1082
    %v4871 = vunpack.c.h.b16 %v1082
    %v4872 = vunpack.c.l.b16 %v1083
    %v4873 = vunpack.c.h.b16 %v1083
    %v4874 = vunpack.c.l.b16 %v1084
    %v4875 = vunpack.c.h.b16 %v1084
    %v4876 = vunpack.c.l.b16 %v1085
    %v4877 = vunpack.c.h.b16 %v1085
    %v4878 = vunpack.c.l.b16 %v1086
    %v4879 = vunpack.c.h.b16 %v1086
    %v4880 = vunpack.c.l.b16 %v1087
    %v4881 = vunpack.c.h.b16 %v1087
    %v4882 = vunpack.c.l.b16 %v1088
    %v4883 = vunpack.c.h.b16 %v1088
    %v4884 = vunpack.c.l.b16 %v1089
    %v4885 = vunpack.c.h.b16 %v1089
    %v4886 = vunpack.c.l.b16 %v1090
    %v4887 = vunpack.c.h.b16 %v1090
    %v4888 = vunpack.c.l.b16 %v1091
    %v4889 = vunpack.c.l.b16 %v1092
    %v4890 = vunpack.c.h.b16 %v1092
    %v4891 = vunpack.c.l.b16 %v1093
    %v4892 = vunpack.c.h.b16 %v1093
    %v4893 = vunpack.c.l.b16 %v1094
    %v4894 = vunpack.c.h.b16 %v1094
    %v4895 = vunpack.c.l.b16 %v1095
    %v4896 = vunpack.c.h.b16 %v1095
    %v4897 = vunpack.c.l.b16 %v1096
    %v4898 = vunpack.c.h.b16 %v1096
    %v4899 = vunpack.c.l.b16 %v1097
    %v4900 = vunpack.c.h.b16 %v1097
    %v4901 = vunpack.c.l.b16 %v1098
    %v4902 = vunpack.c.h.b16 %v1098
    %v4903 = vunpack.c.l.b16 %v1099
    %v4904 = vunpack.c.h.b16 %v1099
    %v4905 = vunpack.c.l.b16 %v1100
    %v4906 = vunpack.c.h.b16 %v1100
    %v4907 = vunpack.c.l.b16 %v1101
    %v4908 = vunpack.c.h.b16 %v1101
    %v4909 = vunpack.c.l.b16 %v1102
    %v4910 = vunpack.c.h.b16 %v1102
    %v4911 = vunpack.c.l.b16 %v1103
    %v4912 = vunpack.c.h.b16 %v1103
    %v4913 = vunpack.c.l.b16 %v1104
    %v4914 = vunpack.c.h.b16 %v1104
    %v4915 = vunpack.c.l.b16 %v1105
    %v4916 = vunpack.c.l.b16 %v1106
    %v4917 = vunpack.c.h.b16 %v1106
    %v4918 = vunpack.c.l.b16 %v1107
    %v4919 = vunpack.c.h.b16 %v1107
    %v4920 = vunpack.c.l.b16 %v1108
    %v4921 = vunpack.c.h.b16 %v1108
    %v4922 = vunpack.c.l.b16 %v1109
    %v4923 = vunpack.c.h.b16 %v1109
    %v4924 = vunpack.c.l.b16 %v1110
    %v4925 = vunpack.c.h.b16 %v1110
    %v4926 = vunpack.c.l.b16 %v1111
    %v4927 = vunpack.c.h.b16 %v1111
    %v4928 = vunpack.c.l.b16 %v1112
    %v4929 = vunpack.c.h.b16 %v1112
    %v4930 = vunpack.c.l.b16 %v1113
    %v4931 = vunpack.c.h.b16 %v1113
    %v4932 = vunpack.c.l.b16 %v1114
    %v4933 = vunpack.c.h.b16 %v1114
    %v4934 = vunpack.c.l.b16 %v1115
    %v4935 = vunpack.c.h.b16 %v1115
    %v4936 = vunpack.c.l.b16 %v1116
    %v4937 = vunpack.c.h.b16 %v1116
    %v4938 = vunpack.c.l.b16 %v1117
    %v4939 = vunpack.c.h.b16 %v1117
    %v4940 = vunpack.c.l.b16 %v1118
    %v4941 = vunpack.c.h.b16 %v1118
    %v4942 = vunpack.c.l.b16 %v1119
    %v4943 = vunpack.c.l.b16 %v1120
    %v4944 = vunpack.c.h.b16 %v1120
    %v4945 = vunpack.c.l.b16 %v1121
    %v4946 = vunpack.c.h.b16 %v1121
    %v4947 = vunpack.c.l.b16 %v1122
    %v4948 = vunpack.c.h.b16 %v1122
    %v4949 = vunpack.c.l.b16 %v1123
    %v4950 = vunpack.c.h.b16 %v1123
    %v4951 = vunpack.c.l.b16 %v1124
    %v4952 = vunpack.c.h.b16 %v1124
    %v4953 = vunpack.c.l.b16 %v1125
    %v4954 = vunpack.c.h.b16 %v1125
    %v4955 = vunpack.c.l.b16 %v1126
    %v4956 = vunpack.c.h.b16 %v1126
    %v4957 = vunpack.c.l.b16 %v1127
    %v4958 = vunpack.c.h.b16 %v1127
    %v4959 = vunpack.c.l.b16 %v1128
    %v4960 = vunpack.c.h.b16 %v1128
    %v4961 = vunpack.c.l.b16 %v1129
    %v4962 = vunpack.c.h.b16 %v1129
    %v4963 = vunpack.c.l.b16 %v1130
    %v4964 = vunpack.c.h.b16 %v1130
    %v4965 = vunpack.c.l.b16 %v1131
    %v4966 = vunpack.c.h.b16 %v1131
    %v4967 = vunpack.c.l.b16 %v1132
    %v4968 = vunpack.c.h.b16 %v1132
    %v4969 = vunpack.c.l.b16 %v1133
    %v4970 = vunpack.c.l.b16 %v1134
    %v4971 = vunpack.c.h.b16 %v1134
    %v4972 = vunpack.c.l.b16 %v1135
    %v4973 = vunpack.c.h.b16 %v1135
    %v4974 = vunpack.c.l.b16 %v1136
    %v4975 = vunpack.c.h.b16 %v1136
    %v4976 = vunpack.c.l.b16 %v1137
    %v4977 = vunpack.c.h.b16 %v1137
    %v4978 = vunpack.c.l.b16 %v1138
    %v4979 = vunpack.c.h.b16 %v1138
    %v4980 = vunpack.c.l.b16 %v1139
    %v4981 = vunpack.c.h.b16 %v1139
    %v4982 = vunpack.c.l.b16 %v1140
    %v4983 = vunpack.c.h.b16 %v1140
    %v4984 = vunpack.c.l.b16 %v1141
    %v4985 = vunpack.c.h.b16 %v1141
    %v4986 = vunpack.c.l.b16 %v1142
    %v4987 = vunpack.c.h.b16 %v1142
    %v4988 = vunpack.c.l.b16 %v1143
    %v4989 = vunpack.c.h.b16 %v1143
    %v4990 = vunpack.c.l.b16 %v1144
    %v4991 = vunpack.c.h.b16 %v1144
    %v4992 = vunpack.c.l.b16 %v1145
    %v4993 = vunpack.c.h.b16 %v1145
    %v4994 = vunpack.c.l.b16 %v1146
    %v4995 = vunpack.c.h.b16 %v1146
    %v4996 = vunpack.c.l.b16 %v1147
    %v4997 = vunpack.c.l.b16 %v1148
    %v4998 = vunpack.c.h.b16 %v1148
    %v4999 = vunpack.c.l.b16 %v1149
    %v5000 = vunpack.c.h.b16 %v1149
    %v5001 = vunpack.c.l.b16 %v1150
    %v5002 = vunpack.c.h.b16 %v1150
    %v5003 = vunpack.c.l.b16 %v1151
    %v5004 = vunpack.c.h.b16 %v1151
    %v5005 = vunpack.c.l.b16 %v1152
    %v5006 = vunpack.c.h.b16 %v1152
    %v5007 = vunpack.c.l.b16 %v1153
    %v5008 = vunpack.c.h.b16 %v1153
    %v5009 = vunpack.c.l.b16 %v1154
    %v5010 = vunpack.c.h.b16 %v1154
    %v5011 = vunpack.c.l.b16 %v1155
    %v5012 = vunpack.c.h.b16 %v1155
    %v5013 = vunpack.c.l.b16 %v1156
    %v5014 = vunpack.c.h.b16 %v1156
    %v5015 = vunpack.c.l.b16 %v1157
    %v5016 = vunpack.c.h.b16 %v1157
    %v5017 = vunpack.c.l.b16 %v1158
    %v5018 = vunpack.c.h.b16 %v1158
    %v5019 = vunpack.c.l.b16 %v1159
    %v5020 = vunpack.c.h.b16 %v1159
    %v5021 = vunpack.c.l.b16 %v1160
    %v5022 = vunpack.c.h.b16 %v1160
    %v5023 = vunpack.c.l.b16 %v1161
    %v5024 = vunpack.c.l.b16 %v1162
    %v5025 = vunpack.c.h.b16 %v1162
    %v5026 = vunpack.c.l.b16 %v1163
    %v5027 = vunpack.c.h.b16 %v1163
    %v5028 = vunpack.c.l.b16 %v1164
    %v5029 = vunpack.c.h.b16 %v1164
    %v5030 = vunpack.c.l.b16 %v1165
    %v5031 = vunpack.c.h.b16 %v1165
    %v5032 = vunpack.c.l.b16 %v1166
    %v5033 = vunpack.c.h.b16 %v1166
    %v5034 = vunpack.c.l.b16 %v1167
    %v5035 = vunpack.c.h.b16 %v1167
    %v5036 = vunpack.c.l.b16 %v1168
    %v5037 = vunpack.c.h.b16 %v1168
    %v5038 = vunpack.c.l.b16 %v1169
    %v5039 = vunpack.c.h.b16 %v1169
    %v5040 = vunpack.c.l.b16 %v1170
    %v5041 = vunpack.c.h.b16 %v1170
    %v5042 = vunpack.c.l.b16 %v1171
    %v5043 = vunpack.c.h.b16 %v1171
    %v5044 = vunpack.c.l.b16 %v1172
    %v5045 = vunpack.c.h.b16 %v1172
    %v5046 = vunpack.c.l.b16 %v1173
    %v5047 = vunpack.c.h.b16 %v1173
    %v5048 = vunpack.c.l.b16 %v1174
    %v5049 = vunpack.c.h.b16 %v1174
    %v5050 = vunpack.c.l.b16 %v1175
    %v5051 = vunpack.c.l.b16 %v1176
    %v5052 = vunpack.c.h.b16 %v1176
    %v5053 = vunpack.c.l.b16 %v1177
    %v5054 = vunpack.c.h.b16 %v1177
    %v5055 = vunpack.c.l.b16 %v1178
    %v5056 = vunpack.c.h.b16 %v1178
    %v5057 = vunpack.c.l.b16 %v1179
    %v5058 = vunpack.c.h.b16 %v1179
    %v5059 = vunpack.c.l.b16 %v1180
    %v5060 = vunpack.c.h.b16 %v1180
    %v5061 = vunpack.c.l.b16 %v1181
    %v5062 = vunpack.c.h.b16 %v1181
    %v5063 = vunpack.c.l.b16 %v1182
    %v5064 = vunpack.c.h.b16 %v1182
    %v5065 = vunpack.c.l.b16 %v1183
    %v5066 = vunpack.c.h.b16 %v1183
    %v5067 = vunpack.c.l.b16 %v1184
    %v5068 = vunpack.c.h.b16 %v1184
    %v5069 = vunpack.c.l.b16 %v1185
    %v5070 = vunpack.c.h.b16 %v1185
    %v5071 = vunpack.c.l.b16 %v1186
    %v5072 = vunpack.c.h.b16 %v1186
    %v5073 = vunpack.c.l.b16 %v1187
    %v5074 = vunpack.c.h.b16 %v1187
    %v5075 = vunpack.c.l.b16 %v1188
    %v5076 = vunpack.c.h.b16 %v1188
    %v5077 = vunpack.c.l.b16 %v1189
    %v5078 = vunpack.c.l.b16 %v1190
    %v5079 = vunpack.c.h.b16 %v1190
    %v5080 = vunpack.c.l.b16 %v1191
    %v5081 = vunpack.c.h.b16 %v1191
    %v5082 = vunpack.c.l.b16 %v1192
    %v5083 = vunpack.c.h.b16 %v1192
    %v5084 = vunpack.c.l.b16 %v1193
    %v5085 = vunpack.c.h.b16 %v1193
    %v5086 = vunpack.c.l.b16 %v1194
    %v5087 = vunpack.c.h.b16 %v1194
    %v5088 = vunpack.c.l.b16 %v1195
    %v5089 = vunpack.c.h.b16 %v1195
    %v5090 = vunpack.c.l.b16 %v1196
    %v5091 = vunpack.c.h.b16 %v1196
    %v5092 = vunpack.c.l.b16 %v1197
    %v5093 = vunpack.c.h.b16 %v1197
    %v5094 = vunpack.c.l.b16 %v1198
    %v5095 = vunpack.c.h.b16 %v1198
    %v5096 = vunpack.c.l.b16 %v1199
    %v5097 = vunpack.c.h.b16 %v1199
    %v5098 = vunpack.c.l.b16 %v1200
    %v5099 = vunpack.c.h.b16 %v1200
    %v5100 = vunpack.c.l.b16 %v1201
    %v5101 = vunpack.c.h.b16 %v1201
    %v5102 = vunpack.c.l.b16 %v1202
    %v5103 = vunpack.c.h.b16 %v1202
    %v5104 = vunpack.c.l.b16 %v1203
    %v5105 = vunpack.c.l.b16 %v1204
    %v5106 = vunpack.c.h.b16 %v1204
    %v5107 = vunpack.c.l.b16 %v1205
    %v5108 = vunpack.c.h.b16 %v1205
    %v5109 = vunpack.c.l.b16 %v1206
    %v5110 = vunpack.c.h.b16 %v1206
    %v5111 = vunpack.c.l.b16 %v1207
    %v5112 = vunpack.c.h.b16 %v1207
    %v5113 = vunpack.c.l.b16 %v1208
    %v5114 = vunpack.c.h.b16 %v1208
    %v5115 = vunpack.c.l.b16 %v1209
    %v5116 = vunpack.c.h.b16 %v1209
    %v5117 = vunpack.c.l.b16 %v1210
    %v5118 = vunpack.c.h.b16 %v1210
    %v5119 = vunpack.c.l.b16 %v1211
    %v5120 = vunpack.c.h.b16 %v1211
    %v5121 = vunpack.c.l.b16 %v1212
    %v5122 = vunpack.c.h.b16 %v1212
    %v5123 = vunpack.c.l.b16 %v1213
    %v5124 = vunpack.c.h.b16 %v1213
    %v5125 = vunpack.c.l.b16 %v1214
    %v5126 = vunpack.c.h.b16 %v1214
    %v5127 = vunpack.c.l.b16 %v1215
    %v5128 = vunpack.c.h.b16 %v1215
    %v5129 = vunpack.c.l.b16 %v1216
    %v5130 = vunpack.c.h.b16 %v1216
    %v5131 = vunpack.c.l.b16 %v1217
    %v5132 = vunpack.c.l.b16 %v1218
    %v5133 = vunpack.c.h.b16 %v1218
    %v5134 = vunpack.c.l.b16 %v1219
    %v5135 = vunpack.c.h.b16 %v1219
    %v5136 = vunpack.c.l.b16 %v1220
    %v5137 = vunpack.c.h.b16 %v1220
    %v5138 = vunpack.c.l.b16 %v1221
    %v5139 = vunpack.c.h.b16 %v1221
    %v5140 = vunpack.c.l.b16 %v1222
    %v5141 = vunpack.c.h.b16 %v1222
    %v5142 = vunpack.c.l.b16 %v1223
    %v5143 = vunpack.c.h.b16 %v1223
    %v5144 = vunpack.c.l.b16 %v1224
    %v5145 = vunpack.c.h.b16 %v1224
    %v5146 = vunpack.c.l.b16 %v1225
    %v5147 = vunpack.c.h.b16 %v1225
    %v5148 = vunpack.c.l.b16 %v1226
    %v5149 = vunpack.c.h.b16 %v1226
    %v5150 = vunpack.c.l.b16 %v1227
    %v5151 = vunpack.c.h.b16 %v1227
    %v5152 = vunpack.c.l.b16 %v1228
    %v5153 = vunpack.c.h.b16 %v1228
    %v5154 = vunpack.c.l.b16 %v1229
    %v5155 = vunpack.c.h.b16 %v1229
    %v5156 = vunpack.c.l.b16 %v1230
    %v5157 = vunpack.c.h.b16 %v1230
    %v5158 = vunpack.c.l.b16 %v1231
    %v5159 = vunpack.c.l.b16 %v1232
    %v5160 = vunpack.c.h.b16 %v1232
    %v5161 = vunpack.c.l.b16 %v1233
    %v5162 = vunpack.c.h.b16 %v1233
    %v5163 = vunpack.c.l.b16 %v1234
    %v5164 = vunpack.c.h.b16 %v1234
    %v5165 = vunpack.c.l.b16 %v1235
    %v5166 = vunpack.c.h.b16 %v1235
    %v5167 = vunpack.c.l.b16 %v1236
    %v5168 = vunpack.c.h.b16 %v1236
    %v5169 = vunpack.c.l.b16 %v1237
    %v5170 = vunpack.c.h.b16 %v1237
    %v5171 = vunpack.c.l.b16 %v1238
    %v5172 = vunpack.c.h.b16 %v1238
    %v5173 = vunpack.c.l.b16 %v1239
    %v5174 = vunpack.c.h.b16 %v1239
    %v5175 = vunpack.c.l.b16 %v1240
    %v5176 = vunpack.c.h.b16 %v1240
    %v5177 = vunpack.c.l.b16 %v1241
    %v5178 = vunpack.c.h.b16 %v1241
    %v5179 = vunpack.c.l.b16 %v1242
    %v5180 = vunpack.c.h.b16 %v1242
    %v5181 = vunpack.c.l.b16 %v1243
    %v5182 = vunpack.c.h.b16 %v1243
    %v5183 = vunpack.c.l.b16 %v1244
    %v5184 = vunpack.c.h.b16 %v1244
    %v5185 = vunpack.c.l.b16 %v1245
    %v5186 = vunpack.c.l.b16 %v1246
    %v5187 = vunpack.c.h.b16 %v1246
    %v5188 = vunpack.c.l.b16 %v1247
    %v5189 = vunpack.c.h.b16 %v1247
    %v5190 = vunpack.c.l.b16 %v1248
    %v5191 = vunpack.c.h.b16 %v1248
    %v5192 = vunpack.c.l.b16 %v1249
    %v5193 = vunpack.c.h.b16 %v1249
    %v5194 = vunpack.c.l.b16 %v1250
    %v5195 = vunpack.c.h.b16 %v1250
    %v5196 = vunpack.c.l.b16 %v1251
    %v5197 = vunpack.c.h.b16 %v1251
    %v5198 = vunpack.c.l.b16 %v1252
    %v5199 = vunpack.c.h.b16 %v1252
    %v5200 = vunpack.c.l.b16 %v1253
    %v5201 = vunpack.c.h.b16 %v1253
    %v5202 = vunpack.c.l.b16 %v1254
    %v5203 = vunpack.c.h.b16 %v1254
    %v5204 = vunpack.c.l.b16 %v1255
    %v5205 = vunpack.c.h.b16 %v1255
    %v5206 = vunpack.c.l.b16 %v1256
    %v5207 = vunpack.c.h.b16 %v1256
    %v5208 = vunpack.c.l.b16 %v1257
    %v5209 = vunpack.c.h.b16 %v1257
    %v5210 = vunpack.c.l.b16 %v1258
    %v5211 = vunpack.c.h.b16 %v1258
    %v5212 = vunpack.c.l.b16 %v1259
    %v5213 = vunpack.c.l.b16 %v1260
    %v5214 = vunpack.c.h.b16 %v1260
    %v5215 = vunpack.c.l.b16 %v1261
    %v5216 = vunpack.c.h.b16 %v1261
    %v5217 = vunpack.c.l.b16 %v1262
    %v5218 = vunpack.c.h.b16 %v1262
    %v5219 = vunpack.c.l.b16 %v1263
    %v5220 = vunpack.c.h.b16 %v1263
    %v5221 = vunpack.c.l.b16 %v1264
    %v5222 = vunpack.c.h.b16 %v1264
    %v5223 = vunpack.c.l.b16 %v1265
    %v5224 = vunpack.c.h.b16 %v1265
    %v5225 = vunpack.c.l.b16 %v1266
    %v5226 = vunpack.c.h.b16 %v1266
    %v5227 = vunpack.c.l.b16 %v1267
    %v5228 = vunpack.c.h.b16 %v1267
    %v5229 = vunpack.c.l.b16 %v1268
    %v5230 = vunpack.c.h.b16 %v1268
    %v5231 = vunpack.c.l.b16 %v1269
    %v5232 = vunpack.c.h.b16 %v1269
    %v5233 = vunpack.c.l.b16 %v1270
    %v5234 = vunpack.c.h.b16 %v1270
    %v5235 = vunpack.c.l.b16 %v1271
    %v5236 = vunpack.c.h.b16 %v1271
    %v5237 = vunpack.c.l.b16 %v1272
    %v5238 = vunpack.c.h.b16 %v1272
    %v5239 = vunpack.c.l.b16 %v1273
    %v5240 = vunpack.c.l.b16 %v1274
    %v5241 = vunpack.c.h.b16 %v1274
    %v5242 = vunpack.c.l.b16 %v1275
    %v5243 = vunpack.c.h.b16 %v1275
    %v5244 = vunpack.c.l.b16 %v1276
    %v5245 = vunpack.c.h.b16 %v1276
    %v5246 = vunpack.c.l.b16 %v1277
    %v5247 = vunpack.c.h.b16 %v1277
    %v5248 = vunpack.c.l.b16 %v1278
    %v5249 = vunpack.c.h.b16 %v1278
    %v5250 = vunpack.c.l.b16 %v1279
    %v5251 = vunpack.c.h.b16 %v1279
    %v5252 = vunpack.c.l.b16 %v1280
    %v5253 = vunpack.c.h.b16 %v1280
    %v5254 = vunpack.c.l.b16 %v1281
    %v5255 = vunpack.c.h.b16 %v1281
    %v5256 = vunpack.c.l.b16 %v1282
    %v5257 = vunpack.c.h.b16 %v1282
    %v5258 = vunpack.c.l.b16 %v1283
    %v5259 = vunpack.c.h.b16 %v1283
    %v5260 = vunpack.c.l.b16 %v1284
    %v5261 = vunpack.c.h.b16 %v1284
    %v5262 = vunpack.c.l.b16 %v1285
    %v5263 = vunpack.c.h.b16 %v1285
    %v5264 = vunpack.c.l.b16 %v1286
    %v5265 = vunpack.c.h.b16 %v1286
    %v5266 = vunpack.c.l.b16 %v1287
    %v5267 = vunpack.c.l.b16 %v1288
    %v5268 = vunpack.c.h.b16 %v1288
    %v5269 = vunpack.c.l.b16 %v1289
    %v5270 = vunpack.c.h.b16 %v1289
    %v5271 = vunpack.c.l.b16 %v1290
    %v5272 = vunpack.c.h.b16 %v1290
    %v5273 = vunpack.c.l.b16 %v1291
    %v5274 = vunpack.c.h.b16 %v1291
    %v5275 = vunpack.c.l.b16 %v1292
    %v5276 = vunpack.c.h.b16 %v1292
    %v5277 = vunpack.c.l.b16 %v1293
    %v5278 = vunpack.c.h.b16 %v1293
    %v5279 = vunpack.c.l.b16 %v1294
    %v5280 = vunpack.c.h.b16 %v1294
    %v5281 = vunpack.c.l.b16 %v1295
    %v5282 = vunpack.c.h.b16 %v1295
    %v5283 = vunpack.c.l.b16 %v1296
    %v5284 = vunpack.c.h.b16 %v1296
    %v5285 = vunpack.c.l.b16 %v1297
    %v5286 = vunpack.c.h.b16 %v1297
    %v5287 = vunpack.c.l.b16 %v1298
    %v5288 = vunpack.c.h.b16 %v1298
    %v5289 = vunpack.c.l.b16 %v1299
    %v5290 = vunpack.c.h.b16 %v1299
    %v5291 = vunpack.c.l.b16 %v1300
    %v5292 = vunpack.c.h.b16 %v1300
    %v5293 = vunpack.c.l.b16 %v1301
    %v5294 = vunpack.c.l.b16 %v1302
    %v5295 = vunpack.c.h.b16 %v1302
    %v5296 = vunpack.c.l.b16 %v1303
    %v5297 = vunpack.c.h.b16 %v1303
    %v5298 = vunpack.c.l.b16 %v1304
    %v5299 = vunpack.c.h.b16 %v1304
    %v5300 = vunpack.c.l.b16 %v1305
    %v5301 = vunpack.c.h.b16 %v1305
    %v5302 = vunpack.c.l.b16 %v1306
    %v5303 = vunpack.c.h.b16 %v1306
    %v5304 = vunpack.c.l.b16 %v1307
    %v5305 = vunpack.c.h.b16 %v1307
    %v5306 = vunpack.c.l.b16 %v1308
    %v5307 = vunpack.c.h.b16 %v1308
    %v5308 = vunpack.c.l.b16 %v1309
    %v5309 = vunpack.c.h.b16 %v1309
    %v5310 = vunpack.c.l.b16 %v1310
    %v5311 = vunpack.c.h.b16 %v1310
    %v5312 = vunpack.c.l.b16 %v1311
    %v5313 = vunpack.c.h.b16 %v1311
    %v5314 = vunpack.c.l.b16 %v1312
    %v5315 = vunpack.c.h.b16 %v1312
    %v5316 = vunpack.c.l.b16 %v1313
    %v5317 = vunpack.c.h.b16 %v1313
    %v5318 = vunpack.c.l.b16 %v1314
    %v5319 = vunpack.c.h.b16 %v1314
    %v5320 = vunpack.c.l.b16 %v1315
    %v5321 = vunpack.c.l.b16 %v1316
    %v5322 = vunpack.c.h.b16 %v1316
    %v5323 = vunpack.c.l.b16 %v1317
    %v5324 = vunpack.c.h.b16 %v1317
    %v5325 = vunpack.c.l.b16 %v1318
    %v5326 = vunpack.c.h.b16 %v1318
    %v5327 = vunpack.c.l.b16 %v1319
    %v5328 = vunpack.c.h.b16 %v1319
    %v5329 = vunpack.c.l.b16 %v1320
    %v5330 = vunpack.c.h.b16 %v1320
    %v5331 = vunpack.c.l.b16 %v1321
    %v5332 = vunpack.c.h.b16 %v1321
    %v5333 = vunpack.c.l.b16 %v1322
    %v5334 = vunpack.c.h.b16 %v1322
    %v5335 = vunpack.c.l.b16 %v1323
    %v5336 = vunpack.c.h.b16 %v1323
    %v5337 = vunpack.c.l.b16 %v1324
    %v5338 = vunpack.c.h.b16 %v1324
    %v5339 = vunpack.c.l.b16 %v1325
    %v5340 = vunpack.c.h.b16 %v1325
    %v5341 = vunpack.c.l.b16 %v1326
    %v5342 = vunpack.c.h.b16 %v1326
    %v5343 = vunpack.c.l.b16 %v1327
    %v5344 = vunpack.c.h.b16 %v1327
    %v5345 = vunpack.c.l.b16 %v1328
    %v5346 = vunpack.c.h.b16 %v1328
    %v5347 = vunpack.c.l.b16 %v1329
    %v5348 = vunpack.c.l.b16 %v1330
    %v5349 = vunpack.c.h.b16 %v1330
    %v5350 = vunpack.c.l.b16 %v1331
    %v5351 = vunpack.c.h.b16 %v1331
    %v5352 = vunpack.c.l.b16 %v1332
    %v5353 = vunpack.c.h.b16 %v1332
    %v5354 = vunpack.c.l.b16 %v1333
    %v5355 = vunpack.c.h.b16 %v1333
    %v5356 = vunpack.c.l.b16 %v1334
    %v5357 = vunpack.c.h.b16 %v1334
    %v5358 = vunpack.c.l.b16 %v1335
    %v5359 = vunpack.c.h.b16 %v1335
    %v5360 = vunpack.c.l.b16 %v1336
    %v5361 = vunpack.c.h.b16 %v1336
    %v5362 = vunpack.c.l.b16 %v1337
    %v5363 = vunpack.c.h.b16 %v1337
    %v5364 = vunpack.c.l.b16 %v1338
    %v5365 = vunpack.c.h.b16 %v1338
    %v5366 = vunpack.c.l.b16 %v1339
    %v5367 = vunpack.c.h.b16 %v1339
    %v5368 = vunpack.c.l.b16 %v1340
    %v5369 = vunpack.c.h.b16 %v1340
    %v5370 = vunpack.c.l.b16 %v1341
    %v5371 = vunpack.c.h.b16 %v1341
    %v5372 = vunpack.c.l.b16 %v1342
    %v5373 = vunpack.c.h.b16 %v1342
    %v5374 = vunpack.c.l.b16 %v1343
    %v5375 = vunpack.c.l.b16 %v1344
    %v5376 = vunpack.c.h.b16 %v1344
    %v5377 = vunpack.c.l.b16 %v1345
    %v5378 = vunpack.c.h.b16 %v1345
    %v5379 = vunpack.c.l.b16 %v1346
    %v5380 = vunpack.c.h.b16 %v1346
    %v5381 = vunpack.c.l.b16 %v1347
    %v5382 = vunpack.c.h.b16 %v1347
    %v5383 = vunpack.c.l.b16 %v1348
    %v5384 = vunpack.c.h.b16 %v1348
    %v5385 = vunpack.c.l.b16 %v1349
    %v5386 = vunpack.c.h.b16 %v1349
    %v5387 = vunpack.c.l.b16 %v1350
    %v5388 = vunpack.c.h.b16 %v1350
    %v5389 = vunpack.c.l.b16 %v1351
    %v5390 = vunpack.c.h.b16 %v1351
    %v5391 = vunpack.c.l.b16 %v1352
    %v5392 = vunpack.c.h.b16 %v1352
    %v5393 = vunpack.c.l.b16 %v1353
    %v5394 = vunpack.c.h.b16 %v1353
    %v5395 = vunpack.c.l.b16 %v1354
    %v5396 = vunpack.c.h.b16 %v1354
    %v5397 = vunpack.c.l.b16 %v1355
    %v5398 = vunpack.c.h.b16 %v1355
    %v5399 = vunpack.c.l.b16 %v1356
    %v5400 = vunpack.c.h.b16 %v1356
    %v5401 = vunpack.c.l.b16 %v1357
    %v5402 = vunpack.c.l.b16 %v1358
    %v5403 = vunpack.c.h.b16 %v1358
    %v5404 = vunpack.c.l.b16 %v1359
    %v5405 = vunpack.c.h.b16 %v1359
    %v5406 = vunpack.c.l.b16 %v1360
    %v5407 = vunpack.c.h.b16 %v1360
    %v5408 = vunpack.c.l.b16 %v1361
    %v5409 = vunpack.c.h.b16 %v1361
    %v5410 = vunpack.c.l.b16 %v1362
    %v5411 = vunpack.c.h.b16 %v1362
    %v5412 = vunpack.c.l.b16 %v1363
    %v5413 = vunpack.c.h.b16 %v1363
    %v5414 = vunpack.c.l.b16 %v1364
    %v5415 = vunpack.c.h.b16 %v1364
    %v5416 = vunpack.c.l.b16 %v1365
    %v5417 = vunpack.c.h.b16 %v1365
    %v5418 = vunpack.c.l.b16 %v1366
    %v5419 = vunpack.c.h.b16 %v1366
    %v5420 = vunpack.c.l.b16 %v1367
    %v5421 = vunpack.c.h.b16 %v1367
    %v5422 = vunpack.c.l.b16 %v1368
    %v5423 = vunpack.c.h.b16 %v1368
    %v5424 = vunpack.c.l.b16 %v1369
    %v5425 = vunpack.c.h.b16 %v1369
    %v5426 = vunpack.c.l.b16 %v1370
    %v5427 = vunpack.c.h.b16 %v1370
    %v5428 = vunpack.c.l.b16 %v1371
    %v5429 = vunpack.c.l.b16 %v1372
    %v5430 = vunpack.c.h.b16 %v1372
    %v5431 = vunpack.c.l.b16 %v1373
    %v5432 = vunpack.c.h.b16 %v1373
    %v5433 = vunpack.c.l.b16 %v1374
    %v5434 = vunpack.c.h.b16 %v1374
    %v5435 = vunpack.c.l.b16 %v1375
    %v5436 = vunpack.c.h.b16 %v1375
    %v5437 = vunpack.c.l.b16 %v1376
    %v5438 = vunpack.c.h.b16 %v1376
    %v5439 = vunpack.c.l.b16 %v1377
    %v5440 = vunpack.c.h.b16 %v1377
    %v5441 = vunpack.c.l.b16 %v1378
    %v5442 = vunpack.c.h.b16 %v1378
    %v5443 = vunpack.c.l.b16 %v1379
    %v5444 = vunpack.c.h.b16 %v1379
    %v5445 = vunpack.c.l.b16 %v1380
    %v5446 = vunpack.c.h.b16 %v1380
    %v5447 = vunpack.c.l.b16 %v1381
    %v5448 = vunpack.c.h.b16 %v1381
    %v5449 = vunpack.c.l.b16 %v1382
    %v5450 = vunpack.c.h.b16 %v1382
    %v5451 = vunpack.c.l.b16 %v1383
    %v5452 = vunpack.c.h.b16 %v1383
    %v5453 = vunpack.c.l.b16 %v1384
    %v5454 = vunpack.c.h.b16 %v1384
    %v5455 = vunpack.c.l.b16 %v1385
    %v5456 = vunpack.c.l.b16 %v1386
    %v5457 = vunpack.c.h.b16 %v1386
    %v5458 = vunpack.c.l.b16 %v1387
    %v5459 = vunpack.c.h.b16 %v1387
    %v5460 = vunpack.c.l.b16 %v1388
    %v5461 = vunpack.c.h.b16 %v1388
    %v5462 = vunpack.c.l.b16 %v1389
    %v5463 = vunpack.c.h.b16 %v1389
    %v5464 = vunpack.c.l.b16 %v1390
    %v5465 = vunpack.c.h.b16 %v1390
    %v5466 = vunpack.c.l.b16 %v1391
    %v5467 = vunpack.c.h.b16 %v1391
    %v5468 = vunpack.c.l.b16 %v1392
    %v5469 = vunpack.c.h.b16 %v1392
    %v5470 = vunpack.c.l.b16 %v1393
    %v5471 = vunpack.c.h.b16 %v1393
    %v5472 = vunpack.c.l.b16 %v1394
    %v5473 = vunpack.c.h.b16 %v1394
    %v5474 = vunpack.c.l.b16 %v1395
    %v5475 = vunpack.c.h.b16 %v1395
    %v5476 = vunpack.c.l.b16 %v1396
    %v5477 = vunpack.c.h.b16 %v1396
    %v5478 = vunpack.c.l.b16 %v1397
    %v5479 = vunpack.c.h.b16 %v1397
    %v5480 = vunpack.c.l.b16 %v1398
    %v5481 = vunpack.c.h.b16 %v1398
    %v5482 = vunpack.c.l.b16 %v1399
    %v5483 = vunpack.c.l.b16 %v1400
    %v5484 = vunpack.c.h.b16 %v1400
    %v5485 = vunpack.c.l.b16 %v1401
    %v5486 = vunpack.c.h.b16 %v1401
    %v5487 = vunpack.c.l.b16 %v1402
    %v5488 = vunpack.c.h.b16 %v1402
    %v5489 = vunpack.c.l.b16 %v1403
    %v5490 = vunpack.c.h.b16 %v1403
    %v5491 = vunpack.c.l.b16 %v1404
    %v5492 = vunpack.c.h.b16 %v1404
    %v5493 = vunpack.c.l.b16 %v1405
    %v5494 = vunpack.c.h.b16 %v1405
    %v5495 = vunpack.c.l.b16 %v1406
    %v5496 = vunpack.c.h.b16 %v1406
    %v5497 = vunpack.c.l.b16 %v1407
    %v5498 = vunpack.c.h.b16 %v1407
    %v5499 = vunpack.c.l.b16 %v1408
    %v5500 = vunpack.c.h.b16 %v1408
    %v5501 = vunpack.c.l.b16 %v1409
    %v5502 = vunpack.c.h.b16 %v1409
    %v5503 = vunpack.c.l.b16 %v1410
    %v5504 = vunpack.c.h.b16 %v1410
    %v5505 = vunpack.c.l.b16 %v1411
    %v5506 = vunpack.c.h.b16 %v1411
    %v5507 = vunpack.c.l.b16 %v1412
    %v5508 = vunpack.c.h.b16 %v1412
    %v5509 = vunpack.c.l.b16 %v1413
    %v5510 = vunpack.c.l.b16 %v1414
    %v5511 = vunpack.c.h.b16 %v1414
    %v5512 = vunpack.c.l.b16 %v1415
    %v5513 = vunpack.c.h.b16 %v1415
    %v5514 = vunpack.c.l.b16 %v1416
    %v5515 = vunpack.c.h.b16 %v1416
    %v5516 = vunpack.c.l.b16 %v1417
    %v5517 = vunpack.c.h.b16 %v1417
    %v5518 = vunpack.c.l.b16 %v1418
    %v5519 = vunpack.c.h.b16 %v1418
    %v5520 = vunpack.c.l.b16 %v1419
    %v5521 = vunpack.c.h.b16 %v1419
    %v5522 = vunpack.c.l.b16 %v1420
    %v5523 = vunpack.c.h.b16 %v1420
    %v5524 = vunpack.c.l.b16 %v1421
    %v5525 = vunpack.c.h.b16 %v1421
    %v5526 = vunpack.c.l.b16 %v1422
    %v5527 = vunpack.c.h.b16 %v1422
    %v5528 = vunpack.c.l.b16 %v1423
    %v5529 = vunpack.c.h.b16 %v1423
    %v5530 = vunpack.c.l.b16 %v1424
    %v5531 = vunpack.c.h.b16 %v1424
    %v5532 = vunpack.c.l.b16 %v1425
    %v5533 = vunpack.c.h.b16 %v1425
    %v5534 = vunpack.c.l.b16 %v1426
    %v5535 = vunpack.c.h.b16 %v1426
    %v5536 = vunpack.c.l.b16 %v1427
    %v5537 = vunpack.c.l.b16 %v1428
    %v5538 = vunpack.c.h.b16 %v1428
    %v5539 = vunpack.c.l.b16 %v1429
    %v5540 = vunpack.c.h.b16 %v1429
    %v5541 = vunpack.c.l.b16 %v1430
    %v5542 = vunpack.c.h.b16 %v1430
    %v5543 = vunpack.c.l.b16 %v1431
    %v5544 = vunpack.c.h.b16 %v1431
    %v5545 = vunpack.c.l.b16 %v1432
    %v5546 = vunpack.c.h.b16 %v1432
    %v5547 = vunpack.c.l.b16 %v1433
    %v5548 = vunpack.c.h.b16 %v1433
    %v5549 = vunpack.c.l.b16 %v1434
    %v5550 = vunpack.c.h.b16 %v1434
    %v5551 = vunpack.c.l.b16 %v1435
    %v5552 = vunpack.c.h.b16 %v1435
    %v5553 = vunpack.c.l.b16 %v1436
    %v5554 = vunpack.c.h.b16 %v1436
    %v5555 = vunpack.c.l.b16 %v1437
    %v5556 = vunpack.c.h.b16 %v1437
    %v5557 = vunpack.c.l.b16 %v1438
    %v5558 = vunpack.c.h.b16 %v1438
    %v5559 = vunpack.c.l.b16 %v1439
    %v5560 = vunpack.c.h.b16 %v1439
    %v5561 = vunpack.c.l.b16 %v1440
    %v5562 = vunpack.c.h.b16 %v1440
    %v5563 = vunpack.c.l.b16 %v1441
    %v5564 = vunpack.c.l.b16 %v1442
    %v5565 = vunpack.c.h.b16 %v1442
    %v5566 = vunpack.c.l.b16 %v1443
    %v5567 = vunpack.c.h.b16 %v1443
    %v5568 = vunpack.c.l.b16 %v1444
    %v5569 = vunpack.c.h.b16 %v1444
    %v5570 = vunpack.c.l.b16 %v1445
    %v5571 = vunpack.c.h.b16 %v1445
    %v5572 = vunpack.c.l.b16 %v1446
    %v5573 = vunpack.c.h.b16 %v1446
    %v5574 = vunpack.c.l.b16 %v1447
    %v5575 = vunpack.c.h.b16 %v1447
    %v5576 = vunpack.c.l.b16 %v1448
    %v5577 = vunpack.c.h.b16 %v1448
    %v5578 = vunpack.c.l.b16 %v1449
    %v5579 = vunpack.c.h.b16 %v1449
    %v5580 = vunpack.c.l.b16 %v1450
    %v5581 = vunpack.c.h.b16 %v1450
    %v5582 = vunpack.c.l.b16 %v1451
    %v5583 = vunpack.c.h.b16 %v1451
    %v5584 = vunpack.c.l.b16 %v1452
    %v5585 = vunpack.c.h.b16 %v1452
    %v5586 = vunpack.c.l.b16 %v1453
    %v5587 = vunpack.c.h.b16 %v1453
    %v5588 = vunpack.c.l.b16 %v1454
    %v5589 = vunpack.c.h.b16 %v1454
    %v5590 = vunpack.c.l.b16 %v1455
    %v5591 = vunpack.c.l.b16 %v1456
    %v5592 = vunpack.c.h.b16 %v1456
    %v5593 = vunpack.c.l.b16 %v1457
    %v5594 = vunpack.c.h.b16 %v1457
    %v5595 = vunpack.c.l.b16 %v1458
    %v5596 = vunpack.c.h.b16 %v1458
    %v5597 = vunpack.c.l.b16 %v1459
    %v5598 = vunpack.c.h.b16 %v1459
    %v5599 = vunpack.c.l.b16 %v1460
    %v5600 = vunpack.c.h.b16 %v1460
    %v5601 = vunpack.c.l.b16 %v1461
    %v5602 = vunpack.c.h.b16 %v1461
    %v5603 = vunpack.c.l.b16 %v1462
    %v5604 = vunpack.c.h.b16 %v1462
    %v5605 = vunpack.c.l.b16 %v1463
    %v5606 = vunpack.c.h.b16 %v1463
    %v5607 = vunpack.c.l.b16 %v1464
    %v5608 = vunpack.c.h.b16 %v1464
    %v5609 = vunpack.c.l.b16 %v1465
    %v5610 = vunpack.c.h.b16 %v1465
    %v5611 = vunpack.c.l.b16 %v1466
    %v5612 = vunpack.c.h.b16 %v1466
    %v5613 = vunpack.c.l.b16 %v1467
    %v5614 = vunpack.c.h.b16 %v1467
    %v5615 = vunpack.c.l.b16 %v1468
    %v5616 = vunpack.c.h.b16 %v1468
    %v5617 = vunpack.c.l.b16 %v1469
    %v5618 = vunpack.c.l.b16 %v1470
    %v5619 = vunpack.c.h.b16 %v1470
    %v5620 = vunpack.c.l.b16 %v1471
    %v5621 = vunpack.c.h.b16 %v1471
    %v5622 = vunpack.c.l.b16 %v1472
    %v5623 = vunpack.c.h.b16 %v1472
    %v5624 = vunpack.c.l.b16 %v1473
    %v5625 = vunpack.c.h.b16 %v1473
    %v5626 = vunpack.c.l.b16 %v1474
    %v5627 = vunpack.c.h.b16 %v1474
    %v5628 = vunpack.c.l.b16 %v1475
    %v5629 = vunpack.c.h.b16 %v1475
    %v5630 = vunpack.c.l.b16 %v1476
    %v5631 = vunpack.c.h.b16 %v1476
    %v5632 = vunpack.c.l.b16 %v1477
    %v5633 = vunpack.c.h.b16 %v1477
    %v5634 = vunpack.c.l.b16 %v1478
    %v5635 = vunpack.c.h.b16 %v1478
    %v5636 = vunpack.c.l.b16 %v1479
    %v5637 = vunpack.c.h.b16 %v1479
    %v5638 = vunpack.c.l.b16 %v1480
    %v5639 = vunpack.c.h.b16 %v1480
    %v5640 = vunpack.c.l.b16 %v1481
    %v5641 = vunpack.c.h.b16 %v1481
    %v5642 = vunpack.c.l.b16 %v1482
    %v5643 = vunpack.c.h.b16 %v1482
    %v5644 = vunpack.c.l.b16 %v1483
    %v5645 = vpack.c.b16 %v3026, %v2999
    %v5646 = vpack.c.b16 %v3027, %v3000
    %v5647 = vpack.c.b16 %v3028, %v3001
    %v5648 = vpack.c.b16 %v3029, %v3002
    %v5649 = vpack.c.b16 %v3030, %v3003
    %v5650 = vpack.c.b16 %v3031, %v3004
    %v5651 = vpack.c.b16 %v3032, %v3005
    %v5652 = vpack.c.b16 %v3033, %v3006
    %v5653 = vpack.c.b16 %v3034, %v3007
    %v5654 = vpack.c.b16 %v3035, %v3008
    %v5655 = vpack.c.b16 %v3036, %v3009
    %v5656 = vpack.c.b16 %v3037, %v3010
    %v5657 = vpack.c.b16 %v3038, %v3011
    %v5658 = vpack.c.b16 %v3039, %v3012
    %v5659 = vpack.c.b16 %v3040, %v3013
    %v5660 = vpack.c.b16 %v3041, %v3014
    %v5661 = vpack.c.b16 %v3042, %v3015
    %v5662 = vpack.c.b16 %v3043, %v3016
    %v5663 = vpack.c.b16 %v3044, %v3017
    %v5664 = vpack.c.b16 %v3045, %v3018
    %v5665 = vpack.c.b16 %v3046, %v3019
    %v5666 = vpack.c.b16 %v3047, %v3020
    %v5667 = vpack.c.b16 %v3048, %v3021
    %v5668 = vpack.c.b16 %v3049, %v3022
    %v5669 = vpack.c.b16 %v3050, %v3023
    %v5670 = vpack.c.b16 %v3051, %v3024
    %v5671 = vpack.c.b16 %v3052, %v3025
    %v5672 = vpack.c.b16 %v3080, %v3053
    %v5673 = vpack.c.b16 %v3081, %v3054
    %v5674 = vpack.c.b16 %v3082, %v3055
    %v5675 = vpack.c.b16 %v3083, %v3056
    %v5676 = vpack.c.b16 %v3084, %v3057
    %v5677 = vpack.c.b16 %v3085, %v3058
    %v5678 = vpack.c.b16 %v3086, %v3059
    %v5679 = vpack.c.b16 %v3087, %v3060
    %v5680 = vpack.c.b16 %v3088, %v3061
    %v5681 = vpack.c.b16 %v3089, %v3062
    %v5682 = vpack.c.b16 %v3090, %v3063
    %v5683 = vpack.c.b16 %v3091, %v3064
    %v5684 = vpack.c.b16 %v3092, %v3065
    %v5685 = vpack.c.b16 %v3093, %v3066
    %v5686 = vpack.c.b16 %v3094, %v3067
    %v5687 = vpack.c.b16 %v3095, %v3068
    %v5688 = vpack.c.b16 %v3096, %v3069
    %v5689 = vpack.c.b16 %v3097, %v3070
    %v5690 = vpack.c.b16 %v3098, %v3071
    %v5691 = vpack.c.b16 %v3099, %v3072
    %v5692 = vpack.c.b16 %v3100, %v3073
    %v5693 = vpack.c.b16 %v3101, %v3074
    %v5694 = vpack.c.b16 %v3102, %v3075
    %v5695 = vpack.c.b16 %v3103, %v3076
    %v5696 = vpack.c.b16 %v3104, %v3077
    %v5697 = vpack.c.b16 %v3105, %v3078
    %v5698 = vpack.c.b16 %v3106, %v3079
    %v5699 = vpack.c.b16 %v3134, %v3107
    %v5700 = vpack.c.b16 %v3135, %v3108
    %v5701 = vpack.c.b16 %v3136, %v3109
    %v5702 = vpack.c.b16 %v3137, %v3110
    %v5703 = vpack.c.b16 %v3138, %v3111
    %v5704 = vpack.c.b16 %v3139, %v3112
    %v5705 = vpack.c.b16 %v3140, %v3113
    %v5706 = vpack.c.b16 %v3141, %v3114
    %v5707 = vpack.c.b16 %v3142, %v3115
    %v5708 = vpack.c.b16 %v3143, %v3116
    %v5709 = vpack.c.b16 %v3144, %v3117
    %v5710 = vpack.c.b16 %v3145, %v3118
    %v5711 = vpack.c.b16 %v3146, %v3119
    %v5712 = vpack.c.b16 %v3147, %v3120
    %v5713 = vpack.c.b16 %v3148, %v3121
    %v5714 = vpack.c.b16 %v3149, %v3122
    %v5715 = vpack.c.b16 %v3150, %v3123
    %v5716 = vpack.c.b16 %v3151, %v3124
    %v5717 = vpack.c.b16 %v3152, %v3125
    %v5718 = vpack.c.b16 %v3153, %v3126
    %v5719 = vpack.c.b16 %v3154, %v3127
    %v5720 = vpack.c.b16 %v3155, %v3128
    %v5721 = vpack.c.b16 %v3156, %v3129
    %v5722 = vpack.c.b16 %v3157, %v3130
    %v5723 = vpack.c.b16 %v3158, %v3131
    %v5724 = vpack.c.b16 %v3159, %v3132
    %v5725 = vpack.c.b16 %v3160, %v3133
    %v5726 = vpack.c.b16 %v3188, %v3161
    %v5727 = vpack.c.b16 %v3189, %v3162
    %v5728 = vpack.c.b16 %v3190, %v3163
    %v5729 = vpack.c.b16 %v3191, %v3164
    %v5730 = vpack.c.b16 %v3192, %v3165
    %v5731 = vpack.c.b16 %v3193, %v3166
    %v5732 = vpack.c.b16 %v3194, %v3167
    %v5733 = vpack.c.b16 %v3195, %v3168
    %v5734 = vpack.c.b16 %v3196, %v3169
    %v5735 = vpack.c.b16 %v3197, %v3170
    %v5736 = vpack.c.b16 %v3198, %v3171
    %v5737 = vpack.c.b16 %v3199, %v3172
    %v5738 = vpack.c.b16 %v3200, %v3173
    %v5739 = vpack.c.b16 %v3201, %v3174
    %v5740 = vpack.c.b16 %v3202, %v3175
    %v5741 = vpack.c.b16 %v3203, %v3176
    %v5742 = vpack.c.b16 %v3204, %v3177
    %v5743 = vpack.c.b16 %v3205, %v3178
    %v5744 = vpack.c.b16 %v3206, %v3179
    %v5745 = vpack.c.b16 %v3207, %v3180
    %v5746 = vpack.c.b16 %v3208, %v3181
    %v5747 = vpack.c.b16 %v3209, %v3182
    %v5748 = vpack.c.b16 %v3210, %v3183
    %v5749 = vpack.c.b16 %v3211, %v3184
    %v5750 = vpack.c.b16 %v3212, %v3185
    %v5751 = vpack.c.b16 %v3213, %v3186
    %v5752 = vpack.c.b16 %v3214, %v3187
    %v5753 = vpack.c.b16 %v3242, %v3215
    %v5754 = vpack.c.b16 %v3243, %v3216
    %v5755 = vpack.c.b16 %v3244, %v3217
    %v5756 = vpack.c.b16 %v3245, %v3218
    %v5757 = vpack.c.b16 %v3246, %v3219
    %v5758 = vpack.c.b16 %v3247, %v3220
    %v5759 = vpack.c.b16 %v3248, %v3221
    %v5760 = vpack.c.b16 %v3249, %v3222
    %v5761 = vpack.c.b16 %v3250, %v3223
    %v5762 = vpack.c.b16 %v3251, %v3224
    %v5763 = vpack.c.b16 %v3252, %v3225
    %v5764 = vpack.c.b16 %v3253, %v3226
    %v5765 = vpack.c.b16 %v3254, %v3227
    %v5766 = vpack.c.b16 %v3255, %v3228
    %v5767 = vpack.c.b16 %v3256, %v3229
    %v5768 = vpack.c.b16 %v3257, %v3230
    %v5769 = vpack.c.b16 %v3258, %v3231
    %v5770 = vpack.c.b16 %v3259, %v3232
    %v5771 = vpack.c.b16 %v3260, %v3233
    %v5772 = vpack.c.b16 %v3261, %v3234
    %v5773 = vpack.c.b16 %v3262, %v3235
    %v5774 = vpack.c.b16 %v3263, %v3236
    %v5775 = vpack.c.b16 %v3264, %v3237
    %v5776 = vpack.c.b16 %v3265, %v3238
    %v5777 = vpack.c.b16 %v3266, %v3239
    %v5778 = vpack.c.b16 %v3267, %v3240
    %v5779 = vpack.c.b16 %v3268, %v3241
    %v5780 = vpack.c.b16 %v3296, %v3269
    %v5781 = vpack.c.b16 %v3297, %v3270
    %v5782 = vpack.c.b16 %v3298, %v3271
    %v5783 = vpack.c.b16 %v3299, %v3272
    %v5784 = vpack.c.b16 %v3300, %v3273
    %v5785 = vpack.c.b16 %v3301, %v3274
    %v5786 = vpack.c.b16 %v3302, %v3275
    %v5787 = vpack.c.b16 %v3303, %v3276
    %v5788 = vpack.c.b16 %v3304, %v3277
    %v5789 = vpack.c.b16 %v3305, %v3278
    %v5790 = vpack.c.b16 %v3306, %v3279
    %v5791 = vpack.c.b16 %v3307, %v3280
    %v5792 = vpack.c.b16 %v3308, %v3281
    %v5793 = vpack.c.b16 %v3309, %v3282
    %v5794 = vpack.c.b16 %v3310, %v3283
    %v5795 = vpack.c.b16 %v3311, %v3284
    %v5796 = vpack.c.b16 %v3312, %v3285
    %v5797 = vpack.c.b16 %v3313, %v3286
    %v5798 = vpack.c.b16 %v3314, %v3287
    %v5799 = vpack.c.b16 %v3315, %v3288
    %v5800 = vpack.c.b16 %v3316, %v3289
    %v5801 = vpack.c.b16 %v3317, %v3290
    %v5802 = vpack.c.b16 %v3318, %v3291
    %v5803 = vpack.c.b16 %v3319, %v3292
    %v5804 = vpack.c.b16 %v3320, %v3293
    %v5805 = vpack.c.b16 %v3321, %v3294
    %v5806 = vpack.c.b16 %v3322, %v3295
    %v5807 = vpack.c.b16 %v3350, %v3323
    %v5808 = vpack.c.b16 %v3351, %v3324
    %v5809 = vpack.c.b16 %v3352, %v3325
    %v5810 = vpack.c.b16 %v3353, %v3326
    %v5811 = vpack.c.b16 %v3354, %v3327
    %v5812 = vpack.c.b16 %v3355, %v3328
    %v5813 = vpack.c.b16 %v3356, %v3329
    %v5814 = vpack.c.b16 %v3357, %v3330
    %v5815 = vpack.c.b16 %v3358, %v3331
    %v5816 = vpack.c.b16 %v3359, %v3332
    %v5817 = vpack.c.b16 %v3360, %v3333
    %v5818 = vpack.c.b16 %v3361, %v3334
    %v5819 = vpack.c.b16 %v3362, %v3335
    %v5820 = vpack.c.b16 %v3363, %v3336
    %v5821 = vpack.c.b16 %v3364, %v3337
    %v5822 = vpack.c.b16 %v3365, %v3338
    %v5823 = vpack.c.b16 %v3366, %v3339
    %v5824 = vpack.c.b16 %v3367, %v3340
    %v5825 = vpack.c.b16 %v3368, %v3341
    %v5826 = vpack.c.b16 %v3369, %v3342
    %v5827 = vpack.c.b16 %v3370, %v3343
    %v5828 = vpack.c.b16 %v3371, %v3344
    %v5829 = vpack.c.b16 %v3372, %v3345
    %v5830 = vpack.c.b16 %v3373, %v3346
    %v5831 = vpack.c.b16 %v3374, %v3347
    %v5832 = vpack.c.b16 %v3375, %v3348
    %v5833 = vpack.c.b16 %v3376, %v3349
    %v5834 = vpack.c.b16 %v3404, %v3377
    %v5835 = vpack.c.b16 %v3405, %v3378
    %v5836 = vpack.c.b16 %v3406, %v3379
    %v5837 = vpack.c.b16 %v3407, %v3380
    %v5838 = vpack.c.b16 %v3408, %v3381
    %v5839 = vpack.c.b16 %v3409, %v3382
    %v5840 = vpack.c.b16 %v3410, %v3383
    %v5841 = vpack.c.b16 %v3411, %v3384
    %v5842 = vpack.c.b16 %v3412, %v3385
    %v5843 = vpack.c.b16 %v3413, %v3386
    %v5844 = vpack.c.b16 %v3414, %v3387
    %v5845 = vpack.c.b16 %v3415, %v3388
    %v5846 = vpack.c.b16 %v3416, %v3389
    %v5847 = vpack.c.b16 %v3417, %v3390
    %v5848 = vpack.c.b16 %v3418, %v3391
    %v5849 = vpack.c.b16 %v3419, %v3392
    %v5850 = vpack.c.b16 %v3420, %v3393
    %v5851 = vpack.c.b16 %v3421, %v3394
    %v5852 = vpack.c.b16 %v3422, %v3395
    %v5853 = vpack.c.b16 %v3423, %v3396
    %v5854 = vpack.c.b16 %v3424, %v3397
    %v5855 = vpack.c.b16 %v3425, %v3398
    %v5856 = vpack.c.b16 %v3426, %v3399
    %v5857 = vpack.c.b16 %v3427, %v3400
    %v5858 = vpack.c.b16 %v3428, %v3401
    %v5859 = vpack.c.b16 %v3429, %v3402
    %v5860 = vpack.c.b16 %v3430, %v3403
    %v5861 = vpack.c.b16 %v3458, %v3431
    %v5862 = vpack.c.b16 %v3459, %v3432
    %v5863 = vpack.c.b16 %v3460, %v3433
    %v5864 = vpack.c.b16 %v3461, %v3434
    %v5865 = vpack.c.b16 %v3462, %v3435
    %v5866 = vpack.c.b16 %v3463, %v3436
    %v5867 = vpack.c.b16 %v3464, %v3437
    %v5868 = vpack.c.b16 %v3465, %v3438
    %v5869 = vpack.c.b16 %v3466, %v3439
    %v5870 = vpack.c.b16 %v3467, %v3440
    %v5871 = vpack.c.b16 %v3468, %v3441
    %v5872 = vpack.c.b16 %v3469, %v3442
    %v5873 = vpack.c.b16 %v3470, %v3443
    %v5874 = vpack.c.b16 %v3471, %v3444
    %v5875 = vpack.c.b16 %v3472, %v3445
    %v5876 = vpack.c.b16 %v3473, %v3446
    %v5877 = vpack.c.b16 %v3474, %v3447
    %v5878 = vpack.c.b16 %v3475, %v3448
    %v5879 = vpack.c.b16 %v3476, %v3449
    %v5880 = vpack.c.b16 %v3477, %v3450
    %v5881 = vpack.c.b16 %v3478, %v3451
    %v5882 = vpack.c.b16 %v3479, %v3452
    %v5883 = vpack.c.b16 %v3480, %v3453
    %v5884 = vpack.c.b16 %v3481, %v3454
    %v5885 = vpack.c.b16 %v3482, %v3455
    %v5886 = vpack.c.b16 %v3483, %v3456
    %v5887 = vpack.c.b16 %v3484, %v3457
    %v5888 = vpack.c.b16 %v3512, %v3485
    %v5889 = vpack.c.b16 %v3513, %v3486
    %v5890 = vpack.c.b16 %v3514, %v3487
    %v5891 = vpack.c.b16 %v3515, %v3488
    %v5892 = vpack.c.b16 %v3516, %v3489
    %v5893 = vpack.c.b16 %v3517, %v3490
    %v5894 = vpack.c.b16 %v3518, %v3491
    %v5895 = vpack.c.b16 %v3519, %v3492
    %v5896 = vpack.c.b16 %v3520, %v3493
    %v5897 = vpack.c.b16 %v3521, %v3494
    %v5898 = vpack.c.b16 %v3522, %v3495
    %v5899 = vpack.c.b16 %v3523, %v3496
    %v5900 = vpack.c.b16 %v3524, %v3497
    %v5901 = vpack.c.b16 %v3525, %v3498
    %v5902 = vpack.c.b16 %v3526, %v3499
    %v5903 = vpack.c.b16 %v3527, %v3500
    %v5904 = vpack.c.b16 %v3528, %v3501
    %v5905 = vpack.c.b16 %v3529, %v3502
    %v5906 = vpack.c.b16 %v3530, %v3503
    %v5907 = vpack.c.b16 %v3531, %v3504
    %v5908 = vpack.c.b16 %v3532, %v3505
    %v5909 = vpack.c.b16 %v3533, %v3506
    %v5910 = vpack.c.b16 %v3534, %v3507
    %v5911 = vpack.c.b16 %v3535, %v3508
    %v5912 = vpack.c.b16 %v3536, %v3509
    %v5913 = vpack.c.b16 %v3537, %v3510
    %v5914 = vpack.c.b16 %v3538, %v3511
    %v5915 = vpack.c.b16 %v3566, %v3539
    %v5916 = vpack.c.b16 %v3567, %v3540
    %v5917 = vpack.c.b16 %v3568, %v3541
    %v5918 = vpack.c.b16 %v3569, %v3542
    %v5919 = vpack.c.b16 %v3570, %v3543
    %v5920 = vpack.c.b16 %v3571, %v3544
    %v5921 = vpack.c.b16 %v3572, %v3545
    %v5922 = vpack.c.b16 %v3573, %v3546
    %v5923 = vpack.c.b16 %v3574, %v3547
    %v5924 = vpack.c.b16 %v3575, %v3548
    %v5925 = vpack.c.b16 %v3576, %v3549
    %v5926 = vpack.c.b16 %v3577, %v3550
    %v5927 = vpack.c.b16 %v3578, %v3551
    %v5928 = vpack.c.b16 %v3579, %v3552
    %v5929 = vpack.c.b16 %v3580, %v3553
    %v5930 = vpack.c.b16 %v3581, %v3554
    %v5931 = vpack.c.b16 %v3582, %v3555
    %v5932 = vpack.c.b16 %v3583, %v3556
    %v5933 = vpack.c.b16 %v3584, %v3557
    %v5934 = vpack.c.b16 %v3585, %v3558
    %v5935 = vpack.c.b16 %v3586, %v3559
    %v5936 = vpack.c.b16 %v3587, %v3560
    %v5937 = vpack.c.b16 %v3588, %v3561
    %v5938 = vpack.c.b16 %v3589, %v3562
    %v5939 = vpack.c.b16 %v3590, %v3563
    %v5940 = vpack.c.b16 %v3591, %v3564
    %v5941 = vpack.c.b16 %v3592, %v3565
    %v5942 = vpack.c.b16 %v3620, %v3593
    %v5943 = vpack.c.b16 %v3621, %v3594
    %v5944 = vpack.c.b16 %v3622, %v3595
    %v5945 = vpack.c.b16 %v3623, %v3596
    %v5946 = vpack.c.b16 %v3624, %v3597
    %v5947 = vpack.c.b16 %v3625, %v3598
    %v5948 = vpack.c.b16 %v3626, %v3599
    %v5949 = vpack.c.b16 %v3627, %v3600
    %v5950 = vpack.c.b16 %v3628, %v3601
    %v5951 = vpack.c.b16 %v3629, %v3602
    %v5952 = vpack.c.b16 %v3630, %v3603
    %v5953 = vpack.c.b16 %v3631, %v3604
    %v5954 = vpack.c.b16 %v3632, %v3605
    %v5955 = vpack.c.b16 %v3633, %v3606
    %v5956 = vpack.c.b16 %v3634, %v3607
    %v5957 = vpack.c.b16 %v3635, %v3608
    %v5958 = vpack.c.b16 %v3636, %v3609
    %v5959 = vpack.c.b16 %v3637, %v3610
    %v5960 = vpack.c.b16 %v3638, %v3611
    %v5961 = vpack.c.b16 %v3639, %v3612
    %v5962 = vpack.c.b16 %v3640, %v3613
    %v5963 = vpack.c.b16 %v3641, %v3614
    %v5964 = vpack.c.b16 %v3642, %v3615
    %v5965 = vpack.c.b16 %v3643, %v3616
    %v5966 = vpack.c.b16 %v3644, %v3617
    %v5967 = vpack.c.b16 %v3645, %v3618
    %v5968 = vpack.c.b16 %v3646, %v3619
    %v5969 = vpack.c.b16 %v3674, %v3647
    %v5970 = vpack.c.b16 %v3675, %v3648
    %v5971 = vpack.c.b16 %v3676, %v3649
    %v5972 = vpack.c.b16 %v3677, %v3650
    %v5973 = vpack.c.b16 %v3678, %v3651
    %v5974 = vpack.c.b16 %v3679, %v3652
    %v5975 = vpack.c.b16 %v3680, %v3653
    %v5976 = vpack.c.b16 %v3681, %v3654
    %v5977 = vpack.c.b16 %v3682, %v3655
    %v5978 = vpack.c.b16 %v3683, %v3656
    %v5979 = vpack.c.b16 %v3684, %v3657
    %v5980 = vpack.c.b16 %v3685, %v3658
    %v5981 = vpack.c.b16 %v3686, %v3659
    %v5982 = vpack.c.b16 %v3687, %v3660
    %v5983 = vpack.c.b16 %v3688, %v3661
    %v5984 = vpack.c.b16 %v3689, %v3662
    %v5985 = vpack.c.b16 %v3690, %v3663
    %v5986 = vpack.c.b16 %v3691, %v3664
    %v5987 = vpack.c.b16 %v3692, %v3665
    %v5988 = vpack.c.b16 %v3693, %v3666
    %v5989 = vpack.c.b16 %v3694, %v3667
    %v5990 = vpack.c.b16 %v3695, %v3668
    %v5991 = vpack.c.b16 %v3696, %v3669
    %v5992 = vpack.c.b16 %v3697, %v3670
    %v5993 = vpack.c.b16 %v3698, %v3671
    %v5994 = vpack.c.b16 %v3699, %v3672
    %v5995 = vpack.c.b16 %v3700, %v3673
    %v5996 = vpack.c.b16 %v3728, %v3701
    %v5997 = vpack.c.b16 %v3729, %v3702
    %v5998 = vpack.c.b16 %v3730, %v3703
    %v5999 = vpack.c.b16 %v3731, %v3704
    %v6000 = vpack.c.b16 %v3732, %v3705
    %v6001 = vpack.c.b16 %v3733, %v3706
    %v6002 = vpack.c.b16 %v3734, %v3707
    %v6003 = vpack.c.b16 %v3735, %v3708
    %v6004 = vpack.c.b16 %v3736, %v3709
    %v6005 = vpack.c.b16 %v3737, %v3710
    %v6006 = vpack.c.b16 %v3738, %v3711
    %v6007 = vpack.c.b16 %v3739, %v3712
    %v6008 = vpack.c.b16 %v3740, %v3713
    %v6009 = vpack.c.b16 %v3741, %v3714
    %v6010 = vpack.c.b16 %v3742, %v3715
    %v6011 = vpack.c.b16 %v3743, %v3716
    %v6012 = vpack.c.b16 %v3744, %v3717
    %v6013 = vpack.c.b16 %v3745, %v3718
    %v6014 = vpack.c.b16 %v3746, %v3719
    %v6015 = vpack.c.b16 %v3747, %v3720
    %v6016 = vpack.c.b16 %v3748, %v3721
    %v6017 = vpack.c.b16 %v3749, %v3722
    %v6018 = vpack.c.b16 %v3750, %v3723
    %v6019 = vpack.c.b16 %v3751, %v3724
    %v6020 = vpack.c.b16 %v3752, %v3725
    %v6021 = vpack.c.b16 %v3753, %v3726
    %v6022 = vpack.c.b16 %v3754, %v3727
    %v6023 = vpack.c.b16 %v3782, %v3755
    %v6024 = vpack.c.b16 %v3783, %v3756
    %v6025 = vpack.c.b16 %v3784, %v3757
    %v6026 = vpack.c.b16 %v3785, %v3758
    %v6027 = vpack.c.b16 %v3786, %v3759
    %v6028 = vpack.c.b16 %v3787, %v3760
    %v6029 = vpack.c.b16 %v3788, %v3761
    %v6030 = vpack.c.b16 %v3789, %v3762
    %v6031 = vpack.c.b16 %v3790, %v3763
    %v6032 = vpack.c.b16 %v3791, %v3764
    %v6033 = vpack.c.b16 %v3792, %v3765
    %v6034 = vpack.c.b16 %v3793, %v3766
    %v6035 = vpack.c.b16 %v3794, %v3767
    %v6036 = vpack.c.b16 %v3795, %v3768
    %v6037 = vpack.c.b16 %v3796, %v3769
    %v6038 = vpack.c.b16 %v3797, %v3770
    %v6039 = vpack.c.b16 %v3798, %v3771
    %v6040 = vpack.c.b16 %v3799, %v3772
    %v6041 = vpack.c.b16 %v3800, %v3773
    %v6042 = vpack.c.b16 %v3801, %v3774
    %v6043 = vpack.c.b16 %v3802, %v3775
    %v6044 = vpack.c.b16 %v3803, %v3776
    %v6045 = vpack.c.b16 %v3804, %v3777
    %v6046 = vpack.c.b16 %v3805, %v3778
    %v6047 = vpack.c.b16 %v3806, %v3779
    %v6048 = vpack.c.b16 %v3807, %v3780
    %v6049 = vpack.c.b16 %v3808, %v3781
    %v6050 = vpack.c.b16 %v3836, %v3809
    %v6051 = vpack.c.b16 %v3837, %v3810
    %v6052 = vpack.c.b16 %v3838, %v3811
    %v6053 = vpack.c.b16 %v3839, %v3812
    %v6054 = vpack.c.b16 %v3840, %v3813
    %v6055 = vpack.c.b16 %v3841, %v3814
    %v6056 = vpack.c.b16 %v3842, %v3815
    %v6057 = vpack.c.b16 %v3843, %v3816
    %v6058 = vpack.c.b16 %v3844, %v3817
    %v6059 = vpack.c.b16 %v3845, %v3818
    %v6060 = vpack.c.b16 %v3846, %v3819
    %v6061 = vpack.c.b16 %v3847, %v3820
    %v6062 = vpack.c.b16 %v3848, %v3821
    %v6063 = vpack.c.b16 %v3849, %v3822
    %v6064 = vpack.c.b16 %v3850, %v3823
    %v6065 = vpack.c.b16 %v3851, %v3824
    %v6066 = vpack.c.b16 %v3852, %v3825
    %v6067 = vpack.c.b16 %v3853, %v3826
    %v6068 = vpack.c.b16 %v3854, %v3827
    %v6069 = vpack.c.b16 %v3855, %v3828
    %v6070 = vpack.c.b16 %v3856, %v3829
    %v6071 = vpack.c.b16 %v3857, %v3830
    %v6072 = vpack.c.b16 %v3858, %v3831
    %v6073 = vpack.c.b16 %v3859, %v3832
    %v6074 = vpack.c.b16 %v3860, %v3833
    %v6075 = vpack.c.b16 %v3861, %v3834
    %v6076 = vpack.c.b16 %v3862, %v3835
    %v6077 = vpack.c.b16 %v3890, %v3863
    %v6078 = vpack.c.b16 %v3891, %v3864
    %v6079 = vpack.c.b16 %v3892, %v3865
    %v6080 = vpack.c.b16 %v3893, %v3866
    %v6081 = vpack.c.b16 %v3894, %v3867
    %v6082 = vpack.c.b16 %v3895, %v3868
    %v6083 = vpack.c.b16 %v3896, %v3869
    %v6084 = vpack.c.b16 %v3897, %v3870
    %v6085 = vpack.c.b16 %v3898, %v3871
    %v6086 = vpack.c.b16 %v3899, %v3872
    %v6087 = vpack.c.b16 %v3900, %v3873
    %v6088 = vpack.c.b16 %v3901, %v3874
    %v6089 = vpack.c.b16 %v3902, %v3875
    %v6090 = vpack.c.b16 %v3903, %v3876
    %v6091 = vpack.c.b16 %v3904, %v3877
    %v6092 = vpack.c.b16 %v3905, %v3878
    %v6093 = vpack.c.b16 %v3906, %v3879
    %v6094 = vpack.c.b16 %v3907, %v3880
    %v6095 = vpack.c.b16 %v3908, %v3881
    %v6096 = vpack.c.b16 %v3909, %v3882
    %v6097 = vpack.c.b16 %v3910, %v3883
    %v6098 = vpack.c.b16 %v3911, %v3884
    %v6099 = vpack.c.b16 %v3912, %v3885
    %v6100 = vpack.c.b16 %v3913, %v3886
    %v6101 = vpack.c.b16 %v3914, %v3887
    %v6102 = vpack.c.b16 %v3915, %v3888
    %v6103 = vpack.c.b16 %v3916, %v3889
    %v6104 = vpack.c.b16 %v3944, %v3917
    %v6105 = vpack.c.b16 %v3945, %v3918
    %v6106 = vpack.c.b16 %v3946, %v3919
    %v6107 = vpack.c.b16 %v3947, %v3920
    %v6108 = vpack.c.b16 %v3948, %v3921
    %v6109 = vpack.c.b16 %v3949, %v3922
    %v6110 = vpack.c.b16 %v3950, %v3923
    %v6111 = vpack.c.b16 %v3951, %v3924
    %v6112 = vpack.c.b16 %v3952, %v3925
    %v6113 = vpack.c.b16 %v3953, %v3926
    %v6114 = vpack.c.b16 %v3954, %v3927
    %v6115 = vpack.c.b16 %v3955, %v3928
    %v6116 = vpack.c.b16 %v3956, %v3929
    %v6117 = vpack.c.b16 %v3957, %v3930
    %v6118 = vpack.c.b16 %v3958, %v3931
    %v6119 = vpack.c.b16 %v3959, %v3932
    %v6120 = vpack.c.b16 %v3960, %v3933
    %v6121 = vpack.c.b16 %v3961, %v3934
    %v6122 = vpack.c.b16 %v3962, %v3935
    %v6123 = vpack.c.b16 %v3963, %v3936
    %v6124 = vpack.c.b16 %v3964, %v3937
    %v6125 = vpack.c.b16 %v3965, %v3938
    %v6126 = vpack.c.b16 %v3966, %v3939
    %v6127 = vpack.c.b16 %v3967, %v3940
    %v6128 = vpack.c.b16 %v3968, %v3941
    %v6129 = vpack.c.b16 %v3969, %v3942
    %v6130 = vpack.c.b16 %v3970, %v3943
    %v6131 = vpack.c.b16 %v3998, %v3971
    %v6132 = vpack.c.b16 %v3999, %v3972
    %v6133 = vpack.c.b16 %v4000, %v3973
    %v6134 = vpack.c.b16 %v4001, %v3974
    %v6135 = vpack.c.b16 %v4002, %v3975
    %v6136 = vpack.c.b16 %v4003, %v3976
    %v6137 = vpack.c.b16 %v4004, %v3977
    %v6138 = vpack.c.b16 %v4005, %v3978
    %v6139 = vpack.c.b16 %v4006, %v3979
    %v6140 = vpack.c.b16 %v4007, %v3980
    %v6141 = vpack.c.b16 %v4008, %v3981
    %v6142 = vpack.c.b16 %v4009, %v3982
    %v6143 = vpack.c.b16 %v4010, %v3983
    %v6144 = vpack.c.b16 %v4011, %v3984
    %v6145 = vpack.c.b16 %v4012, %v3985
    %v6146 = vpack.c.b16 %v4013, %v3986
    %v6147 = vpack.c.b16 %v4014, %v3987
    %v6148 = vpack.c.b16 %v4015, %v3988
    %v6149 = vpack.c.b16 %v4016, %v3989
    %v6150 = vpack.c.b16 %v4017, %v3990
    %v6151 = vpack.c.b16 %v4018, %v3991
    %v6152 = vpack.c.b16 %v4019, %v3992
    %v6153 = vpack.c.b16 %v4020, %v3993
    %v6154 = vpack.c.b16 %v4021, %v3994
    %v6155 = vpack.c.b16 %v4022, %v3995
    %v6156 = vpack.c.b16 %v4023, %v3996
    %v6157 = vpack.c.b16 %v4024, %v3997
    %v6158 = vpack.c.b16 %v4052, %v4025
    %v6159 = vpack.c.b16 %v4053, %v4026
    %v6160 = vpack.c.b16 %v4054, %v4027
    %v6161 = vpack.c.b16 %v4055, %v4028
    %v6162 = vpack.c.b16 %v4056, %v4029
    %v6163 = vpack.c.b16 %v4057, %v4030
    %v6164 = vpack.c.b16 %v4058, %v4031
    %v6165 = vpack.c.b16 %v4059, %v4032
    %v6166 = vpack.c.b16 %v4060, %v4033
    %v6167 = vpack.c.b16 %v4061, %v4034
    %v6168 = vpack.c.b16 %v4062, %v4035
    %v6169 = vpack.c.b16 %v4063, %v4036
    %v6170 = vpack.c.b16 %v4064, %v4037
    %v6171 = vpack.c.b16 %v4065, %v4038
    %v6172 = vpack.c.b16 %v4066, %v4039
    %v6173 = vpack.c.b16 %v4067, %v4040
    %v6174 = vpack.c.b16 %v4068, %v4041
    %v6175 = vpack.c.b16 %v4069, %v4042
    %v6176 = vpack.c.b16 %v4070, %v4043
    %v6177 = vpack.c.b16 %v4071, %v4044
    %v6178 = vpack.c.b16 %v4072, %v4045
    %v6179 = vpack.c.b16 %v4073, %v4046
    %v6180 = vpack.c.b16 %v4074, %v4047
    %v6181 = vpack.c.b16 %v4075, %v4048
    %v6182 = vpack.c.b16 %v4076, %v4049
    %v6183 = vpack.c.b16 %v4077, %v4050
    %v6184 = vpack.c.b16 %v4078, %v4051
    %v6185 = vpack.c.b16 %v4106, %v4079
    %v6186 = vpack.c.b16 %v4107, %v4080
    %v6187 = vpack.c.b16 %v4108, %v4081
    %v6188 = vpack.c.b16 %v4109, %v4082
    %v6189 = vpack.c.b16 %v4110, %v4083
    %v6190 = vpack.c.b16 %v4111, %v4084
    %v6191 = vpack.c.b16 %v4112, %v4085
    %v6192 = vpack.c.b16 %v4113, %v4086
    %v6193 = vpack.c.b16 %v4114, %v4087
    %v6194 = vpack.c.b16 %v4115, %v4088
    %v6195 = vpack.c.b16 %v4116, %v4089
    %v6196 = vpack.c.b16 %v4117, %v4090
    %v6197 = vpack.c.b16 %v4118, %v4091
    %v6198 = vpack.c.b16 %v4119, %v4092
    %v6199 = vpack.c.b16 %v4120, %v4093
    %v6200 = vpack.c.b16 %v4121, %v4094
    %v6201 = vpack.c.b16 %v4122, %v4095
    %v6202 = vpack.c.b16 %v4123, %v4096
    %v6203 = vpack.c.b16 %v4124, %v4097
    %v6204 = vpack.c.b16 %v4125, %v4098
    %v6205 = vpack.c.b16 %v4126, %v4099
    %v6206 = vpack.c.b16 %v4127, %v4100
    %v6207 = vpack.c.b16 %v4128, %v4101
    %v6208 = vpack.c.b16 %v4129, %v4102
    %v6209 = vpack.c.b16 %v4130, %v4103
    %v6210 = vpack.c.b16 %v4131, %v4104
    %v6211 = vpack.c.b16 %v4132, %v4105
    %v6212 = vpack.c.b16 %v4160, %v4133
    %v6213 = vpack.c.b16 %v4161, %v4134
    %v6214 = vpack.c.b16 %v4162, %v4135
    %v6215 = vpack.c.b16 %v4163, %v4136
    %v6216 = vpack.c.b16 %v4164, %v4137
    %v6217 = vpack.c.b16 %v4165, %v4138
    %v6218 = vpack.c.b16 %v4166, %v4139
    %v6219 = vpack.c.b16 %v4167, %v4140
    %v6220 = vpack.c.b16 %v4168, %v4141
    %v6221 = vpack.c.b16 %v4169, %v4142
    %v6222 = vpack.c.b16 %v4170, %v4143
    %v6223 = vpack.c.b16 %v4171, %v4144
    %v6224 = vpack.c.b16 %v4172, %v4145
    %v6225 = vpack.c.b16 %v4173, %v4146
    %v6226 = vpack.c.b16 %v4174, %v4147
    %v6227 = vpack.c.b16 %v4175, %v4148
    %v6228 = vpack.c.b16 %v4176, %v4149
    %v6229 = vpack.c.b16 %v4177, %v4150
    %v6230 = vpack.c.b16 %v4178, %v4151
    %v6231 = vpack.c.b16 %v4179, %v4152
    %v6232 = vpack.c.b16 %v4180, %v4153
    %v6233 = vpack.c.b16 %v4181, %v4154
    %v6234 = vpack.c.b16 %v4182, %v4155
    %v6235 = vpack.c.b16 %v4183, %v4156
    %v6236 = vpack.c.b16 %v4184, %v4157
    %v6237 = vpack.c.b16 %v4185, %v4158
    %v6238 = vpack.c.b16 %v4186, %v4159
    %v6239 = vpack.c.b16 %v4214, %v4187
    %v6240 = vpack.c.b16 %v4215, %v4188
    %v6241 = vpack.c.b16 %v4216, %v4189
    %v6242 = vpack.c.b16 %v4217, %v4190
    %v6243 = vpack.c.b16 %v4218, %v4191
    %v6244 = vpack.c.b16 %v4219, %v4192
    %v6245 = vpack.c.b16 %v4220, %v4193
    %v6246 = vpack.c.b16 %v4221, %v4194
    %v6247 = vpack.c.b16 %v4222, %v4195
    %v6248 = vpack.c.b16 %v4223, %v4196
    %v6249 = vpack.c.b16 %v4224, %v4197
    %v6250 = vpack.c.b16 %v4225, %v4198
    %v6251 = vpack.c.b16 %v4226, %v4199
    %v6252 = vpack.c.b16 %v4227, %v4200
    %v6253 = vpack.c.b16 %v4228, %v4201
    %v6254 = vpack.c.b16 %v4229, %v4202
    %v6255 = vpack.c.b16 %v4230, %v4203
    %v6256 = vpack.c.b16 %v4231, %v4204
    %v6257 = vpack.c.b16 %v4232, %v4205
    %v6258 = vpack.c.b16 %v4233, %v4206
    %v6259 = vpack.c.b16 %v4234, %v4207
    %v6260 = vpack.c.b16 %v4235, %v4208
    %v6261 = vpack.c.b16 %v4236, %v4209
    %v6262 = vpack.c.b16 %v4237, %v4210
    %v6263 = vpack.c.b16 %v4238, %v4211
    %v6264 = vpack.c.b16 %v4239, %v4212
    %v6265 = vpack.c.b16 %v4240, %v4213
    %v6266 = vpack.c.b16 %v4268, %v4241
    %v6267 = vpack.c.b16 %v4269, %v4242
    %v6268 = vpack.c.b16 %v4270, %v4243
    %v6269 = vpack.c.b16 %v4271, %v4244
    %v6270 = vpack.c.b16 %v4272, %v4245
    %v6271 = vpack.c.b16 %v4273, %v4246
    %v6272 = vpack.c.b16 %v4274, %v4247
    %v6273 = vpack.c.b16 %v4275, %v4248
    %v6274 = vpack.c.b16 %v4276, %v4249
    %v6275 = vpack.c.b16 %v4277, %v4250
    %v6276 = vpack.c.b16 %v4278, %v4251
    %v6277 = vpack.c.b16 %v4279, %v4252
    %v6278 = vpack.c.b16 %v4280, %v4253
    %v6279 = vpack.c.b16 %v4281, %v4254
    %v6280 = vpack.c.b16 %v4282, %v4255
    %v6281 = vpack.c.b16 %v4283, %v4256
    %v6282 = vpack.c.b16 %v4284, %v4257
    %v6283 = vpack.c.b16 %v4285, %v4258
    %v6284 = vpack.c.b16 %v4286, %v4259
    %v6285 = vpack.c.b16 %v4287, %v4260
    %v6286 = vpack.c.b16 %v4288, %v4261
    %v6287 = vpack.c.b16 %v4289, %v4262
    %v6288 = vpack.c.b16 %v4290, %v4263
    %v6289 = vpack.c.b16 %v4291, %v4264
    %v6290 = vpack.c.b16 %v4292, %v4265
    %v6291 = vpack.c.b16 %v4293, %v4266
    %v6292 = vpack.c.b16 %v4294, %v4267
    %v6293 = vpack.c.b16 %v4322, %v4295
    %v6294 = vpack.c.b16 %v4323, %v4296
    %v6295 = vpack.c.b16 %v4324, %v4297
    %v6296 = vpack.c.b16 %v4325, %v4298
    %v6297 = vpack.c.b16 %v4326, %v4299
    %v6298 = vpack.c.b16 %v4327, %v4300
    %v6299 = vpack.c.b16 %v4328, %v4301
    %v6300 = vpack.c.b16 %v4329, %v4302
    %v6301 = vpack.c.b16 %v4330, %v4303
    %v6302 = vpack.c.b16 %v4331, %v4304
    %v6303 = vpack.c.b16 %v4332, %v4305
    %v6304 = vpack.c.b16 %v4333, %v4306
    %v6305 = vpack.c.b16 %v4334, %v4307
    %v6306 = vpack.c.b16 %v4335, %v4308
    %v6307 = vpack.c.b16 %v4336, %v4309
    %v6308 = vpack.c.b16 %v4337, %v4310
    %v6309 = vpack.c.b16 %v4338, %v4311
    %v6310 = vpack.c.b16 %v4339, %v4312
    %v6311 = vpack.c.b16 %v4340, %v4313
    %v6312 = vpack.c.b16 %v4341, %v4314
    %v6313 = vpack.c.b16 %v4342, %v4315
    %v6314 = vpack.c.b16 %v4343, %v4316
    %v6315 = vpack.c.b16 %v4344, %v4317
    %v6316 = vpack.c.b16 %v4345, %v4318
    %v6317 = vpack.c.b16 %v4346, %v4319
    %v6318 = vpack.c.b16 %v4347, %v4320
    %v6319 = vpack.c.b16 %v4348, %v4321
    %v6320 = vpack.c.b16 %v4376, %v4349
    %v6321 = vpack.c.b16 %v4377, %v4350
    %v6322 = vpack.c.b16 %v4378, %v4351
    %v6323 = vpack.c.b16 %v4379, %v4352
    %v6324 = vpack.c.b16 %v4380, %v4353
    %v6325 = vpack.c.b16 %v4381, %v4354
    %v6326 = vpack.c.b16 %v4382, %v4355
    %v6327 = vpack.c.b16 %v4383, %v4356
    %v6328 = vpack.c.b16 %v4384, %v4357
    %v6329 = vpack.c.b16 %v4385, %v4358
    %v6330 = vpack.c.b16 %v4386, %v4359
    %v6331 = vpack.c.b16 %v4387, %v4360
    %v6332 = vpack.c.b16 %v4388, %v4361
    %v6333 = vpack.c.b16 %v4389, %v4362
    %v6334 = vpack.c.b16 %v4390, %v4363
    %v6335 = vpack.c.b16 %v4391, %v4364
    %v6336 = vpack.c.b16 %v4392, %v4365
    %v6337 = vpack.c.b16 %v4393, %v4366
    %v6338 = vpack.c.b16 %v4394, %v4367
    %v6339 = vpack.c.b16 %v4395, %v4368
    %v6340 = vpack.c.b16 %v4396, %v4369
    %v6341 = vpack.c.b16 %v4397, %v4370
    %v6342 = vpack.c.b16 %v4398, %v4371
    %v6343 = vpack.c.b16 %v4399, %v4372
    %v6344 = vpack.c.b16 %v4400, %v4373
    %v6345 = vpack.c.b16 %v4401, %v4374
    %v6346 = vpack.c.b16 %v4402, %v4375
    %v6347 = vpack.c.b16 %v4430, %v4403
    %v6348 = vpack.c.b16 %v4431, %v4404
    %v6349 = vpack.c.b16 %v4432, %v4405
    %v6350 = vpack.c.b16 %v4433, %v4406
    %v6351 = vpack.c.b16 %v4434, %v4407
    %v6352 = vpack.c.b16 %v4435, %v4408
    %v6353 = vpack.c.b16 %v4436, %v4409
    %v6354 = vpack.c.b16 %v4437, %v4410
    %v6355 = vpack.c.b16 %v4438, %v4411
    %v6356 = vpack.c.b16 %v4439, %v4412
    %v6357 = vpack.c.b16 %v4440, %v4413
    %v6358 = vpack.c.b16 %v4441, %v4414
    %v6359 = vpack.c.b16 %v4442, %v4415
    %v6360 = vpack.c.b16 %v4443, %v4416
    %v6361 = vpack.c.b16 %v4444, %v4417
    %v6362 = vpack.c.b16 %v4445, %v4418
    %v6363 = vpack.c.b16 %v4446, %v4419
    %v6364 = vpack.c.b16 %v4447, %v4420
    %v6365 = vpack.c.b16 %v4448, %v4421
    %v6366 = vpack.c.b16 %v4449, %v4422
    %v6367 = vpack.c.b16 %v4450, %v4423
    %v6368 = vpack.c.b16 %v4451, %v4424
    %v6369 = vpack.c.b16 %v4452, %v4425
    %v6370 = vpack.c.b16 %v4453, %v4426
    %v6371 = vpack.c.b16 %v4454, %v4427
    %v6372 = vpack.c.b16 %v4455, %v4428
    %v6373 = vpack.c.b16 %v4456, %v4429
    %v6374 = vpack.c.b16 %v4484, %v4457
    %v6375 = vpack.c.b16 %v4485, %v4458
    %v6376 = vpack.c.b16 %v4486, %v4459
    %v6377 = vpack.c.b16 %v4487, %v4460
    %v6378 = vpack.c.b16 %v4488, %v4461
    %v6379 = vpack.c.b16 %v4489, %v4462
    %v6380 = vpack.c.b16 %v4490, %v4463
    %v6381 = vpack.c.b16 %v4491, %v4464
    %v6382 = vpack.c.b16 %v4492, %v4465
    %v6383 = vpack.c.b16 %v4493, %v4466
    %v6384 = vpack.c.b16 %v4494, %v4467
    %v6385 = vpack.c.b16 %v4495, %v4468
    %v6386 = vpack.c.b16 %v4496, %v4469
    %v6387 = vpack.c.b16 %v4497, %v4470
    %v6388 = vpack.c.b16 %v4498, %v4471
    %v6389 = vpack.c.b16 %v4499, %v4472
    %v6390 = vpack.c.b16 %v4500, %v4473
    %v6391 = vpack.c.b16 %v4501, %v4474
    %v6392 = vpack.c.b16 %v4502, %v4475
    %v6393 = vpack.c.b16 %v4503, %v4476
    %v6394 = vpack.c.b16 %v4504, %v4477
    %v6395 = vpack.c.b16 %v4505, %v4478
    %v6396 = vpack.c.b16 %v4506, %v4479
    %v6397 = vpack.c.b16 %v4507, %v4480
    %v6398 = vpack.c.b16 %v4508, %v4481
    %v6399 = vpack.c.b16 %v4509, %v4482
    %v6400 = vpack.c.b16 %v4510, %v4483
    %v6401 = vpack.c.b16 %v4538, %v4511
    %v6402 = vpack.c.b16 %v4539, %v4512
    %v6403 = vpack.c.b16 %v4540, %v4513
    %v6404 = vpack.c.b16 %v4541, %v4514
    %v6405 = vpack.c.b16 %v4542, %v4515
    %v6406 = vpack.c.b16 %v4543, %v4516
    %v6407 = vpack.c.b16 %v4544, %v4517
    %v6408 = vpack.c.b16 %v4545, %v4518
    %v6409 = vpack.c.b16 %v4546, %v4519
    %v6410 = vpack.c.b16 %v4547, %v4520
    %v6411 = vpack.c.b16 %v4548, %v4521
    %v6412 = vpack.c.b16 %v4549, %v4522
    %v6413 = vpack.c.b16 %v4550, %v4523
    %v6414 = vpack.c.b16 %v4551, %v4524
    %v6415 = vpack.c.b16 %v4552, %v4525
    %v6416 = vpack.c.b16 %v4553, %v4526
    %v6417 = vpack.c.b16 %v4554, %v4527
    %v6418 = vpack.c.b16 %v4555, %v4528
    %v6419 = vpack.c.b16 %v4556, %v4529
    %v6420 = vpack.c.b16 %v4557, %v4530
    %v6421 = vpack.c.b16 %v4558, %v4531
    %v6422 = vpack.c.b16 %v4559, %v4532
    %v6423 = vpack.c.b16 %v4560, %v4533
    %v6424 = vpack.c.b16 %v4561, %v4534
    %v6425 = vpack.c.b16 %v4562, %v4535
    %v6426 = vpack.c.b16 %v4563, %v4536
    %v6427 = vpack.c.b16 %v4564, %v4537
    %v6428 = vpack.c.b16 %v4592, %v4565
    %v6429 = vpack.c.b16 %v4593, %v4566
    %v6430 = vpack.c.b16 %v4594, %v4567
    %v6431 = vpack.c.b16 %v4595, %v4568
    %v6432 = vpack.c.b16 %v4596, %v4569
    %v6433 = vpack.c.b16 %v4597, %v4570
    %v6434 = vpack.c.b16 %v4598, %v4571
    %v6435 = vpack.c.b16 %v4599, %v4572
    %v6436 = vpack.c.b16 %v4600, %v4573
    %v6437 = vpack.c.b16 %v4601, %v4574
    %v6438 = vpack.c.b16 %v4602, %v4575
    %v6439 = vpack.c.b16 %v4603, %v4576
    %v6440 = vpack.c.b16 %v4604, %v4577
    %v6441 = vpack.c.b16 %v4605, %v4578
    %v6442 = vpack.c.b16 %v4606, %v4579
    %v6443 = vpack.c.b16 %v4607, %v4580
    %v6444 = vpack.c.b16 %v4608, %v4581
    %v6445 = vpack.c.b16 %v4609, %v4582
    %v6446 = vpack.c.b16 %v4610, %v4583
    %v6447 = vpack.c.b16 %v4611, %v4584
    %v6448 = vpack.c.b16 %v4612, %v4585
    %v6449 = vpack.c.b16 %v4613, %v4586
    %v6450 = vpack.c.b16 %v4614, %v4587
    %v6451 = vpack.c.b16 %v4615, %v4588
    %v6452 = vpack.c.b16 %v4616, %v4589
    %v6453 = vpack.c.b16 %v4617, %v4590
    %v6454 = vpack.c.b16 %v4618, %v4591
    %v6455 = vpack.c.b16 %v4646, %v4619
    %v6456 = vpack.c.b16 %v4647, %v4620
    %v6457 = vpack.c.b16 %v4648, %v4621
    %v6458 = vpack.c.b16 %v4649, %v4622
    %v6459 = vpack.c.b16 %v4650, %v4623
    %v6460 = vpack.c.b16 %v4651, %v4624
    %v6461 = vpack.c.b16 %v4652, %v4625
    %v6462 = vpack.c.b16 %v4653, %v4626
    %v6463 = vpack.c.b16 %v4654, %v4627
    %v6464 = vpack.c.b16 %v4655, %v4628
    %v6465 = vpack.c.b16 %v4656, %v4629
    %v6466 = vpack.c.b16 %v4657, %v4630
    %v6467 = vpack.c.b16 %v4658, %v4631
    %v6468 = vpack.c.b16 %v4659, %v4632
    %v6469 = vpack.c.b16 %v4660, %v4633
    %v6470 = vpack.c.b16 %v4661, %v4634
    %v6471 = vpack.c.b16 %v4662, %v4635
    %v6472 = vpack.c.b16 %v4663, %v4636
    %v6473 = vpack.c.b16 %v4664, %v4637
    %v6474 = vpack.c.b16 %v4665, %v4638
    %v6475 = vpack.c.b16 %v4666, %v4639
    %v6476 = vpack.c.b16 %v4667, %v4640
    %v6477 = vpack.c.b16 %v4668, %v4641
    %v6478 = vpack.c.b16 %v4669, %v4642
    %v6479 = vpack.c.b16 %v4670, %v4643
    %v6480 = vpack.c.b16 %v4671, %v4644
    %v6481 = vpack.c.b16 %v4672, %v4645
    %v6482 = vpack.c.b16 %v4700, %v4673
    %v6483 = vpack.c.b16 %v4701, %v4674
    %v6484 = vpack.c.b16 %v4702, %v4675
    %v6485 = vpack.c.b16 %v4703, %v4676
    %v6486 = vpack.c.b16 %v4704, %v4677
    %v6487 = vpack.c.b16 %v4705, %v4678
    %v6488 = vpack.c.b16 %v4706, %v4679
    %v6489 = vpack.c.b16 %v4707, %v4680
    %v6490 = vpack.c.b16 %v4708, %v4681
    %v6491 = vpack.c.b16 %v4709, %v4682
    %v6492 = vpack.c.b16 %v4710, %v4683
    %v6493 = vpack.c.b16 %v4711, %v4684
    %v6494 = vpack.c.b16 %v4712, %v4685
    %v6495 = vpack.c.b16 %v4713, %v4686
    %v6496 = vpack.c.b16 %v4714, %v4687
    %v6497 = vpack.c.b16 %v4715, %v4688
    %v6498 = vpack.c.b16 %v4716, %v4689
    %v6499 = vpack.c.b16 %v4717, %v4690
    %v6500 = vpack.c.b16 %v4718, %v4691
    %v6501 = vpack.c.b16 %v4719, %v4692
    %v6502 = vpack.c.b16 %v4720, %v4693
    %v6503 = vpack.c.b16 %v4721, %v4694
    %v6504 = vpack.c.b16 %v4722, %v4695
    %v6505 = vpack.c.b16 %v4723, %v4696
    %v6506 = vpack.c.b16 %v4724, %v4697
    %v6507 = vpack.c.b16 %v4725, %v4698
    %v6508 = vpack.c.b16 %v4726, %v4699
    %v6509 = vpack.c.b16 %v4754, %v4727
    %v6510 = vpack.c.b16 %v4755, %v4728
    %v6511 = vpack.c.b16 %v4756, %v4729
    %v6512 = vpack.c.b16 %v4757, %v4730
    %v6513 = vpack.c.b16 %v4758, %v4731
    %v6514 = vpack.c.b16 %v4759, %v4732
    %v6515 = vpack.c.b16 %v4760, %v4733
    %v6516 = vpack.c.b16 %v4761, %v4734
    %v6517 = vpack.c.b16 %v4762, %v4735
    %v6518 = vpack.c.b16 %v4763, %v4736
    %v6519 = vpack.c.b16 %v4764, %v4737
    %v6520 = vpack.c.b16 %v4765, %v4738
    %v6521 = vpack.c.b16 %v4766, %v4739
    %v6522 = vpack.c.b16 %v4767, %v4740
    %v6523 = vpack.c.b16 %v4768, %v4741
    %v6524 = vpack.c.b16 %v4769, %v4742
    %v6525 = vpack.c.b16 %v4770, %v4743
    %v6526 = vpack.c.b16 %v4771, %v4744
    %v6527 = vpack.c.b16 %v4772, %v4745
    %v6528 = vpack.c.b16 %v4773, %v4746
    %v6529 = vpack.c.b16 %v4774, %v4747
    %v6530 = vpack.c.b16 %v4775, %v4748
    %v6531 = vpack.c.b16 %v4776, %v4749
    %v6532 = vpack.c.b16 %v4777, %v4750
    %v6533 = vpack.c.b16 %v4778, %v4751
    %v6534 = vpack.c.b16 %v4779, %v4752
    %v6535 = vpack.c.b16 %v4780, %v4753
    %v6536 = vpack.c.b16 %v4808, %v4781
    %v6537 = vpack.c.b16 %v4809, %v4782
    %v6538 = vpack.c.b16 %v4810, %v4783
    %v6539 = vpack.c.b16 %v4811, %v4784
    %v6540 = vpack.c.b16 %v4812, %v4785
    %v6541 = vpack.c.b16 %v4813, %v4786
    %v6542 = vpack.c.b16 %v4814, %v4787
    %v6543 = vpack.c.b16 %v4815, %v4788
    %v6544 = vpack.c.b16 %v4816, %v4789
    %v6545 = vpack.c.b16 %v4817, %v4790
    %v6546 = vpack.c.b16 %v4818, %v4791
    %v6547 = vpack.c.b16 %v4819, %v4792
    %v6548 = vpack.c.b16 %v4820, %v4793
    %v6549 = vpack.c.b16 %v4821, %v4794
    %v6550 = vpack.c.b16 %v4822, %v4795
    %v6551 = vpack.c.b16 %v4823, %v4796
    %v6552 = vpack.c.b16 %v4824, %v4797
    %v6553 = vpack.c.b16 %v4825, %v4798
    %v6554 = vpack.c.b16 %v4826, %v4799
    %v6555 = vpack.c.b16 %v4827, %v4800
    %v6556 = vpack.c.b16 %v4828, %v4801
    %v6557 = vpack.c.b16 %v4829, %v4802
    %v6558 = vpack.c.b16 %v4830, %v4803
    %v6559 = vpack.c.b16 %v4831, %v4804
    %v6560 = vpack.c.b16 %v4832, %v4805
    %v6561 = vpack.c.b16 %v4833, %v4806
    %v6562 = vpack.c.b16 %v4834, %v4807
    %v6563 = vpack.c.b16 %v4862, %v4835
    %v6564 = vpack.c.b16 %v4863, %v4836
    %v6565 = vpack.c.b16 %v4864, %v4837
    %v6566 = vpack.c.b16 %v4865, %v4838
    %v6567 = vpack.c.b16 %v4866, %v4839
    %v6568 = vpack.c.b16 %v4867, %v4840
    %v6569 = vpack.c.b16 %v4868, %v4841
    %v6570 = vpack.c.b16 %v4869, %v4842
    %v6571 = vpack.c.b16 %v4870, %v4843
    %v6572 = vpack.c.b16 %v4871, %v4844
    %v6573 = vpack.c.b16 %v4872, %v4845
    %v6574 = vpack.c.b16 %v4873, %v4846
    %v6575 = vpack.c.b16 %v4874, %v4847
    %v6576 = vpack.c.b16 %v4875, %v4848
    %v6577 = vpack.c.b16 %v4876, %v4849
    %v6578 = vpack.c.b16 %v4877, %v4850
    %v6579 = vpack.c.b16 %v4878, %v4851
    %v6580 = vpack.c.b16 %v4879, %v4852
    %v6581 = vpack.c.b16 %v4880, %v4853
    %v6582 = vpack.c.b16 %v4881, %v4854
    %v6583 = vpack.c.b16 %v4882, %v4855
    %v6584 = vpack.c.b16 %v4883, %v4856
    %v6585 = vpack.c.b16 %v4884, %v4857
    %v6586 = vpack.c.b16 %v4885, %v4858
    %v6587 = vpack.c.b16 %v4886, %v4859
    %v6588 = vpack.c.b16 %v4887, %v4860
    %v6589 = vpack.c.b16 %v4888, %v4861
    %v6590 = vpack.c.b16 %v4916, %v4889
    %v6591 = vpack.c.b16 %v4917, %v4890
    %v6592 = vpack.c.b16 %v4918, %v4891
    %v6593 = vpack.c.b16 %v4919, %v4892
    %v6594 = vpack.c.b16 %v4920, %v4893
    %v6595 = vpack.c.b16 %v4921, %v4894
    %v6596 = vpack.c.b16 %v4922, %v4895
    %v6597 = vpack.c.b16 %v4923, %v4896
    %v6598 = vpack.c.b16 %v4924, %v4897
    %v6599 = vpack.c.b16 %v4925, %v4898
    %v6600 = vpack.c.b16 %v4926, %v4899
    %v6601 = vpack.c.b16 %v4927, %v4900
    %v6602 = vpack.c.b16 %v4928, %v4901
    %v6603 = vpack.c.b16 %v4929, %v4902
    %v6604 = vpack.c.b16 %v4930, %v4903
    %v6605 = vpack.c.b16 %v4931, %v4904
    %v6606 = vpack.c.b16 %v4932, %v4905
    %v6607 = vpack.c.b16 %v4933, %v4906
    %v6608 = vpack.c.b16 %v4934, %v4907
    %v6609 = vpack.c.b16 %v4935, %v4908
    %v6610 = vpack.c.b16 %v4936, %v4909
    %v6611 = vpack.c.b16 %v4937, %v4910
    %v6612 = vpack.c.b16 %v4938, %v4911
    %v6613 = vpack.c.b16 %v4939, %v4912
    %v6614 = vpack.c.b16 %v4940, %v4913
    %v6615 = vpack.c.b16 %v4941, %v4914
    %v6616 = vpack.c.b16 %v4942, %v4915
    %v6617 = vpack.c.b16 %v4970, %v4943
    %v6618 = vpack.c.b16 %v4971, %v4944
    %v6619 = vpack.c.b16 %v4972, %v4945
    %v6620 = vpack.c.b16 %v4973, %v4946
    %v6621 = vpack.c.b16 %v4974, %v4947
    %v6622 = vpack.c.b16 %v4975, %v4948
    %v6623 = vpack.c.b16 %v4976, %v4949
    %v6624 = vpack.c.b16 %v4977, %v4950
    %v6625 = vpack.c.b16 %v4978, %v4951
    %v6626 = vpack.c.b16 %v4979, %v4952
    %v6627 = vpack.c.b16 %v4980, %v4953
    %v6628 = vpack.c.b16 %v4981, %v4954
    %v6629 = vpack.c.b16 %v4982, %v4955
    %v6630 = vpack.c.b16 %v4983, %v4956
    %v6631 = vpack.c.b16 %v4984, %v4957
    %v6632 = vpack.c.b16 %v4985, %v4958
    %v6633 = vpack.c.b16 %v4986, %v4959
    %v6634 = vpack.c.b16 %v4987, %v4960
    %v6635 = vpack.c.b16 %v4988, %v4961
    %v6636 = vpack.c.b16 %v4989, %v4962
    %v6637 = vpack.c.b16 %v4990, %v4963
    %v6638 = vpack.c.b16 %v4991, %v4964
    %v6639 = vpack.c.b16 %v4992, %v4965
    %v6640 = vpack.c.b16 %v4993, %v4966
    %v6641 = vpack.c.b16 %v4994, %v4967
    %v6642 = vpack.c.b16 %v4995, %v4968
    %v6643 = vpack.c.b16 %v4996, %v4969
    %v6644 = vpack.c.b16 %v5024, %v4997
    %v6645 = vpack.c.b16 %v5025, %v4998
    %v6646 = vpack.c.b16 %v5026, %v4999
    %v6647 = vpack.c.b16 %v5027, %v5000
    %v6648 = vpack.c.b16 %v5028, %v5001
    %v6649 = vpack.c.b16 %v5029, %v5002
    %v6650 = vpack.c.b16 %v5030, %v5003
    %v6651 = vpack.c.b16 %v5031, %v5004
    %v6652 = vpack.c.b16 %v5032, %v5005
    %v6653 = vpack.c.b16 %v5033, %v5006
    %v6654 = vpack.c.b16 %v5034, %v5007
    %v6655 = vpack.c.b16 %v5035, %v5008
    %v6656 = vpack.c.b16 %v5036, %v5009
    %v6657 = vpack.c.b16 %v5037, %v5010
    %v6658 = vpack.c.b16 %v5038, %v5011
    %v6659 = vpack.c.b16 %v5039, %v5012
    %v6660 = vpack.c.b16 %v5040, %v5013
    %v6661 = vpack.c.b16 %v5041, %v5014
    %v6662 = vpack.c.b16 %v5042, %v5015
    %v6663 = vpack.c.b16 %v5043, %v5016
    %v6664 = vpack.c.b16 %v5044, %v5017
    %v6665 = vpack.c.b16 %v5045, %v5018
    %v6666 = vpack.c.b16 %v5046, %v5019
    %v6667 = vpack.c.b16 %v5047, %v5020
    %v6668 = vpack.c.b16 %v5048, %v5021
    %v6669 = vpack.c.b16 %v5049, %v5022
    %v6670 = vpack.c.b16 %v5050, %v5023
    %v6671 = vpack.c.b16 %v5078, %v5051
    %v6672 = vpack.c.b16 %v5079, %v5052
    %v6673 = vpack.c.b16 %v5080, %v5053
    %v6674 = vpack.c.b16 %v5081, %v5054
    %v6675 = vpack.c.b16 %v5082, %v5055
    %v6676 = vpack.c.b16 %v5083, %v5056
    %v6677 = vpack.c.b16 %v5084, %v5057
    %v6678 = vpack.c.b16 %v5085, %v5058
    %v6679 = vpack.c.b16 %v5086, %v5059
    %v6680 = vpack.c.b16 %v5087, %v5060
    %v6681 = vpack.c.b16 %v5088, %v5061
    %v6682 = vpack.c.b16 %v5089, %v5062
    %v6683 = vpack.c.b16 %v5090, %v5063
    %v6684 = vpack.c.b16 %v5091, %v5064
    %v6685 = vpack.c.b16 %v5092, %v5065
    %v6686 = vpack.c.b16 %v5093, %v5066
    %v6687 = vpack.c.b16 %v5094, %v5067
    %v6688 = vpack.c.b16 %v5095, %v5068
    %v6689 = vpack.c.b16 %v5096, %v5069
    %v6690 = vpack.c.b16 %v5097, %v5070
    %v6691 = vpack.c.b16 %v5098, %v5071
    %v6692 = vpack.c.b16 %v5099, %v5072
    %v6693 = vpack.c.b16 %v5100, %v5073
    %v6694 = vpack.c.b16 %v5101, %v5074
    %v6695 = vpack.c.b16 %v5102, %v5075
    %v6696 = vpack.c.b16 %v5103, %v5076
    %v6697 = vpack.c.b16 %v5104, %v5077
    %v6698 = vpack.c.b16 %v5132, %v5105
    %v6699 = vpack.c.b16 %v5133, %v5106
    %v6700 = vpack.c.b16 %v5134, %v5107
    %v6701 = vpack.c.b16 %v5135, %v5108
    %v6702 = vpack.c.b16 %v5136, %v5109
    %v6703 = vpack.c.b16 %v5137, %v5110
    %v6704 = vpack.c.b16 %v5138, %v5111
    %v6705 = vpack.c.b16 %v5139, %v5112
    %v6706 = vpack.c.b16 %v5140, %v5113
    %v6707 = vpack.c.b16 %v5141, %v5114
    %v6708 = vpack.c.b16 %v5142, %v5115
    %v6709 = vpack.c.b16 %v5143, %v5116
    %v6710 = vpack.c.b16 %v5144, %v5117
    %v6711 = vpack.c.b16 %v5145, %v5118
    %v6712 = vpack.c.b16 %v5146, %v5119
    %v6713 = vpack.c.b16 %v5147, %v5120
    %v6714 = vpack.c.b16 %v5148, %v5121
    %v6715 = vpack.c.b16 %v5149, %v5122
    %v6716 = vpack.c.b16 %v5150, %v5123
    %v6717 = vpack.c.b16 %v5151, %v5124
    %v6718 = vpack.c.b16 %v5152, %v5125
    %v6719 = vpack.c.b16 %v5153, %v5126
    %v6720 = vpack.c.b16 %v5154, %v5127
    %v6721 = vpack.c.b16 %v5155, %v5128
    %v6722 = vpack.c.b16 %v5156, %v5129
    %v6723 = vpack.c.b16 %v5157, %v5130
    %v6724 = vpack.c.b16 %v5158, %v5131
    %v6725 = vpack.c.b16 %v5186, %v5159
    %v6726 = vpack.c.b16 %v5187, %v5160
    %v6727 = vpack.c.b16 %v5188, %v5161
    %v6728 = vpack.c.b16 %v5189, %v5162
    %v6729 = vpack.c.b16 %v5190, %v5163
    %v6730 = vpack.c.b16 %v5191, %v5164
    %v6731 = vpack.c.b16 %v5192, %v5165
    %v6732 = vpack.c.b16 %v5193, %v5166
    %v6733 = vpack.c.b16 %v5194, %v5167
    %v6734 = vpack.c.b16 %v5195, %v5168
    %v6735 = vpack.c.b16 %v5196, %v5169
    %v6736 = vpack.c.b16 %v5197, %v5170
    %v6737 = vpack.c.b16 %v5198, %v5171
    %v6738 = vpack.c.b16 %v5199, %v5172
    %v6739 = vpack.c.b16 %v5200, %v5173
    %v6740 = vpack.c.b16 %v5201, %v5174
    %v6741 = vpack.c.b16 %v5202, %v5175
    %v6742 = vpack.c.b16 %v5203, %v5176
    %v6743 = vpack.c.b16 %v5204, %v5177
    %v6744 = vpack.c.b16 %v5205, %v5178
    %v6745 = vpack.c.b16 %v5206, %v5179
    %v6746 = vpack.c.b16 %v5207, %v5180
    %v6747 = vpack.c.b16 %v5208, %v5181
    %v6748 = vpack.c.b16 %v5209, %v5182
    %v6749 = vpack.c.b16 %v5210, %v5183
    %v6750 = vpack.c.b16 %v5211, %v5184
    %v6751 = vpack.c.b16 %v5212, %v5185
    %v6752 = vpack.c.b16 %v5240, %v5213
    %v6753 = vpack.c.b16 %v5241, %v5214
    %v6754 = vpack.c.b16 %v5242, %v5215
    %v6755 = vpack.c.b16 %v5243, %v5216
    %v6756 = vpack.c.b16 %v5244, %v5217
    %v6757 = vpack.c.b16 %v5245, %v5218
    %v6758 = vpack.c.b16 %v5246, %v5219
    %v6759 = vpack.c.b16 %v5247, %v5220
    %v6760 = vpack.c.b16 %v5248, %v5221
    %v6761 = vpack.c.b16 %v5249, %v5222
    %v6762 = vpack.c.b16 %v5250, %v5223
    %v6763 = vpack.c.b16 %v5251, %v5224
    %v6764 = vpack.c.b16 %v5252, %v5225
    %v6765 = vpack.c.b16 %v5253, %v5226
    %v6766 = vpack.c.b16 %v5254, %v5227
    %v6767 = vpack.c.b16 %v5255, %v5228
    %v6768 = vpack.c.b16 %v5256, %v5229
    %v6769 = vpack.c.b16 %v5257, %v5230
    %v6770 = vpack.c.b16 %v5258, %v5231
    %v6771 = vpack.c.b16 %v5259, %v5232
    %v6772 = vpack.c.b16 %v5260, %v5233
    %v6773 = vpack.c.b16 %v5261, %v5234
    %v6774 = vpack.c.b16 %v5262, %v5235
    %v6775 = vpack.c.b16 %v5263, %v5236
    %v6776 = vpack.c.b16 %v5264, %v5237
    %v6777 = vpack.c.b16 %v5265, %v5238
    %v6778 = vpack.c.b16 %v5266, %v5239
    %v6779 = vpack.c.b16 %v5294, %v5267
    %v6780 = vpack.c.b16 %v5295, %v5268
    %v6781 = vpack.c.b16 %v5296, %v5269
    %v6782 = vpack.c.b16 %v5297, %v5270
    %v6783 = vpack.c.b16 %v5298, %v5271
    %v6784 = vpack.c.b16 %v5299, %v5272
    %v6785 = vpack.c.b16 %v5300, %v5273
    %v6786 = vpack.c.b16 %v5301, %v5274
    %v6787 = vpack.c.b16 %v5302, %v5275
    %v6788 = vpack.c.b16 %v5303, %v5276
    %v6789 = vpack.c.b16 %v5304, %v5277
    %v6790 = vpack.c.b16 %v5305, %v5278
    %v6791 = vpack.c.b16 %v5306, %v5279
    %v6792 = vpack.c.b16 %v5307, %v5280
    %v6793 = vpack.c.b16 %v5308, %v5281
    %v6794 = vpack.c.b16 %v5309, %v5282
    %v6795 = vpack.c.b16 %v5310, %v5283
    %v6796 = vpack.c.b16 %v5311, %v5284
    %v6797 = vpack.c.b16 %v5312, %v5285
    %v6798 = vpack.c.b16 %v5313, %v5286
    %v6799 = vpack.c.b16 %v5314, %v5287
    %v6800 = vpack.c.b16 %v5315, %v5288
    %v6801 = vpack.c.b16 %v5316, %v5289
    %v6802 = vpack.c.b16 %v5317, %v5290
    %v6803 = vpack.c.b16 %v5318, %v5291
    %v6804 = vpack.c.b16 %v5319, %v5292
    %v6805 = vpack.c.b16 %v5320, %v5293
    %v6806 = vpack.c.b16 %v5348, %v5321
    %v6807 = vpack.c.b16 %v5349, %v5322
    %v6808 = vpack.c.b16 %v5350, %v5323
    %v6809 = vpack.c.b16 %v5351, %v5324
    %v6810 = vpack.c.b16 %v5352, %v5325
    %v6811 = vpack.c.b16 %v5353, %v5326
    %v6812 = vpack.c.b16 %v5354, %v5327
    %v6813 = vpack.c.b16 %v5355, %v5328
    %v6814 = vpack.c.b16 %v5356, %v5329
    %v6815 = vpack.c.b16 %v5357, %v5330
    %v6816 = vpack.c.b16 %v5358, %v5331
    %v6817 = vpack.c.b16 %v5359, %v5332
    %v6818 = vpack.c.b16 %v5360, %v5333
    %v6819 = vpack.c.b16 %v5361, %v5334
    %v6820 = vpack.c.b16 %v5362, %v5335
    %v6821 = vpack.c.b16 %v5363, %v5336
    %v6822 = vpack.c.b16 %v5364, %v5337
    %v6823 = vpack.c.b16 %v5365, %v5338
    %v6824 = vpack.c.b16 %v5366, %v5339
    %v6825 = vpack.c.b16 %v5367, %v5340
    %v6826 = vpack.c.b16 %v5368, %v5341
    %v6827 = vpack.c.b16 %v5369, %v5342
    %v6828 = vpack.c.b16 %v5370, %v5343
    %v6829 = vpack.c.b16 %v5371, %v5344
    %v6830 = vpack.c.b16 %v5372, %v5345
    %v6831 = vpack.c.b16 %v5373, %v5346
    %v6832 = vpack.c.b16 %v5374, %v5347
    %v6833 = vpack.c.b16 %v5402, %v5375
    %v6834 = vpack.c.b16 %v5403, %v5376
    %v6835 = vpack.c.b16 %v5404, %v5377
    %v6836 = vpack.c.b16 %v5405, %v5378
    %v6837 = vpack.c.b16 %v5406, %v5379
    %v6838 = vpack.c.b16 %v5407, %v5380
    %v6839 = vpack.c.b16 %v5408, %v5381
    %v6840 = vpack.c.b16 %v5409, %v5382
    %v6841 = vpack.c.b16 %v5410, %v5383
    %v6842 = vpack.c.b16 %v5411, %v5384
    %v6843 = vpack.c.b16 %v5412, %v5385
    %v6844 = vpack.c.b16 %v5413, %v5386
    %v6845 = vpack.c.b16 %v5414, %v5387
    %v6846 = vpack.c.b16 %v5415, %v5388
    %v6847 = vpack.c.b16 %v5416, %v5389
    %v6848 = vpack.c.b16 %v5417, %v5390
    %v6849 = vpack.c.b16 %v5418, %v5391
    %v6850 = vpack.c.b16 %v5419, %v5392
    %v6851 = vpack.c.b16 %v5420, %v5393
    %v6852 = vpack.c.b16 %v5421, %v5394
    %v6853 = vpack.c.b16 %v5422, %v5395
    %v6854 = vpack.c.b16 %v5423, %v5396
    %v6855 = vpack.c.b16 %v5424, %v5397
    %v6856 = vpack.c.b16 %v5425, %v5398
    %v6857 = vpack.c.b16 %v5426, %v5399
    %v6858 = vpack.c.b16 %v5427, %v5400
    %v6859 = vpack.c.b16 %v5428, %v5401
    %v6860 = vpack.c.b16 %v5456, %v5429
    %v6861 = vpack.c.b16 %v5457, %v5430
    %v6862 = vpack.c.b16 %v5458, %v5431
    %v6863 = vpack.c.b16 %v5459, %v5432
    %v6864 = vpack.c.b16 %v5460, %v5433
    %v6865 = vpack.c.b16 %v5461, %v5434
    %v6866 = vpack.c.b16 %v5462, %v5435
    %v6867 = vpack.c.b16 %v5463, %v5436
    %v6868 = vpack.c.b16 %v5464, %v5437
    %v6869 = vpack.c.b16 %v5465, %v5438
    %v6870 = vpack.c.b16 %v5466, %v5439
    %v6871 = vpack.c.b16 %v5467, %v5440
    %v6872 = vpack.c.b16 %v5468, %v5441
    %v6873 = vpack.c.b16 %v5469, %v5442
    %v6874 = vpack.c.b16 %v5470, %v5443
    %v6875 = vpack.c.b16 %v5471, %v5444
    %v6876 = vpack.c.b16 %v5472, %v5445
    %v6877 = vpack.c.b16 %v5473, %v5446
    %v6878 = vpack.c.b16 %v5474, %v5447
    %v6879 = vpack.c.b16 %v5475, %v5448
    %v6880 = vpack.c.b16 %v5476, %v5449
    %v6881 = vpack.c.b16 %v5477, %v5450
    %v6882 = vpack.c.b16 %v5478, %v5451
    %v6883 = vpack.c.b16 %v5479, %v5452
    %v6884 = vpack.c.b16 %v5480, %v5453
    %v6885 = vpack.c.b16 %v5481, %v5454
    %v6886 = vpack.c.b16 %v5482, %v5455
    %v6887 = vpack.c.b16 %v5510, %v5483
    %v6888 = vpack.c.b16 %v5511, %v5484
    %v6889 = vpack.c.b16 %v5512, %v5485
    %v6890 = vpack.c.b16 %v5513, %v5486
    %v6891 = vpack.c.b16 %v5514, %v5487
    %v6892 = vpack.c.b16 %v5515, %v5488
    %v6893 = vpack.c.b16 %v5516, %v5489
    %v6894 = vpack.c.b16 %v5517, %v5490
    %v6895 = vpack.c.b16 %v5518, %v5491
    %v6896 = vpack.c.b16 %v5519, %v5492
    %v6897 = vpack.c.b16 %v5520, %v5493
    %v6898 = vpack.c.b16 %v5521, %v5494
    %v6899 = vpack.c.b16 %v5522, %v5495
    %v6900 = vpack.c.b16 %v5523, %v5496
    %v6901 = vpack.c.b16 %v5524, %v5497
    %v6902 = vpack.c.b16 %v5525, %v5498
    %v6903 = vpack.c.b16 %v5526, %v5499
    %v6904 = vpack.c.b16 %v5527, %v5500
    %v6905 = vpack.c.b16 %v5528, %v5501
    %v6906 = vpack.c.b16 %v5529, %v5502
    %v6907 = vpack.c.b16 %v5530, %v5503
    %v6908 = vpack.c.b16 %v5531, %v5504
    %v6909 = vpack.c.b16 %v5532, %v5505
    %v6910 = vpack.c.b16 %v5533, %v5506
    %v6911 = vpack.c.b16 %v5534, %v5507
    %v6912 = vpack.c.b16 %v5535, %v5508
    %v6913 = vpack.c.b16 %v5536, %v5509
    %v6914 = vpack.c.b16 %v5564, %v5537
    %v6915 = vpack.c.b16 %v5565, %v5538
    %v6916 = vpack.c.b16 %v5566, %v5539
    %v6917 = vpack.c.b16 %v5567, %v5540
    %v6918 = vpack.c.b16 %v5568, %v5541
    %v6919 = vpack.c.b16 %v5569, %v5542
    %v6920 = vpack.c.b16 %v5570, %v5543
    %v6921 = vpack.c.b16 %v5571, %v5544
    %v6922 = vpack.c.b16 %v5572, %v5545
    %v6923 = vpack.c.b16 %v5573, %v5546
    %v6924 = vpack.c.b16 %v5574, %v5547
    %v6925 = vpack.c.b16 %v5575, %v5548
    %v6926 = vpack.c.b16 %v5576, %v5549
    %v6927 = vpack.c.b16 %v5577, %v5550
    %v6928 = vpack.c.b16 %v5578, %v5551
    %v6929 = vpack.c.b16 %v5579, %v5552
    %v6930 = vpack.c.b16 %v5580, %v5553
    %v6931 = vpack.c.b16 %v5581, %v5554
    %v6932 = vpack.c.b16 %v5582, %v5555
    %v6933 = vpack.c.b16 %v5583, %v5556
    %v6934 = vpack.c.b16 %v5584, %v5557
    %v6935 = vpack.c.b16 %v5585, %v5558
    %v6936 = vpack.c.b16 %v5586, %v5559
    %v6937 = vpack.c.b16 %v5587, %v5560
    %v6938 = vpack.c.b16 %v5588, %v5561
    %v6939 = vpack.c.b16 %v5589, %v5562
    %v6940 = vpack.c.b16 %v5590, %v5563
    %v6941 = vpack.c.b16 %v5618, %v5591
    %v6942 = vpack.c.b16 %v5619, %v5592
    %v6943 = vpack.c.b16 %v5620, %v5593
    %v6944 = vpack.c.b16 %v5621, %v5594
    %v6945 = vpack.c.b16 %v5622, %v5595
    %v6946 = vpack.c.b16 %v5623, %v5596
    %v6947 = vpack.c.b16 %v5624, %v5597
    %v6948 = vpack.c.b16 %v5625, %v5598
    %v6949 = vpack.c.b16 %v5626, %v5599
    %v6950 = vpack.c.b16 %v5627, %v5600
    %v6951 = vpack.c.b16 %v5628, %v5601
    %v6952 = vpack.c.b16 %v5629, %v5602
    %v6953 = vpack.c.b16 %v5630, %v5603
    %v6954 = vpack.c.b16 %v5631, %v5604
    %v6955 = vpack.c.b16 %v5632, %v5605
    %v6956 = vpack.c.b16 %v5633, %v5606
    %v6957 = vpack.c.b16 %v5634, %v5607
    %v6958 = vpack.c.b16 %v5635, %v5608
    %v6959 = vpack.c.b16 %v5636, %v5609
    %v6960 = vpack.c.b16 %v5637, %v5610
    %v6961 = vpack.c.b16 %v5638, %v5611
    %v6962 = vpack.c.b16 %v5639, %v5612
    %v6963 = vpack.c.b16 %v5640, %v5613
    %v6964 = vpack.c.b16 %v5641, %v5614
    %v6965 = vpack.c.b16 %v5642, %v5615
    %v6966 = vpack.c.b16 %v5643, %v5616
    %v6967 = vpack.c.b16 %v5644, %v5617
    %vm8291 = vcmask 130048
    %v8293 = vsel %vm8291, %v111, 0
    %8295 = vmatprep.subr.bf16.mxu0 %v5835
    %8296 = vmatpush1.bf16.msra.mxu0 %v5834
    %8297 = vmatprep.subr.bf16.mxu0 %v5808
    %8298 = vmatpush1.bf16.msra.mxu0 %v5807
    %8299 = vmatprep.subr.bf16.mxu0 %v5781
    %8300 = vmatpush1.bf16.msra.mxu0 %v5780
    %8301 = vmatprep.subr.bf16.mxu0 %v5754
    %8302 = vmatpush1.bf16.msra.mxu0 %v5753
    %8303 = vmatprep.subr.bf16.mxu0 %v5727
    %8304 = vmatpush1.bf16.msra.mxu0 %v5726
    %8305 = vmatprep.subr.bf16.mxu0 %v5700
    %8306 = vmatpush1.bf16.msra.mxu0 %v5699
    %8307 = vmatprep.subr.bf16.mxu0 %v5673
    %8308 = vmatpush1.bf16.msra.mxu0 %v5672
    %8309 = vmatprep.subr.bf16.mxu0 %v5646
    %8310 = vmatpush1.bf16.msra.mxu0 %v5645
    %8311 = vmatprep.subr.bf16.mxu0 %v6051
    %8312 = vmatpush2.bf16.msra.mxu0 %v6050
    %8313 = vmatprep.subr.bf16.mxu0 %v6024
    %8314 = vmatpush2.bf16.msra.mxu0 %v6023
    %8315 = vmatprep.subr.bf16.mxu0 %v5997
    %8316 = vmatpush2.bf16.msra.mxu0 %v5996
    %8317 = vmatprep.subr.bf16.mxu0 %v5970
    %8318 = vmatpush2.bf16.msra.mxu0 %v5969
    %8319 = vmatprep.subr.bf16.mxu0 %v5943
    %8320 = vmatpush2.bf16.msra.mxu0 %v5942
    %8321 = vmatprep.subr.bf16.mxu0 %v5916
    %8322 = vmatpush2.bf16.msra.mxu0 %v5915
    %8323 = vmatprep.subr.bf16.mxu0 %v5889
    %8324 = vmatpush2.bf16.msra.mxu0 %v5888
    %8325 = vmatprep.subr.bf16.mxu0 %v5862
    %8326 = vmatpush2.bf16.msra.mxu0 %v5861
    %8327 = vmatprep.mubr.bf16.mxu0 %v106
    %8328 = vmatmul.mubr.bf16.gmra.mxu0 %v105
    %v8329 = vpop.f32.mrf.mxu0
    %v8330 = vadd.f32 %v1495, %v8329
    %v8331 = vpop.f32.mrf.mxu0
    %v8332 = vadd.f32 %v1499, %v8331
    %v8333 = vpop.f32.mrf.mxu0
    %v8334 = vadd.f32 %v1495, %v8333
    %v8335 = vpop.f32.mrf.mxu0
    %v8336 = vadd.f32 %v1499, %v8335
    %8337 = vdwg.mxu0
    %8338 = vmatprep.subr.bf16.mxu0 %v6267
    %8339 = vmatpush1.bf16.msra.mxu0 %v6266
    %8340 = vmatprep.subr.bf16.mxu0 %v6240
    %8341 = vmatpush1.bf16.msra.mxu0 %v6239
    %8342 = vmatprep.subr.bf16.mxu0 %v6213
    %8343 = vmatpush1.bf16.msra.mxu0 %v6212
    %8344 = vmatprep.subr.bf16.mxu0 %v6186
    %8345 = vmatpush1.bf16.msra.mxu0 %v6185
    %8346 = vmatprep.subr.bf16.mxu0 %v6159
    %8347 = vmatpush1.bf16.msra.mxu0 %v6158
    %8348 = vmatprep.subr.bf16.mxu0 %v6132
    %8349 = vmatpush1.bf16.msra.mxu0 %v6131
    %8350 = vmatprep.subr.bf16.mxu0 %v6105
    %8351 = vmatpush1.bf16.msra.mxu0 %v6104
    %8352 = vmatprep.subr.bf16.mxu0 %v6078
    %8353 = vmatpush1.bf16.msra.mxu0 %v6077
    %8354 = vmatprep.subr.bf16.mxu0 %v6483
    %8355 = vmatpush2.bf16.msra.mxu0 %v6482
    %8356 = vmatprep.subr.bf16.mxu0 %v6456
    %8357 = vmatpush2.bf16.msra.mxu0 %v6455
    %8358 = vmatprep.subr.bf16.mxu0 %v6429
    %8359 = vmatpush2.bf16.msra.mxu0 %v6428
    %8360 = vmatprep.subr.bf16.mxu0 %v6402
    %8361 = vmatpush2.bf16.msra.mxu0 %v6401
    %8362 = vmatprep.subr.bf16.mxu0 %v6375
    %8363 = vmatpush2.bf16.msra.mxu0 %v6374
    %8364 = vmatprep.subr.bf16.mxu0 %v6348
    %8365 = vmatpush2.bf16.msra.mxu0 %v6347
    %8366 = vmatprep.subr.bf16.mxu0 %v6321
    %8367 = vmatpush2.bf16.msra.mxu0 %v6320
    %8368 = vmatprep.subr.bf16.mxu0 %v6294
    %8369 = vmatpush2.bf16.msra.mxu0 %v6293
    %8370 = vmatprep.mubr.bf16.mxu0 %v108
    %8371 = vmatmul.mubr.bf16.gmra.mxu0 %v107
    %v8372 = vpop.f32.mrf.mxu0
    %v8373 = vadd.f32 %v8330, %v8372
    %v8374 = vpop.f32.mrf.mxu0
    %v8375 = vadd.f32 %v8332, %v8374
    %v8376 = vpop.f32.mrf.mxu0
    %v8377 = vadd.f32 %v8334, %v8376
    %v8378 = vpop.f32.mrf.mxu0
    %v8379 = vadd.f32 %v8336, %v8378
    %8380 = vdwg.mxu0
    %8381 = vmatprep.subr.bf16.mxu0 %v6699
    %8382 = vmatpush1.bf16.msra.mxu0 %v6698
    %8383 = vmatprep.subr.bf16.mxu0 %v6672
    %8384 = vmatpush1.bf16.msra.mxu0 %v6671
    %8385 = vmatprep.subr.bf16.mxu0 %v6645
    %8386 = vmatpush1.bf16.msra.mxu0 %v6644
    %8387 = vmatprep.subr.bf16.mxu0 %v6618
    %8388 = vmatpush1.bf16.msra.mxu0 %v6617
    %8389 = vmatprep.subr.bf16.mxu0 %v6591
    %8390 = vmatpush1.bf16.msra.mxu0 %v6590
    %8391 = vmatprep.subr.bf16.mxu0 %v6564
    %8392 = vmatpush1.bf16.msra.mxu0 %v6563
    %8393 = vmatprep.subr.bf16.mxu0 %v6537
    %8394 = vmatpush1.bf16.msra.mxu0 %v6536
    %8395 = vmatprep.subr.bf16.mxu0 %v6510
    %8396 = vmatpush1.bf16.msra.mxu0 %v6509
    %8397 = vmatprep.subr.bf16.mxu0 %v6915
    %8398 = vmatpush2.bf16.msra.mxu0 %v6914
    %8399 = vmatprep.subr.bf16.mxu0 %v6888
    %8400 = vmatpush2.bf16.msra.mxu0 %v6887
    %8401 = vmatprep.subr.bf16.mxu0 %v6861
    %8402 = vmatpush2.bf16.msra.mxu0 %v6860
    %8403 = vmatprep.subr.bf16.mxu0 %v6834
    %8404 = vmatpush2.bf16.msra.mxu0 %v6833
    %8405 = vmatprep.subr.bf16.mxu0 %v6807
    %8406 = vmatpush2.bf16.msra.mxu0 %v6806
    %8407 = vmatprep.subr.bf16.mxu0 %v6780
    %8408 = vmatpush2.bf16.msra.mxu0 %v6779
    %8409 = vmatprep.subr.bf16.mxu0 %v6753
    %8410 = vmatpush2.bf16.msra.mxu0 %v6752
    %8411 = vmatprep.subr.bf16.mxu0 %v6726
    %8412 = vmatpush2.bf16.msra.mxu0 %v6725
    %8413 = vmatprep.mubr.bf16.mxu0 %v110
    %8414 = vmatmul.mubr.bf16.gmra.mxu0 %v109
    %v8415 = vpop.f32.mrf.mxu0
    %v8416 = vadd.f32 %v8373, %v8415
    %v8417 = vpop.f32.mrf.mxu0
    %v8418 = vadd.f32 %v8375, %v8417
    %v8419 = vpop.f32.mrf.mxu0
    %v8420 = vadd.f32 %v8377, %v8419
    %v8421 = vpop.f32.mrf.mxu0
    %v8422 = vadd.f32 %v8379, %v8421
    %8423 = vdwg.mxu0
    %8424 = vmatprep.subr.bf16.mxu0 0
    %8425 = vmatpush1.bf16.msra.mxu0 0
    %8426 = vmatprep.subr.bf16.mxu0 0
    %8427 = vmatpush1.bf16.msra.mxu0 0
    %8428 = vmatprep.subr.bf16.mxu0 0
    %8429 = vmatpush1.bf16.msra.mxu0 0
    %8430 = vmatprep.subr.bf16.mxu0 0
    %8431 = vmatpush1.bf16.msra.mxu0 0
    %8432 = vmatprep.subr.bf16.mxu0 0
    %8433 = vmatpush1.bf16.msra.mxu0 0
    %8434 = vmatprep.subr.bf16.mxu0 0
    %8435 = vmatpush1.bf16.msra.mxu0 0
    %8436 = vmatprep.subr.bf16.mxu0 0
    %8437 = vmatpush1.bf16.msra.mxu0 0
    %8438 = vmatprep.subr.bf16.mxu0 %v6942
    %8439 = vmatpush1.bf16.msra.mxu0 %v6941
    %8440 = vmatprep.subr.bf16.mxu0 0
    %8441 = vmatpush2.bf16.msra.mxu0 0
    %8442 = vmatprep.subr.bf16.mxu0 0
    %8443 = vmatpush2.bf16.msra.mxu0 0
    %8444 = vmatprep.subr.bf16.mxu0 0
    %8445 = vmatpush2.bf16.msra.mxu0 0
    %8446 = vmatprep.subr.bf16.mxu0 0
    %8447 = vmatpush2.bf16.msra.mxu0 0
    %8448 = vmatprep.subr.bf16.mxu0 0
    %8449 = vmatpush2.bf16.msra.mxu0 0
    %8450 = vmatprep.subr.bf16.mxu0 0
    %8451 = vmatpush2.bf16.msra.mxu0 0
    %8452 = vmatprep.subr.bf16.mxu0 0
    %8453 = vmatpush2.bf16.msra.mxu0 0
    %8454 = vmatprep.subr.bf16.mxu0 0
    %8455 = vmatpush2.bf16.msra.mxu0 0
    %8456 = vmatprep.mubr.bf16.mxu0 0
    %8457 = vmatmul.mubr.bf16.gmra.mxu0 %v8293
    %v8458 = vpop.f32.mrf.mxu0
    %v8459 = vadd.f32 %v8416, %v8458
    %v8460 = vpop.f32.mrf.mxu0
    %v8461 = vadd.f32 %v8418, %v8460
    %v8462 = vpop.f32.mrf.mxu0
    %v8463 = vadd.f32 %v8420, %v8462
    %v8464 = vpop.f32.mrf.mxu0
    %v8465 = vadd.f32 %v8422, %v8464
    %8466 = vdwg.mxu0
    %8467 = vmatprep.subr.bf16.mxu0 %v5837
    %8468 = vmatpush1.bf16.msra.mxu0 %v5836
    %8469 = vmatprep.subr.bf16.mxu0 %v5810
    %8470 = vmatpush1.bf16.msra.mxu0 %v5809
    %8471 = vmatprep.subr.bf16.mxu0 %v5783
    %8472 = vmatpush1.bf16.msra.mxu0 %v5782
    %8473 = vmatprep.subr.bf16.mxu0 %v5756
    %8474 = vmatpush1.bf16.msra.mxu0 %v5755
    %8475 = vmatprep.subr.bf16.mxu0 %v5729
    %8476 = vmatpush1.bf16.msra.mxu0 %v5728
    %8477 = vmatprep.subr.bf16.mxu0 %v5702
    %8478 = vmatpush1.bf16.msra.mxu0 %v5701
    %8479 = vmatprep.subr.bf16.mxu0 %v5675
    %8480 = vmatpush1.bf16.msra.mxu0 %v5674
    %8481 = vmatprep.subr.bf16.mxu0 %v5648
    %8482 = vmatpush1.bf16.msra.mxu0 %v5647
    %8483 = vmatprep.subr.bf16.mxu0 %v6053
    %8484 = vmatpush2.bf16.msra.mxu0 %v6052
    %8485 = vmatprep.subr.bf16.mxu0 %v6026
    %8486 = vmatpush2.bf16.msra.mxu0 %v6025
    %8487 = vmatprep.subr.bf16.mxu0 %v5999
    %8488 = vmatpush2.bf16.msra.mxu0 %v5998
    %8489 = vmatprep.subr.bf16.mxu0 %v5972
    %8490 = vmatpush2.bf16.msra.mxu0 %v5971
    %8491 = vmatprep.subr.bf16.mxu0 %v5945
    %8492 = vmatpush2.bf16.msra.mxu0 %v5944
    %8493 = vmatprep.subr.bf16.mxu0 %v5918
    %8494 = vmatpush2.bf16.msra.mxu0 %v5917
    %8495 = vmatprep.subr.bf16.mxu0 %v5891
    %8496 = vmatpush2.bf16.msra.mxu0 %v5890
    %8497 = vmatprep.subr.bf16.mxu0 %v5864
    %8498 = vmatpush2.bf16.msra.mxu0 %v5863
    %8499 = vmatprep.mubr.bf16.mxu0 %v106
    %8500 = vmatmul.mubr.bf16.gmra.mxu0 %v105
    %v8501 = vpop.f32.mrf.mxu0
    %v8502 = vadd.f32 %v1503, %v8501
    %v8503 = vpop.f32.mrf.mxu0
    %v8504 = vadd.f32 %v1507, %v8503
    %v8505 = vpop.f32.mrf.mxu0
    %v8506 = vadd.f32 %v1503, %v8505
    %v8507 = vpop.f32.mrf.mxu0
    %v8508 = vadd.f32 %v1507, %v8507
    %8509 = vdwg.mxu0
    %8510 = vmatprep.subr.bf16.mxu0 %v6269
    %8511 = vmatpush1.bf16.msra.mxu0 %v6268
    %8512 = vmatprep.subr.bf16.mxu0 %v6242
    %8513 = vmatpush1.bf16.msra.mxu0 %v6241
    %8514 = vmatprep.subr.bf16.mxu0 %v6215
    %8515 = vmatpush1.bf16.msra.mxu0 %v6214
    %8516 = vmatprep.subr.bf16.mxu0 %v6188
    %8517 = vmatpush1.bf16.msra.mxu0 %v6187
    %8518 = vmatprep.subr.bf16.mxu0 %v6161
    %8519 = vmatpush1.bf16.msra.mxu0 %v6160
    %8520 = vmatprep.subr.bf16.mxu0 %v6134
    %8521 = vmatpush1.bf16.msra.mxu0 %v6133
    %8522 = vmatprep.subr.bf16.mxu0 %v6107
    %8523 = vmatpush1.bf16.msra.mxu0 %v6106
    %8524 = vmatprep.subr.bf16.mxu0 %v6080
    %8525 = vmatpush1.bf16.msra.mxu0 %v6079
    %8526 = vmatprep.subr.bf16.mxu0 %v6485
    %8527 = vmatpush2.bf16.msra.mxu0 %v6484
    %8528 = vmatprep.subr.bf16.mxu0 %v6458
    %8529 = vmatpush2.bf16.msra.mxu0 %v6457
    %8530 = vmatprep.subr.bf16.mxu0 %v6431
    %8531 = vmatpush2.bf16.msra.mxu0 %v6430
    %8532 = vmatprep.subr.bf16.mxu0 %v6404
    %8533 = vmatpush2.bf16.msra.mxu0 %v6403
    %8534 = vmatprep.subr.bf16.mxu0 %v6377
    %8535 = vmatpush2.bf16.msra.mxu0 %v6376
    %8536 = vmatprep.subr.bf16.mxu0 %v6350
    %8537 = vmatpush2.bf16.msra.mxu0 %v6349
    %8538 = vmatprep.subr.bf16.mxu0 %v6323
    %8539 = vmatpush2.bf16.msra.mxu0 %v6322
    %8540 = vmatprep.subr.bf16.mxu0 %v6296
    %8541 = vmatpush2.bf16.msra.mxu0 %v6295
    %8542 = vmatprep.mubr.bf16.mxu0 %v108
    %8543 = vmatmul.mubr.bf16.gmra.mxu0 %v107
    %v8544 = vpop.f32.mrf.mxu0
    %v8545 = vadd.f32 %v8502, %v8544
    %v8546 = vpop.f32.mrf.mxu0
    %v8547 = vadd.f32 %v8504, %v8546
    %v8548 = vpop.f32.mrf.mxu0
    %v8549 = vadd.f32 %v8506, %v8548
    %v8550 = vpop.f32.mrf.mxu0
    %v8551 = vadd.f32 %v8508, %v8550
    %8552 = vdwg.mxu0
    %8553 = vmatprep.subr.bf16.mxu0 %v6701
    %8554 = vmatpush1.bf16.msra.mxu0 %v6700
    %8555 = vmatprep.subr.bf16.mxu0 %v6674
    %8556 = vmatpush1.bf16.msra.mxu0 %v6673
    %8557 = vmatprep.subr.bf16.mxu0 %v6647
    %8558 = vmatpush1.bf16.msra.mxu0 %v6646
    %8559 = vmatprep.subr.bf16.mxu0 %v6620
    %8560 = vmatpush1.bf16.msra.mxu0 %v6619
    %8561 = vmatprep.subr.bf16.mxu0 %v6593
    %8562 = vmatpush1.bf16.msra.mxu0 %v6592
    %8563 = vmatprep.subr.bf16.mxu0 %v6566
    %8564 = vmatpush1.bf16.msra.mxu0 %v6565
    %8565 = vmatprep.subr.bf16.mxu0 %v6539
    %8566 = vmatpush1.bf16.msra.mxu0 %v6538
    %8567 = vmatprep.subr.bf16.mxu0 %v6512
    %8568 = vmatpush1.bf16.msra.mxu0 %v6511
    %8569 = vmatprep.subr.bf16.mxu0 %v6917
    %8570 = vmatpush2.bf16.msra.mxu0 %v6916
    %8571 = vmatprep.subr.bf16.mxu0 %v6890
    %8572 = vmatpush2.bf16.msra.mxu0 %v6889
    %8573 = vmatprep.subr.bf16.mxu0 %v6863
    %8574 = vmatpush2.bf16.msra.mxu0 %v6862
    %8575 = vmatprep.subr.bf16.mxu0 %v6836
    %8576 = vmatpush2.bf16.msra.mxu0 %v6835
    %8577 = vmatprep.subr.bf16.mxu0 %v6809
    %8578 = vmatpush2.bf16.msra.mxu0 %v6808
    %8579 = vmatprep.subr.bf16.mxu0 %v6782
    %8580 = vmatpush2.bf16.msra.mxu0 %v6781
    %8581 = vmatprep.subr.bf16.mxu0 %v6755
    %8582 = vmatpush2.bf16.msra.mxu0 %v6754
    %8583 = vmatprep.subr.bf16.mxu0 %v6728
    %8584 = vmatpush2.bf16.msra.mxu0 %v6727
    %8585 = vmatprep.mubr.bf16.mxu0 %v110
    %8586 = vmatmul.mubr.bf16.gmra.mxu0 %v109
    %v8587 = vpop.f32.mrf.mxu0
    %v8588 = vadd.f32 %v8545, %v8587
    %v8589 = vpop.f32.mrf.mxu0
    %v8590 = vadd.f32 %v8547, %v8589
    %v8591 = vpop.f32.mrf.mxu0
    %v8592 = vadd.f32 %v8549, %v8591
    %v8593 = vpop.f32.mrf.mxu0
    %v8594 = vadd.f32 %v8551, %v8593
    %8595 = vdwg.mxu0
    %8596 = vmatprep.subr.bf16.mxu0 0
    %8597 = vmatpush1.bf16.msra.mxu0 0
    %8598 = vmatprep.subr.bf16.mxu0 0
    %8599 = vmatpush1.bf16.msra.mxu0 0
    %8600 = vmatprep.subr.bf16.mxu0 0
    %8601 = vmatpush1.bf16.msra.mxu0 0
    %8602 = vmatprep.subr.bf16.mxu0 0
    %8603 = vmatpush1.bf16.msra.mxu0 0
    %8604 = vmatprep.subr.bf16.mxu0 0
    %8605 = vmatpush1.bf16.msra.mxu0 0
    %8606 = vmatprep.subr.bf16.mxu0 0
    %8607 = vmatpush1.bf16.msra.mxu0 0
    %8608 = vmatprep.subr.bf16.mxu0 0
    %8609 = vmatpush1.bf16.msra.mxu0 0
    %8610 = vmatprep.subr.bf16.mxu0 %v6944
    %8611 = vmatpush1.bf16.msra.mxu0 %v6943
    %8612 = vmatprep.subr.bf16.mxu0 0
    %8613 = vmatpush2.bf16.msra.mxu0 0
    %8614 = vmatprep.subr.bf16.mxu0 0
    %8615 = vmatpush2.bf16.msra.mxu0 0
    %8616 = vmatprep.subr.bf16.mxu0 0
    %8617 = vmatpush2.bf16.msra.mxu0 0
    %8618 = vmatprep.subr.bf16.mxu0 0
    %8619 = vmatpush2.bf16.msra.mxu0 0
    %8620 = vmatprep.subr.bf16.mxu0 0
    %8621 = vmatpush2.bf16.msra.mxu0 0
    %8622 = vmatprep.subr.bf16.mxu0 0
    %8623 = vmatpush2.bf16.msra.mxu0 0
    %8624 = vmatprep.subr.bf16.mxu0 0
    %8625 = vmatpush2.bf16.msra.mxu0 0
    %8626 = vmatprep.subr.bf16.mxu0 0
    %8627 = vmatpush2.bf16.msra.mxu0 0
    %8628 = vmatprep.mubr.bf16.mxu0 0
    %8629 = vmatmul.mubr.bf16.gmra.mxu0 %v8293
    %v8630 = vpop.f32.mrf.mxu0
    %v8631 = vadd.f32 %v8588, %v8630
    %v8632 = vpop.f32.mrf.mxu0
    %v8633 = vadd.f32 %v8590, %v8632
    %v8634 = vpop.f32.mrf.mxu0
    %v8635 = vadd.f32 %v8592, %v8634
    %v8636 = vpop.f32.mrf.mxu0
    %v8637 = vadd.f32 %v8594, %v8636
    %8638 = vdwg.mxu0
    %8639 = vmatprep.subr.bf16.mxu0 %v5839
    %8640 = vmatpush1.bf16.msra.mxu0 %v5838
    %8641 = vmatprep.subr.bf16.mxu0 %v5812
    %8642 = vmatpush1.bf16.msra.mxu0 %v5811
    %8643 = vmatprep.subr.bf16.mxu0 %v5785
    %8644 = vmatpush1.bf16.msra.mxu0 %v5784
    %8645 = vmatprep.subr.bf16.mxu0 %v5758
    %8646 = vmatpush1.bf16.msra.mxu0 %v5757
    %8647 = vmatprep.subr.bf16.mxu0 %v5731
    %8648 = vmatpush1.bf16.msra.mxu0 %v5730
    %8649 = vmatprep.subr.bf16.mxu0 %v5704
    %8650 = vmatpush1.bf16.msra.mxu0 %v5703
    %8651 = vmatprep.subr.bf16.mxu0 %v5677
    %8652 = vmatpush1.bf16.msra.mxu0 %v5676
    %8653 = vmatprep.subr.bf16.mxu0 %v5650
    %8654 = vmatpush1.bf16.msra.mxu0 %v5649
    %8655 = vmatprep.subr.bf16.mxu0 %v6055
    %8656 = vmatpush2.bf16.msra.mxu0 %v6054
    %8657 = vmatprep.subr.bf16.mxu0 %v6028
    %8658 = vmatpush2.bf16.msra.mxu0 %v6027
    %8659 = vmatprep.subr.bf16.mxu0 %v6001
    %8660 = vmatpush2.bf16.msra.mxu0 %v6000
    %8661 = vmatprep.subr.bf16.mxu0 %v5974
    %8662 = vmatpush2.bf16.msra.mxu0 %v5973
    %8663 = vmatprep.subr.bf16.mxu0 %v5947
    %8664 = vmatpush2.bf16.msra.mxu0 %v5946
    %8665 = vmatprep.subr.bf16.mxu0 %v5920
    %8666 = vmatpush2.bf16.msra.mxu0 %v5919
    %8667 = vmatprep.subr.bf16.mxu0 %v5893
    %8668 = vmatpush2.bf16.msra.mxu0 %v5892
    %8669 = vmatprep.subr.bf16.mxu0 %v5866
    %8670 = vmatpush2.bf16.msra.mxu0 %v5865
    %8671 = vmatprep.mubr.bf16.mxu0 %v106
    %8672 = vmatmul.mubr.bf16.gmra.mxu0 %v105
    %v8673 = vpop.f32.mrf.mxu0
    %v8674 = vadd.f32 %v1511, %v8673
    %v8675 = vpop.f32.mrf.mxu0
    %v8676 = vadd.f32 %v1515, %v8675
    %v8677 = vpop.f32.mrf.mxu0
    %v8678 = vadd.f32 %v1511, %v8677
    %v8679 = vpop.f32.mrf.mxu0
    %v8680 = vadd.f32 %v1515, %v8679
    %8681 = vdwg.mxu0
    %8682 = vmatprep.subr.bf16.mxu0 %v6271
    %8683 = vmatpush1.bf16.msra.mxu0 %v6270
    %8684 = vmatprep.subr.bf16.mxu0 %v6244
    %8685 = vmatpush1.bf16.msra.mxu0 %v6243
    %8686 = vmatprep.subr.bf16.mxu0 %v6217
    %8687 = vmatpush1.bf16.msra.mxu0 %v6216
    %8688 = vmatprep.subr.bf16.mxu0 %v6190
    %8689 = vmatpush1.bf16.msra.mxu0 %v6189
    %8690 = vmatprep.subr.bf16.mxu0 %v6163
    %8691 = vmatpush1.bf16.msra.mxu0 %v6162
    %8692 = vmatprep.subr.bf16.mxu0 %v6136
    %8693 = vmatpush1.bf16.msra.mxu0 %v6135
    %8694 = vmatprep.subr.bf16.mxu0 %v6109
    %8695 = vmatpush1.bf16.msra.mxu0 %v6108
    %8696 = vmatprep.subr.bf16.mxu0 %v6082
    %8697 = vmatpush1.bf16.msra.mxu0 %v6081
    %8698 = vmatprep.subr.bf16.mxu0 %v6487
    %8699 = vmatpush2.bf16.msra.mxu0 %v6486
    %8700 = vmatprep.subr.bf16.mxu0 %v6460
    %8701 = vmatpush2.bf16.msra.mxu0 %v6459
    %8702 = vmatprep.subr.bf16.mxu0 %v6433
    %8703 = vmatpush2.bf16.msra.mxu0 %v6432
    %8704 = vmatprep.subr.bf16.mxu0 %v6406
    %8705 = vmatpush2.bf16.msra.mxu0 %v6405
    %8706 = vmatprep.subr.bf16.mxu0 %v6379
    %8707 = vmatpush2.bf16.msra.mxu0 %v6378
    %8708 = vmatprep.subr.bf16.mxu0 %v6352
    %8709 = vmatpush2.bf16.msra.mxu0 %v6351
    %8710 = vmatprep.subr.bf16.mxu0 %v6325
    %8711 = vmatpush2.bf16.msra.mxu0 %v6324
    %8712 = vmatprep.subr.bf16.mxu0 %v6298
    %8713 = vmatpush2.bf16.msra.mxu0 %v6297
    %8714 = vmatprep.mubr.bf16.mxu0 %v108
    %8715 = vmatmul.mubr.bf16.gmra.mxu0 %v107
    %v8716 = vpop.f32.mrf.mxu0
    %v8717 = vadd.f32 %v8674, %v8716
    %v8718 = vpop.f32.mrf.mxu0
    %v8719 = vadd.f32 %v8676, %v8718
    %v8720 = vpop.f32.mrf.mxu0
    %v8721 = vadd.f32 %v8678, %v8720
    %v8722 = vpop.f32.mrf.mxu0
    %v8723 = vadd.f32 %v8680, %v8722
    %8724 = vdwg.mxu0
    %8725 = vmatprep.subr.bf16.mxu0 %v6703
    %8726 = vmatpush1.bf16.msra.mxu0 %v6702
    %8727 = vmatprep.subr.bf16.mxu0 %v6676
    %8728 = vmatpush1.bf16.msra.mxu0 %v6675
    %8729 = vmatprep.subr.bf16.mxu0 %v6649
    %8730 = vmatpush1.bf16.msra.mxu0 %v6648
    %8731 = vmatprep.subr.bf16.mxu0 %v6622
    %8732 = vmatpush1.bf16.msra.mxu0 %v6621
    %8733 = vmatprep.subr.bf16.mxu0 %v6595
    %8734 = vmatpush1.bf16.msra.mxu0 %v6594
    %8735 = vmatprep.subr.bf16.mxu0 %v6568
    %8736 = vmatpush1.bf16.msra.mxu0 %v6567
    %8737 = vmatprep.subr.bf16.mxu0 %v6541
    %8738 = vmatpush1.bf16.msra.mxu0 %v6540
    %8739 = vmatprep.subr.bf16.mxu0 %v6514
    %8740 = vmatpush1.bf16.msra.mxu0 %v6513
    %8741 = vmatprep.subr.bf16.mxu0 %v6919
    %8742 = vmatpush2.bf16.msra.mxu0 %v6918
    %8743 = vmatprep.subr.bf16.mxu0 %v6892
    %8744 = vmatpush2.bf16.msra.mxu0 %v6891
    %8745 = vmatprep.subr.bf16.mxu0 %v6865
    %8746 = vmatpush2.bf16.msra.mxu0 %v6864
    %8747 = vmatprep.subr.bf16.mxu0 %v6838
    %8748 = vmatpush2.bf16.msra.mxu0 %v6837
    %8749 = vmatprep.subr.bf16.mxu0 %v6811
    %8750 = vmatpush2.bf16.msra.mxu0 %v6810
    %8751 = vmatprep.subr.bf16.mxu0 %v6784
    %8752 = vmatpush2.bf16.msra.mxu0 %v6783
    %8753 = vmatprep.subr.bf16.mxu0 %v6757
    %8754 = vmatpush2.bf16.msra.mxu0 %v6756
    %8755 = vmatprep.subr.bf16.mxu0 %v6730
    %8756 = vmatpush2.bf16.msra.mxu0 %v6729
    %8757 = vmatprep.mubr.bf16.mxu0 %v110
    %8758 = vmatmul.mubr.bf16.gmra.mxu0 %v109
    %v8759 = vpop.f32.mrf.mxu0
    %v8760 = vadd.f32 %v8717, %v8759
    %v8761 = vpop.f32.mrf.mxu0
    %v8762 = vadd.f32 %v8719, %v8761
    %v8763 = vpop.f32.mrf.mxu0
    %v8764 = vadd.f32 %v8721, %v8763
    %v8765 = vpop.f32.mrf.mxu0
    %v8766 = vadd.f32 %v8723, %v8765
    %8767 = vdwg.mxu0
    %8768 = vmatprep.subr.bf16.mxu0 0
    %8769 = vmatpush1.bf16.msra.mxu0 0
    %8770 = vmatprep.subr.bf16.mxu0 0
    %8771 = vmatpush1.bf16.msra.mxu0 0
    %8772 = vmatprep.subr.bf16.mxu0 0
    %8773 = vmatpush1.bf16.msra.mxu0 0
    %8774 = vmatprep.subr.bf16.mxu0 0
    %8775 = vmatpush1.bf16.msra.mxu0 0
    %8776 = vmatprep.subr.bf16.mxu0 0
    %8777 = vmatpush1.bf16.msra.mxu0 0
    %8778 = vmatprep.subr.bf16.mxu0 0
    %8779 = vmatpush1.bf16.msra.mxu0 0
    %8780 = vmatprep.subr.bf16.mxu0 0
    %8781 = vmatpush1.bf16.msra.mxu0 0
    %8782 = vmatprep.subr.bf16.mxu0 %v6946
    %8783 = vmatpush1.bf16.msra.mxu0 %v6945
    %8784 = vmatprep.subr.bf16.mxu0 0
    %8785 = vmatpush2.bf16.msra.mxu0 0
    %8786 = vmatprep.subr.bf16.mxu0 0
    %8787 = vmatpush2.bf16.msra.mxu0 0
    %8788 = vmatprep.subr.bf16.mxu0 0
    %8789 = vmatpush2.bf16.msra.mxu0 0
    %8790 = vmatprep.subr.bf16.mxu0 0
    %8791 = vmatpush2.bf16.msra.mxu0 0
    %8792 = vmatprep.subr.bf16.mxu0 0
    %8793 = vmatpush2.bf16.msra.mxu0 0
    %8794 = vmatprep.subr.bf16.mxu0 0
    %8795 = vmatpush2.bf16.msra.mxu0 0
    %8796 = vmatprep.subr.bf16.mxu0 0
    %8797 = vmatpush2.bf16.msra.mxu0 0
    %8798 = vmatprep.subr.bf16.mxu0 0
    %8799 = vmatpush2.bf16.msra.mxu0 0
    %8800 = vmatprep.mubr.bf16.mxu0 0
    %8801 = vmatmul.mubr.bf16.gmra.mxu0 %v8293
    %v8802 = vpop.f32.mrf.mxu0
    %v8803 = vadd.f32 %v8760, %v8802
    %v8804 = vpop.f32.mrf.mxu0
    %v8805 = vadd.f32 %v8762, %v8804
    %v8806 = vpop.f32.mrf.mxu0
    %v8807 = vadd.f32 %v8764, %v8806
    %v8808 = vpop.f32.mrf.mxu0
    %v8809 = vadd.f32 %v8766, %v8808
    %8810 = vdwg.mxu0
    %8811 = vmatprep.subr.bf16.mxu0 %v5841
    %8812 = vmatpush1.bf16.msra.mxu0 %v5840
    %8813 = vmatprep.subr.bf16.mxu0 %v5814
    %8814 = vmatpush1.bf16.msra.mxu0 %v5813
    %8815 = vmatprep.subr.bf16.mxu0 %v5787
    %8816 = vmatpush1.bf16.msra.mxu0 %v5786
    %8817 = vmatprep.subr.bf16.mxu0 %v5760
    %8818 = vmatpush1.bf16.msra.mxu0 %v5759
    %8819 = vmatprep.subr.bf16.mxu0 %v5733
    %8820 = vmatpush1.bf16.msra.mxu0 %v5732
    %8821 = vmatprep.subr.bf16.mxu0 %v5706
    %8822 = vmatpush1.bf16.msra.mxu0 %v5705
    %8823 = vmatprep.subr.bf16.mxu0 %v5679
    %8824 = vmatpush1.bf16.msra.mxu0 %v5678
    %8825 = vmatprep.subr.bf16.mxu0 %v5652
    %8826 = vmatpush1.bf16.msra.mxu0 %v5651
    %8827 = vmatprep.subr.bf16.mxu0 %v6057
    %8828 = vmatpush2.bf16.msra.mxu0 %v6056
    %8829 = vmatprep.subr.bf16.mxu0 %v6030
    %8830 = vmatpush2.bf16.msra.mxu0 %v6029
    %8831 = vmatprep.subr.bf16.mxu0 %v6003
    %8832 = vmatpush2.bf16.msra.mxu0 %v6002
    %8833 = vmatprep.subr.bf16.mxu0 %v5976
    %8834 = vmatpush2.bf16.msra.mxu0 %v5975
    %8835 = vmatprep.subr.bf16.mxu0 %v5949
    %8836 = vmatpush2.bf16.msra.mxu0 %v5948
    %8837 = vmatprep.subr.bf16.mxu0 %v5922
    %8838 = vmatpush2.bf16.msra.mxu0 %v5921
    %8839 = vmatprep.subr.bf16.mxu0 %v5895
    %8840 = vmatpush2.bf16.msra.mxu0 %v5894
    %8841 = vmatprep.subr.bf16.mxu0 %v5868
    %8842 = vmatpush2.bf16.msra.mxu0 %v5867
    %8843 = vmatprep.mubr.bf16.mxu0 %v106
    %8844 = vmatmul.mubr.bf16.gmra.mxu0 %v105
    %v8845 = vpop.f32.mrf.mxu0
    %v8846 = vadd.f32 %v1519, %v8845
    %v8847 = vpop.f32.mrf.mxu0
    %v8848 = vadd.f32 %v1523, %v8847
    %v8849 = vpop.f32.mrf.mxu0
    %v8850 = vadd.f32 %v1519, %v8849
    %v8851 = vpop.f32.mrf.mxu0
    %v8852 = vadd.f32 %v1523, %v8851
    %8853 = vdwg.mxu0
    %8854 = vmatprep.subr.bf16.mxu0 %v6273
    %8855 = vmatpush1.bf16.msra.mxu0 %v6272
    %8856 = vmatprep.subr.bf16.mxu0 %v6246
    %8857 = vmatpush1.bf16.msra.mxu0 %v6245
    %8858 = vmatprep.subr.bf16.mxu0 %v6219
    %8859 = vmatpush1.bf16.msra.mxu0 %v6218
    %8860 = vmatprep.subr.bf16.mxu0 %v6192
    %8861 = vmatpush1.bf16.msra.mxu0 %v6191
    %8862 = vmatprep.subr.bf16.mxu0 %v6165
    %8863 = vmatpush1.bf16.msra.mxu0 %v6164
    %8864 = vmatprep.subr.bf16.mxu0 %v6138
    %8865 = vmatpush1.bf16.msra.mxu0 %v6137
    %8866 = vmatprep.subr.bf16.mxu0 %v6111
    %8867 = vmatpush1.bf16.msra.mxu0 %v6110
    %8868 = vmatprep.subr.bf16.mxu0 %v6084
    %8869 = vmatpush1.bf16.msra.mxu0 %v6083
    %8870 = vmatprep.subr.bf16.mxu0 %v6489
    %8871 = vmatpush2.bf16.msra.mxu0 %v6488
    %8872 = vmatprep.subr.bf16.mxu0 %v6462
    %8873 = vmatpush2.bf16.msra.mxu0 %v6461
    %8874 = vmatprep.subr.bf16.mxu0 %v6435
    %8875 = vmatpush2.bf16.msra.mxu0 %v6434
    %8876 = vmatprep.subr.bf16.mxu0 %v6408
    %8877 = vmatpush2.bf16.msra.mxu0 %v6407
    %8878 = vmatprep.subr.bf16.mxu0 %v6381
    %8879 = vmatpush2.bf16.msra.mxu0 %v6380
    %8880 = vmatprep.subr.bf16.mxu0 %v6354
    %8881 = vmatpush2.bf16.msra.mxu0 %v6353
    %8882 = vmatprep.subr.bf16.mxu0 %v6327
    %8883 = vmatpush2.bf16.msra.mxu0 %v6326
    %8884 = vmatprep.subr.bf16.mxu0 %v6300
    %8885 = vmatpush2.bf16.msra.mxu0 %v6299
    %8886 = vmatprep.mubr.bf16.mxu0 %v108
    %8887 = vmatmul.mubr.bf16.gmra.mxu0 %v107
    %v8888 = vpop.f32.mrf.mxu0
    %v8889 = vadd.f32 %v8846, %v8888
    %v8890 = vpop.f32.mrf.mxu0
    %v8891 = vadd.f32 %v8848, %v8890
    %v8892 = vpop.f32.mrf.mxu0
    %v8893 = vadd.f32 %v8850, %v8892
    %v8894 = vpop.f32.mrf.mxu0
    %v8895 = vadd.f32 %v8852, %v8894
    %8896 = vdwg.mxu0
    %8897 = vmatprep.subr.bf16.mxu0 %v6705
    %8898 = vmatpush1.bf16.msra.mxu0 %v6704
    %8899 = vmatprep.subr.bf16.mxu0 %v6678
    %8900 = vmatpush1.bf16.msra.mxu0 %v6677
    %8901 = vmatprep.subr.bf16.mxu0 %v6651
    %8902 = vmatpush1.bf16.msra.mxu0 %v6650
    %8903 = vmatprep.subr.bf16.mxu0 %v6624
    %8904 = vmatpush1.bf16.msra.mxu0 %v6623
    %8905 = vmatprep.subr.bf16.mxu0 %v6597
    %8906 = vmatpush1.bf16.msra.mxu0 %v6596
    %8907 = vmatprep.subr.bf16.mxu0 %v6570
    %8908 = vmatpush1.bf16.msra.mxu0 %v6569
    %8909 = vmatprep.subr.bf16.mxu0 %v6543
    %8910 = vmatpush1.bf16.msra.mxu0 %v6542
    %8911 = vmatprep.subr.bf16.mxu0 %v6516
    %8912 = vmatpush1.bf16.msra.mxu0 %v6515
    %8913 = vmatprep.subr.bf16.mxu0 %v6921
    %8914 = vmatpush2.bf16.msra.mxu0 %v6920
    %8915 = vmatprep.subr.bf16.mxu0 %v6894
    %8916 = vmatpush2.bf16.msra.mxu0 %v6893
    %8917 = vmatprep.subr.bf16.mxu0 %v6867
    %8918 = vmatpush2.bf16.msra.mxu0 %v6866
    %8919 = vmatprep.subr.bf16.mxu0 %v6840
    %8920 = vmatpush2.bf16.msra.mxu0 %v6839
    %8921 = vmatprep.subr.bf16.mxu0 %v6813
    %8922 = vmatpush2.bf16.msra.mxu0 %v6812
    %8923 = vmatprep.subr.bf16.mxu0 %v6786
    %8924 = vmatpush2.bf16.msra.mxu0 %v6785
    %8925 = vmatprep.subr.bf16.mxu0 %v6759
    %8926 = vmatpush2.bf16.msra.mxu0 %v6758
    %8927 = vmatprep.subr.bf16.mxu0 %v6732
    %8928 = vmatpush2.bf16.msra.mxu0 %v6731
    %8929 = vmatprep.mubr.bf16.mxu0 %v110
    %8930 = vmatmul.mubr.bf16.gmra.mxu0 %v109
    %v8931 = vpop.f32.mrf.mxu0
    %v8932 = vadd.f32 %v8889, %v8931
    %v8933 = vpop.f32.mrf.mxu0
    %v8934 = vadd.f32 %v8891, %v8933
    %v8935 = vpop.f32.mrf.mxu0
    %v8936 = vadd.f32 %v8893, %v8935
    %v8937 = vpop.f32.mrf.mxu0
    %v8938 = vadd.f32 %v8895, %v8937
    %8939 = vdwg.mxu0
    %8940 = vmatprep.subr.bf16.mxu0 0
    %8941 = vmatpush1.bf16.msra.mxu0 0
    %8942 = vmatprep.subr.bf16.mxu0 0
    %8943 = vmatpush1.bf16.msra.mxu0 0
    %8944 = vmatprep.subr.bf16.mxu0 0
    %8945 = vmatpush1.bf16.msra.mxu0 0
    %8946 = vmatprep.subr.bf16.mxu0 0
    %8947 = vmatpush1.bf16.msra.mxu0 0
    %8948 = vmatprep.subr.bf16.mxu0 0
    %8949 = vmatpush1.bf16.msra.mxu0 0
    %8950 = vmatprep.subr.bf16.mxu0 0
    %8951 = vmatpush1.bf16.msra.mxu0 0
    %8952 = vmatprep.subr.bf16.mxu0 0
    %8953 = vmatpush1.bf16.msra.mxu0 0
    %8954 = vmatprep.subr.bf16.mxu0 %v6948
    %8955 = vmatpush1.bf16.msra.mxu0 %v6947
    %8956 = vmatprep.subr.bf16.mxu0 0
    %8957 = vmatpush2.bf16.msra.mxu0 0
    %8958 = vmatprep.subr.bf16.mxu0 0
    %8959 = vmatpush2.bf16.msra.mxu0 0
    %8960 = vmatprep.subr.bf16.mxu0 0
    %8961 = vmatpush2.bf16.msra.mxu0 0
    %8962 = vmatprep.subr.bf16.mxu0 0
    %8963 = vmatpush2.bf16.msra.mxu0 0
    %8964 = vmatprep.subr.bf16.mxu0 0
    %8965 = vmatpush2.bf16.msra.mxu0 0
    %8966 = vmatprep.subr.bf16.mxu0 0
    %8967 = vmatpush2.bf16.msra.mxu0 0
    %8968 = vmatprep.subr.bf16.mxu0 0
    %8969 = vmatpush2.bf16.msra.mxu0 0
    %8970 = vmatprep.subr.bf16.mxu0 0
    %8971 = vmatpush2.bf16.msra.mxu0 0
    %8972 = vmatprep.mubr.bf16.mxu0 0
    %8973 = vmatmul.mubr.bf16.gmra.mxu0 %v8293
    %v8974 = vpop.f32.mrf.mxu0
    %v8975 = vadd.f32 %v8932, %v8974
    %v8976 = vpop.f32.mrf.mxu0
    %v8977 = vadd.f32 %v8934, %v8976
    %v8978 = vpop.f32.mrf.mxu0
    %v8979 = vadd.f32 %v8936, %v8978
    %v8980 = vpop.f32.mrf.mxu0
    %v8981 = vadd.f32 %v8938, %v8980
    %8982 = vdwg.mxu0
    %8983 = vmatprep.subr.bf16.mxu0 %v5843
    %8984 = vmatpush1.bf16.msra.mxu0 %v5842
    %8985 = vmatprep.subr.bf16.mxu0 %v5816
    %8986 = vmatpush1.bf16.msra.mxu0 %v5815
    %8987 = vmatprep.subr.bf16.mxu0 %v5789
    %8988 = vmatpush1.bf16.msra.mxu0 %v5788
    %8989 = vmatprep.subr.bf16.mxu0 %v5762
    %8990 = vmatpush1.bf16.msra.mxu0 %v5761
    %8991 = vmatprep.subr.bf16.mxu0 %v5735
    %8992 = vmatpush1.bf16.msra.mxu0 %v5734
    %8993 = vmatprep.subr.bf16.mxu0 %v5708
    %8994 = vmatpush1.bf16.msra.mxu0 %v5707
    %8995 = vmatprep.subr.bf16.mxu0 %v5681
    %8996 = vmatpush1.bf16.msra.mxu0 %v5680
    %8997 = vmatprep.subr.bf16.mxu0 %v5654
    %8998 = vmatpush1.bf16.msra.mxu0 %v5653
    %8999 = vmatprep.subr.bf16.mxu0 %v6059
    %9000 = vmatpush2.bf16.msra.mxu0 %v6058
    %9001 = vmatprep.subr.bf16.mxu0 %v6032
    %9002 = vmatpush2.bf16.msra.mxu0 %v6031
    %9003 = vmatprep.subr.bf16.mxu0 %v6005
    %9004 = vmatpush2.bf16.msra.mxu0 %v6004
    %9005 = vmatprep.subr.bf16.mxu0 %v5978
    %9006 = vmatpush2.bf16.msra.mxu0 %v5977
    %9007 = vmatprep.subr.bf16.mxu0 %v5951
    %9008 = vmatpush2.bf16.msra.mxu0 %v5950
    %9009 = vmatprep.subr.bf16.mxu0 %v5924
    %9010 = vmatpush2.bf16.msra.mxu0 %v5923
    %9011 = vmatprep.subr.bf16.mxu0 %v5897
    %9012 = vmatpush2.bf16.msra.mxu0 %v5896
    %9013 = vmatprep.subr.bf16.mxu0 %v5870
    %9014 = vmatpush2.bf16.msra.mxu0 %v5869
    %9015 = vmatprep.mubr.bf16.mxu0 %v106
    %9016 = vmatmul.mubr.bf16.gmra.mxu0 %v105
    %v9017 = vpop.f32.mrf.mxu0
    %v9018 = vadd.f32 %v1527, %v9017
    %v9019 = vpop.f32.mrf.mxu0
    %v9020 = vadd.f32 %v1531, %v9019
    %v9021 = vpop.f32.mrf.mxu0
    %v9022 = vadd.f32 %v1527, %v9021
    %v9023 = vpop.f32.mrf.mxu0
    %v9024 = vadd.f32 %v1531, %v9023
    %9025 = vdwg.mxu0
    %9026 = vmatprep.subr.bf16.mxu0 %v6275
    %9027 = vmatpush1.bf16.msra.mxu0 %v6274
    %9028 = vmatprep.subr.bf16.mxu0 %v6248
    %9029 = vmatpush1.bf16.msra.mxu0 %v6247
    %9030 = vmatprep.subr.bf16.mxu0 %v6221
    %9031 = vmatpush1.bf16.msra.mxu0 %v6220
    %9032 = vmatprep.subr.bf16.mxu0 %v6194
    %9033 = vmatpush1.bf16.msra.mxu0 %v6193
    %9034 = vmatprep.subr.bf16.mxu0 %v6167
    %9035 = vmatpush1.bf16.msra.mxu0 %v6166
    %9036 = vmatprep.subr.bf16.mxu0 %v6140
    %9037 = vmatpush1.bf16.msra.mxu0 %v6139
    %9038 = vmatprep.subr.bf16.mxu0 %v6113
    %9039 = vmatpush1.bf16.msra.mxu0 %v6112
    %9040 = vmatprep.subr.bf16.mxu0 %v6086
    %9041 = vmatpush1.bf16.msra.mxu0 %v6085
    %9042 = vmatprep.subr.bf16.mxu0 %v6491
    %9043 = vmatpush2.bf16.msra.mxu0 %v6490
    %9044 = vmatprep.subr.bf16.mxu0 %v6464
    %9045 = vmatpush2.bf16.msra.mxu0 %v6463
    %9046 = vmatprep.subr.bf16.mxu0 %v6437
    %9047 = vmatpush2.bf16.msra.mxu0 %v6436
    %9048 = vmatprep.subr.bf16.mxu0 %v6410
    %9049 = vmatpush2.bf16.msra.mxu0 %v6409
    %9050 = vmatprep.subr.bf16.mxu0 %v6383
    %9051 = vmatpush2.bf16.msra.mxu0 %v6382
    %9052 = vmatprep.subr.bf16.mxu0 %v6356
    %9053 = vmatpush2.bf16.msra.mxu0 %v6355
    %9054 = vmatprep.subr.bf16.mxu0 %v6329
    %9055 = vmatpush2.bf16.msra.mxu0 %v6328
    %9056 = vmatprep.subr.bf16.mxu0 %v6302
    %9057 = vmatpush2.bf16.msra.mxu0 %v6301
    %9058 = vmatprep.mubr.bf16.mxu0 %v108
    %9059 = vmatmul.mubr.bf16.gmra.mxu0 %v107
    %v9060 = vpop.f32.mrf.mxu0
    %v9061 = vadd.f32 %v9018, %v9060
    %v9062 = vpop.f32.mrf.mxu0
    %v9063 = vadd.f32 %v9020, %v9062
    %v9064 = vpop.f32.mrf.mxu0
    %v9065 = vadd.f32 %v9022, %v9064
    %v9066 = vpop.f32.mrf.mxu0
    %v9067 = vadd.f32 %v9024, %v9066
    %9068 = vdwg.mxu0
    %9069 = vmatprep.subr.bf16.mxu0 %v6707
    %9070 = vmatpush1.bf16.msra.mxu0 %v6706
    %9071 = vmatprep.subr.bf16.mxu0 %v6680
    %9072 = vmatpush1.bf16.msra.mxu0 %v6679
    %9073 = vmatprep.subr.bf16.mxu0 %v6653
    %9074 = vmatpush1.bf16.msra.mxu0 %v6652
    %9075 = vmatprep.subr.bf16.mxu0 %v6626
    %9076 = vmatpush1.bf16.msra.mxu0 %v6625
    %9077 = vmatprep.subr.bf16.mxu0 %v6599
    %9078 = vmatpush1.bf16.msra.mxu0 %v6598
    %9079 = vmatprep.subr.bf16.mxu0 %v6572
    %9080 = vmatpush1.bf16.msra.mxu0 %v6571
    %9081 = vmatprep.subr.bf16.mxu0 %v6545
    %9082 = vmatpush1.bf16.msra.mxu0 %v6544
    %9083 = vmatprep.subr.bf16.mxu0 %v6518
    %9084 = vmatpush1.bf16.msra.mxu0 %v6517
    %9085 = vmatprep.subr.bf16.mxu0 %v6923
    %9086 = vmatpush2.bf16.msra.mxu0 %v6922
    %9087 = vmatprep.subr.bf16.mxu0 %v6896
    %9088 = vmatpush2.bf16.msra.mxu0 %v6895
    %9089 = vmatprep.subr.bf16.mxu0 %v6869
    %9090 = vmatpush2.bf16.msra.mxu0 %v6868
    %9091 = vmatprep.subr.bf16.mxu0 %v6842
    %9092 = vmatpush2.bf16.msra.mxu0 %v6841
    %9093 = vmatprep.subr.bf16.mxu0 %v6815
    %9094 = vmatpush2.bf16.msra.mxu0 %v6814
    %9095 = vmatprep.subr.bf16.mxu0 %v6788
    %9096 = vmatpush2.bf16.msra.mxu0 %v6787
    %9097 = vmatprep.subr.bf16.mxu0 %v6761
    %9098 = vmatpush2.bf16.msra.mxu0 %v6760
    %9099 = vmatprep.subr.bf16.mxu0 %v6734
    %9100 = vmatpush2.bf16.msra.mxu0 %v6733
    %9101 = vmatprep.mubr.bf16.mxu0 %v110
    %9102 = vmatmul.mubr.bf16.gmra.mxu0 %v109
    %v9103 = vpop.f32.mrf.mxu0
    %v9104 = vadd.f32 %v9061, %v9103
    %v9105 = vpop.f32.mrf.mxu0
    %v9106 = vadd.f32 %v9063, %v9105
    %v9107 = vpop.f32.mrf.mxu0
    %v9108 = vadd.f32 %v9065, %v9107
    %v9109 = vpop.f32.mrf.mxu0
    %v9110 = vadd.f32 %v9067, %v9109
    %9111 = vdwg.mxu0
    %9112 = vmatprep.subr.bf16.mxu0 0
    %9113 = vmatpush1.bf16.msra.mxu0 0
    %9114 = vmatprep.subr.bf16.mxu0 0
    %9115 = vmatpush1.bf16.msra.mxu0 0
    %9116 = vmatprep.subr.bf16.mxu0 0
    %9117 = vmatpush1.bf16.msra.mxu0 0
    %9118 = vmatprep.subr.bf16.mxu0 0
    %9119 = vmatpush1.bf16.msra.mxu0 0
    %9120 = vmatprep.subr.bf16.mxu0 0
    %9121 = vmatpush1.bf16.msra.mxu0 0
    %9122 = vmatprep.subr.bf16.mxu0 0
    %9123 = vmatpush1.bf16.msra.mxu0 0
    %9124 = vmatprep.subr.bf16.mxu0 0
    %9125 = vmatpush1.bf16.msra.mxu0 0
    %9126 = vmatprep.subr.bf16.mxu0 %v6950
    %9127 = vmatpush1.bf16.msra.mxu0 %v6949
    %9128 = vmatprep.subr.bf16.mxu0 0
    %9129 = vmatpush2.bf16.msra.mxu0 0
    %9130 = vmatprep.subr.bf16.mxu0 0
    %9131 = vmatpush2.bf16.msra.mxu0 0
    %9132 = vmatprep.subr.bf16.mxu0 0
    %9133 = vmatpush2.bf16.msra.mxu0 0
    %9134 = vmatprep.subr.bf16.mxu0 0
    %9135 = vmatpush2.bf16.msra.mxu0 0
    %9136 = vmatprep.subr.bf16.mxu0 0
    %9137 = vmatpush2.bf16.msra.mxu0 0
    %9138 = vmatprep.subr.bf16.mxu0 0
    %9139 = vmatpush2.bf16.msra.mxu0 0
    %9140 = vmatprep.subr.bf16.mxu0 0
    %9141 = vmatpush2.bf16.msra.mxu0 0
    %9142 = vmatprep.subr.bf16.mxu0 0
    %9143 = vmatpush2.bf16.msra.mxu0 0
    %9144 = vmatprep.mubr.bf16.mxu0 0
    %9145 = vmatmul.mubr.bf16.gmra.mxu0 %v8293
    %v9146 = vpop.f32.mrf.mxu0
    %v9147 = vadd.f32 %v9104, %v9146
    %v9148 = vpop.f32.mrf.mxu0
    %v9149 = vadd.f32 %v9106, %v9148
    %v9150 = vpop.f32.mrf.mxu0
    %v9151 = vadd.f32 %v9108, %v9150
    %v9152 = vpop.f32.mrf.mxu0
    %v9153 = vadd.f32 %v9110, %v9152
    %9154 = vdwg.mxu0
    %9155 = vmatprep.subr.bf16.mxu0 %v5845
    %9156 = vmatpush1.bf16.msra.mxu0 %v5844
    %9157 = vmatprep.subr.bf16.mxu0 %v5818
    %9158 = vmatpush1.bf16.msra.mxu0 %v5817
    %9159 = vmatprep.subr.bf16.mxu0 %v5791
    %9160 = vmatpush1.bf16.msra.mxu0 %v5790
    %9161 = vmatprep.subr.bf16.mxu0 %v5764
    %9162 = vmatpush1.bf16.msra.mxu0 %v5763
    %9163 = vmatprep.subr.bf16.mxu0 %v5737
    %9164 = vmatpush1.bf16.msra.mxu0 %v5736
    %9165 = vmatprep.subr.bf16.mxu0 %v5710
    %9166 = vmatpush1.bf16.msra.mxu0 %v5709
    %9167 = vmatprep.subr.bf16.mxu0 %v5683
    %9168 = vmatpush1.bf16.msra.mxu0 %v5682
    %9169 = vmatprep.subr.bf16.mxu0 %v5656
    %9170 = vmatpush1.bf16.msra.mxu0 %v5655
    %9171 = vmatprep.subr.bf16.mxu0 %v6061
    %9172 = vmatpush2.bf16.msra.mxu0 %v6060
    %9173 = vmatprep.subr.bf16.mxu0 %v6034
    %9174 = vmatpush2.bf16.msra.mxu0 %v6033
    %9175 = vmatprep.subr.bf16.mxu0 %v6007
    %9176 = vmatpush2.bf16.msra.mxu0 %v6006
    %9177 = vmatprep.subr.bf16.mxu0 %v5980
    %9178 = vmatpush2.bf16.msra.mxu0 %v5979
    %9179 = vmatprep.subr.bf16.mxu0 %v5953
    %9180 = vmatpush2.bf16.msra.mxu0 %v5952
    %9181 = vmatprep.subr.bf16.mxu0 %v5926
    %9182 = vmatpush2.bf16.msra.mxu0 %v5925
    %9183 = vmatprep.subr.bf16.mxu0 %v5899
    %9184 = vmatpush2.bf16.msra.mxu0 %v5898
    %9185 = vmatprep.subr.bf16.mxu0 %v5872
    %9186 = vmatpush2.bf16.msra.mxu0 %v5871
    %9187 = vmatprep.mubr.bf16.mxu0 %v106
    %9188 = vmatmul.mubr.bf16.gmra.mxu0 %v105
    %v9189 = vpop.f32.mrf.mxu0
    %v9190 = vadd.f32 %v1535, %v9189
    %v9191 = vpop.f32.mrf.mxu0
    %v9192 = vadd.f32 %v1539, %v9191
    %v9193 = vpop.f32.mrf.mxu0
    %v9194 = vadd.f32 %v1535, %v9193
    %v9195 = vpop.f32.mrf.mxu0
    %v9196 = vadd.f32 %v1539, %v9195
    %9197 = vdwg.mxu0
    %9198 = vmatprep.subr.bf16.mxu0 %v6277
    %9199 = vmatpush1.bf16.msra.mxu0 %v6276
    %9200 = vmatprep.subr.bf16.mxu0 %v6250
    %9201 = vmatpush1.bf16.msra.mxu0 %v6249
    %9202 = vmatprep.subr.bf16.mxu0 %v6223
    %9203 = vmatpush1.bf16.msra.mxu0 %v6222
    %9204 = vmatprep.subr.bf16.mxu0 %v6196
    %9205 = vmatpush1.bf16.msra.mxu0 %v6195
    %9206 = vmatprep.subr.bf16.mxu0 %v6169
    %9207 = vmatpush1.bf16.msra.mxu0 %v6168
    %9208 = vmatprep.subr.bf16.mxu0 %v6142
    %9209 = vmatpush1.bf16.msra.mxu0 %v6141
    %9210 = vmatprep.subr.bf16.mxu0 %v6115
    %9211 = vmatpush1.bf16.msra.mxu0 %v6114
    %9212 = vmatprep.subr.bf16.mxu0 %v6088
    %9213 = vmatpush1.bf16.msra.mxu0 %v6087
    %9214 = vmatprep.subr.bf16.mxu0 %v6493
    %9215 = vmatpush2.bf16.msra.mxu0 %v6492
    %9216 = vmatprep.subr.bf16.mxu0 %v6466
    %9217 = vmatpush2.bf16.msra.mxu0 %v6465
    %9218 = vmatprep.subr.bf16.mxu0 %v6439
    %9219 = vmatpush2.bf16.msra.mxu0 %v6438
    %9220 = vmatprep.subr.bf16.mxu0 %v6412
    %9221 = vmatpush2.bf16.msra.mxu0 %v6411
    %9222 = vmatprep.subr.bf16.mxu0 %v6385
    %9223 = vmatpush2.bf16.msra.mxu0 %v6384
    %9224 = vmatprep.subr.bf16.mxu0 %v6358
    %9225 = vmatpush2.bf16.msra.mxu0 %v6357
    %9226 = vmatprep.subr.bf16.mxu0 %v6331
    %9227 = vmatpush2.bf16.msra.mxu0 %v6330
    %9228 = vmatprep.subr.bf16.mxu0 %v6304
    %9229 = vmatpush2.bf16.msra.mxu0 %v6303
    %9230 = vmatprep.mubr.bf16.mxu0 %v108
    %9231 = vmatmul.mubr.bf16.gmra.mxu0 %v107
    %v9232 = vpop.f32.mrf.mxu0
    %v9233 = vadd.f32 %v9190, %v9232
    %v9234 = vpop.f32.mrf.mxu0
    %v9235 = vadd.f32 %v9192, %v9234
    %v9236 = vpop.f32.mrf.mxu0
    %v9237 = vadd.f32 %v9194, %v9236
    %v9238 = vpop.f32.mrf.mxu0
    %v9239 = vadd.f32 %v9196, %v9238
    %9240 = vdwg.mxu0
    %9241 = vmatprep.subr.bf16.mxu0 %v6709
    %9242 = vmatpush1.bf16.msra.mxu0 %v6708
    %9243 = vmatprep.subr.bf16.mxu0 %v6682
    %9244 = vmatpush1.bf16.msra.mxu0 %v6681
    %9245 = vmatprep.subr.bf16.mxu0 %v6655
    %9246 = vmatpush1.bf16.msra.mxu0 %v6654
    %9247 = vmatprep.subr.bf16.mxu0 %v6628
    %9248 = vmatpush1.bf16.msra.mxu0 %v6627
    %9249 = vmatprep.subr.bf16.mxu0 %v6601
    %9250 = vmatpush1.bf16.msra.mxu0 %v6600
    %9251 = vmatprep.subr.bf16.mxu0 %v6574
    %9252 = vmatpush1.bf16.msra.mxu0 %v6573
    %9253 = vmatprep.subr.bf16.mxu0 %v6547
    %9254 = vmatpush1.bf16.msra.mxu0 %v6546
    %9255 = vmatprep.subr.bf16.mxu0 %v6520
    %9256 = vmatpush1.bf16.msra.mxu0 %v6519
    %9257 = vmatprep.subr.bf16.mxu0 %v6925
    %9258 = vmatpush2.bf16.msra.mxu0 %v6924
    %9259 = vmatprep.subr.bf16.mxu0 %v6898
    %9260 = vmatpush2.bf16.msra.mxu0 %v6897
    %9261 = vmatprep.subr.bf16.mxu0 %v6871
    %9262 = vmatpush2.bf16.msra.mxu0 %v6870
    %9263 = vmatprep.subr.bf16.mxu0 %v6844
    %9264 = vmatpush2.bf16.msra.mxu0 %v6843
    %9265 = vmatprep.subr.bf16.mxu0 %v6817
    %9266 = vmatpush2.bf16.msra.mxu0 %v6816
    %9267 = vmatprep.subr.bf16.mxu0 %v6790
    %9268 = vmatpush2.bf16.msra.mxu0 %v6789
    %9269 = vmatprep.subr.bf16.mxu0 %v6763
    %9270 = vmatpush2.bf16.msra.mxu0 %v6762
    %9271 = vmatprep.subr.bf16.mxu0 %v6736
    %9272 = vmatpush2.bf16.msra.mxu0 %v6735
    %9273 = vmatprep.mubr.bf16.mxu0 %v110
    %9274 = vmatmul.mubr.bf16.gmra.mxu0 %v109
    %v9275 = vpop.f32.mrf.mxu0
    %v9276 = vadd.f32 %v9233, %v9275
    %v9277 = vpop.f32.mrf.mxu0
    %v9278 = vadd.f32 %v9235, %v9277
    %v9279 = vpop.f32.mrf.mxu0
    %v9280 = vadd.f32 %v9237, %v9279
    %v9281 = vpop.f32.mrf.mxu0
    %v9282 = vadd.f32 %v9239, %v9281
    %9283 = vdwg.mxu0
    %9284 = vmatprep.subr.bf16.mxu0 0
    %9285 = vmatpush1.bf16.msra.mxu0 0
    %9286 = vmatprep.subr.bf16.mxu0 0
    %9287 = vmatpush1.bf16.msra.mxu0 0
    %9288 = vmatprep.subr.bf16.mxu0 0
    %9289 = vmatpush1.bf16.msra.mxu0 0
    %9290 = vmatprep.subr.bf16.mxu0 0
    %9291 = vmatpush1.bf16.msra.mxu0 0
    %9292 = vmatprep.subr.bf16.mxu0 0
    %9293 = vmatpush1.bf16.msra.mxu0 0
    %9294 = vmatprep.subr.bf16.mxu0 0
    %9295 = vmatpush1.bf16.msra.mxu0 0
    %9296 = vmatprep.subr.bf16.mxu0 0
    %9297 = vmatpush1.bf16.msra.mxu0 0
    %9298 = vmatprep.subr.bf16.mxu0 %v6952
    %9299 = vmatpush1.bf16.msra.mxu0 %v6951
    %9300 = vmatprep.subr.bf16.mxu0 0
    %9301 = vmatpush2.bf16.msra.mxu0 0
    %9302 = vmatprep.subr.bf16.mxu0 0
    %9303 = vmatpush2.bf16.msra.mxu0 0
    %9304 = vmatprep.subr.bf16.mxu0 0
    %9305 = vmatpush2.bf16.msra.mxu0 0
    %9306 = vmatprep.subr.bf16.mxu0 0
    %9307 = vmatpush2.bf16.msra.mxu0 0
    %9308 = vmatprep.subr.bf16.mxu0 0
    %9309 = vmatpush2.bf16.msra.mxu0 0
    %9310 = vmatprep.subr.bf16.mxu0 0
    %9311 = vmatpush2.bf16.msra.mxu0 0
    %9312 = vmatprep.subr.bf16.mxu0 0
    %9313 = vmatpush2.bf16.msra.mxu0 0
    %9314 = vmatprep.subr.bf16.mxu0 0
    %9315 = vmatpush2.bf16.msra.mxu0 0
    %9316 = vmatprep.mubr.bf16.mxu0 0
    %9317 = vmatmul.mubr.bf16.gmra.mxu0 %v8293
    %v9318 = vpop.f32.mrf.mxu0
    %v9319 = vadd.f32 %v9276, %v9318
    %v9320 = vpop.f32.mrf.mxu0
    %v9321 = vadd.f32 %v9278, %v9320
    %v9322 = vpop.f32.mrf.mxu0
    %v9323 = vadd.f32 %v9280, %v9322
    %v9324 = vpop.f32.mrf.mxu0
    %v9325 = vadd.f32 %v9282, %v9324
    %9326 = vdwg.mxu0
    %9327 = vmatprep.subr.bf16.mxu0 %v5847
    %9328 = vmatpush1.bf16.msra.mxu0 %v5846
    %9329 = vmatprep.subr.bf16.mxu0 %v5820
    %9330 = vmatpush1.bf16.msra.mxu0 %v5819
    %9331 = vmatprep.subr.bf16.mxu0 %v5793
    %9332 = vmatpush1.bf16.msra.mxu0 %v5792
    %9333 = vmatprep.subr.bf16.mxu0 %v5766
    %9334 = vmatpush1.bf16.msra.mxu0 %v5765
    %9335 = vmatprep.subr.bf16.mxu0 %v5739
    %9336 = vmatpush1.bf16.msra.mxu0 %v5738
    %9337 = vmatprep.subr.bf16.mxu0 %v5712
    %9338 = vmatpush1.bf16.msra.mxu0 %v5711
    %9339 = vmatprep.subr.bf16.mxu0 %v5685
    %9340 = vmatpush1.bf16.msra.mxu0 %v5684
    %9341 = vmatprep.subr.bf16.mxu0 %v5658
    %9342 = vmatpush1.bf16.msra.mxu0 %v5657
    %9343 = vmatprep.subr.bf16.mxu0 %v6063
    %9344 = vmatpush2.bf16.msra.mxu0 %v6062
    %9345 = vmatprep.subr.bf16.mxu0 %v6036
    %9346 = vmatpush2.bf16.msra.mxu0 %v6035
    %9347 = vmatprep.subr.bf16.mxu0 %v6009
    %9348 = vmatpush2.bf16.msra.mxu0 %v6008
    %9349 = vmatprep.subr.bf16.mxu0 %v5982
    %9350 = vmatpush2.bf16.msra.mxu0 %v5981
    %9351 = vmatprep.subr.bf16.mxu0 %v5955
    %9352 = vmatpush2.bf16.msra.mxu0 %v5954
    %9353 = vmatprep.subr.bf16.mxu0 %v5928
    %9354 = vmatpush2.bf16.msra.mxu0 %v5927
    %9355 = vmatprep.subr.bf16.mxu0 %v5901
    %9356 = vmatpush2.bf16.msra.mxu0 %v5900
    %9357 = vmatprep.subr.bf16.mxu0 %v5874
    %9358 = vmatpush2.bf16.msra.mxu0 %v5873
    %9359 = vmatprep.mubr.bf16.mxu0 %v106
    %9360 = vmatmul.mubr.bf16.gmra.mxu0 %v105
    %v9361 = vpop.f32.mrf.mxu0
    %v9362 = vadd.f32 %v1543, %v9361
    %v9363 = vpop.f32.mrf.mxu0
    %v9364 = vadd.f32 %v1547, %v9363
    %v9365 = vpop.f32.mrf.mxu0
    %v9366 = vadd.f32 %v1543, %v9365
    %v9367 = vpop.f32.mrf.mxu0
    %v9368 = vadd.f32 %v1547, %v9367
    %9369 = vdwg.mxu0
    %9370 = vmatprep.subr.bf16.mxu0 %v6279
    %9371 = vmatpush1.bf16.msra.mxu0 %v6278
    %9372 = vmatprep.subr.bf16.mxu0 %v6252
    %9373 = vmatpush1.bf16.msra.mxu0 %v6251
    %9374 = vmatprep.subr.bf16.mxu0 %v6225
    %9375 = vmatpush1.bf16.msra.mxu0 %v6224
    %9376 = vmatprep.subr.bf16.mxu0 %v6198
    %9377 = vmatpush1.bf16.msra.mxu0 %v6197
    %9378 = vmatprep.subr.bf16.mxu0 %v6171
    %9379 = vmatpush1.bf16.msra.mxu0 %v6170
    %9380 = vmatprep.subr.bf16.mxu0 %v6144
    %9381 = vmatpush1.bf16.msra.mxu0 %v6143
    %9382 = vmatprep.subr.bf16.mxu0 %v6117
    %9383 = vmatpush1.bf16.msra.mxu0 %v6116
    %9384 = vmatprep.subr.bf16.mxu0 %v6090
    %9385 = vmatpush1.bf16.msra.mxu0 %v6089
    %9386 = vmatprep.subr.bf16.mxu0 %v6495
    %9387 = vmatpush2.bf16.msra.mxu0 %v6494
    %9388 = vmatprep.subr.bf16.mxu0 %v6468
    %9389 = vmatpush2.bf16.msra.mxu0 %v6467
    %9390 = vmatprep.subr.bf16.mxu0 %v6441
    %9391 = vmatpush2.bf16.msra.mxu0 %v6440
    %9392 = vmatprep.subr.bf16.mxu0 %v6414
    %9393 = vmatpush2.bf16.msra.mxu0 %v6413
    %9394 = vmatprep.subr.bf16.mxu0 %v6387
    %9395 = vmatpush2.bf16.msra.mxu0 %v6386
    %9396 = vmatprep.subr.bf16.mxu0 %v6360
    %9397 = vmatpush2.bf16.msra.mxu0 %v6359
    %9398 = vmatprep.subr.bf16.mxu0 %v6333
    %9399 = vmatpush2.bf16.msra.mxu0 %v6332
    %9400 = vmatprep.subr.bf16.mxu0 %v6306
    %9401 = vmatpush2.bf16.msra.mxu0 %v6305
    %9402 = vmatprep.mubr.bf16.mxu0 %v108
    %9403 = vmatmul.mubr.bf16.gmra.mxu0 %v107
    %v9404 = vpop.f32.mrf.mxu0
    %v9405 = vadd.f32 %v9362, %v9404
    %v9406 = vpop.f32.mrf.mxu0
    %v9407 = vadd.f32 %v9364, %v9406
    %v9408 = vpop.f32.mrf.mxu0
    %v9409 = vadd.f32 %v9366, %v9408
    %v9410 = vpop.f32.mrf.mxu0
    %v9411 = vadd.f32 %v9368, %v9410
    %9412 = vdwg.mxu0
    %9413 = vmatprep.subr.bf16.mxu0 %v6711
    %9414 = vmatpush1.bf16.msra.mxu0 %v6710
    %9415 = vmatprep.subr.bf16.mxu0 %v6684
    %9416 = vmatpush1.bf16.msra.mxu0 %v6683
    %9417 = vmatprep.subr.bf16.mxu0 %v6657
    %9418 = vmatpush1.bf16.msra.mxu0 %v6656
    %9419 = vmatprep.subr.bf16.mxu0 %v6630
    %9420 = vmatpush1.bf16.msra.mxu0 %v6629
    %9421 = vmatprep.subr.bf16.mxu0 %v6603
    %9422 = vmatpush1.bf16.msra.mxu0 %v6602
    %9423 = vmatprep.subr.bf16.mxu0 %v6576
    %9424 = vmatpush1.bf16.msra.mxu0 %v6575
    %9425 = vmatprep.subr.bf16.mxu0 %v6549
    %9426 = vmatpush1.bf16.msra.mxu0 %v6548
    %9427 = vmatprep.subr.bf16.mxu0 %v6522
    %9428 = vmatpush1.bf16.msra.mxu0 %v6521
    %9429 = vmatprep.subr.bf16.mxu0 %v6927
    %9430 = vmatpush2.bf16.msra.mxu0 %v6926
    %9431 = vmatprep.subr.bf16.mxu0 %v6900
    %9432 = vmatpush2.bf16.msra.mxu0 %v6899
    %9433 = vmatprep.subr.bf16.mxu0 %v6873
    %9434 = vmatpush2.bf16.msra.mxu0 %v6872
    %9435 = vmatprep.subr.bf16.mxu0 %v6846
    %9436 = vmatpush2.bf16.msra.mxu0 %v6845
    %9437 = vmatprep.subr.bf16.mxu0 %v6819
    %9438 = vmatpush2.bf16.msra.mxu0 %v6818
    %9439 = vmatprep.subr.bf16.mxu0 %v6792
    %9440 = vmatpush2.bf16.msra.mxu0 %v6791
    %9441 = vmatprep.subr.bf16.mxu0 %v6765
    %9442 = vmatpush2.bf16.msra.mxu0 %v6764
    %9443 = vmatprep.subr.bf16.mxu0 %v6738
    %9444 = vmatpush2.bf16.msra.mxu0 %v6737
    %9445 = vmatprep.mubr.bf16.mxu0 %v110
    %9446 = vmatmul.mubr.bf16.gmra.mxu0 %v109
    %v9447 = vpop.f32.mrf.mxu0
    %v9448 = vadd.f32 %v9405, %v9447
    %v9449 = vpop.f32.mrf.mxu0
    %v9450 = vadd.f32 %v9407, %v9449
    %v9451 = vpop.f32.mrf.mxu0
    %v9452 = vadd.f32 %v9409, %v9451
    %v9453 = vpop.f32.mrf.mxu0
    %v9454 = vadd.f32 %v9411, %v9453
    %9455 = vdwg.mxu0
    %9456 = vmatprep.subr.bf16.mxu0 0
    %9457 = vmatpush1.bf16.msra.mxu0 0
    %9458 = vmatprep.subr.bf16.mxu0 0
    %9459 = vmatpush1.bf16.msra.mxu0 0
    %9460 = vmatprep.subr.bf16.mxu0 0
    %9461 = vmatpush1.bf16.msra.mxu0 0
    %9462 = vmatprep.subr.bf16.mxu0 0
    %9463 = vmatpush1.bf16.msra.mxu0 0
    %9464 = vmatprep.subr.bf16.mxu0 0
    %9465 = vmatpush1.bf16.msra.mxu0 0
    %9466 = vmatprep.subr.bf16.mxu0 0
    %9467 = vmatpush1.bf16.msra.mxu0 0
    %9468 = vmatprep.subr.bf16.mxu0 0
    %9469 = vmatpush1.bf16.msra.mxu0 0
    %9470 = vmatprep.subr.bf16.mxu0 %v6954
    %9471 = vmatpush1.bf16.msra.mxu0 %v6953
    %9472 = vmatprep.subr.bf16.mxu0 0
    %9473 = vmatpush2.bf16.msra.mxu0 0
    %9474 = vmatprep.subr.bf16.mxu0 0
    %9475 = vmatpush2.bf16.msra.mxu0 0
    %9476 = vmatprep.subr.bf16.mxu0 0
    %9477 = vmatpush2.bf16.msra.mxu0 0
    %9478 = vmatprep.subr.bf16.mxu0 0
    %9479 = vmatpush2.bf16.msra.mxu0 0
    %9480 = vmatprep.subr.bf16.mxu0 0
    %9481 = vmatpush2.bf16.msra.mxu0 0
    %9482 = vmatprep.subr.bf16.mxu0 0
    %9483 = vmatpush2.bf16.msra.mxu0 0
    %9484 = vmatprep.subr.bf16.mxu0 0
    %9485 = vmatpush2.bf16.msra.mxu0 0
    %9486 = vmatprep.subr.bf16.mxu0 0
    %9487 = vmatpush2.bf16.msra.mxu0 0
    %9488 = vmatprep.mubr.bf16.mxu0 0
    %9489 = vmatmul.mubr.bf16.gmra.mxu0 %v8293
    %v9490 = vpop.f32.mrf.mxu0
    %v9491 = vadd.f32 %v9448, %v9490
    %v9492 = vpop.f32.mrf.mxu0
    %v9493 = vadd.f32 %v9450, %v9492
    %v9494 = vpop.f32.mrf.mxu0
    %v9495 = vadd.f32 %v9452, %v9494
    %v9496 = vpop.f32.mrf.mxu0
    %v9497 = vadd.f32 %v9454, %v9496
    %9498 = vdwg.mxu0
    %9499 = vmatprep.subr.bf16.mxu0 %v5849
    %9500 = vmatpush1.bf16.msra.mxu0 %v5848
    %9501 = vmatprep.subr.bf16.mxu0 %v5822
    %9502 = vmatpush1.bf16.msra.mxu0 %v5821
    %9503 = vmatprep.subr.bf16.mxu0 %v5795
    %9504 = vmatpush1.bf16.msra.mxu0 %v5794
    %9505 = vmatprep.subr.bf16.mxu0 %v5768
    %9506 = vmatpush1.bf16.msra.mxu0 %v5767
    %9507 = vmatprep.subr.bf16.mxu0 %v5741
    %9508 = vmatpush1.bf16.msra.mxu0 %v5740
    %9509 = vmatprep.subr.bf16.mxu0 %v5714
    %9510 = vmatpush1.bf16.msra.mxu0 %v5713
    %9511 = vmatprep.subr.bf16.mxu0 %v5687
    %9512 = vmatpush1.bf16.msra.mxu0 %v5686
    %9513 = vmatprep.subr.bf16.mxu0 %v5660
    %9514 = vmatpush1.bf16.msra.mxu0 %v5659
    %9515 = vmatprep.subr.bf16.mxu0 %v6065
    %9516 = vmatpush2.bf16.msra.mxu0 %v6064
    %9517 = vmatprep.subr.bf16.mxu0 %v6038
    %9518 = vmatpush2.bf16.msra.mxu0 %v6037
    %9519 = vmatprep.subr.bf16.mxu0 %v6011
    %9520 = vmatpush2.bf16.msra.mxu0 %v6010
    %9521 = vmatprep.subr.bf16.mxu0 %v5984
    %9522 = vmatpush2.bf16.msra.mxu0 %v5983
    %9523 = vmatprep.subr.bf16.mxu0 %v5957
    %9524 = vmatpush2.bf16.msra.mxu0 %v5956
    %9525 = vmatprep.subr.bf16.mxu0 %v5930
    %9526 = vmatpush2.bf16.msra.mxu0 %v5929
    %9527 = vmatprep.subr.bf16.mxu0 %v5903
    %9528 = vmatpush2.bf16.msra.mxu0 %v5902
    %9529 = vmatprep.subr.bf16.mxu0 %v5876
    %9530 = vmatpush2.bf16.msra.mxu0 %v5875
    %9531 = vmatprep.mubr.bf16.mxu0 %v106
    %9532 = vmatmul.mubr.bf16.gmra.mxu0 %v105
    %v9533 = vpop.f32.mrf.mxu0
    %v9534 = vadd.f32 %v1551, %v9533
    %v9535 = vpop.f32.mrf.mxu0
    %v9536 = vadd.f32 %v1555, %v9535
    %v9537 = vpop.f32.mrf.mxu0
    %v9538 = vadd.f32 %v1551, %v9537
    %v9539 = vpop.f32.mrf.mxu0
    %v9540 = vadd.f32 %v1555, %v9539
    %9541 = vdwg.mxu0
    %9542 = vmatprep.subr.bf16.mxu0 %v6281
    %9543 = vmatpush1.bf16.msra.mxu0 %v6280
    %9544 = vmatprep.subr.bf16.mxu0 %v6254
    %9545 = vmatpush1.bf16.msra.mxu0 %v6253
    %9546 = vmatprep.subr.bf16.mxu0 %v6227
    %9547 = vmatpush1.bf16.msra.mxu0 %v6226
    %9548 = vmatprep.subr.bf16.mxu0 %v6200
    %9549 = vmatpush1.bf16.msra.mxu0 %v6199
    %9550 = vmatprep.subr.bf16.mxu0 %v6173
    %9551 = vmatpush1.bf16.msra.mxu0 %v6172
    %9552 = vmatprep.subr.bf16.mxu0 %v6146
    %9553 = vmatpush1.bf16.msra.mxu0 %v6145
    %9554 = vmatprep.subr.bf16.mxu0 %v6119
    %9555 = vmatpush1.bf16.msra.mxu0 %v6118
    %9556 = vmatprep.subr.bf16.mxu0 %v6092
    %9557 = vmatpush1.bf16.msra.mxu0 %v6091
    %9558 = vmatprep.subr.bf16.mxu0 %v6497
    %9559 = vmatpush2.bf16.msra.mxu0 %v6496
    %9560 = vmatprep.subr.bf16.mxu0 %v6470
    %9561 = vmatpush2.bf16.msra.mxu0 %v6469
    %9562 = vmatprep.subr.bf16.mxu0 %v6443
    %9563 = vmatpush2.bf16.msra.mxu0 %v6442
    %9564 = vmatprep.subr.bf16.mxu0 %v6416
    %9565 = vmatpush2.bf16.msra.mxu0 %v6415
    %9566 = vmatprep.subr.bf16.mxu0 %v6389
    %9567 = vmatpush2.bf16.msra.mxu0 %v6388
    %9568 = vmatprep.subr.bf16.mxu0 %v6362
    %9569 = vmatpush2.bf16.msra.mxu0 %v6361
    %9570 = vmatprep.subr.bf16.mxu0 %v6335
    %9571 = vmatpush2.bf16.msra.mxu0 %v6334
    %9572 = vmatprep.subr.bf16.mxu0 %v6308
    %9573 = vmatpush2.bf16.msra.mxu0 %v6307
    %9574 = vmatprep.mubr.bf16.mxu0 %v108
    %9575 = vmatmul.mubr.bf16.gmra.mxu0 %v107
    %v9576 = vpop.f32.mrf.mxu0
    %v9577 = vadd.f32 %v9534, %v9576
    %v9578 = vpop.f32.mrf.mxu0
    %v9579 = vadd.f32 %v9536, %v9578
    %v9580 = vpop.f32.mrf.mxu0
    %v9581 = vadd.f32 %v9538, %v9580
    %v9582 = vpop.f32.mrf.mxu0
    %v9583 = vadd.f32 %v9540, %v9582
    %9584 = vdwg.mxu0
    %9585 = vmatprep.subr.bf16.mxu0 %v6713
    %9586 = vmatpush1.bf16.msra.mxu0 %v6712
    %9587 = vmatprep.subr.bf16.mxu0 %v6686
    %9588 = vmatpush1.bf16.msra.mxu0 %v6685
    %9589 = vmatprep.subr.bf16.mxu0 %v6659
    %9590 = vmatpush1.bf16.msra.mxu0 %v6658
    %9591 = vmatprep.subr.bf16.mxu0 %v6632
    %9592 = vmatpush1.bf16.msra.mxu0 %v6631
    %9593 = vmatprep.subr.bf16.mxu0 %v6605
    %9594 = vmatpush1.bf16.msra.mxu0 %v6604
    %9595 = vmatprep.subr.bf16.mxu0 %v6578
    %9596 = vmatpush1.bf16.msra.mxu0 %v6577
    %9597 = vmatprep.subr.bf16.mxu0 %v6551
    %9598 = vmatpush1.bf16.msra.mxu0 %v6550
    %9599 = vmatprep.subr.bf16.mxu0 %v6524
    %9600 = vmatpush1.bf16.msra.mxu0 %v6523
    %9601 = vmatprep.subr.bf16.mxu0 %v6929
    %9602 = vmatpush2.bf16.msra.mxu0 %v6928
    %9603 = vmatprep.subr.bf16.mxu0 %v6902
    %9604 = vmatpush2.bf16.msra.mxu0 %v6901
    %9605 = vmatprep.subr.bf16.mxu0 %v6875
    %9606 = vmatpush2.bf16.msra.mxu0 %v6874
    %9607 = vmatprep.subr.bf16.mxu0 %v6848
    %9608 = vmatpush2.bf16.msra.mxu0 %v6847
    %9609 = vmatprep.subr.bf16.mxu0 %v6821
    %9610 = vmatpush2.bf16.msra.mxu0 %v6820
    %9611 = vmatprep.subr.bf16.mxu0 %v6794
    %9612 = vmatpush2.bf16.msra.mxu0 %v6793
    %9613 = vmatprep.subr.bf16.mxu0 %v6767
    %9614 = vmatpush2.bf16.msra.mxu0 %v6766
    %9615 = vmatprep.subr.bf16.mxu0 %v6740
    %9616 = vmatpush2.bf16.msra.mxu0 %v6739
    %9617 = vmatprep.mubr.bf16.mxu0 %v110
    %9618 = vmatmul.mubr.bf16.gmra.mxu0 %v109
    %v9619 = vpop.f32.mrf.mxu0
    %v9620 = vadd.f32 %v9577, %v9619
    %v9621 = vpop.f32.mrf.mxu0
    %v9622 = vadd.f32 %v9579, %v9621
    %v9623 = vpop.f32.mrf.mxu0
    %v9624 = vadd.f32 %v9581, %v9623
    %v9625 = vpop.f32.mrf.mxu0
    %v9626 = vadd.f32 %v9583, %v9625
    %9627 = vdwg.mxu0
    %9628 = vmatprep.subr.bf16.mxu0 0
    %9629 = vmatpush1.bf16.msra.mxu0 0
    %9630 = vmatprep.subr.bf16.mxu0 0
    %9631 = vmatpush1.bf16.msra.mxu0 0
    %9632 = vmatprep.subr.bf16.mxu0 0
    %9633 = vmatpush1.bf16.msra.mxu0 0
    %9634 = vmatprep.subr.bf16.mxu0 0
    %9635 = vmatpush1.bf16.msra.mxu0 0
    %9636 = vmatprep.subr.bf16.mxu0 0
    %9637 = vmatpush1.bf16.msra.mxu0 0
    %9638 = vmatprep.subr.bf16.mxu0 0
    %9639 = vmatpush1.bf16.msra.mxu0 0
    %9640 = vmatprep.subr.bf16.mxu0 0
    %9641 = vmatpush1.bf16.msra.mxu0 0
    %9642 = vmatprep.subr.bf16.mxu0 %v6956
    %9643 = vmatpush1.bf16.msra.mxu0 %v6955
    %9644 = vmatprep.subr.bf16.mxu0 0
    %9645 = vmatpush2.bf16.msra.mxu0 0
    %9646 = vmatprep.subr.bf16.mxu0 0
    %9647 = vmatpush2.bf16.msra.mxu0 0
    %9648 = vmatprep.subr.bf16.mxu0 0
    %9649 = vmatpush2.bf16.msra.mxu0 0
    %9650 = vmatprep.subr.bf16.mxu0 0
    %9651 = vmatpush2.bf16.msra.mxu0 0
    %9652 = vmatprep.subr.bf16.mxu0 0
    %9653 = vmatpush2.bf16.msra.mxu0 0
    %9654 = vmatprep.subr.bf16.mxu0 0
    %9655 = vmatpush2.bf16.msra.mxu0 0
    %9656 = vmatprep.subr.bf16.mxu0 0
    %9657 = vmatpush2.bf16.msra.mxu0 0
    %9658 = vmatprep.subr.bf16.mxu0 0
    %9659 = vmatpush2.bf16.msra.mxu0 0
    %9660 = vmatprep.mubr.bf16.mxu0 0
    %9661 = vmatmul.mubr.bf16.gmra.mxu0 %v8293
    %v9662 = vpop.f32.mrf.mxu0
    %v9663 = vadd.f32 %v9620, %v9662
    %v9664 = vpop.f32.mrf.mxu0
    %v9665 = vadd.f32 %v9622, %v9664
    %v9666 = vpop.f32.mrf.mxu0
    %v9667 = vadd.f32 %v9624, %v9666
    %v9668 = vpop.f32.mrf.mxu0
    %v9669 = vadd.f32 %v9626, %v9668
    %9670 = vdwg.mxu0
    %9671 = vmatprep.subr.bf16.mxu0 %v5851
    %9672 = vmatpush1.bf16.msra.mxu0 %v5850
    %9673 = vmatprep.subr.bf16.mxu0 %v5824
    %9674 = vmatpush1.bf16.msra.mxu0 %v5823
    %9675 = vmatprep.subr.bf16.mxu0 %v5797
    %9676 = vmatpush1.bf16.msra.mxu0 %v5796
    %9677 = vmatprep.subr.bf16.mxu0 %v5770
    %9678 = vmatpush1.bf16.msra.mxu0 %v5769
    %9679 = vmatprep.subr.bf16.mxu0 %v5743
    %9680 = vmatpush1.bf16.msra.mxu0 %v5742
    %9681 = vmatprep.subr.bf16.mxu0 %v5716
    %9682 = vmatpush1.bf16.msra.mxu0 %v5715
    %9683 = vmatprep.subr.bf16.mxu0 %v5689
    %9684 = vmatpush1.bf16.msra.mxu0 %v5688
    %9685 = vmatprep.subr.bf16.mxu0 %v5662
    %9686 = vmatpush1.bf16.msra.mxu0 %v5661
    %9687 = vmatprep.subr.bf16.mxu0 %v6067
    %9688 = vmatpush2.bf16.msra.mxu0 %v6066
    %9689 = vmatprep.subr.bf16.mxu0 %v6040
    %9690 = vmatpush2.bf16.msra.mxu0 %v6039
    %9691 = vmatprep.subr.bf16.mxu0 %v6013
    %9692 = vmatpush2.bf16.msra.mxu0 %v6012
    %9693 = vmatprep.subr.bf16.mxu0 %v5986
    %9694 = vmatpush2.bf16.msra.mxu0 %v5985
    %9695 = vmatprep.subr.bf16.mxu0 %v5959
    %9696 = vmatpush2.bf16.msra.mxu0 %v5958
    %9697 = vmatprep.subr.bf16.mxu0 %v5932
    %9698 = vmatpush2.bf16.msra.mxu0 %v5931
    %9699 = vmatprep.subr.bf16.mxu0 %v5905
    %9700 = vmatpush2.bf16.msra.mxu0 %v5904
    %9701 = vmatprep.subr.bf16.mxu0 %v5878
    %9702 = vmatpush2.bf16.msra.mxu0 %v5877
    %9703 = vmatprep.mubr.bf16.mxu0 %v106
    %9704 = vmatmul.mubr.bf16.gmra.mxu0 %v105
    %v9705 = vpop.f32.mrf.mxu0
    %v9706 = vadd.f32 %v1559, %v9705
    %v9707 = vpop.f32.mrf.mxu0
    %v9708 = vadd.f32 %v1563, %v9707
    %v9709 = vpop.f32.mrf.mxu0
    %v9710 = vadd.f32 %v1559, %v9709
    %v9711 = vpop.f32.mrf.mxu0
    %v9712 = vadd.f32 %v1563, %v9711
    %9713 = vdwg.mxu0
    %9714 = vmatprep.subr.bf16.mxu0 %v6283
    %9715 = vmatpush1.bf16.msra.mxu0 %v6282
    %9716 = vmatprep.subr.bf16.mxu0 %v6256
    %9717 = vmatpush1.bf16.msra.mxu0 %v6255
    %9718 = vmatprep.subr.bf16.mxu0 %v6229
    %9719 = vmatpush1.bf16.msra.mxu0 %v6228
    %9720 = vmatprep.subr.bf16.mxu0 %v6202
    %9721 = vmatpush1.bf16.msra.mxu0 %v6201
    %9722 = vmatprep.subr.bf16.mxu0 %v6175
    %9723 = vmatpush1.bf16.msra.mxu0 %v6174
    %9724 = vmatprep.subr.bf16.mxu0 %v6148
    %9725 = vmatpush1.bf16.msra.mxu0 %v6147
    %9726 = vmatprep.subr.bf16.mxu0 %v6121
    %9727 = vmatpush1.bf16.msra.mxu0 %v6120
    %9728 = vmatprep.subr.bf16.mxu0 %v6094
    %9729 = vmatpush1.bf16.msra.mxu0 %v6093
    %9730 = vmatprep.subr.bf16.mxu0 %v6499
    %9731 = vmatpush2.bf16.msra.mxu0 %v6498
    %9732 = vmatprep.subr.bf16.mxu0 %v6472
    %9733 = vmatpush2.bf16.msra.mxu0 %v6471
    %9734 = vmatprep.subr.bf16.mxu0 %v6445
    %9735 = vmatpush2.bf16.msra.mxu0 %v6444
    %9736 = vmatprep.subr.bf16.mxu0 %v6418
    %9737 = vmatpush2.bf16.msra.mxu0 %v6417
    %9738 = vmatprep.subr.bf16.mxu0 %v6391
    %9739 = vmatpush2.bf16.msra.mxu0 %v6390
    %9740 = vmatprep.subr.bf16.mxu0 %v6364
    %9741 = vmatpush2.bf16.msra.mxu0 %v6363
    %9742 = vmatprep.subr.bf16.mxu0 %v6337
    %9743 = vmatpush2.bf16.msra.mxu0 %v6336
    %9744 = vmatprep.subr.bf16.mxu0 %v6310
    %9745 = vmatpush2.bf16.msra.mxu0 %v6309
    %9746 = vmatprep.mubr.bf16.mxu0 %v108
    %9747 = vmatmul.mubr.bf16.gmra.mxu0 %v107
    %v9748 = vpop.f32.mrf.mxu0
    %v9749 = vadd.f32 %v9706, %v9748
    %v9750 = vpop.f32.mrf.mxu0
    %v9751 = vadd.f32 %v9708, %v9750
    %v9752 = vpop.f32.mrf.mxu0
    %v9753 = vadd.f32 %v9710, %v9752
    %v9754 = vpop.f32.mrf.mxu0
    %v9755 = vadd.f32 %v9712, %v9754
    %9756 = vdwg.mxu0
    %9757 = vmatprep.subr.bf16.mxu0 %v6715
    %9758 = vmatpush1.bf16.msra.mxu0 %v6714
    %9759 = vmatprep.subr.bf16.mxu0 %v6688
    %9760 = vmatpush1.bf16.msra.mxu0 %v6687
    %9761 = vmatprep.subr.bf16.mxu0 %v6661
    %9762 = vmatpush1.bf16.msra.mxu0 %v6660
    %9763 = vmatprep.subr.bf16.mxu0 %v6634
    %9764 = vmatpush1.bf16.msra.mxu0 %v6633
    %9765 = vmatprep.subr.bf16.mxu0 %v6607
    %9766 = vmatpush1.bf16.msra.mxu0 %v6606
    %9767 = vmatprep.subr.bf16.mxu0 %v6580
    %9768 = vmatpush1.bf16.msra.mxu0 %v6579
    %9769 = vmatprep.subr.bf16.mxu0 %v6553
    %9770 = vmatpush1.bf16.msra.mxu0 %v6552
    %9771 = vmatprep.subr.bf16.mxu0 %v6526
    %9772 = vmatpush1.bf16.msra.mxu0 %v6525
    %9773 = vmatprep.subr.bf16.mxu0 %v6931
    %9774 = vmatpush2.bf16.msra.mxu0 %v6930
    %9775 = vmatprep.subr.bf16.mxu0 %v6904
    %9776 = vmatpush2.bf16.msra.mxu0 %v6903
    %9777 = vmatprep.subr.bf16.mxu0 %v6877
    %9778 = vmatpush2.bf16.msra.mxu0 %v6876
    %9779 = vmatprep.subr.bf16.mxu0 %v6850
    %9780 = vmatpush2.bf16.msra.mxu0 %v6849
    %9781 = vmatprep.subr.bf16.mxu0 %v6823
    %9782 = vmatpush2.bf16.msra.mxu0 %v6822
    %9783 = vmatprep.subr.bf16.mxu0 %v6796
    %9784 = vmatpush2.bf16.msra.mxu0 %v6795
    %9785 = vmatprep.subr.bf16.mxu0 %v6769
    %9786 = vmatpush2.bf16.msra.mxu0 %v6768
    %9787 = vmatprep.subr.bf16.mxu0 %v6742
    %9788 = vmatpush2.bf16.msra.mxu0 %v6741
    %9789 = vmatprep.mubr.bf16.mxu0 %v110
    %9790 = vmatmul.mubr.bf16.gmra.mxu0 %v109
    %v9791 = vpop.f32.mrf.mxu0
    %v9792 = vadd.f32 %v9749, %v9791
    %v9793 = vpop.f32.mrf.mxu0
    %v9794 = vadd.f32 %v9751, %v9793
    %v9795 = vpop.f32.mrf.mxu0
    %v9796 = vadd.f32 %v9753, %v9795
    %v9797 = vpop.f32.mrf.mxu0
    %v9798 = vadd.f32 %v9755, %v9797
    %9799 = vdwg.mxu0
    %9800 = vmatprep.subr.bf16.mxu0 0
    %9801 = vmatpush1.bf16.msra.mxu0 0
    %9802 = vmatprep.subr.bf16.mxu0 0
    %9803 = vmatpush1.bf16.msra.mxu0 0
    %9804 = vmatprep.subr.bf16.mxu0 0
    %9805 = vmatpush1.bf16.msra.mxu0 0
    %9806 = vmatprep.subr.bf16.mxu0 0
    %9807 = vmatpush1.bf16.msra.mxu0 0
    %9808 = vmatprep.subr.bf16.mxu0 0
    %9809 = vmatpush1.bf16.msra.mxu0 0
    %9810 = vmatprep.subr.bf16.mxu0 0
    %9811 = vmatpush1.bf16.msra.mxu0 0
    %9812 = vmatprep.subr.bf16.mxu0 0
    %9813 = vmatpush1.bf16.msra.mxu0 0
    %9814 = vmatprep.subr.bf16.mxu0 %v6958
    %9815 = vmatpush1.bf16.msra.mxu0 %v6957
    %9816 = vmatprep.subr.bf16.mxu0 0
    %9817 = vmatpush2.bf16.msra.mxu0 0
    %9818 = vmatprep.subr.bf16.mxu0 0
    %9819 = vmatpush2.bf16.msra.mxu0 0
    %9820 = vmatprep.subr.bf16.mxu0 0
    %9821 = vmatpush2.bf16.msra.mxu0 0
    %9822 = vmatprep.subr.bf16.mxu0 0
    %9823 = vmatpush2.bf16.msra.mxu0 0
    %9824 = vmatprep.subr.bf16.mxu0 0
    %9825 = vmatpush2.bf16.msra.mxu0 0
    %9826 = vmatprep.subr.bf16.mxu0 0
    %9827 = vmatpush2.bf16.msra.mxu0 0
    %9828 = vmatprep.subr.bf16.mxu0 0
    %9829 = vmatpush2.bf16.msra.mxu0 0
    %9830 = vmatprep.subr.bf16.mxu0 0
    %9831 = vmatpush2.bf16.msra.mxu0 0
    %9832 = vmatprep.mubr.bf16.mxu0 0
    %9833 = vmatmul.mubr.bf16.gmra.mxu0 %v8293
    %v9834 = vpop.f32.mrf.mxu0
    %v9835 = vadd.f32 %v9792, %v9834
    %v9836 = vpop.f32.mrf.mxu0
    %v9837 = vadd.f32 %v9794, %v9836
    %v9838 = vpop.f32.mrf.mxu0
    %v9839 = vadd.f32 %v9796, %v9838
    %v9840 = vpop.f32.mrf.mxu0
    %v9841 = vadd.f32 %v9798, %v9840
    %9842 = vdwg.mxu0
    %9843 = vmatprep.subr.bf16.mxu0 %v5853
    %9844 = vmatpush1.bf16.msra.mxu0 %v5852
    %9845 = vmatprep.subr.bf16.mxu0 %v5826
    %9846 = vmatpush1.bf16.msra.mxu0 %v5825
    %9847 = vmatprep.subr.bf16.mxu0 %v5799
    %9848 = vmatpush1.bf16.msra.mxu0 %v5798
    %9849 = vmatprep.subr.bf16.mxu0 %v5772
    %9850 = vmatpush1.bf16.msra.mxu0 %v5771
    %9851 = vmatprep.subr.bf16.mxu0 %v5745
    %9852 = vmatpush1.bf16.msra.mxu0 %v5744
    %9853 = vmatprep.subr.bf16.mxu0 %v5718
    %9854 = vmatpush1.bf16.msra.mxu0 %v5717
    %9855 = vmatprep.subr.bf16.mxu0 %v5691
    %9856 = vmatpush1.bf16.msra.mxu0 %v5690
    %9857 = vmatprep.subr.bf16.mxu0 %v5664
    %9858 = vmatpush1.bf16.msra.mxu0 %v5663
    %9859 = vmatprep.subr.bf16.mxu0 %v6069
    %9860 = vmatpush2.bf16.msra.mxu0 %v6068
    %9861 = vmatprep.subr.bf16.mxu0 %v6042
    %9862 = vmatpush2.bf16.msra.mxu0 %v6041
    %9863 = vmatprep.subr.bf16.mxu0 %v6015
    %9864 = vmatpush2.bf16.msra.mxu0 %v6014
    %9865 = vmatprep.subr.bf16.mxu0 %v5988
    %9866 = vmatpush2.bf16.msra.mxu0 %v5987
    %9867 = vmatprep.subr.bf16.mxu0 %v5961
    %9868 = vmatpush2.bf16.msra.mxu0 %v5960
    %9869 = vmatprep.subr.bf16.mxu0 %v5934
    %9870 = vmatpush2.bf16.msra.mxu0 %v5933
    %9871 = vmatprep.subr.bf16.mxu0 %v5907
    %9872 = vmatpush2.bf16.msra.mxu0 %v5906
    %9873 = vmatprep.subr.bf16.mxu0 %v5880
    %9874 = vmatpush2.bf16.msra.mxu0 %v5879
    %9875 = vmatprep.mubr.bf16.mxu0 %v106
    %9876 = vmatmul.mubr.bf16.gmra.mxu0 %v105
    %v9877 = vpop.f32.mrf.mxu0
    %v9878 = vadd.f32 %v1567, %v9877
    %v9879 = vpop.f32.mrf.mxu0
    %v9880 = vadd.f32 %v1571, %v9879
    %v9881 = vpop.f32.mrf.mxu0
    %v9882 = vadd.f32 %v1567, %v9881
    %v9883 = vpop.f32.mrf.mxu0
    %v9884 = vadd.f32 %v1571, %v9883
    %9885 = vdwg.mxu0
    %9886 = vmatprep.subr.bf16.mxu0 %v6285
    %9887 = vmatpush1.bf16.msra.mxu0 %v6284
    %9888 = vmatprep.subr.bf16.mxu0 %v6258
    %9889 = vmatpush1.bf16.msra.mxu0 %v6257
    %9890 = vmatprep.subr.bf16.mxu0 %v6231
    %9891 = vmatpush1.bf16.msra.mxu0 %v6230
    %9892 = vmatprep.subr.bf16.mxu0 %v6204
    %9893 = vmatpush1.bf16.msra.mxu0 %v6203
    %9894 = vmatprep.subr.bf16.mxu0 %v6177
    %9895 = vmatpush1.bf16.msra.mxu0 %v6176
    %9896 = vmatprep.subr.bf16.mxu0 %v6150
    %9897 = vmatpush1.bf16.msra.mxu0 %v6149
    %9898 = vmatprep.subr.bf16.mxu0 %v6123
    %9899 = vmatpush1.bf16.msra.mxu0 %v6122
    %9900 = vmatprep.subr.bf16.mxu0 %v6096
    %9901 = vmatpush1.bf16.msra.mxu0 %v6095
    %9902 = vmatprep.subr.bf16.mxu0 %v6501
    %9903 = vmatpush2.bf16.msra.mxu0 %v6500
    %9904 = vmatprep.subr.bf16.mxu0 %v6474
    %9905 = vmatpush2.bf16.msra.mxu0 %v6473
    %9906 = vmatprep.subr.bf16.mxu0 %v6447
    %9907 = vmatpush2.bf16.msra.mxu0 %v6446
    %9908 = vmatprep.subr.bf16.mxu0 %v6420
    %9909 = vmatpush2.bf16.msra.mxu0 %v6419
    %9910 = vmatprep.subr.bf16.mxu0 %v6393
    %9911 = vmatpush2.bf16.msra.mxu0 %v6392
    %9912 = vmatprep.subr.bf16.mxu0 %v6366
    %9913 = vmatpush2.bf16.msra.mxu0 %v6365
    %9914 = vmatprep.subr.bf16.mxu0 %v6339
    %9915 = vmatpush2.bf16.msra.mxu0 %v6338
    %9916 = vmatprep.subr.bf16.mxu0 %v6312
    %9917 = vmatpush2.bf16.msra.mxu0 %v6311
    %9918 = vmatprep.mubr.bf16.mxu0 %v108
    %9919 = vmatmul.mubr.bf16.gmra.mxu0 %v107
    %v9920 = vpop.f32.mrf.mxu0
    %v9921 = vadd.f32 %v9878, %v9920
    %v9922 = vpop.f32.mrf.mxu0
    %v9923 = vadd.f32 %v9880, %v9922
    %v9924 = vpop.f32.mrf.mxu0
    %v9925 = vadd.f32 %v9882, %v9924
    %v9926 = vpop.f32.mrf.mxu0
    %v9927 = vadd.f32 %v9884, %v9926
    %9928 = vdwg.mxu0
    %9929 = vmatprep.subr.bf16.mxu0 %v6717
    %9930 = vmatpush1.bf16.msra.mxu0 %v6716
    %9931 = vmatprep.subr.bf16.mxu0 %v6690
    %9932 = vmatpush1.bf16.msra.mxu0 %v6689
    %9933 = vmatprep.subr.bf16.mxu0 %v6663
    %9934 = vmatpush1.bf16.msra.mxu0 %v6662
    %9935 = vmatprep.subr.bf16.mxu0 %v6636
    %9936 = vmatpush1.bf16.msra.mxu0 %v6635
    %9937 = vmatprep.subr.bf16.mxu0 %v6609
    %9938 = vmatpush1.bf16.msra.mxu0 %v6608
    %9939 = vmatprep.subr.bf16.mxu0 %v6582
    %9940 = vmatpush1.bf16.msra.mxu0 %v6581
    %9941 = vmatprep.subr.bf16.mxu0 %v6555
    %9942 = vmatpush1.bf16.msra.mxu0 %v6554
    %9943 = vmatprep.subr.bf16.mxu0 %v6528
    %9944 = vmatpush1.bf16.msra.mxu0 %v6527
    %9945 = vmatprep.subr.bf16.mxu0 %v6933
    %9946 = vmatpush2.bf16.msra.mxu0 %v6932
    %9947 = vmatprep.subr.bf16.mxu0 %v6906
    %9948 = vmatpush2.bf16.msra.mxu0 %v6905
    %9949 = vmatprep.subr.bf16.mxu0 %v6879
    %9950 = vmatpush2.bf16.msra.mxu0 %v6878
    %9951 = vmatprep.subr.bf16.mxu0 %v6852
    %9952 = vmatpush2.bf16.msra.mxu0 %v6851
    %9953 = vmatprep.subr.bf16.mxu0 %v6825
    %9954 = vmatpush2.bf16.msra.mxu0 %v6824
    %9955 = vmatprep.subr.bf16.mxu0 %v6798
    %9956 = vmatpush2.bf16.msra.mxu0 %v6797
    %9957 = vmatprep.subr.bf16.mxu0 %v6771
    %9958 = vmatpush2.bf16.msra.mxu0 %v6770
    %9959 = vmatprep.subr.bf16.mxu0 %v6744
    %9960 = vmatpush2.bf16.msra.mxu0 %v6743
    %9961 = vmatprep.mubr.bf16.mxu0 %v110
    %9962 = vmatmul.mubr.bf16.gmra.mxu0 %v109
    %v9963 = vpop.f32.mrf.mxu0
    %v9964 = vadd.f32 %v9921, %v9963
    %v9965 = vpop.f32.mrf.mxu0
    %v9966 = vadd.f32 %v9923, %v9965
    %v9967 = vpop.f32.mrf.mxu0
    %v9968 = vadd.f32 %v9925, %v9967
    %v9969 = vpop.f32.mrf.mxu0
    %v9970 = vadd.f32 %v9927, %v9969
    %9971 = vdwg.mxu0
    %9972 = vmatprep.subr.bf16.mxu0 0
    %9973 = vmatpush1.bf16.msra.mxu0 0
    %9974 = vmatprep.subr.bf16.mxu0 0
    %9975 = vmatpush1.bf16.msra.mxu0 0
    %9976 = vmatprep.subr.bf16.mxu0 0
    %9977 = vmatpush1.bf16.msra.mxu0 0
    %9978 = vmatprep.subr.bf16.mxu0 0
    %9979 = vmatpush1.bf16.msra.mxu0 0
    %9980 = vmatprep.subr.bf16.mxu0 0
    %9981 = vmatpush1.bf16.msra.mxu0 0
    %9982 = vmatprep.subr.bf16.mxu0 0
    %9983 = vmatpush1.bf16.msra.mxu0 0
    %9984 = vmatprep.subr.bf16.mxu0 0
    %9985 = vmatpush1.bf16.msra.mxu0 0
    %9986 = vmatprep.subr.bf16.mxu0 %v6960
    %9987 = vmatpush1.bf16.msra.mxu0 %v6959
    %9988 = vmatprep.subr.bf16.mxu0 0
    %9989 = vmatpush2.bf16.msra.mxu0 0
    %9990 = vmatprep.subr.bf16.mxu0 0
    %9991 = vmatpush2.bf16.msra.mxu0 0
    %9992 = vmatprep.subr.bf16.mxu0 0
    %9993 = vmatpush2.bf16.msra.mxu0 0
    %9994 = vmatprep.subr.bf16.mxu0 0
    %9995 = vmatpush2.bf16.msra.mxu0 0
    %9996 = vmatprep.subr.bf16.mxu0 0
    %9997 = vmatpush2.bf16.msra.mxu0 0
    %9998 = vmatprep.subr.bf16.mxu0 0
    %9999 = vmatpush2.bf16.msra.mxu0 0
    %10000 = vmatprep.subr.bf16.mxu0 0
    %10001 = vmatpush2.bf16.msra.mxu0 0
    %10002 = vmatprep.subr.bf16.mxu0 0
    %10003 = vmatpush2.bf16.msra.mxu0 0
    %10004 = vmatprep.mubr.bf16.mxu0 0
    %10005 = vmatmul.mubr.bf16.gmra.mxu0 %v8293
    %v10006 = vpop.f32.mrf.mxu0
    %v10007 = vadd.f32 %v9964, %v10006
    %v10008 = vpop.f32.mrf.mxu0
    %v10009 = vadd.f32 %v9966, %v10008
    %v10010 = vpop.f32.mrf.mxu0
    %v10011 = vadd.f32 %v9968, %v10010
    %v10012 = vpop.f32.mrf.mxu0
    %v10013 = vadd.f32 %v9970, %v10012
    %10014 = vdwg.mxu0
    %10015 = vmatprep.subr.bf16.mxu0 %v5855
    %10016 = vmatpush1.bf16.msra.mxu0 %v5854
    %10017 = vmatprep.subr.bf16.mxu0 %v5828
    %10018 = vmatpush1.bf16.msra.mxu0 %v5827
    %10019 = vmatprep.subr.bf16.mxu0 %v5801
    %10020 = vmatpush1.bf16.msra.mxu0 %v5800
    %10021 = vmatprep.subr.bf16.mxu0 %v5774
    %10022 = vmatpush1.bf16.msra.mxu0 %v5773
    %10023 = vmatprep.subr.bf16.mxu0 %v5747
    %10024 = vmatpush1.bf16.msra.mxu0 %v5746
    %10025 = vmatprep.subr.bf16.mxu0 %v5720
    %10026 = vmatpush1.bf16.msra.mxu0 %v5719
    %10027 = vmatprep.subr.bf16.mxu0 %v5693
    %10028 = vmatpush1.bf16.msra.mxu0 %v5692
    %10029 = vmatprep.subr.bf16.mxu0 %v5666
    %10030 = vmatpush1.bf16.msra.mxu0 %v5665
    %10031 = vmatprep.subr.bf16.mxu0 %v6071
    %10032 = vmatpush2.bf16.msra.mxu0 %v6070
    %10033 = vmatprep.subr.bf16.mxu0 %v6044
    %10034 = vmatpush2.bf16.msra.mxu0 %v6043
    %10035 = vmatprep.subr.bf16.mxu0 %v6017
    %10036 = vmatpush2.bf16.msra.mxu0 %v6016
    %10037 = vmatprep.subr.bf16.mxu0 %v5990
    %10038 = vmatpush2.bf16.msra.mxu0 %v5989
    %10039 = vmatprep.subr.bf16.mxu0 %v5963
    %10040 = vmatpush2.bf16.msra.mxu0 %v5962
    %10041 = vmatprep.subr.bf16.mxu0 %v5936
    %10042 = vmatpush2.bf16.msra.mxu0 %v5935
    %10043 = vmatprep.subr.bf16.mxu0 %v5909
    %10044 = vmatpush2.bf16.msra.mxu0 %v5908
    %10045 = vmatprep.subr.bf16.mxu0 %v5882
    %10046 = vmatpush2.bf16.msra.mxu0 %v5881
    %10047 = vmatprep.mubr.bf16.mxu0 %v106
    %10048 = vmatmul.mubr.bf16.gmra.mxu0 %v105
    %v10049 = vpop.f32.mrf.mxu0
    %v10050 = vadd.f32 %v1575, %v10049
    %v10051 = vpop.f32.mrf.mxu0
    %v10052 = vadd.f32 %v1579, %v10051
    %v10053 = vpop.f32.mrf.mxu0
    %v10054 = vadd.f32 %v1575, %v10053
    %v10055 = vpop.f32.mrf.mxu0
    %v10056 = vadd.f32 %v1579, %v10055
    %10057 = vdwg.mxu0
    %10058 = vmatprep.subr.bf16.mxu0 %v6287
    %10059 = vmatpush1.bf16.msra.mxu0 %v6286
    %10060 = vmatprep.subr.bf16.mxu0 %v6260
    %10061 = vmatpush1.bf16.msra.mxu0 %v6259
    %10062 = vmatprep.subr.bf16.mxu0 %v6233
    %10063 = vmatpush1.bf16.msra.mxu0 %v6232
    %10064 = vmatprep.subr.bf16.mxu0 %v6206
    %10065 = vmatpush1.bf16.msra.mxu0 %v6205
    %10066 = vmatprep.subr.bf16.mxu0 %v6179
    %10067 = vmatpush1.bf16.msra.mxu0 %v6178
    %10068 = vmatprep.subr.bf16.mxu0 %v6152
    %10069 = vmatpush1.bf16.msra.mxu0 %v6151
    %10070 = vmatprep.subr.bf16.mxu0 %v6125
    %10071 = vmatpush1.bf16.msra.mxu0 %v6124
    %10072 = vmatprep.subr.bf16.mxu0 %v6098
    %10073 = vmatpush1.bf16.msra.mxu0 %v6097
    %10074 = vmatprep.subr.bf16.mxu0 %v6503
    %10075 = vmatpush2.bf16.msra.mxu0 %v6502
    %10076 = vmatprep.subr.bf16.mxu0 %v6476
    %10077 = vmatpush2.bf16.msra.mxu0 %v6475
    %10078 = vmatprep.subr.bf16.mxu0 %v6449
    %10079 = vmatpush2.bf16.msra.mxu0 %v6448
    %10080 = vmatprep.subr.bf16.mxu0 %v6422
    %10081 = vmatpush2.bf16.msra.mxu0 %v6421
    %10082 = vmatprep.subr.bf16.mxu0 %v6395
    %10083 = vmatpush2.bf16.msra.mxu0 %v6394
    %10084 = vmatprep.subr.bf16.mxu0 %v6368
    %10085 = vmatpush2.bf16.msra.mxu0 %v6367
    %10086 = vmatprep.subr.bf16.mxu0 %v6341
    %10087 = vmatpush2.bf16.msra.mxu0 %v6340
    %10088 = vmatprep.subr.bf16.mxu0 %v6314
    %10089 = vmatpush2.bf16.msra.mxu0 %v6313
    %10090 = vmatprep.mubr.bf16.mxu0 %v108
    %10091 = vmatmul.mubr.bf16.gmra.mxu0 %v107
    %v10092 = vpop.f32.mrf.mxu0
    %v10093 = vadd.f32 %v10050, %v10092
    %v10094 = vpop.f32.mrf.mxu0
    %v10095 = vadd.f32 %v10052, %v10094
    %v10096 = vpop.f32.mrf.mxu0
    %v10097 = vadd.f32 %v10054, %v10096
    %v10098 = vpop.f32.mrf.mxu0
    %v10099 = vadd.f32 %v10056, %v10098
    %10100 = vdwg.mxu0
    %10101 = vmatprep.subr.bf16.mxu0 %v6719
    %10102 = vmatpush1.bf16.msra.mxu0 %v6718
    %10103 = vmatprep.subr.bf16.mxu0 %v6692
    %10104 = vmatpush1.bf16.msra.mxu0 %v6691
    %10105 = vmatprep.subr.bf16.mxu0 %v6665
    %10106 = vmatpush1.bf16.msra.mxu0 %v6664
    %10107 = vmatprep.subr.bf16.mxu0 %v6638
    %10108 = vmatpush1.bf16.msra.mxu0 %v6637
    %10109 = vmatprep.subr.bf16.mxu0 %v6611
    %10110 = vmatpush1.bf16.msra.mxu0 %v6610
    %10111 = vmatprep.subr.bf16.mxu0 %v6584
    %10112 = vmatpush1.bf16.msra.mxu0 %v6583
    %10113 = vmatprep.subr.bf16.mxu0 %v6557
    %10114 = vmatpush1.bf16.msra.mxu0 %v6556
    %10115 = vmatprep.subr.bf16.mxu0 %v6530
    %10116 = vmatpush1.bf16.msra.mxu0 %v6529
    %10117 = vmatprep.subr.bf16.mxu0 %v6935
    %10118 = vmatpush2.bf16.msra.mxu0 %v6934
    %10119 = vmatprep.subr.bf16.mxu0 %v6908
    %10120 = vmatpush2.bf16.msra.mxu0 %v6907
    %10121 = vmatprep.subr.bf16.mxu0 %v6881
    %10122 = vmatpush2.bf16.msra.mxu0 %v6880
    %10123 = vmatprep.subr.bf16.mxu0 %v6854
    %10124 = vmatpush2.bf16.msra.mxu0 %v6853
    %10125 = vmatprep.subr.bf16.mxu0 %v6827
    %10126 = vmatpush2.bf16.msra.mxu0 %v6826
    %10127 = vmatprep.subr.bf16.mxu0 %v6800
    %10128 = vmatpush2.bf16.msra.mxu0 %v6799
    %10129 = vmatprep.subr.bf16.mxu0 %v6773
    %10130 = vmatpush2.bf16.msra.mxu0 %v6772
    %10131 = vmatprep.subr.bf16.mxu0 %v6746
    %10132 = vmatpush2.bf16.msra.mxu0 %v6745
    %10133 = vmatprep.mubr.bf16.mxu0 %v110
    %10134 = vmatmul.mubr.bf16.gmra.mxu0 %v109
    %v10135 = vpop.f32.mrf.mxu0
    %v10136 = vadd.f32 %v10093, %v10135
    %v10137 = vpop.f32.mrf.mxu0
    %v10138 = vadd.f32 %v10095, %v10137
    %v10139 = vpop.f32.mrf.mxu0
    %v10140 = vadd.f32 %v10097, %v10139
    %v10141 = vpop.f32.mrf.mxu0
    %v10142 = vadd.f32 %v10099, %v10141
    %10143 = vdwg.mxu0
    %10144 = vmatprep.subr.bf16.mxu0 0
    %10145 = vmatpush1.bf16.msra.mxu0 0
    %10146 = vmatprep.subr.bf16.mxu0 0
    %10147 = vmatpush1.bf16.msra.mxu0 0
    %10148 = vmatprep.subr.bf16.mxu0 0
    %10149 = vmatpush1.bf16.msra.mxu0 0
    %10150 = vmatprep.subr.bf16.mxu0 0
    %10151 = vmatpush1.bf16.msra.mxu0 0
    %10152 = vmatprep.subr.bf16.mxu0 0
    %10153 = vmatpush1.bf16.msra.mxu0 0
    %10154 = vmatprep.subr.bf16.mxu0 0
    %10155 = vmatpush1.bf16.msra.mxu0 0
    %10156 = vmatprep.subr.bf16.mxu0 0
    %10157 = vmatpush1.bf16.msra.mxu0 0
    %10158 = vmatprep.subr.bf16.mxu0 %v6962
    %10159 = vmatpush1.bf16.msra.mxu0 %v6961
    %10160 = vmatprep.subr.bf16.mxu0 0
    %10161 = vmatpush2.bf16.msra.mxu0 0
    %10162 = vmatprep.subr.bf16.mxu0 0
    %10163 = vmatpush2.bf16.msra.mxu0 0
    %10164 = vmatprep.subr.bf16.mxu0 0
    %10165 = vmatpush2.bf16.msra.mxu0 0
    %10166 = vmatprep.subr.bf16.mxu0 0
    %10167 = vmatpush2.bf16.msra.mxu0 0
    %10168 = vmatprep.subr.bf16.mxu0 0
    %10169 = vmatpush2.bf16.msra.mxu0 0
    %10170 = vmatprep.subr.bf16.mxu0 0
    %10171 = vmatpush2.bf16.msra.mxu0 0
    %10172 = vmatprep.subr.bf16.mxu0 0
    %10173 = vmatpush2.bf16.msra.mxu0 0
    %10174 = vmatprep.subr.bf16.mxu0 0
    %10175 = vmatpush2.bf16.msra.mxu0 0
    %10176 = vmatprep.mubr.bf16.mxu0 0
    %10177 = vmatmul.mubr.bf16.gmra.mxu0 %v8293
    %v10178 = vpop.f32.mrf.mxu0
    %v10179 = vadd.f32 %v10136, %v10178
    %v10180 = vpop.f32.mrf.mxu0
    %v10181 = vadd.f32 %v10138, %v10180
    %v10182 = vpop.f32.mrf.mxu0
    %v10183 = vadd.f32 %v10140, %v10182
    %v10184 = vpop.f32.mrf.mxu0
    %v10185 = vadd.f32 %v10142, %v10184
    %10186 = vdwg.mxu0
    %10187 = vmatprep.subr.bf16.mxu0 %v5857
    %10188 = vmatpush1.bf16.msra.mxu0 %v5856
    %10189 = vmatprep.subr.bf16.mxu0 %v5830
    %10190 = vmatpush1.bf16.msra.mxu0 %v5829
    %10191 = vmatprep.subr.bf16.mxu0 %v5803
    %10192 = vmatpush1.bf16.msra.mxu0 %v5802
    %10193 = vmatprep.subr.bf16.mxu0 %v5776
    %10194 = vmatpush1.bf16.msra.mxu0 %v5775
    %10195 = vmatprep.subr.bf16.mxu0 %v5749
    %10196 = vmatpush1.bf16.msra.mxu0 %v5748
    %10197 = vmatprep.subr.bf16.mxu0 %v5722
    %10198 = vmatpush1.bf16.msra.mxu0 %v5721
    %10199 = vmatprep.subr.bf16.mxu0 %v5695
    %10200 = vmatpush1.bf16.msra.mxu0 %v5694
    %10201 = vmatprep.subr.bf16.mxu0 %v5668
    %10202 = vmatpush1.bf16.msra.mxu0 %v5667
    %10203 = vmatprep.subr.bf16.mxu0 %v6073
    %10204 = vmatpush2.bf16.msra.mxu0 %v6072
    %10205 = vmatprep.subr.bf16.mxu0 %v6046
    %10206 = vmatpush2.bf16.msra.mxu0 %v6045
    %10207 = vmatprep.subr.bf16.mxu0 %v6019
    %10208 = vmatpush2.bf16.msra.mxu0 %v6018
    %10209 = vmatprep.subr.bf16.mxu0 %v5992
    %10210 = vmatpush2.bf16.msra.mxu0 %v5991
    %10211 = vmatprep.subr.bf16.mxu0 %v5965
    %10212 = vmatpush2.bf16.msra.mxu0 %v5964
    %10213 = vmatprep.subr.bf16.mxu0 %v5938
    %10214 = vmatpush2.bf16.msra.mxu0 %v5937
    %10215 = vmatprep.subr.bf16.mxu0 %v5911
    %10216 = vmatpush2.bf16.msra.mxu0 %v5910
    %10217 = vmatprep.subr.bf16.mxu0 %v5884
    %10218 = vmatpush2.bf16.msra.mxu0 %v5883
    %10219 = vmatprep.mubr.bf16.mxu0 %v106
    %10220 = vmatmul.mubr.bf16.gmra.mxu0 %v105
    %v10221 = vpop.f32.mrf.mxu0
    %v10222 = vadd.f32 %v1583, %v10221
    %v10223 = vpop.f32.mrf.mxu0
    %v10224 = vadd.f32 %v1587, %v10223
    %v10225 = vpop.f32.mrf.mxu0
    %v10226 = vadd.f32 %v1583, %v10225
    %v10227 = vpop.f32.mrf.mxu0
    %v10228 = vadd.f32 %v1587, %v10227
    %10229 = vdwg.mxu0
    %10230 = vmatprep.subr.bf16.mxu0 %v6289
    %10231 = vmatpush1.bf16.msra.mxu0 %v6288
    %10232 = vmatprep.subr.bf16.mxu0 %v6262
    %10233 = vmatpush1.bf16.msra.mxu0 %v6261
    %10234 = vmatprep.subr.bf16.mxu0 %v6235
    %10235 = vmatpush1.bf16.msra.mxu0 %v6234
    %10236 = vmatprep.subr.bf16.mxu0 %v6208
    %10237 = vmatpush1.bf16.msra.mxu0 %v6207
    %10238 = vmatprep.subr.bf16.mxu0 %v6181
    %10239 = vmatpush1.bf16.msra.mxu0 %v6180
    %10240 = vmatprep.subr.bf16.mxu0 %v6154
    %10241 = vmatpush1.bf16.msra.mxu0 %v6153
    %10242 = vmatprep.subr.bf16.mxu0 %v6127
    %10243 = vmatpush1.bf16.msra.mxu0 %v6126
    %10244 = vmatprep.subr.bf16.mxu0 %v6100
    %10245 = vmatpush1.bf16.msra.mxu0 %v6099
    %10246 = vmatprep.subr.bf16.mxu0 %v6505
    %10247 = vmatpush2.bf16.msra.mxu0 %v6504
    %10248 = vmatprep.subr.bf16.mxu0 %v6478
    %10249 = vmatpush2.bf16.msra.mxu0 %v6477
    %10250 = vmatprep.subr.bf16.mxu0 %v6451
    %10251 = vmatpush2.bf16.msra.mxu0 %v6450
    %10252 = vmatprep.subr.bf16.mxu0 %v6424
    %10253 = vmatpush2.bf16.msra.mxu0 %v6423
    %10254 = vmatprep.subr.bf16.mxu0 %v6397
    %10255 = vmatpush2.bf16.msra.mxu0 %v6396
    %10256 = vmatprep.subr.bf16.mxu0 %v6370
    %10257 = vmatpush2.bf16.msra.mxu0 %v6369
    %10258 = vmatprep.subr.bf16.mxu0 %v6343
    %10259 = vmatpush2.bf16.msra.mxu0 %v6342
    %10260 = vmatprep.subr.bf16.mxu0 %v6316
    %10261 = vmatpush2.bf16.msra.mxu0 %v6315
    %10262 = vmatprep.mubr.bf16.mxu0 %v108
    %10263 = vmatmul.mubr.bf16.gmra.mxu0 %v107
    %v10264 = vpop.f32.mrf.mxu0
    %v10265 = vadd.f32 %v10222, %v10264
    %v10266 = vpop.f32.mrf.mxu0
    %v10267 = vadd.f32 %v10224, %v10266
    %v10268 = vpop.f32.mrf.mxu0
    %v10269 = vadd.f32 %v10226, %v10268
    %v10270 = vpop.f32.mrf.mxu0
    %v10271 = vadd.f32 %v10228, %v10270
    %10272 = vdwg.mxu0
    %10273 = vmatprep.subr.bf16.mxu0 %v6721
    %10274 = vmatpush1.bf16.msra.mxu0 %v6720
    %10275 = vmatprep.subr.bf16.mxu0 %v6694
    %10276 = vmatpush1.bf16.msra.mxu0 %v6693
    %10277 = vmatprep.subr.bf16.mxu0 %v6667
    %10278 = vmatpush1.bf16.msra.mxu0 %v6666
    %10279 = vmatprep.subr.bf16.mxu0 %v6640
    %10280 = vmatpush1.bf16.msra.mxu0 %v6639
    %10281 = vmatprep.subr.bf16.mxu0 %v6613
    %10282 = vmatpush1.bf16.msra.mxu0 %v6612
    %10283 = vmatprep.subr.bf16.mxu0 %v6586
    %10284 = vmatpush1.bf16.msra.mxu0 %v6585
    %10285 = vmatprep.subr.bf16.mxu0 %v6559
    %10286 = vmatpush1.bf16.msra.mxu0 %v6558
    %10287 = vmatprep.subr.bf16.mxu0 %v6532
    %10288 = vmatpush1.bf16.msra.mxu0 %v6531
    %10289 = vmatprep.subr.bf16.mxu0 %v6937
    %10290 = vmatpush2.bf16.msra.mxu0 %v6936
    %10291 = vmatprep.subr.bf16.mxu0 %v6910
    %10292 = vmatpush2.bf16.msra.mxu0 %v6909
    %10293 = vmatprep.subr.bf16.mxu0 %v6883
    %10294 = vmatpush2.bf16.msra.mxu0 %v6882
    %10295 = vmatprep.subr.bf16.mxu0 %v6856
    %10296 = vmatpush2.bf16.msra.mxu0 %v6855
    %10297 = vmatprep.subr.bf16.mxu0 %v6829
    %10298 = vmatpush2.bf16.msra.mxu0 %v6828
    %10299 = vmatprep.subr.bf16.mxu0 %v6802
    %10300 = vmatpush2.bf16.msra.mxu0 %v6801
    %10301 = vmatprep.subr.bf16.mxu0 %v6775
    %10302 = vmatpush2.bf16.msra.mxu0 %v6774
    %10303 = vmatprep.subr.bf16.mxu0 %v6748
    %10304 = vmatpush2.bf16.msra.mxu0 %v6747
    %10305 = vmatprep.mubr.bf16.mxu0 %v110
    %10306 = vmatmul.mubr.bf16.gmra.mxu0 %v109
    %v10307 = vpop.f32.mrf.mxu0
    %v10308 = vadd.f32 %v10265, %v10307
    %v10309 = vpop.f32.mrf.mxu0
    %v10310 = vadd.f32 %v10267, %v10309
    %v10311 = vpop.f32.mrf.mxu0
    %v10312 = vadd.f32 %v10269, %v10311
    %v10313 = vpop.f32.mrf.mxu0
    %v10314 = vadd.f32 %v10271, %v10313
    %10315 = vdwg.mxu0
    %10316 = vmatprep.subr.bf16.mxu0 0
    %10317 = vmatpush1.bf16.msra.mxu0 0
    %10318 = vmatprep.subr.bf16.mxu0 0
    %10319 = vmatpush1.bf16.msra.mxu0 0
    %10320 = vmatprep.subr.bf16.mxu0 0
    %10321 = vmatpush1.bf16.msra.mxu0 0
    %10322 = vmatprep.subr.bf16.mxu0 0
    %10323 = vmatpush1.bf16.msra.mxu0 0
    %10324 = vmatprep.subr.bf16.mxu0 0
    %10325 = vmatpush1.bf16.msra.mxu0 0
    %10326 = vmatprep.subr.bf16.mxu0 0
    %10327 = vmatpush1.bf16.msra.mxu0 0
    %10328 = vmatprep.subr.bf16.mxu0 0
    %10329 = vmatpush1.bf16.msra.mxu0 0
    %10330 = vmatprep.subr.bf16.mxu0 %v6964
    %10331 = vmatpush1.bf16.msra.mxu0 %v6963
    %10332 = vmatprep.subr.bf16.mxu0 0
    %10333 = vmatpush2.bf16.msra.mxu0 0
    %10334 = vmatprep.subr.bf16.mxu0 0
    %10335 = vmatpush2.bf16.msra.mxu0 0
    %10336 = vmatprep.subr.bf16.mxu0 0
    %10337 = vmatpush2.bf16.msra.mxu0 0
    %10338 = vmatprep.subr.bf16.mxu0 0
    %10339 = vmatpush2.bf16.msra.mxu0 0
    %10340 = vmatprep.subr.bf16.mxu0 0
    %10341 = vmatpush2.bf16.msra.mxu0 0
    %10342 = vmatprep.subr.bf16.mxu0 0
    %10343 = vmatpush2.bf16.msra.mxu0 0
    %10344 = vmatprep.subr.bf16.mxu0 0
    %10345 = vmatpush2.bf16.msra.mxu0 0
    %10346 = vmatprep.subr.bf16.mxu0 0
    %10347 = vmatpush2.bf16.msra.mxu0 0
    %10348 = vmatprep.mubr.bf16.mxu0 0
    %10349 = vmatmul.mubr.bf16.gmra.mxu0 %v8293
    %v10350 = vpop.f32.mrf.mxu0
    %v10351 = vadd.f32 %v10308, %v10350
    %v10352 = vpop.f32.mrf.mxu0
    %v10353 = vadd.f32 %v10310, %v10352
    %v10354 = vpop.f32.mrf.mxu0
    %v10355 = vadd.f32 %v10312, %v10354
    %v10356 = vpop.f32.mrf.mxu0
    %v10357 = vadd.f32 %v10314, %v10356
    %10358 = vdwg.mxu0
    %10359 = vmatprep.subr.bf16.mxu0 %v5859
    %10360 = vmatpush1.bf16.msra.mxu0 %v5858
    %10361 = vmatprep.subr.bf16.mxu0 %v5832
    %10362 = vmatpush1.bf16.msra.mxu0 %v5831
    %10363 = vmatprep.subr.bf16.mxu0 %v5805
    %10364 = vmatpush1.bf16.msra.mxu0 %v5804
    %10365 = vmatprep.subr.bf16.mxu0 %v5778
    %10366 = vmatpush1.bf16.msra.mxu0 %v5777
    %10367 = vmatprep.subr.bf16.mxu0 %v5751
    %10368 = vmatpush1.bf16.msra.mxu0 %v5750
    %10369 = vmatprep.subr.bf16.mxu0 %v5724
    %10370 = vmatpush1.bf16.msra.mxu0 %v5723
    %10371 = vmatprep.subr.bf16.mxu0 %v5697
    %10372 = vmatpush1.bf16.msra.mxu0 %v5696
    %10373 = vmatprep.subr.bf16.mxu0 %v5670
    %10374 = vmatpush1.bf16.msra.mxu0 %v5669
    %10375 = vmatprep.subr.bf16.mxu0 %v6075
    %10376 = vmatpush2.bf16.msra.mxu0 %v6074
    %10377 = vmatprep.subr.bf16.mxu0 %v6048
    %10378 = vmatpush2.bf16.msra.mxu0 %v6047
    %10379 = vmatprep.subr.bf16.mxu0 %v6021
    %10380 = vmatpush2.bf16.msra.mxu0 %v6020
    %10381 = vmatprep.subr.bf16.mxu0 %v5994
    %10382 = vmatpush2.bf16.msra.mxu0 %v5993
    %10383 = vmatprep.subr.bf16.mxu0 %v5967
    %10384 = vmatpush2.bf16.msra.mxu0 %v5966
    %10385 = vmatprep.subr.bf16.mxu0 %v5940
    %10386 = vmatpush2.bf16.msra.mxu0 %v5939
    %10387 = vmatprep.subr.bf16.mxu0 %v5913
    %10388 = vmatpush2.bf16.msra.mxu0 %v5912
    %10389 = vmatprep.subr.bf16.mxu0 %v5886
    %10390 = vmatpush2.bf16.msra.mxu0 %v5885
    %10391 = vmatprep.mubr.bf16.mxu0 %v106
    %10392 = vmatmul.mubr.bf16.gmra.mxu0 %v105
    %v10393 = vpop.f32.mrf.mxu0
    %v10394 = vadd.f32 %v1591, %v10393
    %v10395 = vpop.f32.mrf.mxu0
    %v10396 = vadd.f32 %v1595, %v10395
    %v10397 = vpop.f32.mrf.mxu0
    %v10398 = vadd.f32 %v1591, %v10397
    %v10399 = vpop.f32.mrf.mxu0
    %v10400 = vadd.f32 %v1595, %v10399
    %10401 = vdwg.mxu0
    %10402 = vmatprep.subr.bf16.mxu0 %v6291
    %10403 = vmatpush1.bf16.msra.mxu0 %v6290
    %10404 = vmatprep.subr.bf16.mxu0 %v6264
    %10405 = vmatpush1.bf16.msra.mxu0 %v6263
    %10406 = vmatprep.subr.bf16.mxu0 %v6237
    %10407 = vmatpush1.bf16.msra.mxu0 %v6236
    %10408 = vmatprep.subr.bf16.mxu0 %v6210
    %10409 = vmatpush1.bf16.msra.mxu0 %v6209
    %10410 = vmatprep.subr.bf16.mxu0 %v6183
    %10411 = vmatpush1.bf16.msra.mxu0 %v6182
    %10412 = vmatprep.subr.bf16.mxu0 %v6156
    %10413 = vmatpush1.bf16.msra.mxu0 %v6155
    %10414 = vmatprep.subr.bf16.mxu0 %v6129
    %10415 = vmatpush1.bf16.msra.mxu0 %v6128
    %10416 = vmatprep.subr.bf16.mxu0 %v6102
    %10417 = vmatpush1.bf16.msra.mxu0 %v6101
    %10418 = vmatprep.subr.bf16.mxu0 %v6507
    %10419 = vmatpush2.bf16.msra.mxu0 %v6506
    %10420 = vmatprep.subr.bf16.mxu0 %v6480
    %10421 = vmatpush2.bf16.msra.mxu0 %v6479
    %10422 = vmatprep.subr.bf16.mxu0 %v6453
    %10423 = vmatpush2.bf16.msra.mxu0 %v6452
    %10424 = vmatprep.subr.bf16.mxu0 %v6426
    %10425 = vmatpush2.bf16.msra.mxu0 %v6425
    %10426 = vmatprep.subr.bf16.mxu0 %v6399
    %10427 = vmatpush2.bf16.msra.mxu0 %v6398
    %10428 = vmatprep.subr.bf16.mxu0 %v6372
    %10429 = vmatpush2.bf16.msra.mxu0 %v6371
    %10430 = vmatprep.subr.bf16.mxu0 %v6345
    %10431 = vmatpush2.bf16.msra.mxu0 %v6344
    %10432 = vmatprep.subr.bf16.mxu0 %v6318
    %10433 = vmatpush2.bf16.msra.mxu0 %v6317
    %10434 = vmatprep.mubr.bf16.mxu0 %v108
    %10435 = vmatmul.mubr.bf16.gmra.mxu0 %v107
    %v10436 = vpop.f32.mrf.mxu0
    %v10437 = vadd.f32 %v10394, %v10436
    %v10438 = vpop.f32.mrf.mxu0
    %v10439 = vadd.f32 %v10396, %v10438
    %v10440 = vpop.f32.mrf.mxu0
    %v10441 = vadd.f32 %v10398, %v10440
    %v10442 = vpop.f32.mrf.mxu0
    %v10443 = vadd.f32 %v10400, %v10442
    %10444 = vdwg.mxu0
    %10445 = vmatprep.subr.bf16.mxu0 %v6723
    %10446 = vmatpush1.bf16.msra.mxu0 %v6722
    %10447 = vmatprep.subr.bf16.mxu0 %v6696
    %10448 = vmatpush1.bf16.msra.mxu0 %v6695
    %10449 = vmatprep.subr.bf16.mxu0 %v6669
    %10450 = vmatpush1.bf16.msra.mxu0 %v6668
    %10451 = vmatprep.subr.bf16.mxu0 %v6642
    %10452 = vmatpush1.bf16.msra.mxu0 %v6641
    %10453 = vmatprep.subr.bf16.mxu0 %v6615
    %10454 = vmatpush1.bf16.msra.mxu0 %v6614
    %10455 = vmatprep.subr.bf16.mxu0 %v6588
    %10456 = vmatpush1.bf16.msra.mxu0 %v6587
    %10457 = vmatprep.subr.bf16.mxu0 %v6561
    %10458 = vmatpush1.bf16.msra.mxu0 %v6560
    %10459 = vmatprep.subr.bf16.mxu0 %v6534
    %10460 = vmatpush1.bf16.msra.mxu0 %v6533
    %10461 = vmatprep.subr.bf16.mxu0 %v6939
    %10462 = vmatpush2.bf16.msra.mxu0 %v6938
    %10463 = vmatprep.subr.bf16.mxu0 %v6912
    %10464 = vmatpush2.bf16.msra.mxu0 %v6911
    %10465 = vmatprep.subr.bf16.mxu0 %v6885
    %10466 = vmatpush2.bf16.msra.mxu0 %v6884
    %10467 = vmatprep.subr.bf16.mxu0 %v6858
    %10468 = vmatpush2.bf16.msra.mxu0 %v6857
    %10469 = vmatprep.subr.bf16.mxu0 %v6831
    %10470 = vmatpush2.bf16.msra.mxu0 %v6830
    %10471 = vmatprep.subr.bf16.mxu0 %v6804
    %10472 = vmatpush2.bf16.msra.mxu0 %v6803
    %10473 = vmatprep.subr.bf16.mxu0 %v6777
    %10474 = vmatpush2.bf16.msra.mxu0 %v6776
    %10475 = vmatprep.subr.bf16.mxu0 %v6750
    %10476 = vmatpush2.bf16.msra.mxu0 %v6749
    %10477 = vmatprep.mubr.bf16.mxu0 %v110
    %10478 = vmatmul.mubr.bf16.gmra.mxu0 %v109
    %v10479 = vpop.f32.mrf.mxu0
    %v10480 = vadd.f32 %v10437, %v10479
    %v10481 = vpop.f32.mrf.mxu0
    %v10482 = vadd.f32 %v10439, %v10481
    %v10483 = vpop.f32.mrf.mxu0
    %v10484 = vadd.f32 %v10441, %v10483
    %v10485 = vpop.f32.mrf.mxu0
    %v10486 = vadd.f32 %v10443, %v10485
    %10487 = vdwg.mxu0
    %10488 = vmatprep.subr.bf16.mxu0 0
    %10489 = vmatpush1.bf16.msra.mxu0 0
    %10490 = vmatprep.subr.bf16.mxu0 0
    %10491 = vmatpush1.bf16.msra.mxu0 0
    %10492 = vmatprep.subr.bf16.mxu0 0
    %10493 = vmatpush1.bf16.msra.mxu0 0
    %10494 = vmatprep.subr.bf16.mxu0 0
    %10495 = vmatpush1.bf16.msra.mxu0 0
    %10496 = vmatprep.subr.bf16.mxu0 0
    %10497 = vmatpush1.bf16.msra.mxu0 0
    %10498 = vmatprep.subr.bf16.mxu0 0
    %10499 = vmatpush1.bf16.msra.mxu0 0
    %10500 = vmatprep.subr.bf16.mxu0 0
    %10501 = vmatpush1.bf16.msra.mxu0 0
    %10502 = vmatprep.subr.bf16.mxu0 %v6966
    %10503 = vmatpush1.bf16.msra.mxu0 %v6965
    %10504 = vmatprep.subr.bf16.mxu0 0
    %10505 = vmatpush2.bf16.msra.mxu0 0
    %10506 = vmatprep.subr.bf16.mxu0 0
    %10507 = vmatpush2.bf16.msra.mxu0 0
    %10508 = vmatprep.subr.bf16.mxu0 0
    %10509 = vmatpush2.bf16.msra.mxu0 0
    %10510 = vmatprep.subr.bf16.mxu0 0
    %10511 = vmatpush2.bf16.msra.mxu0 0
    %10512 = vmatprep.subr.bf16.mxu0 0
    %10513 = vmatpush2.bf16.msra.mxu0 0
    %10514 = vmatprep.subr.bf16.mxu0 0
    %10515 = vmatpush2.bf16.msra.mxu0 0
    %10516 = vmatprep.subr.bf16.mxu0 0
    %10517 = vmatpush2.bf16.msra.mxu0 0
    %10518 = vmatprep.subr.bf16.mxu0 0
    %10519 = vmatpush2.bf16.msra.mxu0 0
    %10520 = vmatprep.mubr.bf16.mxu0 0
    %10521 = vmatmul.mubr.bf16.gmra.mxu0 %v8293
    %v10522 = vpop.f32.mrf.mxu0
    %v10523 = vadd.f32 %v10480, %v10522
    %v10524 = vpop.f32.mrf.mxu0
    %v10525 = vadd.f32 %v10482, %v10524
    %v10526 = vpop.f32.mrf.mxu0
    %v10527 = vadd.f32 %v10484, %v10526
    %v10528 = vpop.f32.mrf.mxu0
    %v10529 = vadd.f32 %v10486, %v10528
    %10530 = vdwg.mxu0
    %10531 = vmatprep.subr.bf16.mxu0 0
    %10532 = vmatpush1.bf16.msra.mxu0 %v5860
    %10533 = vmatprep.subr.bf16.mxu0 0
    %10534 = vmatpush1.bf16.msra.mxu0 %v5833
    %10535 = vmatprep.subr.bf16.mxu0 0
    %10536 = vmatpush1.bf16.msra.mxu0 %v5806
    %10537 = vmatprep.subr.bf16.mxu0 0
    %10538 = vmatpush1.bf16.msra.mxu0 %v5779
    %10539 = vmatprep.subr.bf16.mxu0 0
    %10540 = vmatpush1.bf16.msra.mxu0 %v5752
    %10541 = vmatprep.subr.bf16.mxu0 0
    %10542 = vmatpush1.bf16.msra.mxu0 %v5725
    %10543 = vmatprep.subr.bf16.mxu0 0
    %10544 = vmatpush1.bf16.msra.mxu0 %v5698
    %10545 = vmatprep.subr.bf16.mxu0 0
    %10546 = vmatpush1.bf16.msra.mxu0 %v5671
    %10547 = vmatprep.subr.bf16.mxu0 0
    %10548 = vmatpush2.bf16.msra.mxu0 %v6076
    %10549 = vmatprep.subr.bf16.mxu0 0
    %10550 = vmatpush2.bf16.msra.mxu0 %v6049
    %10551 = vmatprep.subr.bf16.mxu0 0
    %10552 = vmatpush2.bf16.msra.mxu0 %v6022
    %10553 = vmatprep.subr.bf16.mxu0 0
    %10554 = vmatpush2.bf16.msra.mxu0 %v5995
    %10555 = vmatprep.subr.bf16.mxu0 0
    %10556 = vmatpush2.bf16.msra.mxu0 %v5968
    %10557 = vmatprep.subr.bf16.mxu0 0
    %10558 = vmatpush2.bf16.msra.mxu0 %v5941
    %10559 = vmatprep.subr.bf16.mxu0 0
    %10560 = vmatpush2.bf16.msra.mxu0 %v5914
    %10561 = vmatprep.subr.bf16.mxu0 0
    %10562 = vmatpush2.bf16.msra.mxu0 %v5887
    %10563 = vmatprep.mubr.bf16.mxu0 %v106
    %10564 = vmatmul.mubr.bf16.gmra.mxu0 %v105
    %v10565 = vpop.f32.mrf.mxu0
    %v10566 = vadd.f32 %v1599, %v10565
    %v10567 = vpop.f32.mrf.mxu0
    %v10568 = vpop.f32.mrf.mxu0
    %v10569 = vadd.f32 %v1599, %v10568
    %v10570 = vpop.f32.mrf.mxu0
    %10571 = vdwg.mxu0
    %10572 = vmatprep.subr.bf16.mxu0 0
    %10573 = vmatpush1.bf16.msra.mxu0 %v6292
    %10574 = vmatprep.subr.bf16.mxu0 0
    %10575 = vmatpush1.bf16.msra.mxu0 %v6265
    %10576 = vmatprep.subr.bf16.mxu0 0
    %10577 = vmatpush1.bf16.msra.mxu0 %v6238
    %10578 = vmatprep.subr.bf16.mxu0 0
    %10579 = vmatpush1.bf16.msra.mxu0 %v6211
    %10580 = vmatprep.subr.bf16.mxu0 0
    %10581 = vmatpush1.bf16.msra.mxu0 %v6184
    %10582 = vmatprep.subr.bf16.mxu0 0
    %10583 = vmatpush1.bf16.msra.mxu0 %v6157
    %10584 = vmatprep.subr.bf16.mxu0 0
    %10585 = vmatpush1.bf16.msra.mxu0 %v6130
    %10586 = vmatprep.subr.bf16.mxu0 0
    %10587 = vmatpush1.bf16.msra.mxu0 %v6103
    %10588 = vmatprep.subr.bf16.mxu0 0
    %10589 = vmatpush2.bf16.msra.mxu0 %v6508
    %10590 = vmatprep.subr.bf16.mxu0 0
    %10591 = vmatpush2.bf16.msra.mxu0 %v6481
    %10592 = vmatprep.subr.bf16.mxu0 0
    %10593 = vmatpush2.bf16.msra.mxu0 %v6454
    %10594 = vmatprep.subr.bf16.mxu0 0
    %10595 = vmatpush2.bf16.msra.mxu0 %v6427
    %10596 = vmatprep.subr.bf16.mxu0 0
    %10597 = vmatpush2.bf16.msra.mxu0 %v6400
    %10598 = vmatprep.subr.bf16.mxu0 0
    %10599 = vmatpush2.bf16.msra.mxu0 %v6373
    %10600 = vmatprep.subr.bf16.mxu0 0
    %10601 = vmatpush2.bf16.msra.mxu0 %v6346
    %10602 = vmatprep.subr.bf16.mxu0 0
    %10603 = vmatpush2.bf16.msra.mxu0 %v6319
    %10604 = vmatprep.mubr.bf16.mxu0 %v108
    %10605 = vmatmul.mubr.bf16.gmra.mxu0 %v107
    %v10606 = vpop.f32.mrf.mxu0
    %v10607 = vadd.f32 %v10566, %v10606
    %v10608 = vpop.f32.mrf.mxu0
    %v10609 = vpop.f32.mrf.mxu0
    %v10610 = vadd.f32 %v10569, %v10609
    %v10611 = vpop.f32.mrf.mxu0
    %10612 = vdwg.mxu0
    %10613 = vmatprep.subr.bf16.mxu0 0
    %10614 = vmatpush1.bf16.msra.mxu0 %v6724
    %10615 = vmatprep.subr.bf16.mxu0 0
    %10616 = vmatpush1.bf16.msra.mxu0 %v6697
    %10617 = vmatprep.subr.bf16.mxu0 0
    %10618 = vmatpush1.bf16.msra.mxu0 %v6670
    %10619 = vmatprep.subr.bf16.mxu0 0
    %10620 = vmatpush1.bf16.msra.mxu0 %v6643
    %10621 = vmatprep.subr.bf16.mxu0 0
    %10622 = vmatpush1.bf16.msra.mxu0 %v6616
    %10623 = vmatprep.subr.bf16.mxu0 0
    %10624 = vmatpush1.bf16.msra.mxu0 %v6589
    %10625 = vmatprep.subr.bf16.mxu0 0
    %10626 = vmatpush1.bf16.msra.mxu0 %v6562
    %10627 = vmatprep.subr.bf16.mxu0 0
    %10628 = vmatpush1.bf16.msra.mxu0 %v6535
    %10629 = vmatprep.subr.bf16.mxu0 0
    %10630 = vmatpush2.bf16.msra.mxu0 %v6940
    %10631 = vmatprep.subr.bf16.mxu0 0
    %10632 = vmatpush2.bf16.msra.mxu0 %v6913
    %10633 = vmatprep.subr.bf16.mxu0 0
    %10634 = vmatpush2.bf16.msra.mxu0 %v6886
    %10635 = vmatprep.subr.bf16.mxu0 0
    %10636 = vmatpush2.bf16.msra.mxu0 %v6859
    %10637 = vmatprep.subr.bf16.mxu0 0
    %10638 = vmatpush2.bf16.msra.mxu0 %v6832
    %10639 = vmatprep.subr.bf16.mxu0 0
    %10640 = vmatpush2.bf16.msra.mxu0 %v6805
    %10641 = vmatprep.subr.bf16.mxu0 0
    %10642 = vmatpush2.bf16.msra.mxu0 %v6778
    %10643 = vmatprep.subr.bf16.mxu0 0
    %10644 = vmatpush2.bf16.msra.mxu0 %v6751
    %10645 = vmatprep.mubr.bf16.mxu0 %v110
    %10646 = vmatmul.mubr.bf16.gmra.mxu0 %v109
    %v10647 = vpop.f32.mrf.mxu0
    %v10648 = vadd.f32 %v10607, %v10647
    %v10649 = vpop.f32.mrf.mxu0
    %v10650 = vpop.f32.mrf.mxu0
    %v10651 = vadd.f32 %v10610, %v10650
    %v10652 = vpop.f32.mrf.mxu0
    %10653 = vdwg.mxu0
    %10654 = vmatprep.subr.bf16.mxu0 0
    %10655 = vmatpush1.bf16.msra.mxu0 0
    %10656 = vmatprep.subr.bf16.mxu0 0
    %10657 = vmatpush1.bf16.msra.mxu0 0
    %10658 = vmatprep.subr.bf16.mxu0 0
    %10659 = vmatpush1.bf16.msra.mxu0 0
    %10660 = vmatprep.subr.bf16.mxu0 0
    %10661 = vmatpush1.bf16.msra.mxu0 0
    %10662 = vmatprep.subr.bf16.mxu0 0
    %10663 = vmatpush1.bf16.msra.mxu0 0
    %10664 = vmatprep.subr.bf16.mxu0 0
    %10665 = vmatpush1.bf16.msra.mxu0 0
    %10666 = vmatprep.subr.bf16.mxu0 0
    %10667 = vmatpush1.bf16.msra.mxu0 0
    %10668 = vmatprep.subr.bf16.mxu0 0
    %10669 = vmatpush1.bf16.msra.mxu0 %v6967
    %10670 = vmatprep.subr.bf16.mxu0 0
    %10671 = vmatpush2.bf16.msra.mxu0 0
    %10672 = vmatprep.subr.bf16.mxu0 0
    %10673 = vmatpush2.bf16.msra.mxu0 0
    %10674 = vmatprep.subr.bf16.mxu0 0
    %10675 = vmatpush2.bf16.msra.mxu0 0
    %10676 = vmatprep.subr.bf16.mxu0 0
    %10677 = vmatpush2.bf16.msra.mxu0 0
    %10678 = vmatprep.subr.bf16.mxu0 0
    %10679 = vmatpush2.bf16.msra.mxu0 0
    %10680 = vmatprep.subr.bf16.mxu0 0
    %10681 = vmatpush2.bf16.msra.mxu0 0
    %10682 = vmatprep.subr.bf16.mxu0 0
    %10683 = vmatpush2.bf16.msra.mxu0 0
    %10684 = vmatprep.subr.bf16.mxu0 0
    %10685 = vmatpush2.bf16.msra.mxu0 0
    %10686 = vmatprep.mubr.bf16.mxu0 0
    %10687 = vmatmul.mubr.bf16.gmra.mxu0 %v8293
    %v10688 = vpop.f32.mrf.mxu0
    %v10689 = vadd.f32 %v10648, %v10688
    %v10690 = vpop.f32.mrf.mxu0
    %v10691 = vpop.f32.mrf.mxu0
    %v10692 = vadd.f32 %v10651, %v10691
    %v10693 = vpop.f32.mrf.mxu0
    %10694 = vdwg.mxu0
    %v10695 = vmul.f32 %v8459, 0.125
    %v10696 = vmul.f32 %v8461, 0.125
    %v10697 = vmul.f32 %v8631, 0.125
    %v10698 = vmul.f32 %v8633, 0.125
    %v10699 = vmul.f32 %v8803, 0.125
    %v10700 = vmul.f32 %v8805, 0.125
    %v10701 = vmul.f32 %v8975, 0.125
    %v10702 = vmul.f32 %v8977, 0.125
    %v10703 = vmul.f32 %v9147, 0.125
    %v10704 = vmul.f32 %v9149, 0.125
    %v10705 = vmul.f32 %v9319, 0.125
    %v10706 = vmul.f32 %v9321, 0.125
    %v10707 = vmul.f32 %v9491, 0.125
    %v10708 = vmul.f32 %v9493, 0.125
    %v10709 = vmul.f32 %v9663, 0.125
    %v10710 = vmul.f32 %v9665, 0.125
    %v10711 = vmul.f32 %v9835, 0.125
    %v10712 = vmul.f32 %v9837, 0.125
    %v10713 = vmul.f32 %v10007, 0.125
    %v10714 = vmul.f32 %v10009, 0.125
    %v10715 = vmul.f32 %v10179, 0.125
    %v10716 = vmul.f32 %v10181, 0.125
    %v10717 = vmul.f32 %v10351, 0.125
    %v10718 = vmul.f32 %v10353, 0.125
    %v10719 = vmul.f32 %v10523, 0.125
    %v10720 = vmul.f32 %v10525, 0.125
    %v10721 = vmul.f32 %v10689, 0.125
    %v10722 = vmul.f32 %v8463, 0.125
    %v10723 = vmul.f32 %v8465, 0.125
    %v10724 = vmul.f32 %v8635, 0.125
    %v10725 = vmul.f32 %v8637, 0.125
    %v10726 = vmul.f32 %v8807, 0.125
    %v10727 = vmul.f32 %v8809, 0.125
    %v10728 = vmul.f32 %v8979, 0.125
    %v10729 = vmul.f32 %v8981, 0.125
    %v10730 = vmul.f32 %v9151, 0.125
    %v10731 = vmul.f32 %v9153, 0.125
    %v10732 = vmul.f32 %v9323, 0.125
    %v10733 = vmul.f32 %v9325, 0.125
    %v10734 = vmul.f32 %v9495, 0.125
    %v10735 = vmul.f32 %v9497, 0.125
    %v10736 = vmul.f32 %v9667, 0.125
    %v10737 = vmul.f32 %v9669, 0.125
    %v10738 = vmul.f32 %v9839, 0.125
    %v10739 = vmul.f32 %v9841, 0.125
    %v10740 = vmul.f32 %v10011, 0.125
    %v10741 = vmul.f32 %v10013, 0.125
    %v10742 = vmul.f32 %v10183, 0.125
    %v10743 = vmul.f32 %v10185, 0.125
    %v10744 = vmul.f32 %v10355, 0.125
    %v10745 = vmul.f32 %v10357, 0.125
    %v10746 = vmul.f32 %v10527, 0.125
    %v10747 = vmul.f32 %v10529, 0.125
    %v10748 = vmul.f32 %v10692, 0.125
    %v10749 = vadd.f32 %v10695, 0.5
    %v10750 = vadd.f32 %v10696, 0.5
    %v10751 = vadd.f32 %v10697, 0.5
    %v10752 = vadd.f32 %v10698, 0.5
    %v10753 = vadd.f32 %v10699, 0.5
    %v10754 = vadd.f32 %v10700, 0.5
    %v10755 = vadd.f32 %v10701, 0.5
    %v10756 = vadd.f32 %v10702, 0.5
    %v10757 = vadd.f32 %v10703, 0.5
    %v10758 = vadd.f32 %v10704, 0.5
    %v10759 = vadd.f32 %v10705, 0.5
    %v10760 = vadd.f32 %v10706, 0.5
    %v10761 = vadd.f32 %v10707, 0.5
    %v10762 = vadd.f32 %v10708, 0.5
    %v10763 = vadd.f32 %v10709, 0.5
    %v10764 = vadd.f32 %v10710, 0.5
    %v10765 = vadd.f32 %v10711, 0.5
    %v10766 = vadd.f32 %v10712, 0.5
    %v10767 = vadd.f32 %v10713, 0.5
    %v10768 = vadd.f32 %v10714, 0.5
    %v10769 = vadd.f32 %v10715, 0.5
    %v10770 = vadd.f32 %v10716, 0.5
    %v10771 = vadd.f32 %v10717, 0.5
    %v10772 = vadd.f32 %v10718, 0.5
    %v10773 = vadd.f32 %v10719, 0.5
    %v10774 = vadd.f32 %v10720, 0.5
    %v10775 = vadd.f32 %v10721, 0.5
    %v10776 = vadd.f32 %v10722, 0.5
    %v10777 = vadd.f32 %v10723, 0.5
    %v10778 = vadd.f32 %v10724, 0.5
    %v10779 = vadd.f32 %v10725, 0.5
    %v10780 = vadd.f32 %v10726, 0.5
    %v10781 = vadd.f32 %v10727, 0.5
    %v10782 = vadd.f32 %v10728, 0.5
    %v10783 = vadd.f32 %v10729, 0.5
    %v10784 = vadd.f32 %v10730, 0.5
    %v10785 = vadd.f32 %v10731, 0.5
    %v10786 = vadd.f32 %v10732, 0.5
    %v10787 = vadd.f32 %v10733, 0.5
    %v10788 = vadd.f32 %v10734, 0.5
    %v10789 = vadd.f32 %v10735, 0.5
    %v10790 = vadd.f32 %v10736, 0.5
    %v10791 = vadd.f32 %v10737, 0.5
    %v10792 = vadd.f32 %v10738, 0.5
    %v10793 = vadd.f32 %v10739, 0.5
    %v10794 = vadd.f32 %v10740, 0.5
    %v10795 = vadd.f32 %v10741, 0.5
    %v10796 = vadd.f32 %v10742, 0.5
    %v10797 = vadd.f32 %v10743, 0.5
    %v10798 = vadd.f32 %v10744, 0.5
    %v10799 = vadd.f32 %v10745, 0.5
    %v10800 = vadd.f32 %v10746, 0.5
    %v10801 = vadd.f32 %v10747, 0.5
    %v10802 = vadd.f32 %v10748, 0.5
    %v10803 = vmul.f32 %v8459, %v10749
    %v10804 = vmul.f32 %v8461, %v10750
    %v10805 = vmul.f32 %v8631, %v10751
    %v10806 = vmul.f32 %v8633, %v10752
    %v10807 = vmul.f32 %v8803, %v10753
    %v10808 = vmul.f32 %v8805, %v10754
    %v10809 = vmul.f32 %v8975, %v10755
    %v10810 = vmul.f32 %v8977, %v10756
    %v10811 = vmul.f32 %v9147, %v10757
    %v10812 = vmul.f32 %v9149, %v10758
    %v10813 = vmul.f32 %v9319, %v10759
    %v10814 = vmul.f32 %v9321, %v10760
    %v10815 = vmul.f32 %v9491, %v10761
    %v10816 = vmul.f32 %v9493, %v10762
    %v10817 = vmul.f32 %v9663, %v10763
    %v10818 = vmul.f32 %v9665, %v10764
    %v10819 = vmul.f32 %v9835, %v10765
    %v10820 = vmul.f32 %v9837, %v10766
    %v10821 = vmul.f32 %v10007, %v10767
    %v10822 = vmul.f32 %v10009, %v10768
    %v10823 = vmul.f32 %v10179, %v10769
    %v10824 = vmul.f32 %v10181, %v10770
    %v10825 = vmul.f32 %v10351, %v10771
    %v10826 = vmul.f32 %v10353, %v10772
    %v10827 = vmul.f32 %v10523, %v10773
    %v10828 = vmul.f32 %v10525, %v10774
    %v10829 = vmul.f32 %v10689, %v10775
    %v10830 = vmul.f32 %v8463, %v10776
    %v10831 = vmul.f32 %v8465, %v10777
    %v10832 = vmul.f32 %v8635, %v10778
    %v10833 = vmul.f32 %v8637, %v10779
    %v10834 = vmul.f32 %v8807, %v10780
    %v10835 = vmul.f32 %v8809, %v10781
    %v10836 = vmul.f32 %v8979, %v10782
    %v10837 = vmul.f32 %v8981, %v10783
    %v10838 = vmul.f32 %v9151, %v10784
    %v10839 = vmul.f32 %v9153, %v10785
    %v10840 = vmul.f32 %v9323, %v10786
    %v10841 = vmul.f32 %v9325, %v10787
    %v10842 = vmul.f32 %v9495, %v10788
    %v10843 = vmul.f32 %v9497, %v10789
    %v10844 = vmul.f32 %v9667, %v10790
    %v10845 = vmul.f32 %v9669, %v10791
    %v10846 = vmul.f32 %v9839, %v10792
    %v10847 = vmul.f32 %v9841, %v10793
    %v10848 = vmul.f32 %v10011, %v10794
    %v10849 = vmul.f32 %v10013, %v10795
    %v10850 = vmul.f32 %v10183, %v10796
    %v10851 = vmul.f32 %v10185, %v10797
    %v10852 = vmul.f32 %v10355, %v10798
    %v10853 = vmul.f32 %v10357, %v10799
    %v10854 = vmul.f32 %v10527, %v10800
    %v10855 = vmul.f32 %v10529, %v10801
    %v10856 = vmul.f32 %v10692, %v10802
    %v10857 = vadd.f32 %v10803, 0.25
    %v10858 = vadd.f32 %v10804, 0.25
    %v10859 = vadd.f32 %v10805, 0.25
    %v10860 = vadd.f32 %v10806, 0.25
    %v10861 = vadd.f32 %v10807, 0.25
    %v10862 = vadd.f32 %v10808, 0.25
    %v10863 = vadd.f32 %v10809, 0.25
    %v10864 = vadd.f32 %v10810, 0.25
    %v10865 = vadd.f32 %v10811, 0.25
    %v10866 = vadd.f32 %v10812, 0.25
    %v10867 = vadd.f32 %v10813, 0.25
    %v10868 = vadd.f32 %v10814, 0.25
    %v10869 = vadd.f32 %v10815, 0.25
    %v10870 = vadd.f32 %v10816, 0.25
    %v10871 = vadd.f32 %v10817, 0.25
    %v10872 = vadd.f32 %v10818, 0.25
    %v10873 = vadd.f32 %v10819, 0.25
    %v10874 = vadd.f32 %v10820, 0.25
    %v10875 = vadd.f32 %v10821, 0.25
    %v10876 = vadd.f32 %v10822, 0.25
    %v10877 = vadd.f32 %v10823, 0.25
    %v10878 = vadd.f32 %v10824, 0.25
    %v10879 = vadd.f32 %v10825, 0.25
    %v10880 = vadd.f32 %v10826, 0.25
    %v10881 = vadd.f32 %v10827, 0.25
    %v10882 = vadd.f32 %v10828, 0.25
    %v10883 = vadd.f32 %v10829, 0.25
    %v10884 = vadd.f32 %v10830, 0.25
    %v10885 = vadd.f32 %v10831, 0.25
    %v10886 = vadd.f32 %v10832, 0.25
    %v10887 = vadd.f32 %v10833, 0.25
    %v10888 = vadd.f32 %v10834, 0.25
    %v10889 = vadd.f32 %v10835, 0.25
    %v10890 = vadd.f32 %v10836, 0.25
    %v10891 = vadd.f32 %v10837, 0.25
    %v10892 = vadd.f32 %v10838, 0.25
    %v10893 = vadd.f32 %v10839, 0.25
    %v10894 = vadd.f32 %v10840, 0.25
    %v10895 = vadd.f32 %v10841, 0.25
    %v10896 = vadd.f32 %v10842, 0.25
    %v10897 = vadd.f32 %v10843, 0.25
    %v10898 = vadd.f32 %v10844, 0.25
    %v10899 = vadd.f32 %v10845, 0.25
    %v10900 = vadd.f32 %v10846, 0.25
    %v10901 = vadd.f32 %v10847, 0.25
    %v10902 = vadd.f32 %v10848, 0.25
    %v10903 = vadd.f32 %v10849, 0.25
    %v10904 = vadd.f32 %v10850, 0.25
    %v10905 = vadd.f32 %v10851, 0.25
    %v10906 = vadd.f32 %v10852, 0.25
    %v10907 = vadd.f32 %v10853, 0.25
    %v10908 = vadd.f32 %v10854, 0.25
    %v10909 = vadd.f32 %v10855, 0.25
    %v10910 = vadd.f32 %v10856, 0.25
    %v10911 = vpack.c.bf16 %v10884, %v10857
    %v10912 = vpack.c.bf16 %v10885, %v10858
    %v10913 = vpack.c.bf16 %v10886, %v10859
    %v10914 = vpack.c.bf16 %v10887, %v10860
    %v10915 = vpack.c.bf16 %v10888, %v10861
    %v10916 = vpack.c.bf16 %v10889, %v10862
    %v10917 = vpack.c.bf16 %v10890, %v10863
    %v10918 = vpack.c.bf16 %v10891, %v10864
    %v10919 = vpack.c.bf16 %v10892, %v10865
    %v10920 = vpack.c.bf16 %v10893, %v10866
    %v10921 = vpack.c.bf16 %v10894, %v10867
    %v10922 = vpack.c.bf16 %v10895, %v10868
    %v10923 = vpack.c.bf16 %v10896, %v10869
    %v10924 = vpack.c.bf16 %v10897, %v10870
    %v10925 = vpack.c.bf16 %v10898, %v10871
    %v10926 = vpack.c.bf16 %v10899, %v10872
    %v10927 = vpack.c.bf16 %v10900, %v10873
    %v10928 = vpack.c.bf16 %v10901, %v10874
    %v10929 = vpack.c.bf16 %v10902, %v10875
    %v10930 = vpack.c.bf16 %v10903, %v10876
    %v10931 = vpack.c.bf16 %v10904, %v10877
    %v10932 = vpack.c.bf16 %v10905, %v10878
    %v10933 = vpack.c.bf16 %v10906, %v10879
    %v10934 = vpack.c.bf16 %v10907, %v10880
    %v10935 = vpack.c.bf16 %v10908, %v10881
    %v10936 = vpack.c.bf16 %v10909, %v10882
    %v10937 = vpack.c.bf16 %v10910, %v10883
    %v10938 = vld [vmem:[#allocation6] sm:$0xf]
    %v10939 = vld [vmem:[#allocation6 + $0x4] sm:$0xf]
    %v10940 = vld [vmem:[#allocation6 + $0x8] sm:$0xf]
    %v10941 = vld [vmem:[#allocation6 + $0xc] sm:$0xf]
    %v10942 = vld [vmem:[#allocation6 + $0x10] sm:$0xf]
    %v10943 = vld [vmem:[#allocation6 + $0x14] sm:$0xf]
    %v10944 = vld [vmem:[#allocation6 + $0x18] sm:$0xf]
    %v10945 = vld [vmem:[#allocation6 + $0x1c] sm:$0xf]
    %v10946 = vld [vmem:[#allocation6 + $0x20] sm:$0xf]
    %v10947 = vld [vmem:[#allocation6 + $0x24] sm:$0xf]
    %v10948 = vld [vmem:[#allocation6 + $0x28] sm:$0xf]
    %v10949 = vld [vmem:[#allocation6 + $0x2c] sm:$0xf]
    %v10950 = vld [vmem:[#allocation6 + $0x30] sm:$0xf]
    %v10951 = vld [vmem:[#allocation6 + $0x34] sm:$0xf]
    %v10952 = vld [vmem:[#allocation6 + $0x38] sm:$0xf]
    %v10953 = vld [vmem:[#allocation6 + $0x3c] sm:$0xf]
    %v10954 = vld [vmem:[#allocation6 + $0x40] sm:$0xf]
    %v10955 = vld [vmem:[#allocation6 + $0x44] sm:$0xf]
    %v10956 = vld [vmem:[#allocation6 + $0x48] sm:$0xf]
    %v10957 = vld [vmem:[#allocation6 + $0x4c] sm:$0xf]
    %v10958 = vld [vmem:[#allocation6 + $0x50] sm:$0xf]
    %v10959 = vld [vmem:[#allocation6 + $0x54] sm:$0xf]
    %v10960 = vld [vmem:[#allocation6 + $0x58] sm:$0xf]
    %v10961 = vld [vmem:[#allocation6 + $0x5c] sm:$0xf]
    %v10962 = vld [vmem:[#allocation6 + $0x60] sm:$0xf]
    %v10963 = vld [vmem:[#allocation6 + $0x64] sm:$0xf]
    %v10964 = vld [vmem:[#allocation6 + $0x68] sm:$0xf]
    %v10965 = vld [vmem:[#allocation6 + $0x6c] sm:$0xf]
    %v10966 = vld [vmem:[#allocation6 + $0x70] sm:$0xf]
    %v10967 = vld [vmem:[#allocation6 + $0x74] sm:$0xf]
    %v10968 = vld [vmem:[#allocation6 + $0x78] sm:$0xf]
    %v10969 = vld [vmem:[#allocation6 + $0x7c] sm:$0xf]
    %v10970 = vld [vmem:[#allocation6 + $0x80] sm:$0xf]
    %v10971 = vld [vmem:[#allocation6 + $0x84] sm:$0xf]
    %v10972 = vld [vmem:[#allocation6 + $0x88] sm:$0xf]
    %v10973 = vld [vmem:[#allocation6 + $0x8c] sm:$0xf]
    %v10974 = vld [vmem:[#allocation6 + $0x90] sm:$0xf]
    %v10975 = vld [vmem:[#allocation6 + $0x94] sm:$0xf]
    %v10976 = vld [vmem:[#allocation6 + $0x98] sm:$0xf]
    %v10977 = vld [vmem:[#allocation6 + $0x9c] sm:$0xf]
    %v10978 = vld [vmem:[#allocation6 + $0xa0] sm:$0xf]
    %v10979 = vld [vmem:[#allocation6 + $0xa4] sm:$0xf]
    %v10980 = vld [vmem:[#allocation6 + $0xa8] sm:$0xf]
    %v10981 = vld [vmem:[#allocation6 + $0xac] sm:$0xf]
    %v10982 = vld [vmem:[#allocation6 + $0xb0] sm:$0xf]
    %v10983 = vld [vmem:[#allocation6 + $0xb4] sm:$0xf]
    %v10984 = vld [vmem:[#allocation6 + $0xb8] sm:$0xf]
    %v10985 = vld [vmem:[#allocation6 + $0xbc] sm:$0xf]
    %v10986 = vld [vmem:[#allocation6 + $0xc0] sm:$0xf]
    %v10987 = vld [vmem:[#allocation6 + $0xc4] sm:$0xf]
    %v10988 = vld [vmem:[#allocation6 + $0xc8] sm:$0xf]
    %v10989 = vld [vmem:[#allocation6 + $0xcc] sm:$0xf]
    %v10990 = vld [vmem:[#allocation6 + $0xd0] sm:$0xf]
    %v10991 = vld [vmem:[#allocation6 + $0xd4] sm:$0xf]
    %v10992 = vld [vmem:[#allocation6 + $0xd8] sm:$0xf]
    %v10993 = vld [vmem:[#allocation6 + $0xdc] sm:$0xf]
    %v10994 = vld [vmem:[#allocation6 + $0xe0] sm:$0xf]
    %v10995 = vld [vmem:[#allocation6 + $0xe4] sm:$0xf]
    %v10996 = vld [vmem:[#allocation6 + $0xe8] sm:$0xf]
    %v10997 = vld [vmem:[#allocation6 + $0xec] sm:$0xf]
    %v10998 = vld [vmem:[#allocation6 + $0xf0] sm:$0xf]
    %v10999 = vld [vmem:[#allocation6 + $0xf4] sm:$0xf]
    %v11000 = vld [vmem:[#allocation6 + $0xf8] sm:$0xf]
    %v11001 = vld [vmem:[#allocation6 + $0xfc] sm:$0xf]
    %v11002 = vld [vmem:[#allocation6 + $0x100] sm:$0xf]
    %v11003 = vld [vmem:[#allocation6 + $0x104] sm:$0xf]
    %v11004 = vld [vmem:[#allocation6 + $0x108] sm:$0xf]
    %v11005 = vld [vmem:[#allocation6 + $0x10c] sm:$0xf]
    %v11006 = vld [vmem:[#allocation6 + $0x110] sm:$0xf]
    %v11007 = vld [vmem:[#allocation6 + $0x114] sm:$0xf]
    %v11008 = vld [vmem:[#allocation6 + $0x118] sm:$0xf]
    %v11009 = vld [vmem:[#allocation6 + $0x11c] sm:$0xf]
    %v11010 = vld [vmem:[#allocation6 + $0x120] sm:$0xf]
    %v11011 = vld [vmem:[#allocation6 + $0x124] sm:$0xf]
    %v11012 = vld [vmem:[#allocation6 + $0x128] sm:$0xf]
    %v11013 = vld [vmem:[#allocation6 + $0x12c] sm:$0xf]
    %v11014 = vld [vmem:[#allocation6 + $0x130] sm:$0xf]
    %v11015 = vld [vmem:[#allocation6 + $0x134] sm:$0xf]
    %v11016 = vld [vmem:[#allocation6 + $0x138] sm:$0xf]
    %v11017 = vld [vmem:[#allocation6 + $0x13c] sm:$0xf]
    %v11018 = vld [vmem:[#allocation6 + $0x140] sm:$0xf]
    %v11019 = vld [vmem:[#allocation6 + $0x144] sm:$0xf]
    %v11020 = vld [vmem:[#allocation6 + $0x148] sm:$0xf]
    %v11021 = vld [vmem:[#allocation6 + $0x14c] sm:$0xf]
    %v11022 = vld [vmem:[#allocation6 + $0x150] sm:$0xf]
    %v11023 = vld [vmem:[#allocation6 + $0x154] sm:$0xf]
    %v11024 = vld [vmem:[#allocation6 + $0x158] sm:$0xf]
    %v11025 = vld [vmem:[#allocation6 + $0x15c] sm:$0xf]
    %v11026 = vld [vmem:[#allocation6 + $0x160] sm:$0xf]
    %v11027 = vld [vmem:[#allocation6 + $0x164] sm:$0xf]
    %v11028 = vld [vmem:[#allocation6 + $0x168] sm:$0xf]
    %v11029 = vld [vmem:[#allocation6 + $0x16c] sm:$0xf]
    %v11030 = vld [vmem:[#allocation6 + $0x170] sm:$0xf]
    %v11031 = vld [vmem:[#allocation6 + $0x174] sm:$0xf]
    %v11032 = vld [vmem:[#allocation6 + $0x178] sm:$0xf]
    %v11033 = vld [vmem:[#allocation6 + $0x17c] sm:$0xf]
    %v11034 = vld [vmem:[#allocation6 + $0x180] sm:$0xf]
    %v11035 = vld [vmem:[#allocation6 + $0x184] sm:$0xf]
    %v11036 = vld [vmem:[#allocation6 + $0x188] sm:$0xf]
    %v11037 = vld [vmem:[#allocation6 + $0x18c] sm:$0xf]
    %v11038 = vld [vmem:[#allocation6 + $0x190] sm:$0xf]
    %v11039 = vld [vmem:[#allocation6 + $0x194] sm:$0xf]
    %v11040 = vld [vmem:[#allocation6 + $0x198] sm:$0xf]
    %v11041 = vld [vmem:[#allocation6 + $0x19c] sm:$0xf]
    %v11042 = vld [vmem:[#allocation6 + $0x1a0] sm:$0xf]
    %v11043 = vld [vmem:[#allocation6 + $0x1a4] sm:$0xf]
    %v11044 = vld [vmem:[#allocation6 + $0x1a8] sm:$0xf]
    %v11045 = vld [vmem:[#allocation6 + $0x1ac] sm:$0xf]
    %v11046 = vld [vmem:[#allocation6 + $0x1b0] sm:$0xf]
    %v11047 = vld [vmem:[#allocation6 + $0x1b4] sm:$0xf]
    %v11048 = vld [vmem:[#allocation6 + $0x1b8] sm:$0xf]
    %v11049 = vld [vmem:[#allocation6 + $0x1bc] sm:$0xf]
    %v11050 = vld [vmem:[#allocation6 + $0x1c0] sm:$0xf]
    %v11051 = vld [vmem:[#allocation6 + $0x1c4] sm:$0xf]
    %v11052 = vld [vmem:[#allocation6 + $0x1c8] sm:$0xf]
    %v11053 = vld [vmem:[#allocation6 + $0x1cc] sm:$0xf]
    %v11054 = vld [vmem:[#allocation6 + $0x1d0] sm:$0xf]
    %v11055 = vld [vmem:[#allocation6 + $0x1d4] sm:$0xf]
    %v11056 = vld [vmem:[#allocation6 + $0x1d8] sm:$0xf]
    %v11057 = vld [vmem:[#allocation6 + $0x1dc] sm:$0xf]
    %v11058 = vld [vmem:[#allocation6 + $0x1e0] sm:$0xf]
    %v11059 = vld [vmem:[#allocation6 + $0x1e4] sm:$0xf]
    %v11060 = vld [vmem:[#allocation6 + $0x1e8] sm:$0xf]
    %v11061 = vld [vmem:[#allocation6 + $0x1ec] sm:$0xf]
    %v11062 = vld [vmem:[#allocation6 + $0x1f0] sm:$0xf]
    %v11063 = vld [vmem:[#allocation6 + $0x1f4] sm:$0xf]
    %v11064 = vld [vmem:[#allocation6 + $0x1f8] sm:$0xf]
    %v11065 = vld [vmem:[#allocation6 + $0x1fc] sm:$0xf]
    %v11066 = vld [vmem:[#allocation6 + $0x200] sm:$0xf]
    %v11067 = vld [vmem:[#allocation6 + $0x204] sm:$0xf]
    %v11068 = vld [vmem:[#allocation6 + $0x208] sm:$0xf]
    %v11069 = vld [vmem:[#allocation6 + $0x20c] sm:$0xf]
    %v11070 = vld [vmem:[#allocation6 + $0x210] sm:$0xf]
    %v11071 = vld [vmem:[#allocation6 + $0x214] sm:$0xf]
    %v11072 = vld [vmem:[#allocation6 + $0x218] sm:$0xf]
    %v11073 = vld [vmem:[#allocation6 + $0x21c] sm:$0xf]
    %v11074 = vld [vmem:[#allocation6 + $0x220] sm:$0xf]
    %v11075 = vld [vmem:[#allocation6 + $0x224] sm:$0xf]
    %v11076 = vld [vmem:[#allocation6 + $0x228] sm:$0xf]
    %v11077 = vld [vmem:[#allocation6 + $0x22c] sm:$0xf]
    %v11078 = vld [vmem:[#allocation6 + $0x230] sm:$0xf]
    %v11079 = vld [vmem:[#allocation6 + $0x234] sm:$0xf]
    %v11080 = vld [vmem:[#allocation6 + $0x238] sm:$0xf]
    %v11081 = vld [vmem:[#allocation6 + $0x23c] sm:$0xf]
    %v11082 = vld [vmem:[#allocation6 + $0x240] sm:$0xf]
    %v11083 = vld [vmem:[#allocation6 + $0x244] sm:$0xf]
    %v11084 = vld [vmem:[#allocation6 + $0x248] sm:$0xf]
    %v11085 = vld [vmem:[#allocation6 + $0x24c] sm:$0xf]
    %v11086 = vld [vmem:[#allocation6 + $0x250] sm:$0xf]
    %v11087 = vld [vmem:[#allocation6 + $0x254] sm:$0xf]
    %v11088 = vld [vmem:[#allocation6 + $0x258] sm:$0xf]
    %v11089 = vld [vmem:[#allocation6 + $0x25c] sm:$0xf]
    %v11090 = vld [vmem:[#allocation6 + $0x260] sm:$0xf]
    %v11091 = vld [vmem:[#allocation6 + $0x264] sm:$0xf]
    %v11092 = vld [vmem:[#allocation6 + $0x268] sm:$0xf]
    %v11093 = vld [vmem:[#allocation6 + $0x26c] sm:$0xf]
    %v11094 = vld [vmem:[#allocation6 + $0x270] sm:$0xf]
    %v11095 = vld [vmem:[#allocation6 + $0x274] sm:$0xf]
    %v11096 = vld [vmem:[#allocation6 + $0x278] sm:$0xf]
    %v11097 = vld [vmem:[#allocation6 + $0x27c] sm:$0xf]
    %v11098 = vld [vmem:[#allocation6 + $0x280] sm:$0xf]
    %v11099 = vld [vmem:[#allocation6 + $0x284] sm:$0xf]
    %v11100 = vld [vmem:[#allocation6 + $0x288] sm:$0xf]
    %v11101 = vld [vmem:[#allocation6 + $0x28c] sm:$0xf]
    %v11102 = vld [vmem:[#allocation6 + $0x290] sm:$0xf]
    %v11103 = vld [vmem:[#allocation6 + $0x294] sm:$0xf]
    %v11104 = vld [vmem:[#allocation6 + $0x298] sm:$0xf]
    %v11105 = vld [vmem:[#allocation6 + $0x29c] sm:$0xf]
    %v11106 = vld [vmem:[#allocation6 + $0x2a0] sm:$0xf]
    %v11107 = vld [vmem:[#allocation6 + $0x2a4] sm:$0xf]
    %v11108 = vld [vmem:[#allocation6 + $0x2a8] sm:$0xf]
    %v11109 = vld [vmem:[#allocation6 + $0x2ac] sm:$0xf]
    %v11110 = vld [vmem:[#allocation6 + $0x2b0] sm:$0xf]
    %v11111 = vld [vmem:[#allocation6 + $0x2b4] sm:$0xf]
    %v11112 = vld [vmem:[#allocation6 + $0x2b8] sm:$0xf]
    %v11113 = vld [vmem:[#allocation6 + $0x2bc] sm:$0xf]
    %v11114 = vld [vmem:[#allocation6 + $0x2c0] sm:$0xf]
    %v11115 = vld [vmem:[#allocation6 + $0x2c4] sm:$0xf]
    %v11116 = vld [vmem:[#allocation6 + $0x2c8] sm:$0xf]
    %v11117 = vld [vmem:[#allocation6 + $0x2cc] sm:$0xf]
    %v11118 = vld [vmem:[#allocation6 + $0x2d0] sm:$0xf]
    %v11119 = vld [vmem:[#allocation6 + $0x2d4] sm:$0xf]
    %v11120 = vld [vmem:[#allocation6 + $0x2d8] sm:$0xf]
    %v11121 = vld [vmem:[#allocation6 + $0x2dc] sm:$0xf]
    %v11122 = vld [vmem:[#allocation6 + $0x2e0] sm:$0xf]
    %v11123 = vld [vmem:[#allocation6 + $0x2e4] sm:$0xf]
    %v11124 = vld [vmem:[#allocation6 + $0x2e8] sm:$0xf]
    %v11125 = vld [vmem:[#allocation6 + $0x2ec] sm:$0xf]
    %v11126 = vld [vmem:[#allocation6 + $0x2f0] sm:$0xf]
    %v11127 = vld [vmem:[#allocation6 + $0x2f4] sm:$0xf]
    %v11128 = vld [vmem:[#allocation6 + $0x2f8] sm:$0xf]
    %v11129 = vld [vmem:[#allocation6 + $0x2fc] sm:$0xf]
    %v11130 = vld [vmem:[#allocation6 + $0x300] sm:$0xf]
    %v11131 = vld [vmem:[#allocation6 + $0x304] sm:$0xf]
    %v11132 = vld [vmem:[#allocation6 + $0x308] sm:$0xf]
    %v11133 = vld [vmem:[#allocation6 + $0x30c] sm:$0xf]
    %v11134 = vld [vmem:[#allocation6 + $0x310] sm:$0xf]
    %v11135 = vld [vmem:[#allocation6 + $0x314] sm:$0xf]
    %v11136 = vld [vmem:[#allocation6 + $0x318] sm:$0xf]
    %v11137 = vld [vmem:[#allocation6 + $0x31c] sm:$0xf]
    %v11138 = vld [vmem:[#allocation6 + $0x320] sm:$0xf]
    %v11139 = vld [vmem:[#allocation6 + $0x324] sm:$0xf]
    %v11140 = vld [vmem:[#allocation6 + $0x328] sm:$0xf]
    %v11141 = vld [vmem:[#allocation6 + $0x32c] sm:$0xf]
    %v11142 = vld [vmem:[#allocation6 + $0x330] sm:$0xf]
    %v11143 = vld [vmem:[#allocation6 + $0x334] sm:$0xf]
    %v11144 = vld [vmem:[#allocation6 + $0x338] sm:$0xf]
    %v11145 = vld [vmem:[#allocation6 + $0x33c] sm:$0xf]
    %v11146 = vld [vmem:[#allocation6 + $0x340] sm:$0xf]
    %v11147 = vld [vmem:[#allocation6 + $0x344] sm:$0xf]
    %v11148 = vld [vmem:[#allocation6 + $0x348] sm:$0xf]
    %v11149 = vld [vmem:[#allocation6 + $0x34c] sm:$0xf]
    %v11150 = vld [vmem:[#allocation6 + $0x350] sm:$0xf]
    %v11151 = vld [vmem:[#allocation6 + $0x354] sm:$0xf]
    %v11152 = vld [vmem:[#allocation6 + $0x358] sm:$0xf]
    %v11153 = vld [vmem:[#allocation6 + $0x35c] sm:$0xf]
    %v11154 = vld [vmem:[#allocation6 + $0x360] sm:$0xf]
    %v11155 = vld [vmem:[#allocation6 + $0x364] sm:$0xf]
    %v11156 = vld [vmem:[#allocation6 + $0x368] sm:$0xf]
    %v11157 = vld [vmem:[#allocation6 + $0x36c] sm:$0xf]
    %v11158 = vld [vmem:[#allocation6 + $0x370] sm:$0xf]
    %v11159 = vld [vmem:[#allocation6 + $0x374] sm:$0xf]
    %v11160 = vld [vmem:[#allocation6 + $0x378] sm:$0xf]
    %v11161 = vld [vmem:[#allocation6 + $0x37c] sm:$0xf]
    %v11162 = vld [vmem:[#allocation6 + $0x380] sm:$0xf]
    %v11163 = vld [vmem:[#allocation6 + $0x384] sm:$0xf]
    %v11164 = vld [vmem:[#allocation6 + $0x388] sm:$0xf]
    %v11165 = vld [vmem:[#allocation6 + $0x38c] sm:$0xf]
    %v11166 = vld [vmem:[#allocation6 + $0x390] sm:$0xf]
    %v11167 = vld [vmem:[#allocation6 + $0x394] sm:$0xf]
    %v11168 = vld [vmem:[#allocation6 + $0x398] sm:$0xf]
    %v11169 = vld [vmem:[#allocation6 + $0x39c] sm:$0xf]
    %v11170 = vld [vmem:[#allocation6 + $0x3a0] sm:$0xf]
    %v11171 = vld [vmem:[#allocation6 + $0x3a4] sm:$0xf]
    %v11172 = vld [vmem:[#allocation6 + $0x3a8] sm:$0xf]
    %v11173 = vld [vmem:[#allocation6 + $0x3ac] sm:$0xf]
    %v11174 = vld [vmem:[#allocation6 + $0x3b0] sm:$0xf]
    %v11175 = vld [vmem:[#allocation6 + $0x3b4] sm:$0xf]
    %v11176 = vld [vmem:[#allocation6 + $0x3b8] sm:$0xf]
    %v11177 = vld [vmem:[#allocation6 + $0x3bc] sm:$0xf]
    %v11178 = vld [vmem:[#allocation6 + $0x3c0] sm:$0xf]
    %v11179 = vld [vmem:[#allocation6 + $0x3c4] sm:$0xf]
    %v11180 = vld [vmem:[#allocation6 + $0x3c8] sm:$0xf]
    %v11181 = vld [vmem:[#allocation6 + $0x3cc] sm:$0xf]
    %v11182 = vld [vmem:[#allocation6 + $0x3d0] sm:$0xf]
    %v11183 = vld [vmem:[#allocation6 + $0x3d4] sm:$0xf]
    %v11184 = vld [vmem:[#allocation6 + $0x3d8] sm:$0xf]
    %v11185 = vld [vmem:[#allocation6 + $0x3dc] sm:$0xf]
    %v11186 = vld [vmem:[#allocation6 + $0x3e0] sm:$0xf]
    %v11187 = vld [vmem:[#allocation6 + $0x3e4] sm:$0xf]
    %v11188 = vld [vmem:[#allocation6 + $0x3e8] sm:$0xf]
    %v11189 = vld [vmem:[#allocation6 + $0x3ec] sm:$0xf]
    %v11190 = vld [vmem:[#allocation6 + $0x3f0] sm:$0xf]
    %v11191 = vld [vmem:[#allocation6 + $0x3f4] sm:$0xf]
    %v11192 = vld [vmem:[#allocation6 + $0x3f8] sm:$0xf]
    %v11193 = vld [vmem:[#allocation6 + $0x3fc] sm:$0xf]
    %v11194 = vld [vmem:[#allocation6 + $0x400] sm:$0xf]
    %v11195 = vld [vmem:[#allocation6 + $0x404] sm:$0xf]
    %v11196 = vld [vmem:[#allocation6 + $0x408] sm:$0xf]
    %v11197 = vld [vmem:[#allocation6 + $0x40c] sm:$0xf]
    %v11198 = vld [vmem:[#allocation6 + $0x410] sm:$0xf]
    %v11199 = vld [vmem:[#allocation6 + $0x414] sm:$0xf]
    %v11200 = vld [vmem:[#allocation6 + $0x418] sm:$0xf]
    %v11201 = vld [vmem:[#allocation6 + $0x41c] sm:$0xf]
    %v11202 = vld [vmem:[#allocation6 + $0x420] sm:$0xf]
    %v11203 = vld [vmem:[#allocation6 + $0x424] sm:$0xf]
    %v11204 = vld [vmem:[#allocation6 + $0x428] sm:$0xf]
    %v11205 = vld [vmem:[#allocation6 + $0x42c] sm:$0xf]
    %v11206 = vld [vmem:[#allocation6 + $0x430] sm:$0xf]
    %v11207 = vld [vmem:[#allocation6 + $0x434] sm:$0xf]
    %v11208 = vld [vmem:[#allocation6 + $0x438] sm:$0xf]
    %v11209 = vld [vmem:[#allocation6 + $0x43c] sm:$0xf]
    %v11210 = vld [vmem:[#allocation6 + $0x440] sm:$0xf]
    %v11211 = vld [vmem:[#allocation6 + $0x444] sm:$0xf]
    %v11212 = vld [vmem:[#allocation6 + $0x448] sm:$0xf]
    %v11213 = vld [vmem:[#allocation6 + $0x44c] sm:$0xf]
    %v11214 = vld [vmem:[#allocation6 + $0x450] sm:$0xf]
    %v11215 = vld [vmem:[#allocation6 + $0x454] sm:$0xf]
    %v11216 = vld [vmem:[#allocation6 + $0x458] sm:$0xf]
    %v11217 = vld [vmem:[#allocation6 + $0x45c] sm:$0xf]
    %v11218 = vld [vmem:[#allocation6 + $0x460] sm:$0xf]
    %v11219 = vld [vmem:[#allocation6 + $0x464] sm:$0xf]
    %v11220 = vld [vmem:[#allocation6 + $0x468] sm:$0xf]
    %v11221 = vld [vmem:[#allocation6 + $0x46c] sm:$0xf]
    %v11222 = vld [vmem:[#allocation6 + $0x470] sm:$0xf]
    %v11223 = vld [vmem:[#allocation6 + $0x474] sm:$0xf]
    %v11224 = vld [vmem:[#allocation6 + $0x478] sm:$0xf]
    %v11225 = vld [vmem:[#allocation6 + $0x47c] sm:$0xf]
    %v11226 = vld [vmem:[#allocation6 + $0x480] sm:$0xf]
    %v11227 = vld [vmem:[#allocation6 + $0x484] sm:$0xf]
    %v11228 = vld [vmem:[#allocation6 + $0x488] sm:$0xf]
    %v11229 = vld [vmem:[#allocation6 + $0x48c] sm:$0xf]
    %v11230 = vld [vmem:[#allocation6 + $0x490] sm:$0xf]
    %v11231 = vld [vmem:[#allocation6 + $0x494] sm:$0xf]
    %v11232 = vld [vmem:[#allocation6 + $0x498] sm:$0xf]
    %v11233 = vld [vmem:[#allocation6 + $0x49c] sm:$0xf]
    %v11234 = vld [vmem:[#allocation6 + $0x4a0] sm:$0xf]
    %v11235 = vld [vmem:[#allocation6 + $0x4a4] sm:$0xf]
    %v11236 = vld [vmem:[#allocation6 + $0x4a8] sm:$0xf]
    %v11237 = vld [vmem:[#allocation6 + $0x4ac] sm:$0xf]
    %v11238 = vld [vmem:[#allocation6 + $0x4b0] sm:$0xf]
    %v11239 = vld [vmem:[#allocation6 + $0x4b4] sm:$0xf]
    %v11240 = vld [vmem:[#allocation6 + $0x4b8] sm:$0xf]
    %v11241 = vld [vmem:[#allocation6 + $0x4bc] sm:$0xf]
    %v11242 = vld [vmem:[#allocation6 + $0x4c0] sm:$0xf]
    %v11243 = vld [vmem:[#allocation6 + $0x4c4] sm:$0xf]
    %v11244 = vld [vmem:[#allocation6 + $0x4c8] sm:$0xf]
    %v11245 = vld [vmem:[#allocation6 + $0x4cc] sm:$0xf]
    %v11246 = vld [vmem:[#allocation6 + $0x4d0] sm:$0xf]
    %v11247 = vld [vmem:[#allocation6 + $0x4d4] sm:$0xf]
    %v11248 = vld [vmem:[#allocation6 + $0x4d8] sm:$0xf]
    %v11249 = vld [vmem:[#allocation6 + $0x4dc] sm:$0xf]
    %v11250 = vld [vmem:[#allocation6 + $0x4e0] sm:$0xf]
    %v11251 = vld [vmem:[#allocation6 + $0x4e4] sm:$0xf]
    %v11252 = vld [vmem:[#allocation6 + $0x4e8] sm:$0xf]
    %v11253 = vld [vmem:[#allocation6 + $0x4ec] sm:$0xf]
    %v11254 = vld [vmem:[#allocation6 + $0x4f0] sm:$0xf]
    %v11255 = vld [vmem:[#allocation6 + $0x4f4] sm:$0xf]
    %v11256 = vld [vmem:[#allocation6 + $0x4f8] sm:$0xf]
    %v11257 = vld [vmem:[#allocation6 + $0x4fc] sm:$0xf]
    %v11258 = vld [vmem:[#allocation6 + $0x500] sm:$0xf]
    %v11259 = vld [vmem:[#allocation6 + $0x504] sm:$0xf]
    %v11260 = vld [vmem:[#allocation6 + $0x508] sm:$0xf]
    %v11261 = vld [vmem:[#allocation6 + $0x50c] sm:$0xf]
    %v11262 = vld [vmem:[#allocation6 + $0x510] sm:$0xf]
    %v11263 = vld [vmem:[#allocation6 + $0x514] sm:$0xf]
    %v11264 = vld [vmem:[#allocation6 + $0x518] sm:$0xf]
    %v11265 = vld [vmem:[#allocation6 + $0x51c] sm:$0xf]
    %v11266 = vld [vmem:[#allocation6 + $0x520] sm:$0xf]
    %v11267 = vld [vmem:[#allocation6 + $0x524] sm:$0xf]
    %v11268 = vld [vmem:[#allocation6 + $0x528] sm:$0xf]
    %v11269 = vld [vmem:[#allocation6 + $0x52c] sm:$0xf]
    %v11270 = vld [vmem:[#allocation6 + $0x530] sm:$0xf]
    %v11271 = vld [vmem:[#allocation6 + $0x534] sm:$0xf]
    %v11272 = vld [vmem:[#allocation6 + $0x538] sm:$0xf]
    %v11273 = vld [vmem:[#allocation6 + $0x53c] sm:$0xf]
    %v11274 = vld [vmem:[#allocation6 + $0x540] sm:$0xf]
    %v11275 = vld [vmem:[#allocation6 + $0x544] sm:$0xf]
    %v11276 = vld [vmem:[#allocation6 + $0x548] sm:$0xf]
    %v11277 = vld [vmem:[#allocation6 + $0x54c] sm:$0xf]
    %v11278 = vld [vmem:[#allocation6 + $0x550] sm:$0xf]
    %v11279 = vld [vmem:[#allocation6 + $0x554] sm:$0xf]
    %v11280 = vld [vmem:[#allocation6 + $0x558] sm:$0xf]
    %v11281 = vld [vmem:[#allocation6 + $0x55c] sm:$0xf]
    %v11282 = vld [vmem:[#allocation6 + $0x560] sm:$0xf]
    %v11283 = vld [vmem:[#allocation6 + $0x564] sm:$0xf]
    %v11284 = vld [vmem:[#allocation6 + $0x568] sm:$0xf]
    %v11285 = vld [vmem:[#allocation6 + $0x56c] sm:$0xf]
    %v11286 = vld [vmem:[#allocation6 + $0x570] sm:$0xf]
    %v11287 = vld [vmem:[#allocation6 + $0x574] sm:$0xf]
    %v11288 = vld [vmem:[#allocation6 + $0x578] sm:$0xf]
    %v11289 = vld [vmem:[#allocation6 + $0x57c] sm:$0xf]
    %v11290 = vld [vmem:[#allocation6 + $0x580] sm:$0xf]
    %v11291 = vld [vmem:[#allocation6 + $0x584] sm:$0xf]
    %v11292 = vld [vmem:[#allocation6 + $0x588] sm:$0xf]
    %v11293 = vld [vmem:[#allocation6 + $0x58c] sm:$0xf]
    %v11294 = vld [vmem:[#allocation6 + $0x590] sm:$0xf]
    %v11295 = vld [vmem:[#allocation6 + $0x594] sm:$0xf]
    %v11296 = vld [vmem:[#allocation6 + $0x598] sm:$0xf]
    %v11297 = vld [vmem:[#allocation6 + $0x59c] sm:$0xf]
    %v11298 = vld [vmem:[#allocation6 + $0x5a0] sm:$0xf]
    %v11299 = vld [vmem:[#allocation6 + $0x5a4] sm:$0xf]
    %v11300 = vld [vmem:[#allocation6 + $0x5a8] sm:$0xf]
    %v11301 = vld [vmem:[#allocation6 + $0x5ac] sm:$0xf]
    %v11302 = vld [vmem:[#allocation6 + $0x5b0] sm:$0xf]
    %v11303 = vld [vmem:[#allocation6 + $0x5b4] sm:$0xf]
    %v11304 = vld [vmem:[#allocation6 + $0x5b8] sm:$0xf]
    %v11305 = vld [vmem:[#allocation6 + $0x5bc] sm:$0xf]
    %v11306 = vld [vmem:[#allocation6 + $0x5c0] sm:$0xf]
    %v11307 = vld [vmem:[#allocation6 + $0x5c4] sm:$0xf]
    %v11308 = vld [vmem:[#allocation6 + $0x5c8] sm:$0xf]
    %v11309 = vld [vmem:[#allocation6 + $0x5cc] sm:$0xf]
    %v11310 = vld [vmem:[#allocation6 + $0x5d0] sm:$0xf]
    %v11311 = vld [vmem:[#allocation6 + $0x5d4] sm:$0xf]
    %v11312 = vld [vmem:[#allocation6 + $0x5d8] sm:$0xf]
    %v11313 = vld [vmem:[#allocation6 + $0x5dc] sm:$0xf]
    %v11314 = vld [vmem:[#allocation6 + $0x5e0] sm:$0xf]
    %v11315 = vld [vmem:[#allocation6 + $0x5e4] sm:$0xf]
    %v11316 = vld [vmem:[#allocation6 + $0x5e8] sm:$0xf]
    %v11317 = vld [vmem:[#allocation6 + $0x5ec] sm:$0xf]
    %v11318 = vld [vmem:[#allocation6 + $0x5f0] sm:$0xf]
    %v11319 = vld [vmem:[#allocation6 + $0x5f4] sm:$0xf]
    %v11320 = vld [vmem:[#allocation6 + $0x5f8] sm:$0xf]
    %v11321 = vld [vmem:[#allocation6 + $0x5fc] sm:$0xf]
    %v11322 = vld [vmem:[#allocation6 + $0x600] sm:$0xf]
    %v11323 = vld [vmem:[#allocation6 + $0x604] sm:$0xf]
    %v11324 = vld [vmem:[#allocation6 + $0x608] sm:$0xf]
    %v11325 = vld [vmem:[#allocation6 + $0x60c] sm:$0xf]
    %v11326 = vld [vmem:[#allocation6 + $0x610] sm:$0xf]
    %v11327 = vld [vmem:[#allocation6 + $0x614] sm:$0xf]
    %v11328 = vld [vmem:[#allocation6 + $0x618] sm:$0xf]
    %v11329 = vld [vmem:[#allocation6 + $0x61c] sm:$0xf]
    %v11330 = vld [vmem:[#allocation6 + $0x620] sm:$0xf]
    %v11331 = vld [vmem:[#allocation6 + $0x624] sm:$0xf]
    %v11332 = vld [vmem:[#allocation6 + $0x628] sm:$0xf]
    %v11333 = vld [vmem:[#allocation6 + $0x62c] sm:$0xf]
    %v11334 = vld [vmem:[#allocation6 + $0x630] sm:$0xf]
    %v11335 = vld [vmem:[#allocation6 + $0x634] sm:$0xf]
    %v11336 = vld [vmem:[#allocation6 + $0x638] sm:$0xf]
    %v11337 = vld [vmem:[#allocation6 + $0x63c] sm:$0xf]
    %v11338 = vld [vmem:[#allocation6 + $0x640] sm:$0xf]
    %v11339 = vld [vmem:[#allocation6 + $0x644] sm:$0xf]
    %v11340 = vld [vmem:[#allocation6 + $0x648] sm:$0xf]
    %v11341 = vld [vmem:[#allocation6 + $0x64c] sm:$0xf]
    %v11342 = vld [vmem:[#allocation6 + $0x650] sm:$0xf]
    %v11343 = vld [vmem:[#allocation6 + $0x654] sm:$0xf]
    %v11344 = vld [vmem:[#allocation6 + $0x658] sm:$0xf]
    %v11345 = vld [vmem:[#allocation6 + $0x65c] sm:$0xf]
    %v11346 = vld [vmem:[#allocation6 + $0x660] sm:$0xf]
    %v11347 = vld [vmem:[#allocation6 + $0x664] sm:$0xf]
    %v11348 = vld [vmem:[#allocation6 + $0x668] sm:$0xf]
    %v11349 = vld [vmem:[#allocation6 + $0x66c] sm:$0xf]
    %v11350 = vld [vmem:[#allocation6 + $0x670] sm:$0xf]
    %v11351 = vld [vmem:[#allocation6 + $0x674] sm:$0xf]
    %v11352 = vld [vmem:[#allocation6 + $0x678] sm:$0xf]
    %v11353 = vld [vmem:[#allocation6 + $0x67c] sm:$0xf]
    %v11354 = vld [vmem:[#allocation6 + $0x680] sm:$0xf]
    %v11355 = vld [vmem:[#allocation6 + $0x684] sm:$0xf]
    %v11356 = vld [vmem:[#allocation6 + $0x688] sm:$0xf]
    %v11357 = vld [vmem:[#allocation6 + $0x68c] sm:$0xf]
    %v11358 = vld [vmem:[#allocation6 + $0x690] sm:$0xf]
    %v11359 = vld [vmem:[#allocation6 + $0x694] sm:$0xf]
    %v11360 = vld [vmem:[#allocation6 + $0x698] sm:$0xf]
    %v11361 = vld [vmem:[#allocation6 + $0x69c] sm:$0xf]
    %v11362 = vld [vmem:[#allocation6 + $0x6a0] sm:$0xf]
    %v11363 = vld [vmem:[#allocation6 + $0x6a4] sm:$0xf]
    %v11364 = vld [vmem:[#allocation6 + $0x6a8] sm:$0xf]
    %v11365 = vld [vmem:[#allocation6 + $0x6ac] sm:$0xf]
    %v11366 = vld [vmem:[#allocation6 + $0x6b0] sm:$0xf]
    %v11367 = vld [vmem:[#allocation6 + $0x6b4] sm:$0xf]
    %v11368 = vld [vmem:[#allocation6 + $0x6b8] sm:$0xf]
    %v11369 = vld [vmem:[#allocation6 + $0x6bc] sm:$0xf]
    %v11370 = vld [vmem:[#allocation7] sm:$0x1]
    %v11372 = vlaneseq
    %v11373 = vshrl.u32 %v11372, 7
    %v11374 = vsub.s32 0, %v11373
    %v11375 = vrot.slane %v11370, %v11374
    %v11809 = vunpack.c.l.b16 %v10938
    %v11810 = vunpack.c.l.b16 %v10939
    %v11811 = vunpack.c.l.b16 %v10940
    %v11812 = vunpack.c.l.b16 %v10941
    %v11813 = vunpack.c.l.b16 %v10942
    %v11814 = vunpack.c.l.b16 %v10943
    %v11815 = vunpack.c.l.b16 %v10944
    %v11816 = vunpack.c.l.b16 %v10945
    %v11817 = vunpack.c.l.b16 %v10946
    %v11818 = vunpack.c.l.b16 %v10947
    %v11819 = vunpack.c.l.b16 %v10948
    %v11820 = vunpack.c.l.b16 %v10949
    %v11821 = vunpack.c.l.b16 %v10950
    %v11822 = vunpack.c.l.b16 %v10951
    %v11823 = vunpack.c.l.b16 %v10952
    %v11824 = vunpack.c.l.b16 %v10953
    %v11825 = vunpack.c.l.b16 %v10954
    %v11826 = vunpack.c.l.b16 %v10955
    %v11827 = vunpack.c.l.b16 %v10956
    %v11828 = vunpack.c.l.b16 %v10957
    %v11829 = vunpack.c.l.b16 %v10958
    %v11830 = vunpack.c.l.b16 %v10959
    %v11831 = vunpack.c.l.b16 %v10960
    %v11832 = vunpack.c.l.b16 %v10961
    %v11833 = vunpack.c.l.b16 %v10962
    %v11834 = vunpack.c.l.b16 %v10963
    %v11835 = vunpack.c.l.b16 %v10964
    %v11836 = vunpack.c.l.b16 %v10965
    %v11837 = vunpack.c.l.b16 %v10966
    %v11838 = vunpack.c.l.b16 %v10967
    %v11839 = vunpack.c.l.b16 %v10968
    %v11840 = vunpack.c.l.b16 %v10969
    %v11841 = vunpack.c.l.b16 %v10970
    %v11842 = vunpack.c.l.b16 %v10971
    %v11843 = vunpack.c.l.b16 %v10972
    %v11844 = vunpack.c.l.b16 %v10973
    %v11845 = vunpack.c.l.b16 %v10974
    %v11846 = vunpack.c.l.b16 %v10975
    %v11847 = vunpack.c.l.b16 %v10976
    %v11848 = vunpack.c.l.b16 %v10977
    %v11849 = vunpack.c.l.b16 %v10978
    %v11850 = vunpack.c.l.b16 %v10979
    %v11851 = vunpack.c.l.b16 %v10980
    %v11852 = vunpack.c.l.b16 %v10981
    %v11853 = vunpack.c.l.b16 %v10982
    %v11854 = vunpack.c.l.b16 %v10983
    %v11855 = vunpack.c.l.b16 %v10984
    %v11856 = vunpack.c.l.b16 %v10985
    %v11857 = vunpack.c.l.b16 %v10986
    %v11858 = vunpack.c.l.b16 %v10987
    %v11859 = vunpack.c.l.b16 %v10988
    %v11860 = vunpack.c.l.b16 %v10989
    %v11861 = vunpack.c.l.b16 %v10990
    %v11862 = vunpack.c.l.b16 %v10991
    %v11863 = vunpack.c.l.b16 %v10992
    %v11864 = vunpack.c.l.b16 %v10993
    %v11865 = vunpack.c.l.b16 %v10994
    %v11866 = vunpack.c.l.b16 %v10995
    %v11867 = vunpack.c.l.b16 %v10996
    %v11868 = vunpack.c.l.b16 %v10997
    %v11869 = vunpack.c.l.b16 %v10998
    %v11870 = vunpack.c.l.b16 %v10999
    %v11871 = vunpack.c.l.b16 %v11000
    %v11872 = vunpack.c.l.b16 %v11001
    %v11873 = vunpack.c.l.b16 %v11002
    %v11874 = vunpack.c.l.b16 %v11003
    %v11875 = vunpack.c.l.b16 %v11004
    %v11876 = vunpack.c.l.b16 %v11005
    %v11877 = vunpack.c.l.b16 %v11006
    %v11878 = vunpack.c.l.b16 %v11007
    %v11879 = vunpack.c.l.b16 %v11008
    %v11880 = vunpack.c.l.b16 %v11009
    %v11881 = vunpack.c.l.b16 %v11010
    %v11882 = vunpack.c.l.b16 %v11011
    %v11883 = vunpack.c.l.b16 %v11012
    %v11884 = vunpack.c.l.b16 %v11013
    %v11885 = vunpack.c.l.b16 %v11014
    %v11886 = vunpack.c.l.b16 %v11015
    %v11887 = vunpack.c.l.b16 %v11016
    %v11888 = vunpack.c.l.b16 %v11017
    %v11889 = vunpack.c.l.b16 %v11018
    %v11890 = vunpack.c.l.b16 %v11019
    %v11891 = vunpack.c.l.b16 %v11020
    %v11892 = vunpack.c.l.b16 %v11021
    %v11893 = vunpack.c.l.b16 %v11022
    %v11894 = vunpack.c.l.b16 %v11023
    %v11895 = vunpack.c.l.b16 %v11024
    %v11896 = vunpack.c.l.b16 %v11025
    %v11897 = vunpack.c.l.b16 %v11026
    %v11898 = vunpack.c.l.b16 %v11027
    %v11899 = vunpack.c.l.b16 %v11028
    %v11900 = vunpack.c.l.b16 %v11029
    %v11901 = vunpack.c.l.b16 %v11030
    %v11902 = vunpack.c.l.b16 %v11031
    %v11903 = vunpack.c.l.b16 %v11032
    %v11904 = vunpack.c.l.b16 %v11033
    %v11905 = vunpack.c.l.b16 %v11034
    %v11906 = vunpack.c.l.b16 %v11035
    %v11907 = vunpack.c.l.b16 %v11036
    %v11908 = vunpack.c.l.b16 %v11037
    %v11909 = vunpack.c.l.b16 %v11038
    %v11910 = vunpack.c.l.b16 %v11039
    %v11911 = vunpack.c.l.b16 %v11040
    %v11912 = vunpack.c.l.b16 %v11041
    %v11913 = vunpack.c.l.b16 %v11042
    %v11914 = vunpack.c.l.b16 %v11043
    %v11915 = vunpack.c.l.b16 %v11044
    %v11916 = vunpack.c.l.b16 %v11045
    %v11917 = vunpack.c.l.b16 %v11046
    %v11918 = vunpack.c.l.b16 %v11047
    %v11919 = vunpack.c.l.b16 %v11048
    %v11920 = vunpack.c.l.b16 %v11049
    %v11921 = vunpack.c.l.b16 %v11050
    %v11922 = vunpack.c.l.b16 %v11051
    %v11923 = vunpack.c.l.b16 %v11052
    %v11924 = vunpack.c.l.b16 %v11053
    %v11925 = vunpack.c.l.b16 %v11054
    %v11926 = vunpack.c.l.b16 %v11055
    %v11927 = vunpack.c.l.b16 %v11056
    %v11928 = vunpack.c.l.b16 %v11057
    %v11929 = vunpack.c.l.b16 %v11058
    %v11930 = vunpack.c.l.b16 %v11059
    %v11931 = vunpack.c.l.b16 %v11060
    %v11932 = vunpack.c.l.b16 %v11061
    %v11933 = vunpack.c.l.b16 %v11062
    %v11934 = vunpack.c.l.b16 %v11063
    %v11935 = vunpack.c.l.b16 %v11064
    %v11936 = vunpack.c.l.b16 %v11065
    %v11937 = vunpack.c.l.b16 %v11066
    %v11938 = vunpack.c.l.b16 %v11067
    %v11939 = vunpack.c.l.b16 %v11068
    %v11940 = vunpack.c.l.b16 %v11069
    %v11941 = vunpack.c.l.b16 %v11070
    %v11942 = vunpack.c.l.b16 %v11071
    %v11943 = vunpack.c.l.b16 %v11072
    %v11944 = vunpack.c.l.b16 %v11073
    %v11945 = vunpack.c.l.b16 %v11074
    %v11946 = vunpack.c.l.b16 %v11075
    %v11947 = vunpack.c.l.b16 %v11076
    %v11948 = vunpack.c.l.b16 %v11077
    %v11949 = vunpack.c.l.b16 %v11078
    %v11950 = vunpack.c.l.b16 %v11079
    %v11951 = vunpack.c.l.b16 %v11080
    %v11952 = vunpack.c.l.b16 %v11081
    %v11953 = vunpack.c.l.b16 %v11082
    %v11954 = vunpack.c.l.b16 %v11083
    %v11955 = vunpack.c.l.b16 %v11084
    %v11956 = vunpack.c.l.b16 %v11085
    %v11957 = vunpack.c.l.b16 %v11086
    %v11958 = vunpack.c.l.b16 %v11087
    %v11959 = vunpack.c.l.b16 %v11088
    %v11960 = vunpack.c.l.b16 %v11089
    %v11961 = vunpack.c.l.b16 %v11090
    %v11962 = vunpack.c.l.b16 %v11091
    %v11963 = vunpack.c.l.b16 %v11092
    %v11964 = vunpack.c.l.b16 %v11093
    %v11965 = vunpack.c.l.b16 %v11094
    %v11966 = vunpack.c.l.b16 %v11095
    %v11967 = vunpack.c.l.b16 %v11096
    %v11968 = vunpack.c.l.b16 %v11097
    %v11969 = vunpack.c.l.b16 %v11098
    %v11970 = vunpack.c.l.b16 %v11099
    %v11971 = vunpack.c.l.b16 %v11100
    %v11972 = vunpack.c.l.b16 %v11101
    %v11973 = vunpack.c.l.b16 %v11102
    %v11974 = vunpack.c.l.b16 %v11103
    %v11975 = vunpack.c.l.b16 %v11104
    %v11976 = vunpack.c.l.b16 %v11105
    %v11977 = vunpack.c.l.b16 %v11106
    %v11978 = vunpack.c.l.b16 %v11107
    %v11979 = vunpack.c.l.b16 %v11108
    %v11980 = vunpack.c.l.b16 %v11109
    %v11981 = vunpack.c.l.b16 %v11110
    %v11982 = vunpack.c.l.b16 %v11111
    %v11983 = vunpack.c.l.b16 %v11112
    %v11984 = vunpack.c.l.b16 %v11113
    %v11985 = vunpack.c.l.b16 %v11114
    %v11986 = vunpack.c.l.b16 %v11115
    %v11987 = vunpack.c.l.b16 %v11116
    %v11988 = vunpack.c.l.b16 %v11117
    %v11989 = vunpack.c.l.b16 %v11118
    %v11990 = vunpack.c.l.b16 %v11119
    %v11991 = vunpack.c.l.b16 %v11120
    %v11992 = vunpack.c.l.b16 %v11121
    %v11993 = vunpack.c.l.b16 %v11122
    %v11994 = vunpack.c.l.b16 %v11123
    %v11995 = vunpack.c.l.b16 %v11124
    %v11996 = vunpack.c.l.b16 %v11125
    %v11997 = vunpack.c.l.b16 %v11126
    %v11998 = vunpack.c.l.b16 %v11127
    %v11999 = vunpack.c.l.b16 %v11128
    %v12000 = vunpack.c.l.b16 %v11129
    %v12001 = vunpack.c.l.b16 %v11130
    %v12002 = vunpack.c.l.b16 %v11131
    %v12003 = vunpack.c.l.b16 %v11132
    %v12004 = vunpack.c.l.b16 %v11133
    %v12005 = vunpack.c.l.b16 %v11134
    %v12006 = vunpack.c.l.b16 %v11135
    %v12007 = vunpack.c.l.b16 %v11136
    %v12008 = vunpack.c.l.b16 %v11137
    %v12009 = vunpack.c.l.b16 %v11138
    %v12010 = vunpack.c.l.b16 %v11139
    %v12011 = vunpack.c.l.b16 %v11140
    %v12012 = vunpack.c.l.b16 %v11141
    %v12013 = vunpack.c.l.b16 %v11142
    %v12014 = vunpack.c.l.b16 %v11143
    %v12015 = vunpack.c.l.b16 %v11144
    %v12016 = vunpack.c.l.b16 %v11145
    %v12017 = vunpack.c.l.b16 %v11146
    %v12018 = vunpack.c.l.b16 %v11147
    %v12019 = vunpack.c.l.b16 %v11148
    %v12020 = vunpack.c.l.b16 %v11149
    %v12021 = vunpack.c.l.b16 %v11150
    %v12022 = vunpack.c.l.b16 %v11151
    %v12023 = vunpack.c.l.b16 %v11152
    %v12024 = vunpack.c.l.b16 %v11153
    %v12025 = vunpack.c.l.b16 %v11154
    %v12026 = vunpack.c.l.b16 %v11155
    %v12027 = vunpack.c.l.b16 %v11156
    %v12028 = vunpack.c.l.b16 %v11157
    %v12029 = vunpack.c.l.b16 %v11158
    %v12030 = vunpack.c.l.b16 %v11159
    %v12031 = vunpack.c.l.b16 %v11160
    %v12032 = vunpack.c.l.b16 %v11161
    %v12033 = vunpack.c.l.b16 %v11162
    %v12034 = vunpack.c.l.b16 %v11163
    %v12035 = vunpack.c.l.b16 %v11164
    %v12036 = vunpack.c.l.b16 %v11165
    %v12037 = vunpack.c.l.b16 %v11166
    %v12038 = vunpack.c.l.b16 %v11167
    %v12039 = vunpack.c.l.b16 %v11168
    %v12040 = vunpack.c.l.b16 %v11169
    %v12041 = vunpack.c.l.b16 %v11170
    %v12042 = vunpack.c.l.b16 %v11171
    %v12043 = vunpack.c.l.b16 %v11172
    %v12044 = vunpack.c.l.b16 %v11173
    %v12045 = vunpack.c.l.b16 %v11174
    %v12046 = vunpack.c.l.b16 %v11175
    %v12047 = vunpack.c.l.b16 %v11176
    %v12048 = vunpack.c.l.b16 %v11177
    %v12049 = vunpack.c.l.b16 %v11178
    %v12050 = vunpack.c.l.b16 %v11179
    %v12051 = vunpack.c.l.b16 %v11180
    %v12052 = vunpack.c.l.b16 %v11181
    %v12053 = vunpack.c.l.b16 %v11182
    %v12054 = vunpack.c.l.b16 %v11183
    %v12055 = vunpack.c.l.b16 %v11184
    %v12056 = vunpack.c.l.b16 %v11185
    %v12057 = vunpack.c.l.b16 %v11186
    %v12058 = vunpack.c.l.b16 %v11187
    %v12059 = vunpack.c.l.b16 %v11188
    %v12060 = vunpack.c.l.b16 %v11189
    %v12061 = vunpack.c.l.b16 %v11190
    %v12062 = vunpack.c.l.b16 %v11191
    %v12063 = vunpack.c.l.b16 %v11192
    %v12064 = vunpack.c.l.b16 %v11193
    %v12065 = vunpack.c.l.b16 %v11194
    %v12066 = vunpack.c.l.b16 %v11195
    %v12067 = vunpack.c.l.b16 %v11196
    %v12068 = vunpack.c.l.b16 %v11197
    %v12069 = vunpack.c.l.b16 %v11198
    %v12070 = vunpack.c.l.b16 %v11199
    %v12071 = vunpack.c.l.b16 %v11200
    %v12072 = vunpack.c.l.b16 %v11201
    %v12073 = vunpack.c.l.b16 %v11202
    %v12074 = vunpack.c.l.b16 %v11203
    %v12075 = vunpack.c.l.b16 %v11204
    %v12076 = vunpack.c.l.b16 %v11205
    %v12077 = vunpack.c.l.b16 %v11206
    %v12078 = vunpack.c.l.b16 %v11207
    %v12079 = vunpack.c.l.b16 %v11208
    %v12080 = vunpack.c.l.b16 %v11209
    %v12081 = vunpack.c.l.b16 %v11210
    %v12082 = vunpack.c.l.b16 %v11211
    %v12083 = vunpack.c.l.b16 %v11212
    %v12084 = vunpack.c.l.b16 %v11213
    %v12085 = vunpack.c.l.b16 %v11214
    %v12086 = vunpack.c.l.b16 %v11215
    %v12087 = vunpack.c.l.b16 %v11216
    %v12088 = vunpack.c.l.b16 %v11217
    %v12089 = vunpack.c.l.b16 %v11218
    %v12090 = vunpack.c.l.b16 %v11219
    %v12091 = vunpack.c.l.b16 %v11220
    %v12092 = vunpack.c.l.b16 %v11221
    %v12093 = vunpack.c.l.b16 %v11222
    %v12094 = vunpack.c.l.b16 %v11223
    %v12095 = vunpack.c.l.b16 %v11224
    %v12096 = vunpack.c.l.b16 %v11225
    %v12097 = vunpack.c.l.b16 %v11226
    %v12098 = vunpack.c.l.b16 %v11227
    %v12099 = vunpack.c.l.b16 %v11228
    %v12100 = vunpack.c.l.b16 %v11229
    %v12101 = vunpack.c.l.b16 %v11230
    %v12102 = vunpack.c.l.b16 %v11231
    %v12103 = vunpack.c.l.b16 %v11232
    %v12104 = vunpack.c.l.b16 %v11233
    %v12105 = vunpack.c.l.b16 %v11234
    %v12106 = vunpack.c.l.b16 %v11235
    %v12107 = vunpack.c.l.b16 %v11236
    %v12108 = vunpack.c.l.b16 %v11237
    %v12109 = vunpack.c.l.b16 %v11238
    %v12110 = vunpack.c.l.b16 %v11239
    %v12111 = vunpack.c.l.b16 %v11240
    %v12112 = vunpack.c.l.b16 %v11241
    %v12113 = vunpack.c.l.b16 %v11242
    %v12114 = vunpack.c.l.b16 %v11243
    %v12115 = vunpack.c.l.b16 %v11244
    %v12116 = vunpack.c.l.b16 %v11245
    %v12117 = vunpack.c.l.b16 %v11246
    %v12118 = vunpack.c.l.b16 %v11247
    %v12119 = vunpack.c.l.b16 %v11248
    %v12120 = vunpack.c.l.b16 %v11249
    %v12121 = vunpack.c.l.b16 %v11250
    %v12122 = vunpack.c.l.b16 %v11251
    %v12123 = vunpack.c.l.b16 %v11252
    %v12124 = vunpack.c.l.b16 %v11253
    %v12125 = vunpack.c.l.b16 %v11254
    %v12126 = vunpack.c.l.b16 %v11255
    %v12127 = vunpack.c.l.b16 %v11256
    %v12128 = vunpack.c.l.b16 %v11257
    %v12129 = vunpack.c.l.b16 %v11258
    %v12130 = vunpack.c.l.b16 %v11259
    %v12131 = vunpack.c.l.b16 %v11260
    %v12132 = vunpack.c.l.b16 %v11261
    %v12133 = vunpack.c.l.b16 %v11262
    %v12134 = vunpack.c.l.b16 %v11263
    %v12135 = vunpack.c.l.b16 %v11264
    %v12136 = vunpack.c.l.b16 %v11265
    %v12137 = vunpack.c.l.b16 %v11266
    %v12138 = vunpack.c.l.b16 %v11267
    %v12139 = vunpack.c.l.b16 %v11268
    %v12140 = vunpack.c.l.b16 %v11269
    %v12141 = vunpack.c.l.b16 %v11270
    %v12142 = vunpack.c.l.b16 %v11271
    %v12143 = vunpack.c.l.b16 %v11272
    %v12144 = vunpack.c.l.b16 %v11273
    %v12145 = vunpack.c.l.b16 %v11274
    %v12146 = vunpack.c.l.b16 %v11275
    %v12147 = vunpack.c.l.b16 %v11276
    %v12148 = vunpack.c.l.b16 %v11277
    %v12149 = vunpack.c.l.b16 %v11278
    %v12150 = vunpack.c.l.b16 %v11279
    %v12151 = vunpack.c.l.b16 %v11280
    %v12152 = vunpack.c.l.b16 %v11281
    %v12153 = vunpack.c.l.b16 %v11282
    %v12154 = vunpack.c.l.b16 %v11283
    %v12155 = vunpack.c.l.b16 %v11284
    %v12156 = vunpack.c.l.b16 %v11285
    %v12157 = vunpack.c.l.b16 %v11286
    %v12158 = vunpack.c.l.b16 %v11287
    %v12159 = vunpack.c.l.b16 %v11288
    %v12160 = vunpack.c.l.b16 %v11289
    %v12161 = vunpack.c.l.b16 %v11290
    %v12162 = vunpack.c.l.b16 %v11291
    %v12163 = vunpack.c.l.b16 %v11292
    %v12164 = vunpack.c.l.b16 %v11293
    %v12165 = vunpack.c.l.b16 %v11294
    %v12166 = vunpack.c.l.b16 %v11295
    %v12167 = vunpack.c.l.b16 %v11296
    %v12168 = vunpack.c.l.b16 %v11297
    %v12169 = vunpack.c.l.b16 %v11298
    %v12170 = vunpack.c.l.b16 %v11299
    %v12171 = vunpack.c.l.b16 %v11300
    %v12172 = vunpack.c.l.b16 %v11301
    %v12173 = vunpack.c.l.b16 %v11302
    %v12174 = vunpack.c.l.b16 %v11303
    %v12175 = vunpack.c.l.b16 %v11304
    %v12176 = vunpack.c.l.b16 %v11305
    %v12177 = vunpack.c.l.b16 %v11306
    %v12178 = vunpack.c.l.b16 %v11307
    %v12179 = vunpack.c.l.b16 %v11308
    %v12180 = vunpack.c.l.b16 %v11309
    %v12181 = vunpack.c.l.b16 %v11310
    %v12182 = vunpack.c.l.b16 %v11311
    %v12183 = vunpack.c.l.b16 %v11312
    %v12184 = vunpack.c.l.b16 %v11313
    %v12185 = vunpack.c.l.b16 %v11314
    %v12186 = vunpack.c.l.b16 %v11315
    %v12187 = vunpack.c.l.b16 %v11316
    %v12188 = vunpack.c.l.b16 %v11317
    %v12189 = vunpack.c.l.b16 %v11318
    %v12190 = vunpack.c.l.b16 %v11319
    %v12191 = vunpack.c.l.b16 %v11320
    %v12192 = vunpack.c.l.b16 %v11321
    %v12193 = vunpack.c.l.b16 %v11322
    %v12194 = vunpack.c.l.b16 %v11323
    %v12195 = vunpack.c.l.b16 %v11324
    %v12196 = vunpack.c.l.b16 %v11325
    %v12197 = vunpack.c.l.b16 %v11326
    %v12198 = vunpack.c.l.b16 %v11327
    %v12199 = vunpack.c.l.b16 %v11328
    %v12200 = vunpack.c.l.b16 %v11329
    %v12201 = vunpack.c.l.b16 %v11330
    %v12202 = vunpack.c.l.b16 %v11331
    %v12203 = vunpack.c.l.b16 %v11332
    %v12204 = vunpack.c.l.b16 %v11333
    %v12205 = vunpack.c.l.b16 %v11334
    %v12206 = vunpack.c.l.b16 %v11335
    %v12207 = vunpack.c.l.b16 %v11336
    %v12208 = vunpack.c.l.b16 %v11337
    %v12209 = vunpack.c.l.b16 %v11338
    %v12210 = vunpack.c.l.b16 %v11339
    %v12211 = vunpack.c.l.b16 %v11340
    %v12212 = vunpack.c.l.b16 %v11341
    %v12213 = vunpack.c.l.b16 %v11342
    %v12214 = vunpack.c.l.b16 %v11343
    %v12215 = vunpack.c.l.b16 %v11344
    %v12216 = vunpack.c.l.b16 %v11345
    %v12217 = vunpack.c.l.b16 %v11346
    %v12218 = vunpack.c.l.b16 %v11347
    %v12219 = vunpack.c.l.b16 %v11348
    %v12220 = vunpack.c.l.b16 %v11349
    %v12221 = vunpack.c.l.b16 %v11350
    %v12222 = vunpack.c.l.b16 %v11351
    %v12223 = vunpack.c.l.b16 %v11352
    %v12224 = vunpack.c.l.b16 %v11353
    %v12225 = vunpack.c.l.b16 %v11354
    %v12226 = vunpack.c.l.b16 %v11355
    %v12227 = vunpack.c.l.b16 %v11356
    %v12228 = vunpack.c.l.b16 %v11357
    %v12229 = vunpack.c.l.b16 %v11358
    %v12230 = vunpack.c.l.b16 %v11359
    %v12231 = vunpack.c.l.b16 %v11360
    %v12232 = vunpack.c.l.b16 %v11361
    %v12233 = vunpack.c.l.b16 %v11362
    %v12234 = vunpack.c.l.b16 %v11363
    %v12235 = vunpack.c.l.b16 %v11364
    %v12236 = vunpack.c.l.b16 %v11365
    %v12237 = vunpack.c.l.b16 %v11366
    %v12238 = vunpack.c.l.b16 %v11367
    %v12239 = vunpack.c.l.b16 %v11368
    %v12240 = vunpack.c.l.b16 %v11369
    %v12241 = vpack.c.b16 %v11810, %v11809
    %v12242 = vpack.c.b16 %v11812, %v11811
    %v12243 = vpack.c.b16 %v11814, %v11813
    %v12244 = vpack.c.b16 %v11816, %v11815
    %v12245 = vpack.c.b16 %v11818, %v11817
    %v12246 = vpack.c.b16 %v11820, %v11819
    %v12247 = vpack.c.b16 %v11822, %v11821
    %v12248 = vpack.c.b16 %v11824, %v11823
    %v12249 = vpack.c.b16 %v11826, %v11825
    %v12250 = vpack.c.b16 %v11828, %v11827
    %v12251 = vpack.c.b16 %v11830, %v11829
    %v12252 = vpack.c.b16 %v11832, %v11831
    %v12253 = vpack.c.b16 %v11834, %v11833
    %v12254 = vpack.c.b16 %v11836, %v11835
    %v12255 = vpack.c.b16 %v11838, %v11837
    %v12256 = vpack.c.b16 %v11840, %v11839
    %v12257 = vpack.c.b16 %v11842, %v11841
    %v12258 = vpack.c.b16 %v11844, %v11843
    %v12259 = vpack.c.b16 %v11846, %v11845
    %v12260 = vpack.c.b16 %v11848, %v11847
    %v12261 = vpack.c.b16 %v11850, %v11849
    %v12262 = vpack.c.b16 %v11852, %v11851
    %v12263 = vpack.c.b16 %v11854, %v11853
    %v12264 = vpack.c.b16 %v11856, %v11855
    %v12265 = vpack.c.b16 %v11858, %v11857
    %v12266 = vpack.c.b16 %v11860, %v11859
    %v12267 = vpack.c.b16 %v11862, %v11861
    %v12268 = vpack.c.b16 %v11864, %v11863
    %v12269 = vpack.c.b16 %v11866, %v11865
    %v12270 = vpack.c.b16 %v11868, %v11867
    %v12271 = vpack.c.b16 %v11870, %v11869
    %v12272 = vpack.c.b16 %v11872, %v11871
    %v12273 = vpack.c.b16 %v11874, %v11873
    %v12274 = vpack.c.b16 %v11876, %v11875
    %v12275 = vpack.c.b16 %v11878, %v11877
    %v12276 = vpack.c.b16 %v11880, %v11879
    %v12277 = vpack.c.b16 %v11882, %v11881
    %v12278 = vpack.c.b16 %v11884, %v11883
    %v12279 = vpack.c.b16 %v11886, %v11885
    %v12280 = vpack.c.b16 %v11888, %v11887
    %v12281 = vpack.c.b16 %v11890, %v11889
    %v12282 = vpack.c.b16 %v11892, %v11891
    %v12283 = vpack.c.b16 %v11894, %v11893
    %v12284 = vpack.c.b16 %v11896, %v11895
    %v12285 = vpack.c.b16 %v11898, %v11897
    %v12286 = vpack.c.b16 %v11900, %v11899
    %v12287 = vpack.c.b16 %v11902, %v11901
    %v12288 = vpack.c.b16 %v11904, %v11903
    %v12289 = vpack.c.b16 %v11906, %v11905
    %v12290 = vpack.c.b16 %v11908, %v11907
    %v12291 = vpack.c.b16 %v11910, %v11909
    %v12292 = vpack.c.b16 %v11912, %v11911
    %v12293 = vpack.c.b16 %v11914, %v11913
    %v12294 = vpack.c.b16 %v11916, %v11915
    %v12295 = vpack.c.b16 %v11918, %v11917
    %v12296 = vpack.c.b16 %v11920, %v11919
    %v12297 = vpack.c.b16 %v11922, %v11921
    %v12298 = vpack.c.b16 %v11924, %v11923
    %v12299 = vpack.c.b16 %v11926, %v11925
    %v12300 = vpack.c.b16 %v11928, %v11927
    %v12301 = vpack.c.b16 %v11930, %v11929
    %v12302 = vpack.c.b16 %v11932, %v11931
    %v12303 = vpack.c.b16 %v11934, %v11933
    %v12304 = vpack.c.b16 %v11936, %v11935
    %v12305 = vpack.c.b16 %v11938, %v11937
    %v12306 = vpack.c.b16 %v11940, %v11939
    %v12307 = vpack.c.b16 %v11942, %v11941
    %v12308 = vpack.c.b16 %v11944, %v11943
    %v12309 = vpack.c.b16 %v11946, %v11945
    %v12310 = vpack.c.b16 %v11948, %v11947
    %v12311 = vpack.c.b16 %v11950, %v11949
    %v12312 = vpack.c.b16 %v11952, %v11951
    %v12313 = vpack.c.b16 %v11954, %v11953
    %v12314 = vpack.c.b16 %v11956, %v11955
    %v12315 = vpack.c.b16 %v11958, %v11957
    %v12316 = vpack.c.b16 %v11960, %v11959
    %v12317 = vpack.c.b16 %v11962, %v11961
    %v12318 = vpack.c.b16 %v11964, %v11963
    %v12319 = vpack.c.b16 %v11966, %v11965
    %v12320 = vpack.c.b16 %v11968, %v11967
    %v12321 = vpack.c.b16 %v11970, %v11969
    %v12322 = vpack.c.b16 %v11972, %v11971
    %v12323 = vpack.c.b16 %v11974, %v11973
    %v12324 = vpack.c.b16 %v11976, %v11975
    %v12325 = vpack.c.b16 %v11978, %v11977
    %v12326 = vpack.c.b16 %v11980, %v11979
    %v12327 = vpack.c.b16 %v11982, %v11981
    %v12328 = vpack.c.b16 %v11984, %v11983
    %v12329 = vpack.c.b16 %v11986, %v11985
    %v12330 = vpack.c.b16 %v11988, %v11987
    %v12331 = vpack.c.b16 %v11990, %v11989
    %v12332 = vpack.c.b16 %v11992, %v11991
    %v12333 = vpack.c.b16 %v11994, %v11993
    %v12334 = vpack.c.b16 %v11996, %v11995
    %v12335 = vpack.c.b16 %v11998, %v11997
    %v12336 = vpack.c.b16 %v12000, %v11999
    %v12337 = vpack.c.b16 %v12002, %v12001
    %v12338 = vpack.c.b16 %v12004, %v12003
    %v12339 = vpack.c.b16 %v12006, %v12005
    %v12340 = vpack.c.b16 %v12008, %v12007
    %v12341 = vpack.c.b16 %v12010, %v12009
    %v12342 = vpack.c.b16 %v12012, %v12011
    %v12343 = vpack.c.b16 %v12014, %v12013
    %v12344 = vpack.c.b16 %v12016, %v12015
    %v12345 = vpack.c.b16 %v12018, %v12017
    %v12346 = vpack.c.b16 %v12020, %v12019
    %v12347 = vpack.c.b16 %v12022, %v12021
    %v12348 = vpack.c.b16 %v12024, %v12023
    %v12349 = vpack.c.b16 %v12026, %v12025
    %v12350 = vpack.c.b16 %v12028, %v12027
    %v12351 = vpack.c.b16 %v12030, %v12029
    %v12352 = vpack.c.b16 %v12032, %v12031
    %v12353 = vpack.c.b16 %v12034, %v12033
    %v12354 = vpack.c.b16 %v12036, %v12035
    %v12355 = vpack.c.b16 %v12038, %v12037
    %v12356 = vpack.c.b16 %v12040, %v12039
    %v12357 = vpack.c.b16 %v12042, %v12041
    %v12358 = vpack.c.b16 %v12044, %v12043
    %v12359 = vpack.c.b16 %v12046, %v12045
    %v12360 = vpack.c.b16 %v12048, %v12047
    %v12361 = vpack.c.b16 %v12050, %v12049
    %v12362 = vpack.c.b16 %v12052, %v12051
    %v12363 = vpack.c.b16 %v12054, %v12053
    %v12364 = vpack.c.b16 %v12056, %v12055
    %v12365 = vpack.c.b16 %v12058, %v12057
    %v12366 = vpack.c.b16 %v12060, %v12059
    %v12367 = vpack.c.b16 %v12062, %v12061
    %v12368 = vpack.c.b16 %v12064, %v12063
    %v12369 = vpack.c.b16 %v12066, %v12065
    %v12370 = vpack.c.b16 %v12068, %v12067
    %v12371 = vpack.c.b16 %v12070, %v12069
    %v12372 = vpack.c.b16 %v12072, %v12071
    %v12373 = vpack.c.b16 %v12074, %v12073
    %v12374 = vpack.c.b16 %v12076, %v12075
    %v12375 = vpack.c.b16 %v12078, %v12077
    %v12376 = vpack.c.b16 %v12080, %v12079
    %v12377 = vpack.c.b16 %v12082, %v12081
    %v12378 = vpack.c.b16 %v12084, %v12083
    %v12379 = vpack.c.b16 %v12086, %v12085
    %v12380 = vpack.c.b16 %v12088, %v12087
    %v12381 = vpack.c.b16 %v12090, %v12089
    %v12382 = vpack.c.b16 %v12092, %v12091
    %v12383 = vpack.c.b16 %v12094, %v12093
    %v12384 = vpack.c.b16 %v12096, %v12095
    %v12385 = vpack.c.b16 %v12098, %v12097
    %v12386 = vpack.c.b16 %v12100, %v12099
    %v12387 = vpack.c.b16 %v12102, %v12101
    %v12388 = vpack.c.b16 %v12104, %v12103
    %v12389 = vpack.c.b16 %v12106, %v12105
    %v12390 = vpack.c.b16 %v12108, %v12107
    %v12391 = vpack.c.b16 %v12110, %v12109
    %v12392 = vpack.c.b16 %v12112, %v12111
    %v12393 = vpack.c.b16 %v12114, %v12113
    %v12394 = vpack.c.b16 %v12116, %v12115
    %v12395 = vpack.c.b16 %v12118, %v12117
    %v12396 = vpack.c.b16 %v12120, %v12119
    %v12397 = vpack.c.b16 %v12122, %v12121
    %v12398 = vpack.c.b16 %v12124, %v12123
    %v12399 = vpack.c.b16 %v12126, %v12125
    %v12400 = vpack.c.b16 %v12128, %v12127
    %v12401 = vpack.c.b16 %v12130, %v12129
    %v12402 = vpack.c.b16 %v12132, %v12131
    %v12403 = vpack.c.b16 %v12134, %v12133
    %v12404 = vpack.c.b16 %v12136, %v12135
    %v12405 = vpack.c.b16 %v12138, %v12137
    %v12406 = vpack.c.b16 %v12140, %v12139
    %v12407 = vpack.c.b16 %v12142, %v12141
    %v12408 = vpack.c.b16 %v12144, %v12143
    %v12409 = vpack.c.b16 %v12146, %v12145
    %v12410 = vpack.c.b16 %v12148, %v12147
    %v12411 = vpack.c.b16 %v12150, %v12149
    %v12412 = vpack.c.b16 %v12152, %v12151
    %v12413 = vpack.c.b16 %v12154, %v12153
    %v12414 = vpack.c.b16 %v12156, %v12155
    %v12415 = vpack.c.b16 %v12158, %v12157
    %v12416 = vpack.c.b16 %v12160, %v12159
    %v12417 = vpack.c.b16 %v12162, %v12161
    %v12418 = vpack.c.b16 %v12164, %v12163
    %v12419 = vpack.c.b16 %v12166, %v12165
    %v12420 = vpack.c.b16 %v12168, %v12167
    %v12421 = vpack.c.b16 %v12170, %v12169
    %v12422 = vpack.c.b16 %v12172, %v12171
    %v12423 = vpack.c.b16 %v12174, %v12173
    %v12424 = vpack.c.b16 %v12176, %v12175
    %v12425 = vpack.c.b16 %v12178, %v12177
    %v12426 = vpack.c.b16 %v12180, %v12179
    %v12427 = vpack.c.b16 %v12182, %v12181
    %v12428 = vpack.c.b16 %v12184, %v12183
    %v12429 = vpack.c.b16 %v12186, %v12185
    %v12430 = vpack.c.b16 %v12188, %v12187
    %v12431 = vpack.c.b16 %v12190, %v12189
    %v12432 = vpack.c.b16 %v12192, %v12191
    %v12433 = vpack.c.b16 %v12194, %v12193
    %v12434 = vpack.c.b16 %v12196, %v12195
    %v12435 = vpack.c.b16 %v12198, %v12197
    %v12436 = vpack.c.b16 %v12200, %v12199
    %v12437 = vpack.c.b16 %v12202, %v12201
    %v12438 = vpack.c.b16 %v12204, %v12203
    %v12439 = vpack.c.b16 %v12206, %v12205
    %v12440 = vpack.c.b16 %v12208, %v12207
    %v12441 = vpack.c.b16 %v12210, %v12209
    %v12442 = vpack.c.b16 %v12212, %v12211
    %v12443 = vpack.c.b16 %v12214, %v12213
    %v12444 = vpack.c.b16 %v12216, %v12215
    %v12445 = vpack.c.b16 %v12218, %v12217
    %v12446 = vpack.c.b16 %v12220, %v12219
    %v12447 = vpack.c.b16 %v12222, %v12221
    %v12448 = vpack.c.b16 %v12224, %v12223
    %v12449 = vpack.c.b16 %v12226, %v12225
    %v12450 = vpack.c.b16 %v12228, %v12227
    %v12451 = vpack.c.b16 %v12230, %v12229
    %v12452 = vpack.c.b16 %v12232, %v12231
    %v12453 = vpack.c.b16 %v12234, %v12233
    %v12454 = vpack.c.b16 %v12236, %v12235
    %v12455 = vpack.c.b16 %v12238, %v12237
    %v12456 = vpack.c.b16 %v12240, %v12239
    %12673 = vmatprep.subr.bf16.mxu0 0
    %12674 = vmatpush1.bf16.msra.mxu0 %v12248
    %12675 = vmatprep.subr.bf16.mxu0 0
    %12676 = vmatpush1.bf16.msra.mxu0 %v12247
    %12677 = vmatprep.subr.bf16.mxu0 0
    %12678 = vmatpush1.bf16.msra.mxu0 %v12246
    %12679 = vmatprep.subr.bf16.mxu0 0
    %12680 = vmatpush1.bf16.msra.mxu0 %v12245
    %12681 = vmatprep.subr.bf16.mxu0 0
    %12682 = vmatpush1.bf16.msra.mxu0 %v12244
    %12683 = vmatprep.subr.bf16.mxu0 0
    %12684 = vmatpush1.bf16.msra.mxu0 %v12243
    %12685 = vmatprep.subr.bf16.mxu0 0
    %12686 = vmatpush1.bf16.msra.mxu0 %v12242
    %12687 = vmatprep.subr.bf16.mxu0 0
    %12688 = vmatpush1.bf16.msra.mxu0 %v12241
    %12689 = vmatprep.subr.bf16.mxu0 0
    %12690 = vmatpush2.bf16.msra.mxu0 %v12256
    %12691 = vmatprep.subr.bf16.mxu0 0
    %12692 = vmatpush2.bf16.msra.mxu0 %v12255
    %12693 = vmatprep.subr.bf16.mxu0 0
    %12694 = vmatpush2.bf16.msra.mxu0 %v12254
    %12695 = vmatprep.subr.bf16.mxu0 0
    %12696 = vmatpush2.bf16.msra.mxu0 %v12253
    %12697 = vmatprep.subr.bf16.mxu0 0
    %12698 = vmatpush2.bf16.msra.mxu0 %v12252
    %12699 = vmatprep.subr.bf16.mxu0 0
    %12700 = vmatpush2.bf16.msra.mxu0 %v12251
    %12701 = vmatprep.subr.bf16.mxu0 0
    %12702 = vmatpush2.bf16.msra.mxu0 %v12250
    %12703 = vmatprep.subr.bf16.mxu0 0
    %12704 = vmatpush2.bf16.msra.mxu0 %v12249
    %12705 = vmatprep.mubr.bf16.mxu0 %v10912
    %12706 = vmatmul.mubr.bf16.gmra.mxu0 %v10911
    %v12707 = vpop.f32.mrf.mxu0
    %v12708 = vadd.f32 %v11375, %v12707
    %v12709 = vpop.f32.mrf.mxu0
    %v12710 = vpop.f32.mrf.mxu0
    %v12711 = vadd.f32 %v11375, %v12710
    %v12712 = vpop.f32.mrf.mxu0
    %12713 = vdwg.mxu0
    %12714 = vmatprep.subr.bf16.mxu0 0
    %12715 = vmatpush1.bf16.msra.mxu0 %v12264
    %12716 = vmatprep.subr.bf16.mxu0 0
    %12717 = vmatpush1.bf16.msra.mxu0 %v12263
    %12718 = vmatprep.subr.bf16.mxu0 0
    %12719 = vmatpush1.bf16.msra.mxu0 %v12262
    %12720 = vmatprep.subr.bf16.mxu0 0
    %12721 = vmatpush1.bf16.msra.mxu0 %v12261
    %12722 = vmatprep.subr.bf16.mxu0 0
    %12723 = vmatpush1.bf16.msra.mxu0 %v12260
    %12724 = vmatprep.subr.bf16.mxu0 0
    %12725 = vmatpush1.bf16.msra.mxu0 %v12259
    %12726 = vmatprep.subr.bf16.mxu0 0
    %12727 = vmatpush1.bf16.msra.mxu0 %v12258
    %12728 = vmatprep.subr.bf16.mxu0 0
    %12729 = vmatpush1.bf16.msra.mxu0 %v12257
    %12730 = vmatprep.subr.bf16.mxu0 0
    %12731 = vmatpush2.bf16.msra.mxu0 %v12272
    %12732 = vmatprep.subr.bf16.mxu0 0
    %12733 = vmatpush2.bf16.msra.mxu0 %v12271
    %12734 = vmatprep.subr.bf16.mxu0 0
    %12735 = vmatpush2.bf16.msra.mxu0 %v12270
    %12736 = vmatprep.subr.bf16.mxu0 0
    %12737 = vmatpush2.bf16.msra.mxu0 %v12269
    %12738 = vmatprep.subr.bf16.mxu0 0
    %12739 = vmatpush2.bf16.msra.mxu0 %v12268
    %12740 = vmatprep.subr.bf16.mxu0 0
    %12741 = vmatpush2.bf16.msra.mxu0 %v12267
    %12742 = vmatprep.subr.bf16.mxu0 0
    %12743 = vmatpush2.bf16.msra.mxu0 %v12266
    %12744 = vmatprep.subr.bf16.mxu0 0
    %12745 = vmatpush2.bf16.msra.mxu0 %v12265
    %12746 = vmatprep.mubr.bf16.mxu0 %v10914
    %12747 = vmatmul.mubr.bf16.gmra.mxu0 %v10913
    %v12748 = vpop.f32.mrf.mxu0
    %v12749 = vadd.f32 %v12708, %v12748
    %v12750 = vpop.f32.mrf.mxu0
    %v12751 = vpop.f32.mrf.mxu0
    %v12752 = vadd.f32 %v12711, %v12751
    %v12753 = vpop.f32.mrf.mxu0
    %12754 = vdwg.mxu0
    %12755 = vmatprep.subr.bf16.mxu0 0
    %12756 = vmatpush1.bf16.msra.mxu0 %v12280
    %12757 = vmatprep.subr.bf16.mxu0 0
    %12758 = vmatpush1.bf16.msra.mxu0 %v12279
    %12759 = vmatprep.subr.bf16.mxu0 0
    %12760 = vmatpush1.bf16.msra.mxu0 %v12278
    %12761 = vmatprep.subr.bf16.mxu0 0
    %12762 = vmatpush1.bf16.msra.mxu0 %v12277
    %12763 = vmatprep.subr.bf16.mxu0 0
    %12764 = vmatpush1.bf16.msra.mxu0 %v12276
    %12765 = vmatprep.subr.bf16.mxu0 0
    %12766 = vmatpush1.bf16.msra.mxu0 %v12275
    %12767 = vmatprep.subr.bf16.mxu0 0
    %12768 = vmatpush1.bf16.msra.mxu0 %v12274
    %12769 = vmatprep.subr.bf16.mxu0 0
    %12770 = vmatpush1.bf16.msra.mxu0 %v12273
    %12771 = vmatprep.subr.bf16.mxu0 0
    %12772 = vmatpush2.bf16.msra.mxu0 %v12288
    %12773 = vmatprep.subr.bf16.mxu0 0
    %12774 = vmatpush2.bf16.msra.mxu0 %v12287
    %12775 = vmatprep.subr.bf16.mxu0 0
    %12776 = vmatpush2.bf16.msra.mxu0 %v12286
    %12777 = vmatprep.subr.bf16.mxu0 0
    %12778 = vmatpush2.bf16.msra.mxu0 %v12285
    %12779 = vmatprep.subr.bf16.mxu0 0
    %12780 = vmatpush2.bf16.msra.mxu0 %v12284
    %12781 = vmatprep.subr.bf16.mxu0 0
    %12782 = vmatpush2.bf16.msra.mxu0 %v12283
    %12783 = vmatprep.subr.bf16.mxu0 0
    %12784 = vmatpush2.bf16.msra.mxu0 %v12282
    %12785 = vmatprep.subr.bf16.mxu0 0
    %12786 = vmatpush2.bf16.msra.mxu0 %v12281
    %12787 = vmatprep.mubr.bf16.mxu0 %v10916
    %12788 = vmatmul.mubr.bf16.gmra.mxu0 %v10915
    %v12789 = vpop.f32.mrf.mxu0
    %v12790 = vadd.f32 %v12749, %v12789
    %v12791 = vpop.f32.mrf.mxu0
    %v12792 = vpop.f32.mrf.mxu0
    %v12793 = vadd.f32 %v12752, %v12792
    %v12794 = vpop.f32.mrf.mxu0
    %12795 = vdwg.mxu0
    %12796 = vmatprep.subr.bf16.mxu0 0
    %12797 = vmatpush1.bf16.msra.mxu0 %v12296
    %12798 = vmatprep.subr.bf16.mxu0 0
    %12799 = vmatpush1.bf16.msra.mxu0 %v12295
    %12800 = vmatprep.subr.bf16.mxu0 0
    %12801 = vmatpush1.bf16.msra.mxu0 %v12294
    %12802 = vmatprep.subr.bf16.mxu0 0
    %12803 = vmatpush1.bf16.msra.mxu0 %v12293
    %12804 = vmatprep.subr.bf16.mxu0 0
    %12805 = vmatpush1.bf16.msra.mxu0 %v12292
    %12806 = vmatprep.subr.bf16.mxu0 0
    %12807 = vmatpush1.bf16.msra.mxu0 %v12291
    %12808 = vmatprep.subr.bf16.mxu0 0
    %12809 = vmatpush1.bf16.msra.mxu0 %v12290
    %12810 = vmatprep.subr.bf16.mxu0 0
    %12811 = vmatpush1.bf16.msra.mxu0 %v12289
    %12812 = vmatprep.subr.bf16.mxu0 0
    %12813 = vmatpush2.bf16.msra.mxu0 %v12304
    %12814 = vmatprep.subr.bf16.mxu0 0
    %12815 = vmatpush2.bf16.msra.mxu0 %v12303
    %12816 = vmatprep.subr.bf16.mxu0 0
    %12817 = vmatpush2.bf16.msra.mxu0 %v12302
    %12818 = vmatprep.subr.bf16.mxu0 0
    %12819 = vmatpush2.bf16.msra.mxu0 %v12301
    %12820 = vmatprep.subr.bf16.mxu0 0
    %12821 = vmatpush2.bf16.msra.mxu0 %v12300
    %12822 = vmatprep.subr.bf16.mxu0 0
    %12823 = vmatpush2.bf16.msra.mxu0 %v12299
    %12824 = vmatprep.subr.bf16.mxu0 0
    %12825 = vmatpush2.bf16.msra.mxu0 %v12298
    %12826 = vmatprep.subr.bf16.mxu0 0
    %12827 = vmatpush2.bf16.msra.mxu0 %v12297
    %12828 = vmatprep.mubr.bf16.mxu0 %v10918
    %12829 = vmatmul.mubr.bf16.gmra.mxu0 %v10917
    %v12830 = vpop.f32.mrf.mxu0
    %v12831 = vadd.f32 %v12790, %v12830
    %v12832 = vpop.f32.mrf.mxu0
    %v12833 = vpop.f32.mrf.mxu0
    %v12834 = vadd.f32 %v12793, %v12833
    %v12835 = vpop.f32.mrf.mxu0
    %12836 = vdwg.mxu0
    %12837 = vmatprep.subr.bf16.mxu0 0
    %12838 = vmatpush1.bf16.msra.mxu0 %v12312
    %12839 = vmatprep.subr.bf16.mxu0 0
    %12840 = vmatpush1.bf16.msra.mxu0 %v12311
    %12841 = vmatprep.subr.bf16.mxu0 0
    %12842 = vmatpush1.bf16.msra.mxu0 %v12310
    %12843 = vmatprep.subr.bf16.mxu0 0
    %12844 = vmatpush1.bf16.msra.mxu0 %v12309
    %12845 = vmatprep.subr.bf16.mxu0 0
    %12846 = vmatpush1.bf16.msra.mxu0 %v12308
    %12847 = vmatprep.subr.bf16.mxu0 0
    %12848 = vmatpush1.bf16.msra.mxu0 %v12307
    %12849 = vmatprep.subr.bf16.mxu0 0
    %12850 = vmatpush1.bf16.msra.mxu0 %v12306
    %12851 = vmatprep.subr.bf16.mxu0 0
    %12852 = vmatpush1.bf16.msra.mxu0 %v12305
    %12853 = vmatprep.subr.bf16.mxu0 0
    %12854 = vmatpush2.bf16.msra.mxu0 %v12320
    %12855 = vmatprep.subr.bf16.mxu0 0
    %12856 = vmatpush2.bf16.msra.mxu0 %v12319
    %12857 = vmatprep.subr.bf16.mxu0 0
    %12858 = vmatpush2.bf16.msra.mxu0 %v12318
    %12859 = vmatprep.subr.bf16.mxu0 0
    %12860 = vmatpush2.bf16.msra.mxu0 %v12317
    %12861 = vmatprep.subr.bf16.mxu0 0
    %12862 = vmatpush2.bf16.msra.mxu0 %v12316
    %12863 = vmatprep.subr.bf16.mxu0 0
    %12864 = vmatpush2.bf16.msra.mxu0 %v12315
    %12865 = vmatprep.subr.bf16.mxu0 0
    %12866 = vmatpush2.bf16.msra.mxu0 %v12314
    %12867 = vmatprep.subr.bf16.mxu0 0
    %12868 = vmatpush2.bf16.msra.mxu0 %v12313
    %12869 = vmatprep.mubr.bf16.mxu0 %v10920
    %12870 = vmatmul.mubr.bf16.gmra.mxu0 %v10919
    %v12871 = vpop.f32.mrf.mxu0
    %v12872 = vadd.f32 %v12831, %v12871
    %v12873 = vpop.f32.mrf.mxu0
    %v12874 = vpop.f32.mrf.mxu0
    %v12875 = vadd.f32 %v12834, %v12874
    %v12876 = vpop.f32.mrf.mxu0
    %12877 = vdwg.mxu0
    %12878 = vmatprep.subr.bf16.mxu0 0
    %12879 = vmatpush1.bf16.msra.mxu0 %v12328
    %12880 = vmatprep.subr.bf16.mxu0 0
    %12881 = vmatpush1.bf16.msra.mxu0 %v12327
    %12882 = vmatprep.subr.bf16.mxu0 0
    %12883 = vmatpush1.bf16.msra.mxu0 %v12326
    %12884 = vmatprep.subr.bf16.mxu0 0
    %12885 = vmatpush1.bf16.msra.mxu0 %v12325
    %12886 = vmatprep.subr.bf16.mxu0 0
    %12887 = vmatpush1.bf16.msra.mxu0 %v12324
    %12888 = vmatprep.subr.bf16.mxu0 0
    %12889 = vmatpush1.bf16.msra.mxu0 %v12323
    %12890 = vmatprep.subr.bf16.mxu0 0
    %12891 = vmatpush1.bf16.msra.mxu0 %v12322
    %12892 = vmatprep.subr.bf16.mxu0 0
    %12893 = vmatpush1.bf16.msra.mxu0 %v12321
    %12894 = vmatprep.subr.bf16.mxu0 0
    %12895 = vmatpush2.bf16.msra.mxu0 %v12336
    %12896 = vmatprep.subr.bf16.mxu0 0
    %12897 = vmatpush2.bf16.msra.mxu0 %v12335
    %12898 = vmatprep.subr.bf16.mxu0 0
    %12899 = vmatpush2.bf16.msra.mxu0 %v12334
    %12900 = vmatprep.subr.bf16.mxu0 0
    %12901 = vmatpush2.bf16.msra.mxu0 %v12333
    %12902 = vmatprep.subr.bf16.mxu0 0
    %12903 = vmatpush2.bf16.msra.mxu0 %v12332
    %12904 = vmatprep.subr.bf16.mxu0 0
    %12905 = vmatpush2.bf16.msra.mxu0 %v12331
    %12906 = vmatprep.subr.bf16.mxu0 0
    %12907 = vmatpush2.bf16.msra.mxu0 %v12330
    %12908 = vmatprep.subr.bf16.mxu0 0
    %12909 = vmatpush2.bf16.msra.mxu0 %v12329
    %12910 = vmatprep.mubr.bf16.mxu0 %v10922
    %12911 = vmatmul.mubr.bf16.gmra.mxu0 %v10921
    %v12912 = vpop.f32.mrf.mxu0
    %v12913 = vadd.f32 %v12872, %v12912
    %v12914 = vpop.f32.mrf.mxu0
    %v12915 = vpop.f32.mrf.mxu0
    %v12916 = vadd.f32 %v12875, %v12915
    %v12917 = vpop.f32.mrf.mxu0
    %12918 = vdwg.mxu0
    %12919 = vmatprep.subr.bf16.mxu0 0
    %12920 = vmatpush1.bf16.msra.mxu0 %v12344
    %12921 = vmatprep.subr.bf16.mxu0 0
    %12922 = vmatpush1.bf16.msra.mxu0 %v12343
    %12923 = vmatprep.subr.bf16.mxu0 0
    %12924 = vmatpush1.bf16.msra.mxu0 %v12342
    %12925 = vmatprep.subr.bf16.mxu0 0
    %12926 = vmatpush1.bf16.msra.mxu0 %v12341
    %12927 = vmatprep.subr.bf16.mxu0 0
    %12928 = vmatpush1.bf16.msra.mxu0 %v12340
    %12929 = vmatprep.subr.bf16.mxu0 0
    %12930 = vmatpush1.bf16.msra.mxu0 %v12339
    %12931 = vmatprep.subr.bf16.mxu0 0
    %12932 = vmatpush1.bf16.msra.mxu0 %v12338
    %12933 = vmatprep.subr.bf16.mxu0 0
    %12934 = vmatpush1.bf16.msra.mxu0 %v12337
    %12935 = vmatprep.subr.bf16.mxu0 0
    %12936 = vmatpush2.bf16.msra.mxu0 %v12352
    %12937 = vmatprep.subr.bf16.mxu0 0
    %12938 = vmatpush2.bf16.msra.mxu0 %v12351
    %12939 = vmatprep.subr.bf16.mxu0 0
    %12940 = vmatpush2.bf16.msra.mxu0 %v12350
    %12941 = vmatprep.subr.bf16.mxu0 0
    %12942 = vmatpush2.bf16.msra.mxu0 %v12349
    %12943 = vmatprep.subr.bf16.mxu0 0
    %12944 = vmatpush2.bf16.msra.mxu0 %v12348
    %12945 = vmatprep.subr.bf16.mxu0 0
    %12946 = vmatpush2.bf16.msra.mxu0 %v12347
    %12947 = vmatprep.subr.bf16.mxu0 0
    %12948 = vmatpush2.bf16.msra.mxu0 %v12346
    %12949 = vmatprep.subr.bf16.mxu0 0
    %12950 = vmatpush2.bf16.msra.mxu0 %v12345
    %12951 = vmatprep.mubr.bf16.mxu0 %v10924
    %12952 = vmatmul.mubr.bf16.gmra.mxu0 %v10923
    %v12953 = vpop.f32.mrf.mxu0
    %v12954 = vadd.f32 %v12913, %v12953
    %v12955 = vpop.f32.mrf.mxu0
    %v12956 = vpop.f32.mrf.mxu0
    %v12957 = vadd.f32 %v12916, %v12956
    %v12958 = vpop.f32.mrf.mxu0
    %12959 = vdwg.mxu0
    %12960 = vmatprep.subr.bf16.mxu0 0
    %12961 = vmatpush1.bf16.msra.mxu0 %v12360
    %12962 = vmatprep.subr.bf16.mxu0 0
    %12963 = vmatpush1.bf16.msra.mxu0 %v12359
    %12964 = vmatprep.subr.bf16.mxu0 0
    %12965 = vmatpush1.bf16.msra.mxu0 %v12358
    %12966 = vmatprep.subr.bf16.mxu0 0
    %12967 = vmatpush1.bf16.msra.mxu0 %v12357
    %12968 = vmatprep.subr.bf16.mxu0 0
    %12969 = vmatpush1.bf16.msra.mxu0 %v12356
    %12970 = vmatprep.subr.bf16.mxu0 0
    %12971 = vmatpush1.bf16.msra.mxu0 %v12355
    %12972 = vmatprep.subr.bf16.mxu0 0
    %12973 = vmatpush1.bf16.msra.mxu0 %v12354
    %12974 = vmatprep.subr.bf16.mxu0 0
    %12975 = vmatpush1.bf16.msra.mxu0 %v12353
    %12976 = vmatprep.subr.bf16.mxu0 0
    %12977 = vmatpush2.bf16.msra.mxu0 %v12368
    %12978 = vmatprep.subr.bf16.mxu0 0
    %12979 = vmatpush2.bf16.msra.mxu0 %v12367
    %12980 = vmatprep.subr.bf16.mxu0 0
    %12981 = vmatpush2.bf16.msra.mxu0 %v12366
    %12982 = vmatprep.subr.bf16.mxu0 0
    %12983 = vmatpush2.bf16.msra.mxu0 %v12365
    %12984 = vmatprep.subr.bf16.mxu0 0
    %12985 = vmatpush2.bf16.msra.mxu0 %v12364
    %12986 = vmatprep.subr.bf16.mxu0 0
    %12987 = vmatpush2.bf16.msra.mxu0 %v12363
    %12988 = vmatprep.subr.bf16.mxu0 0
    %12989 = vmatpush2.bf16.msra.mxu0 %v12362
    %12990 = vmatprep.subr.bf16.mxu0 0
    %12991 = vmatpush2.bf16.msra.mxu0 %v12361
    %12992 = vmatprep.mubr.bf16.mxu0 %v10926
    %12993 = vmatmul.mubr.bf16.gmra.mxu0 %v10925
    %v12994 = vpop.f32.mrf.mxu0
    %v12995 = vadd.f32 %v12954, %v12994
    %v12996 = vpop.f32.mrf.mxu0
    %v12997 = vpop.f32.mrf.mxu0
    %v12998 = vadd.f32 %v12957, %v12997
    %v12999 = vpop.f32.mrf.mxu0
    %13000 = vdwg.mxu0
    %13001 = vmatprep.subr.bf16.mxu0 0
    %13002 = vmatpush1.bf16.msra.mxu0 %v12376
    %13003 = vmatprep.subr.bf16.mxu0 0
    %13004 = vmatpush1.bf16.msra.mxu0 %v12375
    %13005 = vmatprep.subr.bf16.mxu0 0
    %13006 = vmatpush1.bf16.msra.mxu0 %v12374
    %13007 = vmatprep.subr.bf16.mxu0 0
    %13008 = vmatpush1.bf16.msra.mxu0 %v12373
    %13009 = vmatprep.subr.bf16.mxu0 0
    %13010 = vmatpush1.bf16.msra.mxu0 %v12372
    %13011 = vmatprep.subr.bf16.mxu0 0
    %13012 = vmatpush1.bf16.msra.mxu0 %v12371
    %13013 = vmatprep.subr.bf16.mxu0 0
    %13014 = vmatpush1.bf16.msra.mxu0 %v12370
    %13015 = vmatprep.subr.bf16.mxu0 0
    %13016 = vmatpush1.bf16.msra.mxu0 %v12369
    %13017 = vmatprep.subr.bf16.mxu0 0
    %13018 = vmatpush2.bf16.msra.mxu0 %v12384
    %13019 = vmatprep.subr.bf16.mxu0 0
    %13020 = vmatpush2.bf16.msra.mxu0 %v12383
    %13021 = vmatprep.subr.bf16.mxu0 0
    %13022 = vmatpush2.bf16.msra.mxu0 %v12382
    %13023 = vmatprep.subr.bf16.mxu0 0
    %13024 = vmatpush2.bf16.msra.mxu0 %v12381
    %13025 = vmatprep.subr.bf16.mxu0 0
    %13026 = vmatpush2.bf16.msra.mxu0 %v12380
    %13027 = vmatprep.subr.bf16.mxu0 0
    %13028 = vmatpush2.bf16.msra.mxu0 %v12379
    %13029 = vmatprep.subr.bf16.mxu0 0
    %13030 = vmatpush2.bf16.msra.mxu0 %v12378
    %13031 = vmatprep.subr.bf16.mxu0 0
    %13032 = vmatpush2.bf16.msra.mxu0 %v12377
    %13033 = vmatprep.mubr.bf16.mxu0 %v10928
    %13034 = vmatmul.mubr.bf16.gmra.mxu0 %v10927
    %v13035 = vpop.f32.mrf.mxu0
    %v13036 = vadd.f32 %v12995, %v13035
    %v13037 = vpop.f32.mrf.mxu0
    %v13038 = vpop.f32.mrf.mxu0
    %v13039 = vadd.f32 %v12998, %v13038
    %v13040 = vpop.f32.mrf.mxu0
    %13041 = vdwg.mxu0
    %13042 = vmatprep.subr.bf16.mxu0 0
    %13043 = vmatpush1.bf16.msra.mxu0 %v12392
    %13044 = vmatprep.subr.bf16.mxu0 0
    %13045 = vmatpush1.bf16.msra.mxu0 %v12391
    %13046 = vmatprep.subr.bf16.mxu0 0
    %13047 = vmatpush1.bf16.msra.mxu0 %v12390
    %13048 = vmatprep.subr.bf16.mxu0 0
    %13049 = vmatpush1.bf16.msra.mxu0 %v12389
    %13050 = vmatprep.subr.bf16.mxu0 0
    %13051 = vmatpush1.bf16.msra.mxu0 %v12388
    %13052 = vmatprep.subr.bf16.mxu0 0
    %13053 = vmatpush1.bf16.msra.mxu0 %v12387
    %13054 = vmatprep.subr.bf16.mxu0 0
    %13055 = vmatpush1.bf16.msra.mxu0 %v12386
    %13056 = vmatprep.subr.bf16.mxu0 0
    %13057 = vmatpush1.bf16.msra.mxu0 %v12385
    %13058 = vmatprep.subr.bf16.mxu0 0
    %13059 = vmatpush2.bf16.msra.mxu0 %v12400
    %13060 = vmatprep.subr.bf16.mxu0 0
    %13061 = vmatpush2.bf16.msra.mxu0 %v12399
    %13062 = vmatprep.subr.bf16.mxu0 0
    %13063 = vmatpush2.bf16.msra.mxu0 %v12398
    %13064 = vmatprep.subr.bf16.mxu0 0
    %13065 = vmatpush2.bf16.msra.mxu0 %v12397
    %13066 = vmatprep.subr.bf16.mxu0 0
    %13067 = vmatpush2.bf16.msra.mxu0 %v12396
    %13068 = vmatprep.subr.bf16.mxu0 0
    %13069 = vmatpush2.bf16.msra.mxu0 %v12395
    %13070 = vmatprep.subr.bf16.mxu0 0
    %13071 = vmatpush2.bf16.msra.mxu0 %v12394
    %13072 = vmatprep.subr.bf16.mxu0 0
    %13073 = vmatpush2.bf16.msra.mxu0 %v12393
    %13074 = vmatprep.mubr.bf16.mxu0 %v10930
    %13075 = vmatmul.mubr.bf16.gmra.mxu0 %v10929
    %v13076 = vpop.f32.mrf.mxu0
    %v13077 = vadd.f32 %v13036, %v13076
    %v13078 = vpop.f32.mrf.mxu0
    %v13079 = vpop.f32.mrf.mxu0
    %v13080 = vadd.f32 %v13039, %v13079
    %v13081 = vpop.f32.mrf.mxu0
    %13082 = vdwg.mxu0
    %13083 = vmatprep.subr.bf16.mxu0 0
    %13084 = vmatpush1.bf16.msra.mxu0 %v12408
    %13085 = vmatprep.subr.bf16.mxu0 0
    %13086 = vmatpush1.bf16.msra.mxu0 %v12407
    %13087 = vmatprep.subr.bf16.mxu0 0
    %13088 = vmatpush1.bf16.msra.mxu0 %v12406
    %13089 = vmatprep.subr.bf16.mxu0 0
    %13090 = vmatpush1.bf16.msra.mxu0 %v12405
    %13091 = vmatprep.subr.bf16.mxu0 0
    %13092 = vmatpush1.bf16.msra.mxu0 %v12404
    %13093 = vmatprep.subr.bf16.mxu0 0
    %13094 = vmatpush1.bf16.msra.mxu0 %v12403
    %13095 = vmatprep.subr.bf16.mxu0 0
    %13096 = vmatpush1.bf16.msra.mxu0 %v12402
    %13097 = vmatprep.subr.bf16.mxu0 0
    %13098 = vmatpush1.bf16.msra.mxu0 %v12401
    %13099 = vmatprep.subr.bf16.mxu0 0
    %13100 = vmatpush2.bf16.msra.mxu0 %v12416
    %13101 = vmatprep.subr.bf16.mxu0 0
    %13102 = vmatpush2.bf16.msra.mxu0 %v12415
    %13103 = vmatprep.subr.bf16.mxu0 0
    %13104 = vmatpush2.bf16.msra.mxu0 %v12414
    %13105 = vmatprep.subr.bf16.mxu0 0
    %13106 = vmatpush2.bf16.msra.mxu0 %v12413
    %13107 = vmatprep.subr.bf16.mxu0 0
    %13108 = vmatpush2.bf16.msra.mxu0 %v12412
    %13109 = vmatprep.subr.bf16.mxu0 0
    %13110 = vmatpush2.bf16.msra.mxu0 %v12411
    %13111 = vmatprep.subr.bf16.mxu0 0
    %13112 = vmatpush2.bf16.msra.mxu0 %v12410
    %13113 = vmatprep.subr.bf16.mxu0 0
    %13114 = vmatpush2.bf16.msra.mxu0 %v12409
    %13115 = vmatprep.mubr.bf16.mxu0 %v10932
    %13116 = vmatmul.mubr.bf16.gmra.mxu0 %v10931
    %v13117 = vpop.f32.mrf.mxu0
    %v13118 = vadd.f32 %v13077, %v13117
    %v13119 = vpop.f32.mrf.mxu0
    %v13120 = vpop.f32.mrf.mxu0
    %v13121 = vadd.f32 %v13080, %v13120
    %v13122 = vpop.f32.mrf.mxu0
    %13123 = vdwg.mxu0
    %13124 = vmatprep.subr.bf16.mxu0 0
    %13125 = vmatpush1.bf16.msra.mxu0 %v12424
    %13126 = vmatprep.subr.bf16.mxu0 0
    %13127 = vmatpush1.bf16.msra.mxu0 %v12423
    %13128 = vmatprep.subr.bf16.mxu0 0
    %13129 = vmatpush1.bf16.msra.mxu0 %v12422
    %13130 = vmatprep.subr.bf16.mxu0 0
    %13131 = vmatpush1.bf16.msra.mxu0 %v12421
    %13132 = vmatprep.subr.bf16.mxu0 0
    %13133 = vmatpush1.bf16.msra.mxu0 %v12420
    %13134 = vmatprep.subr.bf16.mxu0 0
    %13135 = vmatpush1.bf16.msra.mxu0 %v12419
    %13136 = vmatprep.subr.bf16.mxu0 0
    %13137 = vmatpush1.bf16.msra.mxu0 %v12418
    %13138 = vmatprep.subr.bf16.mxu0 0
    %13139 = vmatpush1.bf16.msra.mxu0 %v12417
    %13140 = vmatprep.subr.bf16.mxu0 0
    %13141 = vmatpush2.bf16.msra.mxu0 %v12432
    %13142 = vmatprep.subr.bf16.mxu0 0
    %13143 = vmatpush2.bf16.msra.mxu0 %v12431
    %13144 = vmatprep.subr.bf16.mxu0 0
    %13145 = vmatpush2.bf16.msra.mxu0 %v12430
    %13146 = vmatprep.subr.bf16.mxu0 0
    %13147 = vmatpush2.bf16.msra.mxu0 %v12429
    %13148 = vmatprep.subr.bf16.mxu0 0
    %13149 = vmatpush2.bf16.msra.mxu0 %v12428
    %13150 = vmatprep.subr.bf16.mxu0 0
    %13151 = vmatpush2.bf16.msra.mxu0 %v12427
    %13152 = vmatprep.subr.bf16.mxu0 0
    %13153 = vmatpush2.bf16.msra.mxu0 %v12426
    %13154 = vmatprep.subr.bf16.mxu0 0
    %13155 = vmatpush2.bf16.msra.mxu0 %v12425
    %13156 = vmatprep.mubr.bf16.mxu0 %v10934
    %13157 = vmatmul.mubr.bf16.gmra.mxu0 %v10933
    %v13158 = vpop.f32.mrf.mxu0
    %v13159 = vadd.f32 %v13118, %v13158
    %v13160 = vpop.f32.mrf.mxu0
    %v13161 = vpop.f32.mrf.mxu0
    %v13162 = vadd.f32 %v13121, %v13161
    %v13163 = vpop.f32.mrf.mxu0
    %13164 = vdwg.mxu0
    %13165 = vmatprep.subr.bf16.mxu0 0
    %13166 = vmatpush1.bf16.msra.mxu0 %v12440
    %13167 = vmatprep.subr.bf16.mxu0 0
    %13168 = vmatpush1.bf16.msra.mxu0 %v12439
    %13169 = vmatprep.subr.bf16.mxu0 0
    %13170 = vmatpush1.bf16.msra.mxu0 %v12438
    %13171 = vmatprep.subr.bf16.mxu0 0
    %13172 = vmatpush1.bf16.msra.mxu0 %v12437
    %13173 = vmatprep.subr.bf16.mxu0 0
    %13174 = vmatpush1.bf16.msra.mxu0 %v12436
    %13175 = vmatprep.subr.bf16.mxu0 0
    %13176 = vmatpush1.bf16.msra.mxu0 %v12435
    %13177 = vmatprep.subr.bf16.mxu0 0
    %13178 = vmatpush1.bf16.msra.mxu0 %v12434
    %13179 = vmatprep.subr.bf16.mxu0 0
    %13180 = vmatpush1.bf16.msra.mxu0 %v12433
    %13181 = vmatprep.subr.bf16.mxu0 0
    %13182 = vmatpush2.bf16.msra.mxu0 %v12448
    %13183 = vmatprep.subr.bf16.mxu0 0
    %13184 = vmatpush2.bf16.msra.mxu0 %v12447
    %13185 = vmatprep.subr.bf16.mxu0 0
    %13186 = vmatpush2.bf16.msra.mxu0 %v12446
    %13187 = vmatprep.subr.bf16.mxu0 0
    %13188 = vmatpush2.bf16.msra.mxu0 %v12445
    %13189 = vmatprep.subr.bf16.mxu0 0
    %13190 = vmatpush2.bf16.msra.mxu0 %v12444
    %13191 = vmatprep.subr.bf16.mxu0 0
    %13192 = vmatpush2.bf16.msra.mxu0 %v12443
    %13193 = vmatprep.subr.bf16.mxu0 0
    %13194 = vmatpush2.bf16.msra.mxu0 %v12442
    %13195 = vmatprep.subr.bf16.mxu0 0
    %13196 = vmatpush2.bf16.msra.mxu0 %v12441
    %13197 = vmatprep.mubr.bf16.mxu0 %v10936
    %13198 = vmatmul.mubr.bf16.gmra.mxu0 %v10935
    %v13199 = vpop.f32.mrf.mxu0
    %v13200 = vadd.f32 %v13159, %v13199
    %v13201 = vpop.f32.mrf.mxu0
    %v13202 = vpop.f32.mrf.mxu0
    %v13203 = vadd.f32 %v13162, %v13202
    %v13204 = vpop.f32.mrf.mxu0
    %13205 = vdwg.mxu0
    %13206 = vmatprep.subr.bf16.mxu0 0
    %13207 = vmatpush1.bf16.msra.mxu0 %v12456
    %13208 = vmatprep.subr.bf16.mxu0 0
    %13209 = vmatpush1.bf16.msra.mxu0 %v12455
    %13210 = vmatprep.subr.bf16.mxu0 0
    %13211 = vmatpush1.bf16.msra.mxu0 %v12454
    %13212 = vmatprep.subr.bf16.mxu0 0
    %13213 = vmatpush1.bf16.msra.mxu0 %v12453
    %13214 = vmatprep.subr.bf16.mxu0 0
    %13215 = vmatpush1.bf16.msra.mxu0 %v12452
    %13216 = vmatprep.subr.bf16.mxu0 0
    %13217 = vmatpush1.bf16.msra.mxu0 %v12451
    %13218 = vmatprep.subr.bf16.mxu0 0
    %13219 = vmatpush1.bf16.msra.mxu0 %v12450
    %13220 = vmatprep.subr.bf16.mxu0 0
    %13221 = vmatpush1.bf16.msra.mxu0 %v12449
    %13222 = vmatprep.subr.bf16.mxu0 0
    %13223 = vmatpush2.bf16.msra.mxu0 0
    %13224 = vmatprep.subr.bf16.mxu0 0
    %13225 = vmatpush2.bf16.msra.mxu0 0
    %13226 = vmatprep.subr.bf16.mxu0 0
    %13227 = vmatpush2.bf16.msra.mxu0 0
    %13228 = vmatprep.subr.bf16.mxu0 0
    %13229 = vmatpush2.bf16.msra.mxu0 0
    %13230 = vmatprep.subr.bf16.mxu0 0
    %13231 = vmatpush2.bf16.msra.mxu0 0
    %13232 = vmatprep.subr.bf16.mxu0 0
    %13233 = vmatpush2.bf16.msra.mxu0 0
    %13234 = vmatprep.subr.bf16.mxu0 0
    %13235 = vmatpush2.bf16.msra.mxu0 0
    %13236 = vmatprep.subr.bf16.mxu0 0
    %13237 = vmatpush2.bf16.msra.mxu0 0
    %13238 = vmatprep.mubr.bf16.mxu0 0
    %13239 = vmatmul.mubr.bf16.gmra.mxu0 %v10937
    %v13240 = vpop.f32.mrf.mxu0
    %v13241 = vadd.f32 %v13200, %v13240
    %v13242 = vpop.f32.mrf.mxu0
    %v13243 = vpop.f32.mrf.mxu0
    %v13244 = vadd.f32 %v13203, %v13243
    %v13245 = vpop.f32.mrf.mxu0
    %13246 = vdwg.mxu0
    %v13247 = vmul.f32 %v13241, 0.125
    %v13248 = vmul.f32 %v13244, 0.125
    %v13249 = vadd.f32 %v13247, 0.5
    %v13250 = vadd.f32 %v13248, 0.5
    %v13251 = vmul.f32 %v13241, %v13249
    %v13252 = vmul.f32 %v13244, %v13250
    %v13253 = vadd.f32 %v13251, 0.25
    %v13254 = vadd.f32 %v13252, 0.25
    %v13255 = vld [vmem:[#allocation9] sm:$0xff]
    %v13256 = vld [vmem:[#allocation9 + $0x8] sm:$0xff]
    %v13257 = vld [vmem:[#allocation9 + $0x10] sm:$0xff]
    %v13258 = vld [vmem:[#allocation9 + $0x18] sm:$0xff]
    %v13259 = vld [vmem:[#allocation9 + $0x20] sm:$0xff]
    %v13260 = vld [vmem:[#allocation9 + $0x28] sm:$0xff]
    %v13261 = vld [vmem:[#allocation9 + $0x30] sm:$0xff]
    %v13262 = vld [vmem:[#allocation9 + $0x38] sm:$0xff]
    %v13263 = vld [vmem:[#allocation9 + $0x40] sm:$0xff]
    %v13264 = vld [vmem:[#allocation9 + $0x48] sm:$0xff]
    %v13265 = vld [vmem:[#allocation9 + $0x50] sm:$0xff]
    %v13266 = vld [vmem:[#allocation9 + $0x58] sm:$0xff]
    %v13267 = vld [vmem:[#allocation9 + $0x60] sm:$0xff]
    %v13268 = vld [vmem:[#allocation9 + $0x68] sm:$0xff]
    %v13269 = vld [vmem:[#allocation9 + $0x70] sm:$0xff]
    %v13270 = vld [vmem:[#allocation9 + $0x78] sm:$0xff]
    %v13271 = vld [vmem:[%s6] sm:$0x1]
    %v13273 = vlaneseq
    %v13274 = vshrl.u32 %v13273, 7
    %v13275 = vsub.s32 0, %v13274
    %v13276 = vrot.slane %v13271, %v13275
    %13278 = vmatprep.subr.mxu0 0.0
    %13279 = vmatpush1.msra.mxu0 %v13270
    %13280 = vmatprep.subr.mxu0 0.0
    %13281 = vmatpush1.msra.mxu0 %v13269
    %13282 = vmatprep.subr.mxu0 0.0
    %13283 = vmatpush1.msra.mxu0 %v13268
    %13284 = vmatprep.subr.mxu0 0.0
    %13285 = vmatpush1.msra.mxu0 %v13267
    %13286 = vmatprep.subr.mxu0 0.0
    %13287 = vmatpush1.msra.mxu0 %v13266
    %13288 = vmatprep.subr.mxu0 0.0
    %13289 = vmatpush1.msra.mxu0 %v13265
    %13290 = vmatprep.subr.mxu0 0.0
    %13291 = vmatpush1.msra.mxu0 %v13264
    %13292 = vmatprep.subr.mxu0 0.0
    %13293 = vmatpush1.msra.mxu0 %v13263
    %13294 = vmatprep.subr.mxu0 0.0
    %13295 = vmatpush1.msra.mxu0 %v13262
    %13296 = vmatprep.subr.mxu0 0.0
    %13297 = vmatpush1.msra.mxu0 %v13261
    %13298 = vmatprep.subr.mxu0 0.0
    %13299 = vmatpush1.msra.mxu0 %v13260
    %13300 = vmatprep.subr.mxu0 0.0
    %13301 = vmatpush1.msra.mxu0 %v13259
    %13302 = vmatprep.subr.mxu0 0.0
    %13303 = vmatpush1.msra.mxu0 %v13258
    %13304 = vmatprep.subr.mxu0 0.0
    %13305 = vmatpush1.msra.mxu0 %v13257
    %13306 = vmatprep.subr.mxu0 0.0
    %13307 = vmatpush1.msra.mxu0 %v13256
    %13308 = vmatprep.subr.mxu0 0.0
    %13309 = vmatpush1.msra.mxu0 %v13255
    %13310 = vmatprep.subr.mxu0 0.0
    %13311 = vmatpush2.msra.mxu0 0.0
    %13312 = vmatprep.subr.mxu0 0.0
    %13313 = vmatpush2.msra.mxu0 0.0
    %13314 = vmatprep.subr.mxu0 0.0
    %13315 = vmatpush2.msra.mxu0 0.0
    %13316 = vmatprep.subr.mxu0 0.0
    %13317 = vmatpush2.msra.mxu0 0.0
    %13318 = vmatprep.subr.mxu0 0.0
    %13319 = vmatpush2.msra.mxu0 0.0
    %13320 = vmatprep.subr.mxu0 0.0
    %13321 = vmatpush2.msra.mxu0 0.0
    %13322 = vmatprep.subr.mxu0 0.0
    %13323 = vmatpush2.msra.mxu0 0.0
    %13324 = vmatprep.subr.mxu0 0.0
    %13325 = vmatpush2.msra.mxu0 0.0
    %13326 = vmatprep.subr.mxu0 0.0
    %13327 = vmatpush2.msra.mxu0 0.0
    %13328 = vmatprep.subr.mxu0 0.0
    %13329 = vmatpush2.msra.mxu0 0.0
    %13330 = vmatprep.subr.mxu0 0.0
    %13331 = vmatpush2.msra.mxu0 0.0
    %13332 = vmatprep.subr.mxu0 0.0
    %13333 = vmatpush2.msra.mxu0 0.0
    %13334 = vmatprep.subr.mxu0 0.0
    %13335 = vmatpush2.msra.mxu0 0.0
    %13336 = vmatprep.subr.mxu0 0.0
    %13337 = vmatpush2.msra.mxu0 0.0
    %13338 = vmatprep.subr.mxu0 0.0
    %13339 = vmatpush2.msra.mxu0 0.0
    %13340 = vmatprep.subr.mxu0 0.0
    %13341 = vmatpush2.msra.mxu0 0.0
    %13342 = vmatprep.mubr.f32.mxu0 0.0
    %13343 = vmatmul.mubr.f32.gmra.mxu0 %v13253
    %v13344 = vpop.f32.mrf.mxu0
    %v13345 = vadd.f32 %v13276, %v13344
    %v13346 = vpop.f32.mrf.mxu0
    %13347 = vmatprep.mubr.f32.mxu0 0.0
    %13348 = vmatmul.mubr.f32.gmra.mxu0 %v13254
    %v13349 = vpop.f32.mrf.mxu0
    %v13350 = vadd.f32 %v13276, %v13349
    %v13351 = vpop.f32.mrf.mxu0
    %13352 = vdwg.mxu0
    %13353 = vst [vmem:[%s7] sm:$0xff] %v13345
    %13354 = vst [vmem:[%s7 + $0x8] sm:$0xff] %v13350
    // Predicated region
    $region50: #{forward.1} parent=1 // pred_check
      _
    $region51: #{forward.1} parent=1 // pred_check_branch
      %13356 = sbr.rel (0) target = $region53
    $region52: #{forward.1} parent=1 // pred_region
      _
    $region53: #{forward.1} parent=1 // pred_fallthru
      _
    // Predicated region
    $region54: #{forward.1} parent=1 // pred_check
      _
    $region55: #{forward.1} parent=1 // pred_check_branch
      %13358 = sbr.rel (0) target = $region57
    $region56: #{forward.1} parent=1 // pred_region
      _
    $region57: #{forward.1} parent=1 // pred_fallthru
      _
    %13359 = vsyncpa [#allocation3], 1
    %13360 = vsyncpa [#allocation5], 1
    %13361 = vsyncpa [#allocation8], 1

</llo_original>
